<compile_context>
chip_gen: v7x
topology: tpu7x:2x2x1
jax: 0.10.0
libtpu: 0.0.40
codegen_flags: <defaults>
</compile_context>

<pallas_src>
import functools

import jax
import jax.numpy as jnp
from jax.experimental import pallas as pl
from jax.experimental.pallas import tpu as pltpu


_VMEM_LIMIT_CACHE = [None]


def _vmem_limit_bytes():
    """Scoped-VMEM request: ~3/4 of physical, clamped to [32, 96] MiB."""
    if _VMEM_LIMIT_CACHE[0] is None:
        limit = 48 * 1024 * 1024                    # safe on v7x (64 MiB physical)
        try:
            cap = int(pltpu.get_tpu_info().vmem_capacity_bytes)
            limit = max(32 * 1024 * 1024, min(3 * cap // 4, 96 * 1024 * 1024))
        except Exception:
            pass
        _VMEM_LIMIT_CACHE[0] = limit
    return _VMEM_LIMIT_CACHE[0]


# ------------------------------ Pallas kernel ------------------------------

def _conv4s2_kernel(xa_ref, xb_ref, we_ref, wo_ref, b_ref, o_ref, *,
                    th, wo_len, cin, slope):
    """Fused im2col + matmul + bias (+ LeakyReLU) for Conv2d(k=4, s=2, p=1).

    Input layout: xr[b, i, q, j, p*C + c] = x_padded[b, 2i+q, 2j+p, c].
      xa_ref: (1, th, 2, Wo+1, 2*C)  row pairs i in [t*th, t*th+th)
      xb_ref: (1, 1,  2, Wo+1, 2*C)  the single extra row pair i = (t+1)*th
      we_ref: (8*C, Npad)            weight rows (kh, kw in {0,1}, cin)
      wo_ref: (8*C, Npad)            weight rows (kh, kw in {2,3}, cin)
      b_ref : (1, Npad)
      o_ref : (1, 1, th*Wo, Npad)
    """
    xa = xa_ref[0]                                        # (th, 2, Wo+1, 2C)
    xb = xb_ref[0]                                        # (1,  2, Wo+1, 2C)
    xall = jnp.concatenate([xa, xb], axis=0)              # (th+1, 2, Wo+1, 2C)
    # Channel-concat the four kh-shifted row views -> (th, Wo+1, 8C); channel
    # order (kh, kw-parity, cin) matches the pre-arranged weight layout.
    a = jnp.concatenate([xall[0:th, 0], xall[0:th, 1],
                         xall[1:th + 1, 0], xall[1:th + 1, 1]], axis=-1)
    m = th * wo_len
    k = 8 * cin
    p_even = a[:, 0:wo_len, :].reshape(m, k)              # kw in {0, 1}
    p_odd = a[:, 1:wo_len + 1, :].reshape(m, k)           # kw in {2, 3}
    acc = jnp.dot(p_even, we_ref[...], preferred_element_type=jnp.float32)
    acc = acc + jnp.dot(p_odd, wo_ref[...], preferred_element_type=jnp.float32)
    y = acc + b_ref[...]                                  # (1, Npad) broadcasts
    if slope is not None:
        y = jnp.maximum(y, slope * y)                     # LeakyReLU, 0 < slope < 1
    o_ref[0, 0] = y.astype(o_ref.dtype)


def _pick_th(ho, wo, cin, npad, out_itemsize,
             budget=24 * 1024 * 1024, m_cap=4096):
    """Largest divisor of Ho whose per-step VMEM footprint fits the budget."""
    if wo % 8 != 0:
        return 1                       # keep the in-kernel M-collapse 8-aligned
    k = 8 * cin
    best = 1
    for th in range(1, ho + 1):
        if ho % th:
            continue
        m = th * wo
        if th > 1 and m > m_cap:
            continue
        xa_b = 2 * th * 2 * (wo + 1) * 2 * cin * 2        # double-buffered bf16
        xb_b = 2 * 2 * (wo + 1) * 2 * cin * 2
        w_b = 2 * k * npad * 2                            # both weight halves
        out_b = 2 * m * npad * out_itemsize
        tmp_b = 3 * m * k * 2 + m * npad * 4              # acat/p0/p1 + f32 acc
        if th == 1 or xa_b + xb_b + w_b + out_b + tmp_b <= budget:
            best = th
    return best


def conv4s2p1(x_nhwc, layer, *, negative_slope, out_dtype):
    """Conv2d(k=4, s=2, p=1) (+ optional LeakyReLU) on NHWC activations.

    Returns (B, H/2, W/2, Npad) with Cout zero-padded to a multiple of 128.
    """
    B, H, W, C = x_nhwc.shape
    assert H % 2 == 0 and W % 2 == 0 and C == layer["cin_pad"]
    Ho, Wo = H // 2, W // 2
    npad = layer["npad"]
    k = 8 * C
    out_itemsize = jnp.dtype(out_dtype).itemsize

    # Spatial pad, then a *free* reshape exposing row-pair / col-pair phases.
    xp = jnp.pad(x_nhwc.astype(jnp.bfloat16), ((0, 0), (1, 1), (1, 1), (0, 0)))
    xr = xp.reshape(B, Ho + 1, 2, Wo + 1, 2 * C)

    th = _pick_th(Ho, Wo, C, npad, out_itemsize)
    grid = (B, Ho // th)
    kernel = functools.partial(_conv4s2_kernel, th=th, wo_len=Wo, cin=C,
                               slope=negative_slope)

    out = pl.pallas_call(
        kernel,
        out_shape=jax.ShapeDtypeStruct((B, Ho // th, th * Wo, npad), out_dtype),
        grid_spec=pltpu.PrefetchScalarGridSpec(
            num_scalar_prefetch=0,
            grid=grid,
            in_specs=[
                pl.BlockSpec((1, th, 2, Wo + 1, 2 * C),
                             lambda b, t: (b, t, 0, 0, 0)),
                pl.BlockSpec((1, 1, 2, Wo + 1, 2 * C),
                             lambda b, t: (b, (t + 1) * th, 0, 0, 0)),
                pl.BlockSpec((k, npad), lambda b, t: (0, 0)),   # VMEM-resident
                pl.BlockSpec((k, npad), lambda b, t: (0, 0)),   # VMEM-resident
                pl.BlockSpec((1, npad), lambda b, t: (0, 0)),
            ],
            out_specs=pl.BlockSpec((1, 1, th * Wo, npad),
                                   lambda b, t: (b, t, 0, 0)),
        ),
        compiler_params=pltpu.CompilerParams(
            dimension_semantics=("parallel", "parallel"),
            vmem_limit_bytes=_vmem_limit_bytes()),
        cost_estimate=pl.CostEstimate(
            flops=2 * B * Ho * Wo * npad * 16 * C,
            transcendentals=0,
            bytes_accessed=(xr.size * 2 + 2 * k * npad * 2 + npad * 4
                            + B * Ho * Wo * npad * out_itemsize)),
    )(xr, xr, layer["w_even"], layer["w_odd"], layer["bias"])

    return out.reshape(B, Ho, Wo, npad)


# --------------------------- module definition ----------------------------

def init_fc_discriminator_params(key, num_classes, ndf=64):
    """Torch-layout params: weights (Cout, Cin, 4, 4) ~ N(0, 0.02), biases = 0."""
    chans = [(num_classes, ndf), (ndf, ndf * 2), (ndf * 2, ndf * 4),
             (ndf * 4, ndf * 8), (ndf * 8, 1)]
    params = []
    for cin, cout in chans:
        key, sub = jax.random.split(key)
        w = 0.02 * jax.random.normal(sub, (cout, cin, 4, 4), dtype=jnp.float32)
        b = jnp.zeros((cout,), dtype=jnp.float32)
        params.append((w, b))
    return params


def prepare_params(params, lane=128):
    """(Cout, Cin, 4, 4) torch weights -> bf16 even/odd-kw GEMM operands.

    K rows are ordered (kh, kw-parity, cin) with cin zero-padded to the
    previous layer's padded Cout (so the lane-dense channel dim is carried
    between layers) and Cout zero-padded to a multiple of `lane`.
    """
    prepped = []
    cin_pad = int(params[0][0].shape[1])        # layer-1 input channels, unpadded
    for w, b in params:
        cout, cin = int(w.shape[0]), int(w.shape[1])
        npad = ((cout + lane - 1) // lane) * lane
        wt = jnp.transpose(w, (2, 3, 1, 0))     # (kh, kw, cin, cout)
        wt = jnp.pad(wt, ((0, 0), (0, 0), (0, cin_pad - cin), (0, npad - cout)))
        prepped.append(dict(
            w_even=wt[:, 0:2].reshape(8 * cin_pad, npad).astype(jnp.bfloat16),
            w_odd=wt[:, 2:4].reshape(8 * cin_pad, npad).astype(jnp.bfloat16),
            bias=jnp.pad(b, (0, npad - cout)).reshape(1, npad).astype(jnp.float32),
            cin_pad=cin_pad, cout=cout, npad=npad))
        cin_pad = npad
    return prepped


def fc_discriminator_forward(prepped, x_nchw):
    """x: (B, num_classes, H, W) NCHW -> logits (B, 1, H/32, W/32)."""
    x = jnp.transpose(x_nchw, (0, 2, 3, 1)).astype(jnp.bfloat16)   # NCHW->NHWC once
    n = len(prepped)
    for i, layer in enumerate(prepped):
        last = i == n - 1
        x = conv4s2p1(x, layer,
                      negative_slope=None if last else 0.2,
                      out_dtype=jnp.float32 if last else jnp.bfloat16)
    x = x[..., :prepped[-1]["cout"]]             # drop classifier lane padding
    return jnp.transpose(x, (0, 3, 1, 2))        # NHWC -> NCHW


# ------------------------------- reference --------------------------------

def _reference_forward(params, x):
    def conv(x, w, b):
        y = jax.lax.conv_general_dilated(
            x, w, window_strides=(2, 2), padding=((1, 1), (1, 1)),
            dimension_numbers=("NCHW", "OIHW", "NCHW"))
        return y + b.reshape(1, -1, 1, 1)

    (w1, b1), (w2, b2), (w3, b3), (w4, b4), (wc, bc) = params
    lrelu = lambda t: jnp.where(t >= 0, t, 0.2 * t)
    x = lrelu(conv(x, w1, b1))
    x = lrelu(conv(x, w2, b2))
    x = lrelu(conv(x, w3, b3))
    x = lrelu(conv(x, w4, b4))
    return conv(x, wc, bc)


# --------------------------------- main ------------------------------------

if __name__ == "__main__":
    key = jax.random.PRNGKey(0)
    k_in, k_par = jax.random.split(key)

    B, num_classes, H, W = 2, 4, 32, 32   # five stride-2 layers -> 1x1 output
    ndf = 16                              # small filter count for the test

    x = jax.random.uniform(k_in, (B, num_classes, H, W), dtype=jnp.float32)
    params = init_fc_discriminator_params(k_par, num_classes, ndf)
    prepped = prepare_params(params)

    fwd = jax.jit(lambda xx: fc_discriminator_forward(prepped, xx))
    out = jax.block_until_ready(fwd(x))
    assert out.shape == (B, 1, H // 32, W // 32), out.shape

    ref = jax.block_until_ready(_reference_forward(params, x))
    err = float(jnp.max(jnp.abs(out - ref)))
    scale = float(jnp.max(jnp.abs(ref)))
    # bf16 MXU inputs / bf16 intermediates with f32 accumulation vs f32 ref.
    assert err <= 5e-2 * scale + 1e-5, (err, scale)

    print("KERNEL_OK")
</pallas_src>

<mosaic_0001>
module attributes {stable_mosaic.version = 11 : i64} {
  func.func @_conv4s2_kernel(%arg0: i32, %arg1: i32, %arg2: memref<1x16x2x17x8xbf16, #tpu.memory_space<vmem>>, %arg3: memref<1x1x2x17x8xbf16, #tpu.memory_space<vmem>>, %arg4: memref<32x128xbf16, #tpu.memory_space<vmem>>, %arg5: memref<32x128xbf16, #tpu.memory_space<vmem>>, %arg6: memref<1x128xf32, #tpu.memory_space<vmem>>, %arg7: memref<1x1x256x128xbf16, #tpu.memory_space<vmem>>) attributes {dimension_semantics = [#tpu.dimension_semantics<parallel>, #tpu.dimension_semantics<parallel>], iteration_bounds = array<i64: 2, 1>, scalar_prefetch = 0 : i64, scratch_operands = 0 : i64, tpu.core_type = #tpu.core_type<tc>, window_params = [{transform_indices = @transform_0, window_bounds = array<i64: 1, 16, 2, 17, 8>}, {transform_indices = @transform_1, window_bounds = array<i64: 1, 1, 2, 17, 8>}, {pipeline_mode = #tpu.pipeline_mode<synchronous>, transform_indices = @transform_2, window_bounds = array<i64: 32, 128>}, {pipeline_mode = #tpu.pipeline_mode<synchronous>, transform_indices = @transform_3, window_bounds = array<i64: 32, 128>}, {pipeline_mode = #tpu.pipeline_mode<synchronous>, transform_indices = @transform_4, window_bounds = array<i64: 1, 128>}, {transform_indices = @transform_5, window_bounds = array<i64: 1, 1, 256, 128>}]} {
    %c0 = arith.constant 0 : index
    %c0_0 = arith.constant 0 : index
    %c0_1 = arith.constant 0 : index
    %c0_2 = arith.constant 0 : index
    %c0_3 = arith.constant 0 : index
    %0 = vector.load %arg2[%c0, %c0_0, %c0_1, %c0_2, %c0_3] : memref<1x16x2x17x8xbf16, #tpu.memory_space<vmem>>, vector<1x16x2x17x8xbf16>
    %1 = vector.shape_cast %0 : vector<1x16x2x17x8xbf16> to vector<16x2x17x8xbf16>
    %c0_4 = arith.constant 0 : index
    %c0_5 = arith.constant 0 : index
    %c0_6 = arith.constant 0 : index
    %c0_7 = arith.constant 0 : index
    %c0_8 = arith.constant 0 : index
    %2 = vector.load %arg3[%c0_4, %c0_5, %c0_6, %c0_7, %c0_8] : memref<1x1x2x17x8xbf16, #tpu.memory_space<vmem>>, vector<1x1x2x17x8xbf16>
    %3 = vector.shape_cast %2 : vector<1x1x2x17x8xbf16> to vector<1x2x17x8xbf16>
    %4 = tpu.concatenate %1, %3 in 0 : vector<16x2x17x8xbf16>, vector<1x2x17x8xbf16> -> vector<17x2x17x8xbf16>
    %5 = vector.extract_strided_slice %4 {offsets = [0, 0, 0, 0], sizes = [16, 1, 17, 8], strides = [1, 1, 1, 1]} : vector<17x2x17x8xbf16> to vector<16x1x17x8xbf16>
    %6 = vector.shape_cast %5 : vector<16x1x17x8xbf16> to vector<16x17x8xbf16>
    %7 = vector.extract_strided_slice %4 {offsets = [0, 1, 0, 0], sizes = [16, 1, 17, 8], strides = [1, 1, 1, 1]} : vector<17x2x17x8xbf16> to vector<16x1x17x8xbf16>
    %8 = vector.shape_cast %7 : vector<16x1x17x8xbf16> to vector<16x17x8xbf16>
    %9 = vector.extract_strided_slice %4 {offsets = [1, 0, 0, 0], sizes = [16, 1, 17, 8], strides = [1, 1, 1, 1]} : vector<17x2x17x8xbf16> to vector<16x1x17x8xbf16>
    %10 = vector.shape_cast %9 : vector<16x1x17x8xbf16> to vector<16x17x8xbf16>
    %11 = vector.extract_strided_slice %4 {offsets = [1, 1, 0, 0], sizes = [16, 1, 17, 8], strides = [1, 1, 1, 1]} : vector<17x2x17x8xbf16> to vector<16x1x17x8xbf16>
    %12 = vector.shape_cast %11 : vector<16x1x17x8xbf16> to vector<16x17x8xbf16>
    %13 = tpu.concatenate %6, %8, %10, %12 in 2 : vector<16x17x8xbf16>, vector<16x17x8xbf16>, vector<16x17x8xbf16>, vector<16x17x8xbf16> -> vector<16x17x32xbf16>
    %14 = vector.extract_strided_slice %13 {offsets = [0, 0, 0], sizes = [16, 16, 32], strides = [1, 1, 1]} : vector<16x17x32xbf16> to vector<16x16x32xbf16>
    %15 = vector.shape_cast %14 : vector<16x16x32xbf16> to vector<256x32xbf16>
    %16 = vector.extract_strided_slice %13 {offsets = [0, 1, 0], sizes = [16, 16, 32], strides = [1, 1, 1]} : vector<16x17x32xbf16> to vector<16x16x32xbf16>
    %17 = vector.shape_cast %16 : vector<16x16x32xbf16> to vector<256x32xbf16>
    %c0_9 = arith.constant 0 : index
    %c0_10 = arith.constant 0 : index
    %18 = vector.load %arg4[%c0_9, %c0_10] : memref<32x128xbf16, #tpu.memory_space<vmem>>, vector<32x128xbf16>
    %cst = arith.constant dense<0.000000e+00> : vector<256x128xf32>
    %19 = tpu.matmul %15, %18, %cst {dimension_numbers = #tpu.dot_dimension_numbers<[1], [0], [0], [1], [0, 0, 1, 1], [], []>} : vector<256x32xbf16>, vector<32x128xbf16>, vector<256x128xf32> -> vector<256x128xf32>
    %c0_11 = arith.constant 0 : index
    %c0_12 = arith.constant 0 : index
    %20 = vector.load %arg5[%c0_11, %c0_12] : memref<32x128xbf16, #tpu.memory_space<vmem>>, vector<32x128xbf16>
    %cst_13 = arith.constant dense<0.000000e+00> : vector<256x128xf32>
    %21 = tpu.matmul %17, %20, %cst_13 {dimension_numbers = #tpu.dot_dimension_numbers<[1], [0], [0], [1], [0, 0, 1, 1], [], []>} : vector<256x32xbf16>, vector<32x128xbf16>, vector<256x128xf32> -> vector<256x128xf32>
    %22 = arith.addf %19, %21 : vector<256x128xf32>
    %c0_14 = arith.constant 0 : index
    %c0_15 = arith.constant 0 : index
    %23 = vector.load %arg6[%c0_14, %c0_15] : memref<1x128xf32, #tpu.memory_space<vmem>>, vector<1x128xf32>
    %24 = vector.broadcast %23 : vector<1x128xf32> to vector<256x128xf32>
    %25 = arith.addf %22, %24 : vector<256x128xf32>
    %cst_16 = arith.constant 2.000000e-01 : f32
    %26 = vector.broadcast %cst_16 : f32 to vector<256x128xf32>
    %27 = arith.mulf %26, %25 : vector<256x128xf32>
    %28 = arith.maximumf %25, %27 : vector<256x128xf32>
    %29 = arith.truncf %28 : vector<256x128xf32> to vector<256x128xbf16>
    %c0_17 = arith.constant 0 : index
    %c0_18 = arith.constant 0 : index
    %c0_19 = arith.constant 0 : index
    %c0_20 = arith.constant 0 : index
    %30 = vector.load %arg7[%c0_17, %c0_18, %c0_19, %c0_20] : memref<1x1x256x128xbf16, #tpu.memory_space<vmem>>, vector<1x1x256x128xbf16>
    %31 = vector.shape_cast %30 : vector<1x1x256x128xbf16> to vector<256x128xbf16>
    %32 = vector.shape_cast %29 : vector<256x128xbf16> to vector<1x1x256x128xbf16>
    tpu.vector_store %arg7[%c0_17, %c0_18, %c0_19, %c0_20], %32 {strides = array<i32>} : memref<1x1x256x128xbf16, #tpu.memory_space<vmem>>, vector<1x1x256x128xbf16>,
    return
  }
  func.func @transform_0(%arg0: i32, %arg1: i32) -> (i32, i32, i32, i32, i32) {
    %c0_i32 = arith.constant 0 : i32
    %c0_i32_0 = arith.constant 0 : i32
    %c0_i32_1 = arith.constant 0 : i32
    %c0_i32_2 = arith.constant 0 : i32
    return %arg0, %arg1, %c0_i32, %c0_i32_0, %c0_i32_1 : i32, i32, i32, i32, i32
  }
  func.func @transform_1(%arg0: i32, %arg1: i32) -> (i32, i32, i32, i32, i32) {
    %c1_i32 = arith.constant 1 : i32
    %0 = arith.addi %arg1, %c1_i32 : i32
    %c16_i32 = arith.constant 16 : i32
    %1 = arith.muli %0, %c16_i32 : i32
    %c0_i32 = arith.constant 0 : i32
    %c0_i32_0 = arith.constant 0 : i32
    %c0_i32_1 = arith.constant 0 : i32
    %c0_i32_2 = arith.constant 0 : i32
    return %arg0, %1, %c0_i32, %c0_i32_0, %c0_i32_1 : i32, i32, i32, i32, i32
  }
  func.func @transform_2(%arg0: i32, %arg1: i32) -> (i32, i32) {
    %c0_i32 = arith.constant 0 : i32
    %c0_i32_0 = arith.constant 0 : i32
    %c0_i32_1 = arith.constant 0 : i32
    return %c0_i32, %c0_i32_0 : i32, i32
  }
  func.func @transform_3(%arg0: i32, %arg1: i32) -> (i32, i32) {
    %c0_i32 = arith.constant 0 : i32
    %c0_i32_0 = arith.constant 0 : i32
    %c0_i32_1 = arith.constant 0 : i32
    return %c0_i32, %c0_i32_0 : i32, i32
  }
  func.func @transform_4(%arg0: i32, %arg1: i32) -> (i32, i32) {
    %c0_i32 = arith.constant 0 : i32
    %c0_i32_0 = arith.constant 0 : i32
    %c0_i32_1 = arith.constant 0 : i32
    return %c0_i32, %c0_i32_0 : i32, i32
  }
  func.func @transform_5(%arg0: i32, %arg1: i32) -> (i32, i32, i32, i32) {
    %c0_i32 = arith.constant 0 : i32
    %c0_i32_0 = arith.constant 0 : i32
    %c0_i32_1 = arith.constant 0 : i32
    return %arg0, %arg1, %c0_i32, %c0_i32_0 : i32, i32, i32, i32
  }
}

module attributes {stable_mosaic.version = 11 : i64} {
  func.func @_conv4s2_kernel(%arg0: i32, %arg1: i32, %arg2: memref<1x8x2x9x256xbf16, #tpu.memory_space<vmem>>, %arg3: memref<1x1x2x9x256xbf16, #tpu.memory_space<vmem>>, %arg4: memref<1024x128xbf16, #tpu.memory_space<vmem>>, %arg5: memref<1024x128xbf16, #tpu.memory_space<vmem>>, %arg6: memref<1x128xf32, #tpu.memory_space<vmem>>, %arg7: memref<1x1x64x128xbf16, #tpu.memory_space<vmem>>) attributes {dimension_semantics = [#tpu.dimension_semantics<parallel>, #tpu.dimension_semantics<parallel>], iteration_bounds = array<i64: 2, 1>, scalar_prefetch = 0 : i64, scratch_operands = 0 : i64, tpu.core_type = #tpu.core_type<tc>, window_params = [{transform_indices = @transform_0, window_bounds = array<i64: 1, 8, 2, 9, 256>}, {transform_indices = @transform_1, window_bounds = array<i64: 1, 1, 2, 9, 256>}, {pipeline_mode = #tpu.pipeline_mode<synchronous>, transform_indices = @transform_2, window_bounds = array<i64: 1024, 128>}, {pipeline_mode = #tpu.pipeline_mode<synchronous>, transform_indices = @transform_3, window_bounds = array<i64: 1024, 128>}, {pipeline_mode = #tpu.pipeline_mode<synchronous>, transform_indices = @transform_4, window_bounds = array<i64: 1, 128>}, {transform_indices = @transform_5, window_bounds = array<i64: 1, 1, 64, 128>}]} {
    %c0 = arith.constant 0 : index
    %c0_0 = arith.constant 0 : index
    %c0_1 = arith.constant 0 : index
    %c0_2 = arith.constant 0 : index
    %c0_3 = arith.constant 0 : index
    %0 = vector.load %arg2[%c0, %c0_0, %c0_1, %c0_2, %c0_3] : memref<1x8x2x9x256xbf16, #tpu.memory_space<vmem>>, vector<1x8x2x9x256xbf16>
    %1 = vector.shape_cast %0 : vector<1x8x2x9x256xbf16> to vector<8x2x9x256xbf16>
    %c0_4 = arith.constant 0 : index
    %c0_5 = arith.constant 0 : index
    %c0_6 = arith.constant 0 : index
    %c0_7 = arith.constant 0 : index
    %c0_8 = arith.constant 0 : index
    %2 = vector.load %arg3[%c0_4, %c0_5, %c0_6, %c0_7, %c0_8] : memref<1x1x2x9x256xbf16, #tpu.memory_space<vmem>>, vector<1x1x2x9x256xbf16>
    %3 = vector.shape_cast %2 : vector<1x1x2x9x256xbf16> to vector<1x2x9x256xbf16>
    %4 = tpu.concatenate %1, %3 in 0 : vector<8x2x9x256xbf16>, vector<1x2x9x256xbf16> -> vector<9x2x9x256xbf16>
    %5 = vector.extract_strided_slice %4 {offsets = [0, 0, 0, 0], sizes = [8, 1, 9, 256], strides = [1, 1, 1, 1]} : vector<9x2x9x256xbf16> to vector<8x1x9x256xbf16>
    %6 = vector.shape_cast %5 : vector<8x1x9x256xbf16> to vector<8x9x256xbf16>
    %7 = vector.extract_strided_slice %4 {offsets = [0, 1, 0, 0], sizes = [8, 1, 9, 256], strides = [1, 1, 1, 1]} : vector<9x2x9x256xbf16> to vector<8x1x9x256xbf16>
    %8 = vector.shape_cast %7 : vector<8x1x9x256xbf16> to vector<8x9x256xbf16>
    %9 = vector.extract_strided_slice %4 {offsets = [1, 0, 0, 0], sizes = [8, 1, 9, 256], strides = [1, 1, 1, 1]} : vector<9x2x9x256xbf16> to vector<8x1x9x256xbf16>
    %10 = vector.shape_cast %9 : vector<8x1x9x256xbf16> to vector<8x9x256xbf16>
    %11 = vector.extract_strided_slice %4 {offsets = [1, 1, 0, 0], sizes = [8, 1, 9, 256], strides = [1, 1, 1, 1]} : vector<9x2x9x256xbf16> to vector<8x1x9x256xbf16>
    %12 = vector.shape_cast %11 : vector<8x1x9x256xbf16> to vector<8x9x256xbf16>
    %13 = tpu.concatenate %6, %8, %10, %12 in 2 : vector<8x9x256xbf16>, vector<8x9x256xbf16>, vector<8x9x256xbf16>, vector<8x9x256xbf16> -> vector<8x9x1024xbf16>
    %14 = vector.extract_strided_slice %13 {offsets = [0, 0, 0], sizes = [8, 8, 1024], strides = [1, 1, 1]} : vector<8x9x1024xbf16> to vector<8x8x1024xbf16>
    %15 = vector.shape_cast %14 : vector<8x8x1024xbf16> to vector<64x1024xbf16>
    %16 = vector.extract_strided_slice %13 {offsets = [0, 1, 0], sizes = [8, 8, 1024], strides = [1, 1, 1]} : vector<8x9x1024xbf16> to vector<8x8x1024xbf16>
    %17 = vector.shape_cast %16 : vector<8x8x1024xbf16> to vector<64x1024xbf16>
    %c0_9 = arith.constant 0 : index
    %c0_10 = arith.constant 0 : index
    %18 = vector.load %arg4[%c0_9, %c0_10] : memref<1024x128xbf16, #tpu.memory_space<vmem>>, vector<1024x128xbf16>
    %cst = arith.constant dense<0.000000e+00> : vector<64x128xf32>
    %19 = tpu.matmul %15, %18, %cst {dimension_numbers = #tpu.dot_dimension_numbers<[1], [0], [0], [1], [0, 0, 1, 1], [], []>} : vector<64x1024xbf16>, vector<1024x128xbf16>, vector<64x128xf32> -> vector<64x128xf32>
    %c0_11 = arith.constant 0 : index
    %c0_12 = arith.constant 0 : index
    %20 = vector.load %arg5[%c0_11, %c0_12] : memref<1024x128xbf16, #tpu.memory_space<vmem>>, vector<1024x128xbf16>
    %cst_13 = arith.constant dense<0.000000e+00> : vector<64x128xf32>
    %21 = tpu.matmul %17, %20, %cst_13 {dimension_numbers = #tpu.dot_dimension_numbers<[1], [0], [0], [1], [0, 0, 1, 1], [], []>} : vector<64x1024xbf16>, vector<1024x128xbf16>, vector<64x128xf32> -> vector<64x128xf32>
    %22 = arith.addf %19, %21 : vector<64x128xf32>
    %c0_14 = arith.constant 0 : index
    %c0_15 = arith.constant 0 : index
    %23 = vector.load %arg6[%c0_14, %c0_15] : memref<1x128xf32, #tpu.memory_space<vmem>>, vector<1x128xf32>
    %24 = vector.broadcast %23 : vector<1x128xf32> to vector<64x128xf32>
    %25 = arith.addf %22, %24 : vector<64x128xf32>
    %cst_16 = arith.constant 2.000000e-01 : f32
    %26 = vector.broadcast %cst_16 : f32 to vector<64x128xf32>
    %27 = arith.mulf %26, %25 : vector<64x128xf32>
    %28 = arith.maximumf %25, %27 : vector<64x128xf32>
    %29 = arith.truncf %28 : vector<64x128xf32> to vector<64x128xbf16>
    %c0_17 = arith.constant 0 : index
    %c0_18 = arith.constant 0 : index
    %c0_19 = arith.constant 0 : index
    %c0_20 = arith.constant 0 : index
    %30 = vector.load %arg7[%c0_17, %c0_18, %c0_19, %c0_20] : memref<1x1x64x128xbf16, #tpu.memory_space<vmem>>, vector<1x1x64x128xbf16>
    %31 = vector.shape_cast %30 : vector<1x1x64x128xbf16> to vector<64x128xbf16>
    %32 = vector.shape_cast %29 : vector<64x128xbf16> to vector<1x1x64x128xbf16>
    tpu.vector_store %arg7[%c0_17, %c0_18, %c0_19, %c0_20], %32 {strides = array<i32>} : memref<1x1x64x128xbf16, #tpu.memory_space<vmem>>, vector<1x1x64x128xbf16>,
    return
  }
  func.func @transform_0(%arg0: i32, %arg1: i32) -> (i32, i32, i32, i32, i32) {
    %c0_i32 = arith.constant 0 : i32
    %c0_i32_0 = arith.constant 0 : i32
    %c0_i32_1 = arith.constant 0 : i32
    %c0_i32_2 = arith.constant 0 : i32
    return %arg0, %arg1, %c0_i32, %c0_i32_0, %c0_i32_1 : i32, i32, i32, i32, i32
  }
  func.func @transform_1(%arg0: i32, %arg1: i32) -> (i32, i32, i32, i32, i32) {
    %c1_i32 = arith.constant 1 : i32
    %0 = arith.addi %arg1, %c1_i32 : i32
    %c8_i32 = arith.constant 8 : i32
    %1 = arith.muli %0, %c8_i32 : i32
    %c0_i32 = arith.constant 0 : i32
    %c0_i32_0 = arith.constant 0 : i32
    %c0_i32_1 = arith.constant 0 : i32
    %c0_i32_2 = arith.constant 0 : i32
    return %arg0, %1, %c0_i32, %c0_i32_0, %c0_i32_1 : i32, i32, i32, i32, i32
  }
  func.func @transform_2(%arg0: i32, %arg1: i32) -> (i32, i32) {
    %c0_i32 = arith.constant 0 : i32
    %c0_i32_0 = arith.constant 0 : i32
    %c0_i32_1 = arith.constant 0 : i32
    return %c0_i32, %c0_i32_0 : i32, i32
  }
  func.func @transform_3(%arg0: i32, %arg1: i32) -> (i32, i32) {
    %c0_i32 = arith.constant 0 : i32
    %c0_i32_0 = arith.constant 0 : i32
    %c0_i32_1 = arith.constant 0 : i32
    return %c0_i32, %c0_i32_0 : i32, i32
  }
  func.func @transform_4(%arg0: i32, %arg1: i32) -> (i32, i32) {
    %c0_i32 = arith.constant 0 : i32
    %c0_i32_0 = arith.constant 0 : i32
    %c0_i32_1 = arith.constant 0 : i32
    return %c0_i32, %c0_i32_0 : i32, i32
  }
  func.func @transform_5(%arg0: i32, %arg1: i32) -> (i32, i32, i32, i32) {
    %c0_i32 = arith.constant 0 : i32
    %c0_i32_0 = arith.constant 0 : i32
    %c0_i32_1 = arith.constant 0 : i32
    return %arg0, %arg1, %c0_i32, %c0_i32_0 : i32, i32, i32, i32
  }
}

module attributes {stable_mosaic.version = 11 : i64} {
  func.func @_conv4s2_kernel(%arg0: i32, %arg1: i32, %arg2: memref<1x1x2x5x256xbf16, #tpu.memory_space<vmem>>, %arg3: memref<1x1x2x5x256xbf16, #tpu.memory_space<vmem>>, %arg4: memref<1024x128xbf16, #tpu.memory_space<vmem>>, %arg5: memref<1024x128xbf16, #tpu.memory_space<vmem>>, %arg6: memref<1x128xf32, #tpu.memory_space<vmem>>, %arg7: memref<1x1x4x128xbf16, #tpu.memory_space<vmem>>) attributes {dimension_semantics = [#tpu.dimension_semantics<parallel>, #tpu.dimension_semantics<parallel>], iteration_bounds = array<i64: 2, 4>, scalar_prefetch = 0 : i64, scratch_operands = 0 : i64, tpu.core_type = #tpu.core_type<tc>, window_params = [{transform_indices = @transform_0, window_bounds = array<i64: 1, 1, 2, 5, 256>}, {transform_indices = @transform_1, window_bounds = array<i64: 1, 1, 2, 5, 256>}, {pipeline_mode = #tpu.pipeline_mode<synchronous>, transform_indices = @transform_2, window_bounds = array<i64: 1024, 128>}, {pipeline_mode = #tpu.pipeline_mode<synchronous>, transform_indices = @transform_3, window_bounds = array<i64: 1024, 128>}, {pipeline_mode = #tpu.pipeline_mode<synchronous>, transform_indices = @transform_4, window_bounds = array<i64: 1, 128>}, {transform_indices = @transform_5, window_bounds = array<i64: 1, 1, 4, 128>}]} {
    %c0 = arith.constant 0 : index
    %c0_0 = arith.constant 0 : index
    %c0_1 = arith.constant 0 : index
    %c0_2 = arith.constant 0 : index
    %c0_3 = arith.constant 0 : index
    %0 = vector.load %arg2[%c0, %c0_0, %c0_1, %c0_2, %c0_3] : memref<1x1x2x5x256xbf16, #tpu.memory_space<vmem>>, vector<1x1x2x5x256xbf16>
    %1 = vector.shape_cast %0 : vector<1x1x2x5x256xbf16> to vector<1x2x5x256xbf16>
    %c0_4 = arith.constant 0 : index
    %c0_5 = arith.constant 0 : index
    %c0_6 = arith.constant 0 : index
    %c0_7 = arith.constant 0 : index
    %c0_8 = arith.constant 0 : index
    %2 = vector.load %arg3[%c0_4, %c0_5, %c0_6, %c0_7, %c0_8] : memref<1x1x2x5x256xbf16, #tpu.memory_space<vmem>>, vector<1x1x2x5x256xbf16>
    %3 = vector.shape_cast %2 : vector<1x1x2x5x256xbf16> to vector<1x2x5x256xbf16>
    %4 = tpu.concatenate %1, %3 in 0 : vector<1x2x5x256xbf16>, vector<1x2x5x256xbf16> -> vector<2x2x5x256xbf16>
    %5 = vector.extract_strided_slice %4 {offsets = [0, 0, 0, 0], sizes = [1, 1, 5, 256], strides = [1, 1, 1, 1]} : vector<2x2x5x256xbf16> to vector<1x1x5x256xbf16>
    %6 = vector.shape_cast %5 : vector<1x1x5x256xbf16> to vector<1x5x256xbf16>
    %7 = vector.extract_strided_slice %4 {offsets = [0, 1, 0, 0], sizes = [1, 1, 5, 256], strides = [1, 1, 1, 1]} : vector<2x2x5x256xbf16> to vector<1x1x5x256xbf16>
    %8 = vector.shape_cast %7 : vector<1x1x5x256xbf16> to vector<1x5x256xbf16>
    %9 = vector.extract_strided_slice %4 {offsets = [1, 0, 0, 0], sizes = [1, 1, 5, 256], strides = [1, 1, 1, 1]} : vector<2x2x5x256xbf16> to vector<1x1x5x256xbf16>
    %10 = vector.shape_cast %9 : vector<1x1x5x256xbf16> to vector<1x5x256xbf16>
    %11 = vector.extract_strided_slice %4 {offsets = [1, 1, 0, 0], sizes = [1, 1, 5, 256], strides = [1, 1, 1, 1]} : vector<2x2x5x256xbf16> to vector<1x1x5x256xbf16>
    %12 = vector.shape_cast %11 : vector<1x1x5x256xbf16> to vector<1x5x256xbf16>
    %13 = tpu.concatenate %6, %8, %10, %12 in 2 : vector<1x5x256xbf16>, vector<1x5x256xbf16>, vector<1x5x256xbf16>, vector<1x5x256xbf16> -> vector<1x5x1024xbf16>
    %14 = vector.extract_strided_slice %13 {offsets = [0, 0, 0], sizes = [1, 4, 1024], strides = [1, 1, 1]} : vector<1x5x1024xbf16> to vector<1x4x1024xbf16>
    %15 = vector.shape_cast %14 : vector<1x4x1024xbf16> to vector<4x1024xbf16>
    %16 = vector.extract_strided_slice %13 {offsets = [0, 1, 0], sizes = [1, 4, 1024], strides = [1, 1, 1]} : vector<1x5x1024xbf16> to vector<1x4x1024xbf16>
    %17 = vector.shape_cast %16 : vector<1x4x1024xbf16> to vector<4x1024xbf16>
    %c0_9 = arith.constant 0 : index
    %c0_10 = arith.constant 0 : index
    %18 = vector.load %arg4[%c0_9, %c0_10] : memref<1024x128xbf16, #tpu.memory_space<vmem>>, vector<1024x128xbf16>
    %cst = arith.constant dense<0.000000e+00> : vector<4x128xf32>
    %19 = tpu.matmul %15, %18, %cst {dimension_numbers = #tpu.dot_dimension_numbers<[1], [0], [0], [1], [0, 0, 1, 1], [], []>} : vector<4x1024xbf16>, vector<1024x128xbf16>, vector<4x128xf32> -> vector<4x128xf32>
    %c0_11 = arith.constant 0 : index
    %c0_12 = arith.constant 0 : index
    %20 = vector.load %arg5[%c0_11, %c0_12] : memref<1024x128xbf16, #tpu.memory_space<vmem>>, vector<1024x128xbf16>
    %cst_13 = arith.constant dense<0.000000e+00> : vector<4x128xf32>
    %21 = tpu.matmul %17, %20, %cst_13 {dimension_numbers = #tpu.dot_dimension_numbers<[1], [0], [0], [1], [0, 0, 1, 1], [], []>} : vector<4x1024xbf16>, vector<1024x128xbf16>, vector<4x128xf32> -> vector<4x128xf32>
    %22 = arith.addf %19, %21 : vector<4x128xf32>
    %c0_14 = arith.constant 0 : index
    %c0_15 = arith.constant 0 : index
    %23 = vector.load %arg6[%c0_14, %c0_15] : memref<1x128xf32, #tpu.memory_space<vmem>>, vector<1x128xf32>
    %24 = vector.broadcast %23 : vector<1x128xf32> to vector<4x128xf32>
    %25 = arith.addf %22, %24 : vector<4x128xf32>
    %cst_16 = arith.constant 2.000000e-01 : f32
    %26 = vector.broadcast %cst_16 : f32 to vector<4x128xf32>
    %27 = arith.mulf %26, %25 : vector<4x128xf32>
    %28 = arith.maximumf %25, %27 : vector<4x128xf32>
    %29 = arith.truncf %28 : vector<4x128xf32> to vector<4x128xbf16>
    %c0_17 = arith.constant 0 : index
    %c0_18 = arith.constant 0 : index
    %c0_19 = arith.constant 0 : index
    %c0_20 = arith.constant 0 : index
    %30 = vector.load %arg7[%c0_17, %c0_18, %c0_19, %c0_20] : memref<1x1x4x128xbf16, #tpu.memory_space<vmem>>, vector<1x1x4x128xbf16>
    %31 = vector.shape_cast %30 : vector<1x1x4x128xbf16> to vector<4x128xbf16>
    %32 = vector.shape_cast %29 : vector<4x128xbf16> to vector<1x1x4x128xbf16>
    tpu.vector_store %arg7[%c0_17, %c0_18, %c0_19, %c0_20], %32 {strides = array<i32>} : memref<1x1x4x128xbf16, #tpu.memory_space<vmem>>, vector<1x1x4x128xbf16>,
    return
  }
  func.func @transform_0(%arg0: i32, %arg1: i32) -> (i32, i32, i32, i32, i32) {
    %c0_i32 = arith.constant 0 : i32
    %c0_i32_0 = arith.constant 0 : i32
    %c0_i32_1 = arith.constant 0 : i32
    %c0_i32_2 = arith.constant 0 : i32
    return %arg0, %arg1, %c0_i32, %c0_i32_0, %c0_i32_1 : i32, i32, i32, i32, i32
  }
  func.func @transform_1(%arg0: i32, %arg1: i32) -> (i32, i32, i32, i32, i32) {
    %c1_i32 = arith.constant 1 : i32
    %0 = arith.addi %arg1, %c1_i32 : i32
    %c1_i32_0 = arith.constant 1 : i32
    %1 = arith.muli %0, %c1_i32_0 : i32
    %c0_i32 = arith.constant 0 : i32
    %c0_i32_1 = arith.constant 0 : i32
    %c0_i32_2 = arith.constant 0 : i32
    %c0_i32_3 = arith.constant 0 : i32
    return %arg0, %1, %c0_i32, %c0_i32_1, %c0_i32_2 : i32, i32, i32, i32, i32
  }
  func.func @transform_2(%arg0: i32, %arg1: i32) -> (i32, i32) {
    %c0_i32 = arith.constant 0 : i32
    %c0_i32_0 = arith.constant 0 : i32
    %c0_i32_1 = arith.constant 0 : i32
    return %c0_i32, %c0_i32_0 : i32, i32
  }
  func.func @transform_3(%arg0: i32, %arg1: i32) -> (i32, i32) {
    %c0_i32 = arith.constant 0 : i32
    %c0_i32_0 = arith.constant 0 : i32
    %c0_i32_1 = arith.constant 0 : i32
    return %c0_i32, %c0_i32_0 : i32, i32
  }
  func.func @transform_4(%arg0: i32, %arg1: i32) -> (i32, i32) {
    %c0_i32 = arith.constant 0 : i32
    %c0_i32_0 = arith.constant 0 : i32
    %c0_i32_1 = arith.constant 0 : i32
    return %c0_i32, %c0_i32_0 : i32, i32
  }
  func.func @transform_5(%arg0: i32, %arg1: i32) -> (i32, i32, i32, i32) {
    %c0_i32 = arith.constant 0 : i32
    %c0_i32_0 = arith.constant 0 : i32
    %c0_i32_1 = arith.constant 0 : i32
    return %arg0, %arg1, %c0_i32, %c0_i32_0 : i32, i32, i32, i32
  }
}

module attributes {stable_mosaic.version = 11 : i64} {
  func.func @_conv4s2_kernel(%arg0: i32, %arg1: i32, %arg2: memref<1x1x2x3x256xbf16, #tpu.memory_space<vmem>>, %arg3: memref<1x1x2x3x256xbf16, #tpu.memory_space<vmem>>, %arg4: memref<1024x128xbf16, #tpu.memory_space<vmem>>, %arg5: memref<1024x128xbf16, #tpu.memory_space<vmem>>, %arg6: memref<1x128xf32, #tpu.memory_space<vmem>>, %arg7: memref<1x1x2x128xbf16, #tpu.memory_space<vmem>>) attributes {dimension_semantics = [#tpu.dimension_semantics<parallel>, #tpu.dimension_semantics<parallel>], iteration_bounds = array<i64: 2, 2>, scalar_prefetch = 0 : i64, scratch_operands = 0 : i64, tpu.core_type = #tpu.core_type<tc>, window_params = [{transform_indices = @transform_0, window_bounds = array<i64: 1, 1, 2, 3, 256>}, {transform_indices = @transform_1, window_bounds = array<i64: 1, 1, 2, 3, 256>}, {pipeline_mode = #tpu.pipeline_mode<synchronous>, transform_indices = @transform_2, window_bounds = array<i64: 1024, 128>}, {pipeline_mode = #tpu.pipeline_mode<synchronous>, transform_indices = @transform_3, window_bounds = array<i64: 1024, 128>}, {pipeline_mode = #tpu.pipeline_mode<synchronous>, transform_indices = @transform_4, window_bounds = array<i64: 1, 128>}, {transform_indices = @transform_5, window_bounds = array<i64: 1, 1, 2, 128>}]} {
    %c0 = arith.constant 0 : index
    %c0_0 = arith.constant 0 : index
    %c0_1 = arith.constant 0 : index
    %c0_2 = arith.constant 0 : index
    %c0_3 = arith.constant 0 : index
    %0 = vector.load %arg2[%c0, %c0_0, %c0_1, %c0_2, %c0_3] : memref<1x1x2x3x256xbf16, #tpu.memory_space<vmem>>, vector<1x1x2x3x256xbf16>
    %1 = vector.shape_cast %0 : vector<1x1x2x3x256xbf16> to vector<1x2x3x256xbf16>
    %c0_4 = arith.constant 0 : index
    %c0_5 = arith.constant 0 : index
    %c0_6 = arith.constant 0 : index
    %c0_7 = arith.constant 0 : index
    %c0_8 = arith.constant 0 : index
    %2 = vector.load %arg3[%c0_4, %c0_5, %c0_6, %c0_7, %c0_8] : memref<1x1x2x3x256xbf16, #tpu.memory_space<vmem>>, vector<1x1x2x3x256xbf16>
    %3 = vector.shape_cast %2 : vector<1x1x2x3x256xbf16> to vector<1x2x3x256xbf16>
    %4 = tpu.concatenate %1, %3 in 0 : vector<1x2x3x256xbf16>, vector<1x2x3x256xbf16> -> vector<2x2x3x256xbf16>
    %5 = vector.extract_strided_slice %4 {offsets = [0, 0, 0, 0], sizes = [1, 1, 3, 256], strides = [1, 1, 1, 1]} : vector<2x2x3x256xbf16> to vector<1x1x3x256xbf16>
    %6 = vector.shape_cast %5 : vector<1x1x3x256xbf16> to vector<1x3x256xbf16>
    %7 = vector.extract_strided_slice %4 {offsets = [0, 1, 0, 0], sizes = [1, 1, 3, 256], strides = [1, 1, 1, 1]} : vector<2x2x3x256xbf16> to vector<1x1x3x256xbf16>
    %8 = vector.shape_cast %7 : vector<1x1x3x256xbf16> to vector<1x3x256xbf16>
    %9 = vector.extract_strided_slice %4 {offsets = [1, 0, 0, 0], sizes = [1, 1, 3, 256], strides = [1, 1, 1, 1]} : vector<2x2x3x256xbf16> to vector<1x1x3x256xbf16>
    %10 = vector.shape_cast %9 : vector<1x1x3x256xbf16> to vector<1x3x256xbf16>
    %11 = vector.extract_strided_slice %4 {offsets = [1, 1, 0, 0], sizes = [1, 1, 3, 256], strides = [1, 1, 1, 1]} : vector<2x2x3x256xbf16> to vector<1x1x3x256xbf16>
    %12 = vector.shape_cast %11 : vector<1x1x3x256xbf16> to vector<1x3x256xbf16>
    %13 = tpu.concatenate %6, %8, %10, %12 in 2 : vector<1x3x256xbf16>, vector<1x3x256xbf16>, vector<1x3x256xbf16>, vector<1x3x256xbf16> -> vector<1x3x1024xbf16>
    %14 = vector.extract_strided_slice %13 {offsets = [0, 0, 0], sizes = [1, 2, 1024], strides = [1, 1, 1]} : vector<1x3x1024xbf16> to vector<1x2x1024xbf16>
    %15 = vector.shape_cast %14 : vector<1x2x1024xbf16> to vector<2x1024xbf16>
    %16 = vector.extract_strided_slice %13 {offsets = [0, 1, 0], sizes = [1, 2, 1024], strides = [1, 1, 1]} : vector<1x3x1024xbf16> to vector<1x2x1024xbf16>
    %17 = vector.shape_cast %16 : vector<1x2x1024xbf16> to vector<2x1024xbf16>
    %c0_9 = arith.constant 0 : index
    %c0_10 = arith.constant 0 : index
    %18 = vector.load %arg4[%c0_9, %c0_10] : memref<1024x128xbf16, #tpu.memory_space<vmem>>, vector<1024x128xbf16>
    %cst = arith.constant dense<0.000000e+00> : vector<2x128xf32>
    %19 = tpu.matmul %15, %18, %cst {dimension_numbers = #tpu.dot_dimension_numbers<[1], [0], [0], [1], [0, 0, 1, 1], [], []>} : vector<2x1024xbf16>, vector<1024x128xbf16>, vector<2x128xf32> -> vector<2x128xf32>
    %c0_11 = arith.constant 0 : index
    %c0_12 = arith.constant 0 : index
    %20 = vector.load %arg5[%c0_11, %c0_12] : memref<1024x128xbf16, #tpu.memory_space<vmem>>, vector<1024x128xbf16>
    %cst_13 = arith.constant dense<0.000000e+00> : vector<2x128xf32>
    %21 = tpu.matmul %17, %20, %cst_13 {dimension_numbers = #tpu.dot_dimension_numbers<[1], [0], [0], [1], [0, 0, 1, 1], [], []>} : vector<2x1024xbf16>, vector<1024x128xbf16>, vector<2x128xf32> -> vector<2x128xf32>
    %22 = arith.addf %19, %21 : vector<2x128xf32>
    %c0_14 = arith.constant 0 : index
    %c0_15 = arith.constant 0 : index
    %23 = vector.load %arg6[%c0_14, %c0_15] : memref<1x128xf32, #tpu.memory_space<vmem>>, vector<1x128xf32>
    %24 = vector.broadcast %23 : vector<1x128xf32> to vector<2x128xf32>
    %25 = arith.addf %22, %24 : vector<2x128xf32>
    %cst_16 = arith.constant 2.000000e-01 : f32
    %26 = vector.broadcast %cst_16 : f32 to vector<2x128xf32>
    %27 = arith.mulf %26, %25 : vector<2x128xf32>
    %28 = arith.maximumf %25, %27 : vector<2x128xf32>
    %29 = arith.truncf %28 : vector<2x128xf32> to vector<2x128xbf16>
    %c0_17 = arith.constant 0 : index
    %c0_18 = arith.constant 0 : index
    %c0_19 = arith.constant 0 : index
    %c0_20 = arith.constant 0 : index
    %30 = vector.load %arg7[%c0_17, %c0_18, %c0_19, %c0_20] : memref<1x1x2x128xbf16, #tpu.memory_space<vmem>>, vector<1x1x2x128xbf16>
    %31 = vector.shape_cast %30 : vector<1x1x2x128xbf16> to vector<2x128xbf16>
    %32 = vector.shape_cast %29 : vector<2x128xbf16> to vector<1x1x2x128xbf16>
    tpu.vector_store %arg7[%c0_17, %c0_18, %c0_19, %c0_20], %32 {strides = array<i32>} : memref<1x1x2x128xbf16, #tpu.memory_space<vmem>>, vector<1x1x2x128xbf16>,
    return
  }
  func.func @transform_0(%arg0: i32, %arg1: i32) -> (i32, i32, i32, i32, i32) {
    %c0_i32 = arith.constant 0 : i32
    %c0_i32_0 = arith.constant 0 : i32
    %c0_i32_1 = arith.constant 0 : i32
    %c0_i32_2 = arith.constant 0 : i32
    return %arg0, %arg1, %c0_i32, %c0_i32_0, %c0_i32_1 : i32, i32, i32, i32, i32
  }
  func.func @transform_1(%arg0: i32, %arg1: i32) -> (i32, i32, i32, i32, i32) {
    %c1_i32 = arith.constant 1 : i32
    %0 = arith.addi %arg1, %c1_i32 : i32
    %c1_i32_0 = arith.constant 1 : i32
    %1 = arith.muli %0, %c1_i32_0 : i32
    %c0_i32 = arith.constant 0 : i32
    %c0_i32_1 = arith.constant 0 : i32
    %c0_i32_2 = arith.constant 0 : i32
    %c0_i32_3 = arith.constant 0 : i32
    return %arg0, %1, %c0_i32, %c0_i32_1, %c0_i32_2 : i32, i32, i32, i32, i32
  }
  func.func @transform_2(%arg0: i32, %arg1: i32) -> (i32, i32) {
    %c0_i32 = arith.constant 0 : i32
    %c0_i32_0 = arith.constant 0 : i32
    %c0_i32_1 = arith.constant 0 : i32
    return %c0_i32, %c0_i32_0 : i32, i32
  }
  func.func @transform_3(%arg0: i32, %arg1: i32) -> (i32, i32) {
    %c0_i32 = arith.constant 0 : i32
    %c0_i32_0 = arith.constant 0 : i32
    %c0_i32_1 = arith.constant 0 : i32
    return %c0_i32, %c0_i32_0 : i32, i32
  }
  func.func @transform_4(%arg0: i32, %arg1: i32) -> (i32, i32) {
    %c0_i32 = arith.constant 0 : i32
    %c0_i32_0 = arith.constant 0 : i32
    %c0_i32_1 = arith.constant 0 : i32
    return %c0_i32, %c0_i32_0 : i32, i32
  }
  func.func @transform_5(%arg0: i32, %arg1: i32) -> (i32, i32, i32, i32) {
    %c0_i32 = arith.constant 0 : i32
    %c0_i32_0 = arith.constant 0 : i32
    %c0_i32_1 = arith.constant 0 : i32
    return %arg0, %arg1, %c0_i32, %c0_i32_0 : i32, i32, i32, i32
  }
}

module attributes {stable_mosaic.version = 11 : i64} {
  func.func @_conv4s2_kernel(%arg0: i32, %arg1: i32, %arg2: memref<1x1x2x2x256xbf16, #tpu.memory_space<vmem>>, %arg3: memref<1x1x2x2x256xbf16, #tpu.memory_space<vmem>>, %arg4: memref<1024x128xbf16, #tpu.memory_space<vmem>>, %arg5: memref<1024x128xbf16, #tpu.memory_space<vmem>>, %arg6: memref<1x128xf32, #tpu.memory_space<vmem>>, %arg7: memref<1x1x1x128xf32, #tpu.memory_space<vmem>>) attributes {dimension_semantics = [#tpu.dimension_semantics<parallel>, #tpu.dimension_semantics<parallel>], iteration_bounds = array<i64: 2, 1>, scalar_prefetch = 0 : i64, scratch_operands = 0 : i64, tpu.core_type = #tpu.core_type<tc>, window_params = [{transform_indices = @transform_0, window_bounds = array<i64: 1, 1, 2, 2, 256>}, {transform_indices = @transform_1, window_bounds = array<i64: 1, 1, 2, 2, 256>}, {pipeline_mode = #tpu.pipeline_mode<synchronous>, transform_indices = @transform_2, window_bounds = array<i64: 1024, 128>}, {pipeline_mode = #tpu.pipeline_mode<synchronous>, transform_indices = @transform_3, window_bounds = array<i64: 1024, 128>}, {pipeline_mode = #tpu.pipeline_mode<synchronous>, transform_indices = @transform_4, window_bounds = array<i64: 1, 128>}, {transform_indices = @transform_5, window_bounds = array<i64: 1, 1, 1, 128>}]} {
    %c0 = arith.constant 0 : index
    %c0_0 = arith.constant 0 : index
    %c0_1 = arith.constant 0 : index
    %c0_2 = arith.constant 0 : index
    %c0_3 = arith.constant 0 : index
    %0 = vector.load %arg2[%c0, %c0_0, %c0_1, %c0_2, %c0_3] : memref<1x1x2x2x256xbf16, #tpu.memory_space<vmem>>, vector<1x1x2x2x256xbf16>
    %1 = vector.shape_cast %0 : vector<1x1x2x2x256xbf16> to vector<1x2x2x256xbf16>
    %c0_4 = arith.constant 0 : index
    %c0_5 = arith.constant 0 : index
    %c0_6 = arith.constant 0 : index
    %c0_7 = arith.constant 0 : index
    %c0_8 = arith.constant 0 : index
    %2 = vector.load %arg3[%c0_4, %c0_5, %c0_6, %c0_7, %c0_8] : memref<1x1x2x2x256xbf16, #tpu.memory_space<vmem>>, vector<1x1x2x2x256xbf16>
    %3 = vector.shape_cast %2 : vector<1x1x2x2x256xbf16> to vector<1x2x2x256xbf16>
    %4 = tpu.concatenate %1, %3 in 0 : vector<1x2x2x256xbf16>, vector<1x2x2x256xbf16> -> vector<2x2x2x256xbf16>
    %5 = vector.extract_strided_slice %4 {offsets = [0, 0, 0, 0], sizes = [1, 1, 2, 256], strides = [1, 1, 1, 1]} : vector<2x2x2x256xbf16> to vector<1x1x2x256xbf16>
    %6 = vector.shape_cast %5 : vector<1x1x2x256xbf16> to vector<1x2x256xbf16>
    %7 = vector.extract_strided_slice %4 {offsets = [0, 1, 0, 0], sizes = [1, 1, 2, 256], strides = [1, 1, 1, 1]} : vector<2x2x2x256xbf16> to vector<1x1x2x256xbf16>
    %8 = vector.shape_cast %7 : vector<1x1x2x256xbf16> to vector<1x2x256xbf16>
    %9 = vector.extract_strided_slice %4 {offsets = [1, 0, 0, 0], sizes = [1, 1, 2, 256], strides = [1, 1, 1, 1]} : vector<2x2x2x256xbf16> to vector<1x1x2x256xbf16>
    %10 = vector.shape_cast %9 : vector<1x1x2x256xbf16> to vector<1x2x256xbf16>
    %11 = vector.extract_strided_slice %4 {offsets = [1, 1, 0, 0], sizes = [1, 1, 2, 256], strides = [1, 1, 1, 1]} : vector<2x2x2x256xbf16> to vector<1x1x2x256xbf16>
    %12 = vector.shape_cast %11 : vector<1x1x2x256xbf16> to vector<1x2x256xbf16>
    %13 = tpu.concatenate %6, %8, %10, %12 in 2 : vector<1x2x256xbf16>, vector<1x2x256xbf16>, vector<1x2x256xbf16>, vector<1x2x256xbf16> -> vector<1x2x1024xbf16>
    %14 = vector.extract_strided_slice %13 {offsets = [0, 0, 0], sizes = [1, 1, 1024], strides = [1, 1, 1]} : vector<1x2x1024xbf16> to vector<1x1x1024xbf16>
    %15 = vector.shape_cast %14 : vector<1x1x1024xbf16> to vector<1x1024xbf16>
    %16 = vector.extract_strided_slice %13 {offsets = [0, 1, 0], sizes = [1, 1, 1024], strides = [1, 1, 1]} : vector<1x2x1024xbf16> to vector<1x1x1024xbf16>
    %17 = vector.shape_cast %16 : vector<1x1x1024xbf16> to vector<1x1024xbf16>
    %c0_9 = arith.constant 0 : index
    %c0_10 = arith.constant 0 : index
    %18 = vector.load %arg4[%c0_9, %c0_10] : memref<1024x128xbf16, #tpu.memory_space<vmem>>, vector<1024x128xbf16>
    %cst = arith.constant dense<0.000000e+00> : vector<1x128xf32>
    %19 = tpu.matmul %15, %18, %cst {dimension_numbers = #tpu.dot_dimension_numbers<[1], [0], [0], [1], [0, 0, 1, 1], [], []>} : vector<1x1024xbf16>, vector<1024x128xbf16>, vector<1x128xf32> -> vector<1x128xf32>
    %c0_11 = arith.constant 0 : index
    %c0_12 = arith.constant 0 : index
    %20 = vector.load %arg5[%c0_11, %c0_12] : memref<1024x128xbf16, #tpu.memory_space<vmem>>, vector<1024x128xbf16>
    %cst_13 = arith.constant dense<0.000000e+00> : vector<1x128xf32>
    %21 = tpu.matmul %17, %20, %cst_13 {dimension_numbers = #tpu.dot_dimension_numbers<[1], [0], [0], [1], [0, 0, 1, 1], [], []>} : vector<1x1024xbf16>, vector<1024x128xbf16>, vector<1x128xf32> -> vector<1x128xf32>
    %22 = arith.addf %19, %21 : vector<1x128xf32>
    %c0_14 = arith.constant 0 : index
    %c0_15 = arith.constant 0 : index
    %23 = vector.load %arg6[%c0_14, %c0_15] : memref<1x128xf32, #tpu.memory_space<vmem>>, vector<1x128xf32>
    %24 = arith.addf %22, %23 : vector<1x128xf32>
    %c0_16 = arith.constant 0 : index
    %c0_17 = arith.constant 0 : index
    %c0_18 = arith.constant 0 : index
    %c0_19 = arith.constant 0 : index
    %25 = vector.load %arg7[%c0_16, %c0_17, %c0_18, %c0_19] : memref<1x1x1x128xf32, #tpu.memory_space<vmem>>, vector<1x1x1x128xf32>
    %26 = vector.shape_cast %25 : vector<1x1x1x128xf32> to vector<1x128xf32>
    %27 = vector.shape_cast %24 : vector<1x128xf32> to vector<1x1x1x128xf32>
    tpu.vector_store %arg7[%c0_16, %c0_17, %c0_18, %c0_19], %27 {strides = array<i32>} : memref<1x1x1x128xf32, #tpu.memory_space<vmem>>, vector<1x1x1x128xf32>,
    return
  }
  func.func @transform_0(%arg0: i32, %arg1: i32) -> (i32, i32, i32, i32, i32) {
    %c0_i32 = arith.constant 0 : i32
    %c0_i32_0 = arith.constant 0 : i32
    %c0_i32_1 = arith.constant 0 : i32
    %c0_i32_2 = arith.constant 0 : i32
    return %arg0, %arg1, %c0_i32, %c0_i32_0, %c0_i32_1 : i32, i32, i32, i32, i32
  }
  func.func @transform_1(%arg0: i32, %arg1: i32) -> (i32, i32, i32, i32, i32) {
    %c1_i32 = arith.constant 1 : i32
    %0 = arith.addi %arg1, %c1_i32 : i32
    %c1_i32_0 = arith.constant 1 : i32
    %1 = arith.muli %0, %c1_i32_0 : i32
    %c0_i32 = arith.constant 0 : i32
    %c0_i32_1 = arith.constant 0 : i32
    %c0_i32_2 = arith.constant 0 : i32
    %c0_i32_3 = arith.constant 0 : i32
    return %arg0, %1, %c0_i32, %c0_i32_1, %c0_i32_2 : i32, i32, i32, i32, i32
  }
  func.func @transform_2(%arg0: i32, %arg1: i32) -> (i32, i32) {
    %c0_i32 = arith.constant 0 : i32
    %c0_i32_0 = arith.constant 0 : i32
    %c0_i32_1 = arith.constant 0 : i32
    return %c0_i32, %c0_i32_0 : i32, i32
  }
  func.func @transform_3(%arg0: i32, %arg1: i32) -> (i32, i32) {
    %c0_i32 = arith.constant 0 : i32
    %c0_i32_0 = arith.constant 0 : i32
    %c0_i32_1 = arith.constant 0 : i32
    return %c0_i32, %c0_i32_0 : i32, i32
  }
  func.func @transform_4(%arg0: i32, %arg1: i32) -> (i32, i32) {
    %c0_i32 = arith.constant 0 : i32
    %c0_i32_0 = arith.constant 0 : i32
    %c0_i32_1 = arith.constant 0 : i32
    return %c0_i32, %c0_i32_0 : i32, i32
  }
  func.func @transform_5(%arg0: i32, %arg1: i32) -> (i32, i32, i32, i32) {
    %c0_i32 = arith.constant 0 : i32
    %c0_i32_0 = arith.constant 0 : i32
    %c0_i32_1 = arith.constant 0 : i32
    return %arg0, %arg1, %c0_i32, %c0_i32_0 : i32, i32, i32, i32
  }
}

</mosaic_0001>

<llo_original>
// kernel: _lambda_.5
$region0: #{_lambda_.5}
  #allocation0 [shape = 'u32[]', space=smem, size = 0x4, offset = 0x4, fixed_abs, tag = 'smem constant byte address 0x4 - core index']
  #allocation1 [shape = 'u32[144,128]{1,0:T(1,128)}', space=vmem, size = 0x12000, scoped, tag = 'internal scratch']
  %s0 = inlined_call_operand.vmem [shape: bf16[2,17,2,17,8], index: 0, kind: input, shape index: {}, may-alias: {0,1}]
  %s1 = inlined_call_operand.vmem [shape: bf16[2,17,2,17,8], index: 1, kind: input, shape index: {}, may-alias: {0,1}]
  %s2 = inlined_call_operand.vmem [shape: bf16[32,128], index: 2, kind: input, shape index: {}]
  %s3 = inlined_call_operand.vmem [shape: bf16[32,128], index: 3, kind: input, shape index: {}]
  %s4 = inlined_call_operand.vmem [shape: f32[1,128], index: 4, kind: input, shape index: {}]
  %s5 = inlined_call_operand.vmem [shape: bf16[2,1,256,128], index: 5, kind: output, shape index: {}]
  %s6 = sld [smem:[#allocation0]]
  $region53: #{_lambda_.5} parent=0
    _
  %s8 = ssub.s32 1, %s6
  %s9 = scalar_select 0, %s8, %s6
  loop: start=0, step=1, limit=4
  $region2: #{_lambda_.5} parent=0 // loop_pre_header
    _
  $region3: #{_lambda_.5} parent=0 // loop_header
    %s11 = sphi 0, %s15
    %p12 = scmp.ge.s32.totalorder %s11, 4
    %s18 = sphi 0, %s30
    %s19 = sphi 0, %s26
    %s20 = sphi 0, %s18
    %s21 = sphi 0, %s19
    %s22 = sphi 0, %s20
    %s23 = sphi 0, %s21
    %s35 = sphi 0, %s37
    %s38 = sphi 0, %s35
    %s39 = sphi 0, %s38
    %s55 = sphi 0, %s39
    %s67 = sphi 0, %s69
    %s70 = sphi 0, %s67
    %s71 = sphi 0, %s70
    %s87 = sphi 0, %s71
    %s91 = sphi 0, %s91
    %s93 = sphi 0, %s91
    %s94 = sphi 0, %s93
    %s108 = sphi 0, %s94
    %s112 = sphi 0, %s112
    %s114 = sphi 0, %s112
    %s115 = sphi 0, %s114
    %s129 = sphi 0, %s115
    %s133 = sphi 0, %s133
    %s135 = sphi 0, %s133
    %s136 = sphi 0, %s135
    %s150 = sphi 0, %s136
    %s158 = sphi 0, %s160
    %s161 = sphi 0, %s158
    %s162 = sphi 0, %s161
    %s178 = sphi 0, %s162
  $region4: #{_lambda_.5} parent=0 // loop_header_branch
    %14 = sbr.rel (%p12) target = $region8
  $region5: #{_lambda_.5} parent=0 // loop_body
    %s16 = ssub.s32 %s11, 1
    %s17 = ssub.s32 %s11, 2
    %s24 = sadd.s32 1, %s19
    %p25 = scmp.ge.s32.totalorder %s24, 1
    %s26 = scalar_select %p25, 0, %s24
    %s27 = sadd.s32 1, %s18
    %s28 = scalar_select %p25, %s27, %s18
    %p29 = scmp.ge.s32.totalorder %s28, 2
    %s30 = scalar_select %p29, 0, %s28
    %s31 = ssub.s32 %s18, %s30
    %s32 = ssub.s32 %s19, %s26
    %s33 = sor.u32 %s31, %s32
    %p34 = scmp.eq.s32.totalorder %s33, 0
    %s36 = sadd.s32 %s35, 1
    %s37 = scalar_select %p34, %s35, %s36
    %p40 = pneg %p34
    %p41 = scmp.eq.s32.totalorder %s11, 1
    %p42 = por %p40, %p41
    %p43 = scmp.ne.s32.totalorder %s35, %s38
    %p44 = scmp.eq.s32.totalorder %s11, 0
    %p45 = por %p43, %p44
    %p46 = scmp.ne.s32.totalorder %s35, %s38
    %p47 = scmp.eq.s32.totalorder %s16, 1
    %p48 = por %p46, %p47
    %p49 = scmp.ne.s32.totalorder %s38, %s39
    %p50 = scmp.eq.s32.totalorder %s16, 0
    %p51 = por %p49, %p50
    %p52 = scmp.ne.s32.totalorder %s38, %s39
    %p53 = scmp.eq.s32.totalorder %s17, 1
    %p54 = por %p52, %p53
    %p56 = scmp.ne.s32.totalorder %s39, %s55
    %p57 = scmp.eq.s32.totalorder %s17, 0
    %p58 = por %p56, %p57
    %s59 = sadd.s32 %s19, 1
    %s60 = smul.u32 %s59, 16
    %s61 = sadd.s32 %s26, 1
    %s62 = smul.u32 %s61, 16
    %s63 = ssub.s32 %s18, %s30
    %s64 = ssub.s32 %s60, %s62
    %s65 = sor.u32 %s63, %s64
    %p66 = scmp.eq.s32.totalorder %s65, 0
    %s68 = sadd.s32 %s67, 1
    %s69 = scalar_select %p66, %s67, %s68
    %p72 = pneg %p66
    %p73 = scmp.eq.s32.totalorder %s11, 1
    %p74 = por %p72, %p73
    %p75 = scmp.ne.s32.totalorder %s67, %s70
    %p76 = scmp.eq.s32.totalorder %s11, 0
    %p77 = por %p75, %p76
    %p78 = scmp.ne.s32.totalorder %s67, %s70
    %p79 = scmp.eq.s32.totalorder %s16, 1
    %p80 = por %p78, %p79
    %p81 = scmp.ne.s32.totalorder %s70, %s71
    %p82 = scmp.eq.s32.totalorder %s16, 0
    %p83 = por %p81, %p82
    %p84 = scmp.ne.s32.totalorder %s70, %s71
    %p85 = scmp.eq.s32.totalorder %s17, 1
    %p86 = por %p84, %p85
    %p88 = scmp.ne.s32.totalorder %s71, %s87
    %p89 = scmp.eq.s32.totalorder %s17, 0
    %p90 = por %p88, %p89
    %s92 = sadd.s32 %s91, 1
    %p95 = scmp.eq.s32.totalorder %s11, 1
    %p96 = scmp.ne.s32.totalorder %s91, %s93
    %p97 = scmp.eq.s32.totalorder %s11, 0
    %p98 = por %p96, %p97
    %p99 = scmp.ne.s32.totalorder %s91, %s93
    %p100 = scmp.eq.s32.totalorder %s16, 1
    %p101 = por %p99, %p100
    %p102 = scmp.ne.s32.totalorder %s93, %s94
    %p103 = scmp.eq.s32.totalorder %s16, 0
    %p104 = por %p102, %p103
    %p105 = scmp.ne.s32.totalorder %s93, %s94
    %p106 = scmp.eq.s32.totalorder %s17, 1
    %p107 = por %p105, %p106
    %p109 = scmp.ne.s32.totalorder %s94, %s108
    %p110 = scmp.eq.s32.totalorder %s17, 0
    %p111 = por %p109, %p110
    %s113 = sadd.s32 %s112, 1
    %p116 = scmp.eq.s32.totalorder %s11, 1
    %p117 = scmp.ne.s32.totalorder %s112, %s114
    %p118 = scmp.eq.s32.totalorder %s11, 0
    %p119 = por %p117, %p118
    %p120 = scmp.ne.s32.totalorder %s112, %s114
    %p121 = scmp.eq.s32.totalorder %s16, 1
    %p122 = por %p120, %p121
    %p123 = scmp.ne.s32.totalorder %s114, %s115
    %p124 = scmp.eq.s32.totalorder %s16, 0
    %p125 = por %p123, %p124
    %p126 = scmp.ne.s32.totalorder %s114, %s115
    %p127 = scmp.eq.s32.totalorder %s17, 1
    %p128 = por %p126, %p127
    %p130 = scmp.ne.s32.totalorder %s115, %s129
    %p131 = scmp.eq.s32.totalorder %s17, 0
    %p132 = por %p130, %p131
    %s134 = sadd.s32 %s133, 1
    %p137 = scmp.eq.s32.totalorder %s11, 1
    %p138 = scmp.ne.s32.totalorder %s133, %s135
    %p139 = scmp.eq.s32.totalorder %s11, 0
    %p140 = por %p138, %p139
    %p141 = scmp.ne.s32.totalorder %s133, %s135
    %p142 = scmp.eq.s32.totalorder %s16, 1
    %p143 = por %p141, %p142
    %p144 = scmp.ne.s32.totalorder %s135, %s136
    %p145 = scmp.eq.s32.totalorder %s16, 0
    %p146 = por %p144, %p145
    %p147 = scmp.ne.s32.totalorder %s135, %s136
    %p148 = scmp.eq.s32.totalorder %s17, 1
    %p149 = por %p147, %p148
    %p151 = scmp.ne.s32.totalorder %s136, %s150
    %p152 = scmp.eq.s32.totalorder %s17, 0
    %p153 = por %p151, %p152
    %s154 = ssub.s32 %s18, %s30
    %s155 = ssub.s32 %s19, %s26
    %s156 = sor.u32 %s154, %s155
    %p157 = scmp.eq.s32.totalorder %s156, 0
    %s159 = sadd.s32 %s158, 1
    %s160 = scalar_select %p157, %s158, %s159
    %p163 = pneg %p157
    %p164 = scmp.eq.s32.totalorder %s11, 1
    %p165 = por %p163, %p164
    %p166 = scmp.ne.s32.totalorder %s158, %s161
    %p167 = scmp.eq.s32.totalorder %s11, 0
    %p168 = por %p166, %p167
    %p169 = scmp.ne.s32.totalorder %s158, %s161
    %p170 = scmp.eq.s32.totalorder %s16, 1
    %p171 = por %p169, %p170
    %p172 = scmp.ne.s32.totalorder %s161, %s162
    %p173 = scmp.eq.s32.totalorder %s16, 0
    %p174 = por %p172, %p173
    %p175 = scmp.ne.s32.totalorder %s161, %s162
    %p176 = scmp.eq.s32.totalorder %s17, 1
    %p177 = por %p175, %p176
    %p179 = scmp.ne.s32.totalorder %s162, %s178
    %p180 = scmp.eq.s32.totalorder %s17, 0
    %p181 = por %p179, %p180
    %p182 = scmp.le.s32.totalorder 1, %s11
    %p183 = scmp.lt.s32.totalorder %s11, 3
    %p184 = pnand %p182, %p183
    %p185 = pneg %p184
    // Predicated region
    $region9: #{_lambda_.5} parent=5 // pred_check
      _
    $region10: #{_lambda_.5} parent=5 // pred_check_branch
      %187 = sbr.rel (%p184) target = $region12
    $region11: #{_lambda_.5} parent=5 // pred_region
      %s188 = ssub.s32 %s11, 1
      // Predicated region
      $region13: #{_lambda_.5} parent=11 // pred_check
        %p189 = pneg %p104
      $region14: #{_lambda_.5} parent=11 // pred_check_branch
        %191 = sbr.rel (%p189) target = $region16
      $region15: #{_lambda_.5} parent=11 // pred_region
        _
      $region16: #{_lambda_.5} parent=11 // pred_fallthru
        _
      // Predicated region
      $region17: #{_lambda_.5} parent=11 // pred_check
        %p192 = pneg %p125
      $region18: #{_lambda_.5} parent=11 // pred_check_branch
        %194 = sbr.rel (%p192) target = $region20
      $region19: #{_lambda_.5} parent=11 // pred_region
        _
      $region20: #{_lambda_.5} parent=11 // pred_fallthru
        _
      // Predicated region
      $region21: #{_lambda_.5} parent=11 // pred_check
        %p195 = pneg %p146
      $region22: #{_lambda_.5} parent=11 // pred_check_branch
        %197 = sbr.rel (%p195) target = $region24
      $region23: #{_lambda_.5} parent=11 // pred_region
        _
      $region24: #{_lambda_.5} parent=11 // pred_fallthru
        _
    $region12: #{_lambda_.5} parent=5 // pred_fallthru
      _
    %p198 = scmp.lt.s32.totalorder %s11, 2
    // Predicated region
    $region25: #{_lambda_.5} parent=5 // pred_check
      %p199 = pneg %p198
    $region26: #{_lambda_.5} parent=5 // pred_check_branch
      %201 = sbr.rel (%p199) target = $region28
    $region27: #{_lambda_.5} parent=5 // pred_region
      // Predicated region
      $region29: #{_lambda_.5} parent=27 // pred_check
        %p202 = pneg %p45
      $region30: #{_lambda_.5} parent=27 // pred_check_branch
        %204 = sbr.rel (%p202) target = $region32
      $region31: #{_lambda_.5} parent=27 // pred_region
        %s205 = smul.u32 16, %s19
        %s206 = ssub.s32 17, %s205
        %p207 = scmp.lt.s32.totalorder %s206, 16
        %s208 = scalar_select %p207, %s206, 16
        %s209 = smul.u32 64, %s208
        %s210 = smul.u32 %s209, 2
        %s211 = smul.u32 %s210, 3
        %p212 = scmp.lt.s32.totalorder %s18, 1
        %s213 = scalar_select %p212, %s18, 1
        %p214 = scmp.lt.s32.totalorder %s205, 16
        %s215 = scalar_select %p214, %s205, 16
        %s216 = smul.addr %s215, 6
        %s217 = smul.addr %s213, 102
        %s218 = sadd.s32 %s216, %s217
        %s219 = smul.addr %s218, 4
        %s220 = scalar_lea.vmem %s0, %s219
        %s221 = smul.u32 16, %s19
        %s222 = ssub.s32 17, %s221
        %p223 = scmp.lt.s32.totalorder %s222, 16
        %s224 = scalar_select %p223, %s222, 16
        %s225 = smul.u32 64, %s224
        %s226 = smul.u32 %s225, 2
        %s227 = smul.u32 %s226, 3
      $region32: #{_lambda_.5} parent=27 // pred_fallthru
        _
      // Predicated region
      $region33: #{_lambda_.5} parent=27 // pred_check
        %p228 = pneg %p77
      $region34: #{_lambda_.5} parent=27 // pred_check_branch
        %230 = sbr.rel (%p228) target = $region36
      $region35: #{_lambda_.5} parent=27 // pred_region
        %s231 = sadd.s32 %s19, 1
        %s232 = smul.u32 %s231, 16
        %p233 = scmp.lt.s32.totalorder %s18, 1
        %s234 = scalar_select %p233, %s18, 1
        %p235 = scmp.lt.s32.totalorder %s232, 16
        %s236 = scalar_select %p235, %s232, 16
        %s237 = smul.addr %s236, 6
        %s238 = smul.addr %s234, 102
        %s239 = sadd.s32 %s237, %s238
        %s240 = smul.addr %s239, 4
        %s241 = scalar_lea.vmem %s1, %s240
        %s242 = sadd.s32 %s19, 1
        %s243 = smul.u32 %s242, 16
      $region36: #{_lambda_.5} parent=27 // pred_fallthru
        _
    $region28: #{_lambda_.5} parent=5 // pred_fallthru
      _
    %p244 = scmp.le.s32.totalorder 1, %s11
    %p245 = scmp.lt.s32.totalorder %s11, 3
    %p246 = pnand %p244, %p245
    %p247 = pneg %p246
    // Predicated region
    $region37: #{_lambda_.5} parent=5 // pred_check
      _
    $region38: #{_lambda_.5} parent=5 // pred_check_branch
      %249 = sbr.rel (%p246) target = $region40
    $region39: #{_lambda_.5} parent=5 // pred_region
      %s250 = ssub.s32 %s11, 1
      %s251 = smul.u32 16, %s21
      %s252 = ssub.s32 17, %s251
      %p253 = scmp.lt.s32.totalorder %s252, 16
      %s254 = scalar_select %p253, %s252, 16
      %s255 = smul.u32 64, %s254
      %s256 = smul.u32 %s255, 2
      %s257 = smul.u32 %s256, 3
      %p258 = scmp.lt.s32.totalorder %s20, 1
      %s259 = scalar_select %p258, %s20, 1
      %p260 = scmp.lt.s32.totalorder %s251, 16
      %s261 = scalar_select %p260, %s251, 16
      %s262 = smul.addr %s261, 6
      %s263 = smul.addr %s259, 102
      %s264 = sadd.s32 %s262, %s263
      %s265 = smul.addr %s264, 4
      %s266 = scalar_lea.vmem %s0, %s265
      %p267 = pneg %p51
      %p268 = pneg %p48
      %s269 = sadd.s32 %s21, 1
      %s270 = smul.u32 %s269, 16
      %p271 = scmp.lt.s32.totalorder %s20, 1
      %s272 = scalar_select %p271, %s20, 1
      %p273 = scmp.lt.s32.totalorder %s270, 16
      %s274 = scalar_select %p273, %s270, 16
      %s275 = smul.addr %s274, 6
      %s276 = smul.addr %s272, 102
      %s277 = sadd.s32 %s275, %s276
      %s278 = smul.addr %s277, 4
      %s279 = scalar_lea.vmem %s1, %s278
      %p280 = pneg %p83
      %p281 = pneg %p80
      %p282 = pneg %p104
      %p283 = pneg %p101
      %p284 = pneg %p125
      %p285 = pneg %p122
      %p286 = pneg %p146
      %p287 = pneg %p143
      %p288 = pneg %p174
      %p289 = pneg %p171
      %p290 = scmp.lt.s32.totalorder %s20, 1
      %s291 = scalar_select %p290, %s20, 1
      %p292 = scmp.lt.s32.totalorder %s21, 0
      %s293 = scalar_select %p292, %s21, 0
      %s294 = smul.addr %s293, 32
      %s295 = smul.addr %s291, 32
      %s296 = sadd.s32 %s294, %s295
      %s297 = smul.addr %s296, 4
      %s298 = scalar_lea.vmem %s5, %s297
      %s299 = smul.u32 16, %s21
      %s300 = ssub.s32 17, %s299
      %p301 = scmp.lt.s32.totalorder %s300, 16
      %s302 = scalar_select %p301, %s300, 16
      %s303 = smul.u32 64, %s302
      %s304 = smul.u32 %s303, 2
      %s305 = smul.u32 %s304, 3
      %p306 = scmp.lt.s32.totalorder %s20, 1
      %s307 = scalar_select %p306, %s20, 1
      %p308 = scmp.lt.s32.totalorder %s299, 16
      %s309 = scalar_select %p308, %s299, 16
      %s310 = smul.addr %s309, 6
      %s311 = smul.addr %s307, 102
      %s312 = sadd.s32 %s310, %s311
      %s313 = smul.addr %s312, 4
      %s314 = scalar_lea.vmem %s0, %s313
      %s315 = smul.u32 16, %s21
      %s316 = ssub.s32 17, %s315
      %p317 = scmp.lt.s32.totalorder %s316, 16
      %s318 = scalar_select %p317, %s316, 16
      %s319 = smul.u32 64, %s318
      %s320 = smul.u32 %s319, 2
      %s321 = smul.u32 %s320, 3
      %s322 = sadd.s32 %s21, 1
      %s323 = smul.u32 %s322, 16
      %p324 = scmp.lt.s32.totalorder %s20, 1
      %s325 = scalar_select %p324, %s20, 1
      %p326 = scmp.lt.s32.totalorder %s323, 16
      %s327 = scalar_select %p326, %s323, 16
      %s328 = smul.addr %s327, 6
      %s329 = smul.addr %s325, 102
      %s330 = sadd.s32 %s328, %s329
      %s331 = smul.addr %s330, 4
      %s332 = scalar_lea.vmem %s1, %s331
      %s333 = sadd.s32 %s21, 1
      %s334 = smul.u32 %s333, 16
      %p335 = scmp.lt.s32.totalorder %s20, 1
      %s336 = scalar_select %p335, %s20, 1
      %p337 = scmp.lt.s32.totalorder %s21, 0
      %s338 = scalar_select %p337, %s21, 0
      %s339 = smul.addr %s338, 32
      %s340 = smul.addr %s336, 32
      %s341 = sadd.s32 %s339, %s340
      %s342 = smul.addr %s341, 4
      %s343 = scalar_lea.vmem %s5, %s342
      %v345 = vld [vmem:[%s314] sm:$0xf]
      %v346 = vld [vmem:[%s314 + $0x4] sm:$0xf]
      %v347 = vld [vmem:[%s314 + $0x8] sm:$0x1]
      %v348 = vld [vmem:[%s314 + $0xc] sm:$0xf]
      %v349 = vld [vmem:[%s314 + $0x10] sm:$0xf]
      %v350 = vld [vmem:[%s314 + $0x14] sm:$0x1]
      %v351 = vld [vmem:[%s314 + $0x18] sm:$0xf]
      %v352 = vld [vmem:[%s314 + $0x1c] sm:$0xf]
      %v353 = vld [vmem:[%s314 + $0x20] sm:$0x1]
      %v354 = vld [vmem:[%s314 + $0x24] sm:$0xf]
      %v355 = vld [vmem:[%s314 + $0x28] sm:$0xf]
      %v356 = vld [vmem:[%s314 + $0x2c] sm:$0x1]
      %v357 = vld [vmem:[%s314 + $0x30] sm:$0xf]
      %v358 = vld [vmem:[%s314 + $0x34] sm:$0xf]
      %v359 = vld [vmem:[%s314 + $0x38] sm:$0x1]
      %v360 = vld [vmem:[%s314 + $0x3c] sm:$0xf]
      %v361 = vld [vmem:[%s314 + $0x40] sm:$0xf]
      %v362 = vld [vmem:[%s314 + $0x44] sm:$0x1]
      %v363 = vld [vmem:[%s314 + $0x48] sm:$0xf]
      %v364 = vld [vmem:[%s314 + $0x4c] sm:$0xf]
      %v365 = vld [vmem:[%s314 + $0x50] sm:$0x1]
      %v366 = vld [vmem:[%s314 + $0x54] sm:$0xf]
      %v367 = vld [vmem:[%s314 + $0x58] sm:$0xf]
      %v368 = vld [vmem:[%s314 + $0x5c] sm:$0x1]
      %v369 = vld [vmem:[%s314 + $0x60] sm:$0xf]
      %v370 = vld [vmem:[%s314 + $0x64] sm:$0xf]
      %v371 = vld [vmem:[%s314 + $0x68] sm:$0x1]
      %v372 = vld [vmem:[%s314 + $0x6c] sm:$0xf]
      %v373 = vld [vmem:[%s314 + $0x70] sm:$0xf]
      %v374 = vld [vmem:[%s314 + $0x74] sm:$0x1]
      %v375 = vld [vmem:[%s314 + $0x78] sm:$0xf]
      %v376 = vld [vmem:[%s314 + $0x7c] sm:$0xf]
      %v377 = vld [vmem:[%s314 + $0x80] sm:$0x1]
      %v378 = vld [vmem:[%s314 + $0x84] sm:$0xf]
      %v379 = vld [vmem:[%s314 + $0x88] sm:$0xf]
      %v380 = vld [vmem:[%s314 + $0x8c] sm:$0x1]
      %v381 = vld [vmem:[%s314 + $0x90] sm:$0xf]
      %v382 = vld [vmem:[%s314 + $0x94] sm:$0xf]
      %v383 = vld [vmem:[%s314 + $0x98] sm:$0x1]
      %v384 = vld [vmem:[%s314 + $0x9c] sm:$0xf]
      %v385 = vld [vmem:[%s314 + $0xa0] sm:$0xf]
      %v386 = vld [vmem:[%s314 + $0xa4] sm:$0x1]
      %v387 = vld [vmem:[%s314 + $0xa8] sm:$0xf]
      %v388 = vld [vmem:[%s314 + $0xac] sm:$0xf]
      %v389 = vld [vmem:[%s314 + $0xb0] sm:$0x1]
      %v390 = vld [vmem:[%s314 + $0xb4] sm:$0xf]
      %v391 = vld [vmem:[%s314 + $0xb8] sm:$0xf]
      %v392 = vld [vmem:[%s314 + $0xbc] sm:$0x1]
      %v393 = vld [vmem:[%s314 + $0xc0] sm:$0xf]
      %v394 = vld [vmem:[%s314 + $0xc4] sm:$0xf]
      %v395 = vld [vmem:[%s314 + $0xc8] sm:$0x1]
      %v396 = vld [vmem:[%s314 + $0xcc] sm:$0xf]
      %v397 = vld [vmem:[%s314 + $0xd0] sm:$0xf]
      %v398 = vld [vmem:[%s314 + $0xd4] sm:$0x1]
      %v399 = vld [vmem:[%s314 + $0xd8] sm:$0xf]
      %v400 = vld [vmem:[%s314 + $0xdc] sm:$0xf]
      %v401 = vld [vmem:[%s314 + $0xe0] sm:$0x1]
      %v402 = vld [vmem:[%s314 + $0xe4] sm:$0xf]
      %v403 = vld [vmem:[%s314 + $0xe8] sm:$0xf]
      %v404 = vld [vmem:[%s314 + $0xec] sm:$0x1]
      %v405 = vld [vmem:[%s314 + $0xf0] sm:$0xf]
      %v406 = vld [vmem:[%s314 + $0xf4] sm:$0xf]
      %v407 = vld [vmem:[%s314 + $0xf8] sm:$0x1]
      %v408 = vld [vmem:[%s314 + $0xfc] sm:$0xf]
      %v409 = vld [vmem:[%s314 + $0x100] sm:$0xf]
      %v410 = vld [vmem:[%s314 + $0x104] sm:$0x1]
      %v411 = vld [vmem:[%s314 + $0x108] sm:$0xf]
      %v412 = vld [vmem:[%s314 + $0x10c] sm:$0xf]
      %v413 = vld [vmem:[%s314 + $0x110] sm:$0x1]
      %v414 = vld [vmem:[%s314 + $0x114] sm:$0xf]
      %v415 = vld [vmem:[%s314 + $0x118] sm:$0xf]
      %v416 = vld [vmem:[%s314 + $0x11c] sm:$0x1]
      %v417 = vld [vmem:[%s314 + $0x120] sm:$0xf]
      %v418 = vld [vmem:[%s314 + $0x124] sm:$0xf]
      %v419 = vld [vmem:[%s314 + $0x128] sm:$0x1]
      %v420 = vld [vmem:[%s314 + $0x12c] sm:$0xf]
      %v421 = vld [vmem:[%s314 + $0x130] sm:$0xf]
      %v422 = vld [vmem:[%s314 + $0x134] sm:$0x1]
      %v423 = vld [vmem:[%s314 + $0x138] sm:$0xf]
      %v424 = vld [vmem:[%s314 + $0x13c] sm:$0xf]
      %v425 = vld [vmem:[%s314 + $0x140] sm:$0x1]
      %v426 = vld [vmem:[%s314 + $0x144] sm:$0xf]
      %v427 = vld [vmem:[%s314 + $0x148] sm:$0xf]
      %v428 = vld [vmem:[%s314 + $0x14c] sm:$0x1]
      %v429 = vld [vmem:[%s314 + $0x150] sm:$0xf]
      %v430 = vld [vmem:[%s314 + $0x154] sm:$0xf]
      %v431 = vld [vmem:[%s314 + $0x158] sm:$0x1]
      %v432 = vld [vmem:[%s314 + $0x15c] sm:$0xf]
      %v433 = vld [vmem:[%s314 + $0x160] sm:$0xf]
      %v434 = vld [vmem:[%s314 + $0x164] sm:$0x1]
      %v435 = vld [vmem:[%s314 + $0x168] sm:$0xf]
      %v436 = vld [vmem:[%s314 + $0x16c] sm:$0xf]
      %v437 = vld [vmem:[%s314 + $0x170] sm:$0x1]
      %v438 = vld [vmem:[%s314 + $0x174] sm:$0xf]
      %v439 = vld [vmem:[%s314 + $0x178] sm:$0xf]
      %v440 = vld [vmem:[%s314 + $0x17c] sm:$0x1]
      %v441 = vld [vmem:[%s332] sm:$0xf]
      %v442 = vld [vmem:[%s332 + $0x4] sm:$0xf]
      %v443 = vld [vmem:[%s332 + $0x8] sm:$0x1]
      %v444 = vld [vmem:[%s332 + $0xc] sm:$0xf]
      %v445 = vld [vmem:[%s332 + $0x10] sm:$0xf]
      %v446 = vld [vmem:[%s332 + $0x14] sm:$0x1]
      %v495 = vunpack.c.l.b16 %v345
      %v496 = vunpack.c.l.b16 %v346
      %v497 = vunpack.c.l.b16 %v347
      %v498 = vunpack.c.l.b16 %v351
      %v499 = vunpack.c.l.b16 %v352
      %v500 = vunpack.c.l.b16 %v353
      %v501 = vunpack.c.l.b16 %v357
      %v502 = vunpack.c.l.b16 %v358
      %v503 = vunpack.c.l.b16 %v359
      %v504 = vunpack.c.l.b16 %v363
      %v505 = vunpack.c.l.b16 %v364
      %v506 = vunpack.c.l.b16 %v365
      %v507 = vunpack.c.l.b16 %v369
      %v508 = vunpack.c.l.b16 %v370
      %v509 = vunpack.c.l.b16 %v371
      %v510 = vunpack.c.l.b16 %v375
      %v511 = vunpack.c.l.b16 %v376
      %v512 = vunpack.c.l.b16 %v377
      %v513 = vunpack.c.l.b16 %v381
      %v514 = vunpack.c.l.b16 %v382
      %v515 = vunpack.c.l.b16 %v383
      %v516 = vunpack.c.l.b16 %v387
      %v517 = vunpack.c.l.b16 %v388
      %v518 = vunpack.c.l.b16 %v389
      %v519 = vunpack.c.l.b16 %v393
      %v520 = vunpack.c.l.b16 %v394
      %v521 = vunpack.c.l.b16 %v395
      %v522 = vunpack.c.l.b16 %v399
      %v523 = vunpack.c.l.b16 %v400
      %v524 = vunpack.c.l.b16 %v401
      %v525 = vunpack.c.l.b16 %v405
      %v526 = vunpack.c.l.b16 %v406
      %v527 = vunpack.c.l.b16 %v407
      %v528 = vunpack.c.l.b16 %v411
      %v529 = vunpack.c.l.b16 %v412
      %v530 = vunpack.c.l.b16 %v413
      %v531 = vunpack.c.l.b16 %v417
      %v532 = vunpack.c.l.b16 %v418
      %v533 = vunpack.c.l.b16 %v419
      %v534 = vunpack.c.l.b16 %v423
      %v535 = vunpack.c.l.b16 %v424
      %v536 = vunpack.c.l.b16 %v425
      %v537 = vunpack.c.l.b16 %v429
      %v538 = vunpack.c.l.b16 %v430
      %v539 = vunpack.c.l.b16 %v431
      %v540 = vunpack.c.l.b16 %v435
      %v541 = vunpack.c.l.b16 %v436
      %v542 = vunpack.c.l.b16 %v437
      %v543 = vpack.c.b16 %v496, %v495
      %v544 = vpack.c.b16 %v497, %v497
      %v545 = vpack.c.b16 %v499, %v498
      %v546 = vpack.c.b16 %v500, %v500
      %v547 = vpack.c.b16 %v502, %v501
      %v548 = vpack.c.b16 %v503, %v503
      %v549 = vpack.c.b16 %v505, %v504
      %v550 = vpack.c.b16 %v506, %v506
      %v551 = vpack.c.b16 %v508, %v507
      %v552 = vpack.c.b16 %v509, %v509
      %v553 = vpack.c.b16 %v511, %v510
      %v554 = vpack.c.b16 %v512, %v512
      %v555 = vpack.c.b16 %v514, %v513
      %v556 = vpack.c.b16 %v515, %v515
      %v557 = vpack.c.b16 %v517, %v516
      %v558 = vpack.c.b16 %v518, %v518
      %v559 = vpack.c.b16 %v520, %v519
      %v560 = vpack.c.b16 %v521, %v521
      %v561 = vpack.c.b16 %v523, %v522
      %v562 = vpack.c.b16 %v524, %v524
      %v563 = vpack.c.b16 %v526, %v525
      %v564 = vpack.c.b16 %v527, %v527
      %v565 = vpack.c.b16 %v529, %v528
      %v566 = vpack.c.b16 %v530, %v530
      %v567 = vpack.c.b16 %v532, %v531
      %v568 = vpack.c.b16 %v533, %v533
      %v569 = vpack.c.b16 %v535, %v534
      %v570 = vpack.c.b16 %v536, %v536
      %v571 = vpack.c.b16 %v538, %v537
      %v572 = vpack.c.b16 %v539, %v539
      %v573 = vpack.c.b16 %v541, %v540
      %v574 = vpack.c.b16 %v542, %v542
      %v623 = vunpack.c.l.b16 %v348
      %v624 = vunpack.c.l.b16 %v349
      %v625 = vunpack.c.l.b16 %v350
      %v626 = vunpack.c.l.b16 %v354
      %v627 = vunpack.c.l.b16 %v355
      %v628 = vunpack.c.l.b16 %v356
      %v629 = vunpack.c.l.b16 %v360
      %v630 = vunpack.c.l.b16 %v361
      %v631 = vunpack.c.l.b16 %v362
      %v632 = vunpack.c.l.b16 %v366
      %v633 = vunpack.c.l.b16 %v367
      %v634 = vunpack.c.l.b16 %v368
      %v635 = vunpack.c.l.b16 %v372
      %v636 = vunpack.c.l.b16 %v373
      %v637 = vunpack.c.l.b16 %v374
      %v638 = vunpack.c.l.b16 %v378
      %v639 = vunpack.c.l.b16 %v379
      %v640 = vunpack.c.l.b16 %v380
      %v641 = vunpack.c.l.b16 %v384
      %v642 = vunpack.c.l.b16 %v385
      %v643 = vunpack.c.l.b16 %v386
      %v644 = vunpack.c.l.b16 %v390
      %v645 = vunpack.c.l.b16 %v391
      %v646 = vunpack.c.l.b16 %v392
      %v647 = vunpack.c.l.b16 %v396
      %v648 = vunpack.c.l.b16 %v397
      %v649 = vunpack.c.l.b16 %v398
      %v650 = vunpack.c.l.b16 %v402
      %v651 = vunpack.c.l.b16 %v403
      %v652 = vunpack.c.l.b16 %v404
      %v653 = vunpack.c.l.b16 %v408
      %v654 = vunpack.c.l.b16 %v409
      %v655 = vunpack.c.l.b16 %v410
      %v656 = vunpack.c.l.b16 %v414
      %v657 = vunpack.c.l.b16 %v415
      %v658 = vunpack.c.l.b16 %v416
      %v659 = vunpack.c.l.b16 %v420
      %v660 = vunpack.c.l.b16 %v421
      %v661 = vunpack.c.l.b16 %v422
      %v662 = vunpack.c.l.b16 %v426
      %v663 = vunpack.c.l.b16 %v427
      %v664 = vunpack.c.l.b16 %v428
      %v665 = vunpack.c.l.b16 %v432
      %v666 = vunpack.c.l.b16 %v433
      %v667 = vunpack.c.l.b16 %v434
      %v668 = vunpack.c.l.b16 %v438
      %v669 = vunpack.c.l.b16 %v439
      %v670 = vunpack.c.l.b16 %v440
      %v671 = vpack.c.b16 %v624, %v623
      %v672 = vpack.c.b16 %v625, %v625
      %v673 = vpack.c.b16 %v627, %v626
      %v674 = vpack.c.b16 %v628, %v628
      %v675 = vpack.c.b16 %v630, %v629
      %v676 = vpack.c.b16 %v631, %v631
      %v677 = vpack.c.b16 %v633, %v632
      %v678 = vpack.c.b16 %v634, %v634
      %v679 = vpack.c.b16 %v636, %v635
      %v680 = vpack.c.b16 %v637, %v637
      %v681 = vpack.c.b16 %v639, %v638
      %v682 = vpack.c.b16 %v640, %v640
      %v683 = vpack.c.b16 %v642, %v641
      %v684 = vpack.c.b16 %v643, %v643
      %v685 = vpack.c.b16 %v645, %v644
      %v686 = vpack.c.b16 %v646, %v646
      %v687 = vpack.c.b16 %v648, %v647
      %v688 = vpack.c.b16 %v649, %v649
      %v689 = vpack.c.b16 %v651, %v650
      %v690 = vpack.c.b16 %v652, %v652
      %v691 = vpack.c.b16 %v654, %v653
      %v692 = vpack.c.b16 %v655, %v655
      %v693 = vpack.c.b16 %v657, %v656
      %v694 = vpack.c.b16 %v658, %v658
      %v695 = vpack.c.b16 %v660, %v659
      %v696 = vpack.c.b16 %v661, %v661
      %v697 = vpack.c.b16 %v663, %v662
      %v698 = vpack.c.b16 %v664, %v664
      %v699 = vpack.c.b16 %v666, %v665
      %v700 = vpack.c.b16 %v667, %v667
      %v701 = vpack.c.b16 %v669, %v668
      %v702 = vpack.c.b16 %v670, %v670
      %703 = vrot.lane.b32.xlu0 %v671, 8
      %v704 = vpop.permute.xlu0 %703
      %705 = vrot.lane.b32.xlu0 %v672, 8
      %v706 = vpop.permute.xlu0 %705
      %707 = vrot.lane.b32.xlu0 %v673, 8
      %v708 = vpop.permute.xlu0 %707
      %709 = vrot.lane.b32.xlu0 %v674, 8
      %v710 = vpop.permute.xlu0 %709
      %711 = vrot.lane.b32.xlu0 %v675, 8
      %v712 = vpop.permute.xlu0 %711
      %713 = vrot.lane.b32.xlu0 %v676, 8
      %v714 = vpop.permute.xlu0 %713
      %715 = vrot.lane.b32.xlu0 %v677, 8
      %v716 = vpop.permute.xlu0 %715
      %717 = vrot.lane.b32.xlu0 %v678, 8
      %v718 = vpop.permute.xlu0 %717
      %719 = vrot.lane.b32.xlu0 %v679, 8
      %v720 = vpop.permute.xlu0 %719
      %721 = vrot.lane.b32.xlu0 %v680, 8
      %v722 = vpop.permute.xlu0 %721
      %723 = vrot.lane.b32.xlu0 %v681, 8
      %v724 = vpop.permute.xlu0 %723
      %725 = vrot.lane.b32.xlu0 %v682, 8
      %v726 = vpop.permute.xlu0 %725
      %727 = vrot.lane.b32.xlu0 %v683, 8
      %v728 = vpop.permute.xlu0 %727
      %729 = vrot.lane.b32.xlu0 %v684, 8
      %v730 = vpop.permute.xlu0 %729
      %731 = vrot.lane.b32.xlu0 %v685, 8
      %v732 = vpop.permute.xlu0 %731
      %733 = vrot.lane.b32.xlu0 %v686, 8
      %v734 = vpop.permute.xlu0 %733
      %735 = vrot.lane.b32.xlu0 %v687, 8
      %v736 = vpop.permute.xlu0 %735
      %737 = vrot.lane.b32.xlu0 %v688, 8
      %v738 = vpop.permute.xlu0 %737
      %739 = vrot.lane.b32.xlu0 %v689, 8
      %v740 = vpop.permute.xlu0 %739
      %741 = vrot.lane.b32.xlu0 %v690, 8
      %v742 = vpop.permute.xlu0 %741
      %743 = vrot.lane.b32.xlu0 %v691, 8
      %v744 = vpop.permute.xlu0 %743
      %745 = vrot.lane.b32.xlu0 %v692, 8
      %v746 = vpop.permute.xlu0 %745
      %747 = vrot.lane.b32.xlu0 %v693, 8
      %v748 = vpop.permute.xlu0 %747
      %749 = vrot.lane.b32.xlu0 %v694, 8
      %v750 = vpop.permute.xlu0 %749
      %751 = vrot.lane.b32.xlu0 %v695, 8
      %v752 = vpop.permute.xlu0 %751
      %753 = vrot.lane.b32.xlu0 %v696, 8
      %v754 = vpop.permute.xlu0 %753
      %755 = vrot.lane.b32.xlu0 %v697, 8
      %v756 = vpop.permute.xlu0 %755
      %757 = vrot.lane.b32.xlu0 %v698, 8
      %v758 = vpop.permute.xlu0 %757
      %759 = vrot.lane.b32.xlu0 %v699, 8
      %v760 = vpop.permute.xlu0 %759
      %761 = vrot.lane.b32.xlu0 %v700, 8
      %v762 = vpop.permute.xlu0 %761
      %763 = vrot.lane.b32.xlu0 %v701, 8
      %v764 = vpop.permute.xlu0 %763
      %765 = vrot.lane.b32.xlu0 %v702, 8
      %v766 = vpop.permute.xlu0 %765
      %v770 = vunpack.c.l.b16 %v441
      %v771 = vunpack.c.l.b16 %v442
      %v772 = vunpack.c.l.b16 %v443
      %v773 = vpack.c.b16 %v771, %v770
      %v774 = vpack.c.b16 %v772, %v772
      %775 = vrot.lane.b32.xlu0 %v545, 16
      %v776 = vpop.permute.xlu0 %775
      %777 = vrot.lane.b32.xlu0 %v546, 16
      %v778 = vpop.permute.xlu0 %777
      %779 = vrot.lane.b32.xlu0 %v547, 16
      %v780 = vpop.permute.xlu0 %779
      %781 = vrot.lane.b32.xlu0 %v548, 16
      %v782 = vpop.permute.xlu0 %781
      %783 = vrot.lane.b32.xlu0 %v549, 16
      %v784 = vpop.permute.xlu0 %783
      %785 = vrot.lane.b32.xlu0 %v550, 16
      %v786 = vpop.permute.xlu0 %785
      %787 = vrot.lane.b32.xlu0 %v551, 16
      %v788 = vpop.permute.xlu0 %787
      %789 = vrot.lane.b32.xlu0 %v552, 16
      %v790 = vpop.permute.xlu0 %789
      %791 = vrot.lane.b32.xlu0 %v553, 16
      %v792 = vpop.permute.xlu0 %791
      %793 = vrot.lane.b32.xlu0 %v554, 16
      %v794 = vpop.permute.xlu0 %793
      %795 = vrot.lane.b32.xlu0 %v555, 16
      %v796 = vpop.permute.xlu0 %795
      %797 = vrot.lane.b32.xlu0 %v556, 16
      %v798 = vpop.permute.xlu0 %797
      %799 = vrot.lane.b32.xlu0 %v557, 16
      %v800 = vpop.permute.xlu0 %799
      %801 = vrot.lane.b32.xlu0 %v558, 16
      %v802 = vpop.permute.xlu0 %801
      %803 = vrot.lane.b32.xlu0 %v559, 16
      %v804 = vpop.permute.xlu0 %803
      %805 = vrot.lane.b32.xlu0 %v560, 16
      %v806 = vpop.permute.xlu0 %805
      %807 = vrot.lane.b32.xlu0 %v561, 16
      %v808 = vpop.permute.xlu0 %807
      %809 = vrot.lane.b32.xlu0 %v562, 16
      %v810 = vpop.permute.xlu0 %809
      %811 = vrot.lane.b32.xlu0 %v563, 16
      %v812 = vpop.permute.xlu0 %811
      %813 = vrot.lane.b32.xlu0 %v564, 16
      %v814 = vpop.permute.xlu0 %813
      %815 = vrot.lane.b32.xlu0 %v565, 16
      %v816 = vpop.permute.xlu0 %815
      %817 = vrot.lane.b32.xlu0 %v566, 16
      %v818 = vpop.permute.xlu0 %817
      %819 = vrot.lane.b32.xlu0 %v567, 16
      %v820 = vpop.permute.xlu0 %819
      %821 = vrot.lane.b32.xlu0 %v568, 16
      %v822 = vpop.permute.xlu0 %821
      %823 = vrot.lane.b32.xlu0 %v569, 16
      %v824 = vpop.permute.xlu0 %823
      %825 = vrot.lane.b32.xlu0 %v570, 16
      %v826 = vpop.permute.xlu0 %825
      %827 = vrot.lane.b32.xlu0 %v571, 16
      %v828 = vpop.permute.xlu0 %827
      %829 = vrot.lane.b32.xlu0 %v572, 16
      %v830 = vpop.permute.xlu0 %829
      %831 = vrot.lane.b32.xlu0 %v573, 16
      %v832 = vpop.permute.xlu0 %831
      %833 = vrot.lane.b32.xlu0 %v574, 16
      %v834 = vpop.permute.xlu0 %833
      %835 = vrot.lane.b32.xlu0 %v773, 16
      %v836 = vpop.permute.xlu0 %835
      %837 = vrot.lane.b32.xlu0 %v774, 16
      %v838 = vpop.permute.xlu0 %837
      %v842 = vunpack.c.l.b16 %v444
      %v843 = vunpack.c.l.b16 %v445
      %v844 = vunpack.c.l.b16 %v446
      %v845 = vpack.c.b16 %v843, %v842
      %v846 = vpack.c.b16 %v844, %v844
      %847 = vrot.lane.b32.xlu0 %v673, 24
      %v848 = vpop.permute.xlu0 %847
      %849 = vrot.lane.b32.xlu0 %v674, 24
      %v850 = vpop.permute.xlu0 %849
      %851 = vrot.lane.b32.xlu0 %v675, 24
      %v852 = vpop.permute.xlu0 %851
      %853 = vrot.lane.b32.xlu0 %v676, 24
      %v854 = vpop.permute.xlu0 %853
      %855 = vrot.lane.b32.xlu0 %v677, 24
      %v856 = vpop.permute.xlu0 %855
      %857 = vrot.lane.b32.xlu0 %v678, 24
      %v858 = vpop.permute.xlu0 %857
      %859 = vrot.lane.b32.xlu0 %v679, 24
      %v860 = vpop.permute.xlu0 %859
      %861 = vrot.lane.b32.xlu0 %v680, 24
      %v862 = vpop.permute.xlu0 %861
      %863 = vrot.lane.b32.xlu0 %v681, 24
      %v864 = vpop.permute.xlu0 %863
      %865 = vrot.lane.b32.xlu0 %v682, 24
      %v866 = vpop.permute.xlu0 %865
      %867 = vrot.lane.b32.xlu0 %v683, 24
      %v868 = vpop.permute.xlu0 %867
      %869 = vrot.lane.b32.xlu0 %v684, 24
      %v870 = vpop.permute.xlu0 %869
      %871 = vrot.lane.b32.xlu0 %v685, 24
      %v872 = vpop.permute.xlu0 %871
      %873 = vrot.lane.b32.xlu0 %v686, 24
      %v874 = vpop.permute.xlu0 %873
      %875 = vrot.lane.b32.xlu0 %v687, 24
      %v876 = vpop.permute.xlu0 %875
      %877 = vrot.lane.b32.xlu0 %v688, 24
      %v878 = vpop.permute.xlu0 %877
      %879 = vrot.lane.b32.xlu0 %v689, 24
      %v880 = vpop.permute.xlu0 %879
      %881 = vrot.lane.b32.xlu0 %v690, 24
      %v882 = vpop.permute.xlu0 %881
      %883 = vrot.lane.b32.xlu0 %v691, 24
      %v884 = vpop.permute.xlu0 %883
      %885 = vrot.lane.b32.xlu0 %v692, 24
      %v886 = vpop.permute.xlu0 %885
      %887 = vrot.lane.b32.xlu0 %v693, 24
      %v888 = vpop.permute.xlu0 %887
      %889 = vrot.lane.b32.xlu0 %v694, 24
      %v890 = vpop.permute.xlu0 %889
      %891 = vrot.lane.b32.xlu0 %v695, 24
      %v892 = vpop.permute.xlu0 %891
      %893 = vrot.lane.b32.xlu0 %v696, 24
      %v894 = vpop.permute.xlu0 %893
      %895 = vrot.lane.b32.xlu0 %v697, 24
      %v896 = vpop.permute.xlu0 %895
      %897 = vrot.lane.b32.xlu0 %v698, 24
      %v898 = vpop.permute.xlu0 %897
      %899 = vrot.lane.b32.xlu0 %v699, 24
      %v900 = vpop.permute.xlu0 %899
      %901 = vrot.lane.b32.xlu0 %v700, 24
      %v902 = vpop.permute.xlu0 %901
      %903 = vrot.lane.b32.xlu0 %v701, 24
      %v904 = vpop.permute.xlu0 %903
      %905 = vrot.lane.b32.xlu0 %v702, 24
      %v906 = vpop.permute.xlu0 %905
      %907 = vrot.lane.b32.xlu0 %v845, 24
      %v908 = vpop.permute.xlu0 %907
      %909 = vrot.lane.b32.xlu0 %v846, 24
      %v910 = vpop.permute.xlu0 %909
      %vm911 = vcmask 64512
      %v914 = vsel %vm911, %v543, %v704
      %v917 = vsel %vm911, %v544, %v706
      %v920 = vsel %vm911, %v545, %v708
      %v923 = vsel %vm911, %v546, %v710
      %v926 = vsel %vm911, %v547, %v712
      %v929 = vsel %vm911, %v548, %v714
      %v932 = vsel %vm911, %v549, %v716
      %v935 = vsel %vm911, %v550, %v718
      %v938 = vsel %vm911, %v551, %v720
      %v941 = vsel %vm911, %v552, %v722
      %v944 = vsel %vm911, %v553, %v724
      %v947 = vsel %vm911, %v554, %v726
      %v950 = vsel %vm911, %v555, %v728
      %v953 = vsel %vm911, %v556, %v730
      %v956 = vsel %vm911, %v557, %v732
      %v959 = vsel %vm911, %v558, %v734
      %v962 = vsel %vm911, %v559, %v736
      %v965 = vsel %vm911, %v560, %v738
      %v968 = vsel %vm911, %v561, %v740
      %v971 = vsel %vm911, %v562, %v742
      %v974 = vsel %vm911, %v563, %v744
      %v977 = vsel %vm911, %v564, %v746
      %v980 = vsel %vm911, %v565, %v748
      %v983 = vsel %vm911, %v566, %v750
      %v986 = vsel %vm911, %v567, %v752
      %v989 = vsel %vm911, %v568, %v754
      %v992 = vsel %vm911, %v569, %v756
      %v995 = vsel %vm911, %v570, %v758
      %v998 = vsel %vm911, %v571, %v760
      %v1001 = vsel %vm911, %v572, %v762
      %v1004 = vsel %vm911, %v573, %v764
      %v1007 = vsel %vm911, %v574, %v766
      %vm1008 = vcmask 130048
      %v1010 = vsel %vm1008, %v914, %v776
      %v1012 = vsel %vm1008, %v917, %v778
      %v1014 = vsel %vm1008, %v920, %v780
      %v1016 = vsel %vm1008, %v923, %v782
      %v1018 = vsel %vm1008, %v926, %v784
      %v1020 = vsel %vm1008, %v929, %v786
      %v1022 = vsel %vm1008, %v932, %v788
      %v1024 = vsel %vm1008, %v935, %v790
      %v1026 = vsel %vm1008, %v938, %v792
      %v1028 = vsel %vm1008, %v941, %v794
      %v1030 = vsel %vm1008, %v944, %v796
      %v1032 = vsel %vm1008, %v947, %v798
      %v1034 = vsel %vm1008, %v950, %v800
      %v1036 = vsel %vm1008, %v953, %v802
      %v1038 = vsel %vm1008, %v956, %v804
      %v1040 = vsel %vm1008, %v959, %v806
      %v1042 = vsel %vm1008, %v962, %v808
      %v1044 = vsel %vm1008, %v965, %v810
      %v1046 = vsel %vm1008, %v968, %v812
      %v1048 = vsel %vm1008, %v971, %v814
      %v1050 = vsel %vm1008, %v974, %v816
      %v1052 = vsel %vm1008, %v977, %v818
      %v1054 = vsel %vm1008, %v980, %v820
      %v1056 = vsel %vm1008, %v983, %v822
      %v1058 = vsel %vm1008, %v986, %v824
      %v1060 = vsel %vm1008, %v989, %v826
      %v1062 = vsel %vm1008, %v992, %v828
      %v1064 = vsel %vm1008, %v995, %v830
      %v1066 = vsel %vm1008, %v998, %v832
      %v1068 = vsel %vm1008, %v1001, %v834
      %v1070 = vsel %vm1008, %v1004, %v836
      %v1072 = vsel %vm1008, %v1007, %v838
      %vm1073 = vcmask 195584
      %v1075 = vsel %vm1073, %v1010, %v848
      %v1077 = vsel %vm1073, %v1012, %v850
      %v1079 = vsel %vm1073, %v1014, %v852
      %v1081 = vsel %vm1073, %v1016, %v854
      %v1083 = vsel %vm1073, %v1018, %v856
      %v1085 = vsel %vm1073, %v1020, %v858
      %v1087 = vsel %vm1073, %v1022, %v860
      %v1089 = vsel %vm1073, %v1024, %v862
      %v1091 = vsel %vm1073, %v1026, %v864
      %v1093 = vsel %vm1073, %v1028, %v866
      %v1095 = vsel %vm1073, %v1030, %v868
      %v1097 = vsel %vm1073, %v1032, %v870
      %v1099 = vsel %vm1073, %v1034, %v872
      %v1101 = vsel %vm1073, %v1036, %v874
      %v1103 = vsel %vm1073, %v1038, %v876
      %v1105 = vsel %vm1073, %v1040, %v878
      %v1107 = vsel %vm1073, %v1042, %v880
      %v1109 = vsel %vm1073, %v1044, %v882
      %v1111 = vsel %vm1073, %v1046, %v884
      %v1113 = vsel %vm1073, %v1048, %v886
      %v1115 = vsel %vm1073, %v1050, %v888
      %v1117 = vsel %vm1073, %v1052, %v890
      %v1119 = vsel %vm1073, %v1054, %v892
      %v1121 = vsel %vm1073, %v1056, %v894
      %v1123 = vsel %vm1073, %v1058, %v896
      %v1125 = vsel %vm1073, %v1060, %v898
      %v1127 = vsel %vm1073, %v1062, %v900
      %v1129 = vsel %vm1073, %v1064, %v902
      %v1131 = vsel %vm1073, %v1066, %v904
      %v1133 = vsel %vm1073, %v1068, %v906
      %v1135 = vsel %vm1073, %v1070, %v908
      %v1137 = vsel %vm1073, %v1072, %v910
      %vm1138 = vsmask.f32 7424
      %v1139 = vshrl.u32 %v1075, 16
      %v1141 = vshll.u32 %v1075, 16
      %v1143 = vrot.slane %v1141, 1
      %v1144 = vor.u32 %v1139, %v1143
      %v1145 = vshll.u32 %v1077, 16
      %v1147 = vrot.slane %v1145, 1
      %v1148 = vsel %vm1138, %v1144, %v1147
      %v1149 = vshrl.u32 %v1079, 16
      %v1151 = vshll.u32 %v1079, 16
      %v1153 = vrot.slane %v1151, 1
      %v1154 = vor.u32 %v1149, %v1153
      %v1155 = vshll.u32 %v1081, 16
      %v1157 = vrot.slane %v1155, 1
      %v1158 = vsel %vm1138, %v1154, %v1157
      %v1159 = vshrl.u32 %v1083, 16
      %v1161 = vshll.u32 %v1083, 16
      %v1163 = vrot.slane %v1161, 1
      %v1164 = vor.u32 %v1159, %v1163
      %v1165 = vshll.u32 %v1085, 16
      %v1167 = vrot.slane %v1165, 1
      %v1168 = vsel %vm1138, %v1164, %v1167
      %v1169 = vshrl.u32 %v1087, 16
      %v1171 = vshll.u32 %v1087, 16
      %v1173 = vrot.slane %v1171, 1
      %v1174 = vor.u32 %v1169, %v1173
      %v1175 = vshll.u32 %v1089, 16
      %v1177 = vrot.slane %v1175, 1
      %v1178 = vsel %vm1138, %v1174, %v1177
      %v1179 = vshrl.u32 %v1091, 16
      %v1181 = vshll.u32 %v1091, 16
      %v1183 = vrot.slane %v1181, 1
      %v1184 = vor.u32 %v1179, %v1183
      %v1185 = vshll.u32 %v1093, 16
      %v1187 = vrot.slane %v1185, 1
      %v1188 = vsel %vm1138, %v1184, %v1187
      %v1189 = vshrl.u32 %v1095, 16
      %v1191 = vshll.u32 %v1095, 16
      %v1193 = vrot.slane %v1191, 1
      %v1194 = vor.u32 %v1189, %v1193
      %v1195 = vshll.u32 %v1097, 16
      %v1197 = vrot.slane %v1195, 1
      %v1198 = vsel %vm1138, %v1194, %v1197
      %v1199 = vshrl.u32 %v1099, 16
      %v1201 = vshll.u32 %v1099, 16
      %v1203 = vrot.slane %v1201, 1
      %v1204 = vor.u32 %v1199, %v1203
      %v1205 = vshll.u32 %v1101, 16
      %v1207 = vrot.slane %v1205, 1
      %v1208 = vsel %vm1138, %v1204, %v1207
      %v1209 = vshrl.u32 %v1103, 16
      %v1211 = vshll.u32 %v1103, 16
      %v1213 = vrot.slane %v1211, 1
      %v1214 = vor.u32 %v1209, %v1213
      %v1215 = vshll.u32 %v1105, 16
      %v1217 = vrot.slane %v1215, 1
      %v1218 = vsel %vm1138, %v1214, %v1217
      %v1219 = vshrl.u32 %v1107, 16
      %v1221 = vshll.u32 %v1107, 16
      %v1223 = vrot.slane %v1221, 1
      %v1224 = vor.u32 %v1219, %v1223
      %v1225 = vshll.u32 %v1109, 16
      %v1227 = vrot.slane %v1225, 1
      %v1228 = vsel %vm1138, %v1224, %v1227
      %v1229 = vshrl.u32 %v1111, 16
      %v1231 = vshll.u32 %v1111, 16
      %v1233 = vrot.slane %v1231, 1
      %v1234 = vor.u32 %v1229, %v1233
      %v1235 = vshll.u32 %v1113, 16
      %v1237 = vrot.slane %v1235, 1
      %v1238 = vsel %vm1138, %v1234, %v1237
      %v1239 = vshrl.u32 %v1115, 16
      %v1241 = vshll.u32 %v1115, 16
      %v1243 = vrot.slane %v1241, 1
      %v1244 = vor.u32 %v1239, %v1243
      %v1245 = vshll.u32 %v1117, 16
      %v1247 = vrot.slane %v1245, 1
      %v1248 = vsel %vm1138, %v1244, %v1247
      %v1249 = vshrl.u32 %v1119, 16
      %v1251 = vshll.u32 %v1119, 16
      %v1253 = vrot.slane %v1251, 1
      %v1254 = vor.u32 %v1249, %v1253
      %v1255 = vshll.u32 %v1121, 16
      %v1257 = vrot.slane %v1255, 1
      %v1258 = vsel %vm1138, %v1254, %v1257
      %v1259 = vshrl.u32 %v1123, 16
      %v1261 = vshll.u32 %v1123, 16
      %v1263 = vrot.slane %v1261, 1
      %v1264 = vor.u32 %v1259, %v1263
      %v1265 = vshll.u32 %v1125, 16
      %v1267 = vrot.slane %v1265, 1
      %v1268 = vsel %vm1138, %v1264, %v1267
      %v1269 = vshrl.u32 %v1127, 16
      %v1271 = vshll.u32 %v1127, 16
      %v1273 = vrot.slane %v1271, 1
      %v1274 = vor.u32 %v1269, %v1273
      %v1275 = vshll.u32 %v1129, 16
      %v1277 = vrot.slane %v1275, 1
      %v1278 = vsel %vm1138, %v1274, %v1277
      %v1279 = vshrl.u32 %v1131, 16
      %v1281 = vshll.u32 %v1131, 16
      %v1283 = vrot.slane %v1281, 1
      %v1284 = vor.u32 %v1279, %v1283
      %v1285 = vshll.u32 %v1133, 16
      %v1287 = vrot.slane %v1285, 1
      %v1288 = vsel %vm1138, %v1284, %v1287
      %v1289 = vshrl.u32 %v1135, 16
      %v1291 = vshll.u32 %v1135, 16
      %v1293 = vrot.slane %v1291, 1
      %v1294 = vor.u32 %v1289, %v1293
      %v1295 = vshll.u32 %v1137, 16
      %v1297 = vrot.slane %v1295, 1
      %v1298 = vsel %vm1138, %v1294, %v1297
      %v1299 = vld [vmem:[%s2] sm:$0xf]
      %v1300 = vld [vmem:[%s2 + $0x4] sm:$0xf]
      %v1301 = vld [vmem:[%s2 + $0x8] sm:$0xf]
      %v1302 = vld [vmem:[%s2 + $0xc] sm:$0xf]
      %v1303 = vld [vmem:[%s3] sm:$0xf]
      %v1304 = vld [vmem:[%s3 + $0x4] sm:$0xf]
      %v1305 = vld [vmem:[%s3 + $0x8] sm:$0xf]
      %v1306 = vld [vmem:[%s3 + $0xc] sm:$0xf]
      %v1311 = vunpack.c.l.b16 %v1303
      %v1312 = vunpack.c.l.b16 %v1304
      %v1313 = vunpack.c.l.b16 %v1305
      %v1314 = vunpack.c.l.b16 %v1306
      %v1315 = vpack.c.b16 %v1312, %v1311
      %v1316 = vpack.c.b16 %v1314, %v1313
      %vm1319 = vcmask 261120
      %v1321 = vsel %vm1319, %v1148, 0
      %v1324 = vsel %vm1319, %v1158, 0
      %v1327 = vsel %vm1319, %v1168, 0
      %v1330 = vsel %vm1319, %v1178, 0
      %v1333 = vsel %vm1319, %v1188, 0
      %v1336 = vsel %vm1319, %v1198, 0
      %v1339 = vsel %vm1319, %v1208, 0
      %v1342 = vsel %vm1319, %v1218, 0
      %v1345 = vsel %vm1319, %v1228, 0
      %v1348 = vsel %vm1319, %v1238, 0
      %v1351 = vsel %vm1319, %v1248, 0
      %v1354 = vsel %vm1319, %v1258, 0
      %v1357 = vsel %vm1319, %v1268, 0
      %v1360 = vsel %vm1319, %v1278, 0
      %v1363 = vsel %vm1319, %v1288, 0
      %v1366 = vsel %vm1319, %v1298, 0
      %1368 = vmatprep.subr.bf16.mxu0 0
      %1369 = vmatpush1.bf16.msra.mxu0 %v1315
      %1370 = vmatprep.subr.bf16.mxu0 0
      %1371 = vmatpush1.bf16.msra.mxu0 %v1316
      %1372 = vmatprep.subr.bf16.mxu0 0
      %1373 = vmatpush1.bf16.msra.mxu0 0
      %1374 = vmatprep.subr.bf16.mxu0 0
      %1375 = vmatpush1.bf16.msra.mxu0 0
      %1376 = vmatprep.subr.bf16.mxu0 0
      %1377 = vmatpush1.bf16.msra.mxu0 0
      %1378 = vmatprep.subr.bf16.mxu0 0
      %1379 = vmatpush1.bf16.msra.mxu0 0
      %1380 = vmatprep.subr.bf16.mxu0 0
      %1381 = vmatpush1.bf16.msra.mxu0 0
      %1382 = vmatprep.subr.bf16.mxu0 0
      %1383 = vmatpush1.bf16.msra.mxu0 0
      %1384 = vmatprep.subr.bf16.mxu0 0
      %1385 = vmatpush1.bf16.msra.mxu0 0
      %1386 = vmatprep.subr.bf16.mxu0 0
      %1387 = vmatpush1.bf16.msra.mxu0 0
      %1388 = vmatprep.subr.bf16.mxu0 0
      %1389 = vmatpush1.bf16.msra.mxu0 0
      %1390 = vmatprep.subr.bf16.mxu0 0
      %1391 = vmatpush1.bf16.msra.mxu0 0
      %1392 = vmatprep.subr.bf16.mxu0 0
      %1393 = vmatpush1.bf16.msra.mxu0 0
      %1394 = vmatprep.subr.bf16.mxu0 0
      %1395 = vmatpush1.bf16.msra.mxu0 0
      %1396 = vmatprep.subr.bf16.mxu0 0
      %1397 = vmatpush1.bf16.msra.mxu0 0
      %1398 = vmatprep.subr.bf16.mxu0 0
      %1399 = vmatpush1.bf16.msra.mxu0 0
      %1400 = vmatprep.mubr.bf16.mxu0 0
      %1401 = vmatmul.mubr.bf16.gmra.mrb[0].mxu0 %v1321
      %v1402 = vpop.f32.mrb[0].mxu0
      %v1403 = vadd.f32 0.0, %v1402
      %v1404 = vpop.f32.mrb[0].mxu0
      %v1405 = vpop.f32.mrb[0].mxu0
      %v1406 = vadd.f32 0.0, %v1405
      %v1407 = vpop.f32.mrb[0].mxu0
      %1408 = vmatprep.mubr.bf16.mxu0 0
      %1409 = vmatmul.mubr.bf16.gmra.mrb[0].mxu0 %v1324
      %v1410 = vpop.f32.mrb[0].mxu0
      %v1411 = vadd.f32 0.0, %v1410
      %v1412 = vpop.f32.mrb[0].mxu0
      %v1413 = vpop.f32.mrb[0].mxu0
      %v1414 = vadd.f32 0.0, %v1413
      %v1415 = vpop.f32.mrb[0].mxu0
      %1416 = vmatprep.mubr.bf16.mxu0 0
      %1417 = vmatmul.mubr.bf16.gmra.mrb[0].mxu0 %v1327
      %v1418 = vpop.f32.mrb[0].mxu0
      %v1419 = vadd.f32 0.0, %v1418
      %v1420 = vpop.f32.mrb[0].mxu0
      %v1421 = vpop.f32.mrb[0].mxu0
      %v1422 = vadd.f32 0.0, %v1421
      %v1423 = vpop.f32.mrb[0].mxu0
      %1424 = vmatprep.mubr.bf16.mxu0 0
      %1425 = vmatmul.mubr.bf16.gmra.mrb[0].mxu0 %v1330
      %v1426 = vpop.f32.mrb[0].mxu0
      %v1427 = vadd.f32 0.0, %v1426
      %v1428 = vpop.f32.mrb[0].mxu0
      %v1429 = vpop.f32.mrb[0].mxu0
      %v1430 = vadd.f32 0.0, %v1429
      %v1431 = vpop.f32.mrb[0].mxu0
      %1432 = vmatprep.mubr.bf16.mxu0 0
      %1433 = vmatmul.mubr.bf16.gmra.mrb[0].mxu0 %v1333
      %v1434 = vpop.f32.mrb[0].mxu0
      %v1435 = vadd.f32 0.0, %v1434
      %v1436 = vpop.f32.mrb[0].mxu0
      %v1437 = vpop.f32.mrb[0].mxu0
      %v1438 = vadd.f32 0.0, %v1437
      %v1439 = vpop.f32.mrb[0].mxu0
      %1440 = vmatprep.mubr.bf16.mxu0 0
      %1441 = vmatmul.mubr.bf16.gmra.mrb[0].mxu0 %v1336
      %v1442 = vpop.f32.mrb[0].mxu0
      %v1443 = vadd.f32 0.0, %v1442
      %v1444 = vpop.f32.mrb[0].mxu0
      %v1445 = vpop.f32.mrb[0].mxu0
      %v1446 = vadd.f32 0.0, %v1445
      %v1447 = vpop.f32.mrb[0].mxu0
      %1448 = vmatprep.mubr.bf16.mxu0 0
      %1449 = vmatmul.mubr.bf16.gmra.mrb[0].mxu0 %v1339
      %v1450 = vpop.f32.mrb[0].mxu0
      %v1451 = vadd.f32 0.0, %v1450
      %v1452 = vpop.f32.mrb[0].mxu0
      %v1453 = vpop.f32.mrb[0].mxu0
      %v1454 = vadd.f32 0.0, %v1453
      %v1455 = vpop.f32.mrb[0].mxu0
      %1456 = vmatprep.mubr.bf16.mxu0 0
      %1457 = vmatmul.mubr.bf16.gmra.mrb[0].mxu0 %v1342
      %v1458 = vpop.f32.mrb[0].mxu0
      %v1459 = vadd.f32 0.0, %v1458
      %v1460 = vpop.f32.mrb[0].mxu0
      %v1461 = vpop.f32.mrb[0].mxu0
      %v1462 = vadd.f32 0.0, %v1461
      %v1463 = vpop.f32.mrb[0].mxu0
      %1464 = vmatprep.mubr.bf16.mxu0 0
      %1465 = vmatmul.mubr.bf16.gmra.mrb[0].mxu0 %v1345
      %v1466 = vpop.f32.mrb[0].mxu0
      %v1467 = vadd.f32 0.0, %v1466
      %v1468 = vpop.f32.mrb[0].mxu0
      %v1469 = vpop.f32.mrb[0].mxu0
      %v1470 = vadd.f32 0.0, %v1469
      %v1471 = vpop.f32.mrb[0].mxu0
      %1472 = vmatprep.mubr.bf16.mxu0 0
      %1473 = vmatmul.mubr.bf16.gmra.mrb[0].mxu0 %v1348
      %v1474 = vpop.f32.mrb[0].mxu0
      %v1475 = vadd.f32 0.0, %v1474
      %v1476 = vpop.f32.mrb[0].mxu0
      %v1477 = vpop.f32.mrb[0].mxu0
      %v1478 = vadd.f32 0.0, %v1477
      %v1479 = vpop.f32.mrb[0].mxu0
      %1480 = vmatprep.mubr.bf16.mxu0 0
      %1481 = vmatmul.mubr.bf16.gmra.mrb[0].mxu0 %v1351
      %v1482 = vpop.f32.mrb[0].mxu0
      %v1483 = vadd.f32 0.0, %v1482
      %v1484 = vpop.f32.mrb[0].mxu0
      %v1485 = vpop.f32.mrb[0].mxu0
      %v1486 = vadd.f32 0.0, %v1485
      %v1487 = vpop.f32.mrb[0].mxu0
      %1488 = vmatprep.mubr.bf16.mxu0 0
      %1489 = vmatmul.mubr.bf16.gmra.mrb[0].mxu0 %v1354
      %v1490 = vpop.f32.mrb[0].mxu0
      %v1491 = vadd.f32 0.0, %v1490
      %v1492 = vpop.f32.mrb[0].mxu0
      %v1493 = vpop.f32.mrb[0].mxu0
      %v1494 = vadd.f32 0.0, %v1493
      %v1495 = vpop.f32.mrb[0].mxu0
      %1496 = vmatprep.mubr.bf16.mxu0 0
      %1497 = vmatmul.mubr.bf16.gmra.mrb[0].mxu0 %v1357
      %v1498 = vpop.f32.mrb[0].mxu0
      %v1499 = vadd.f32 0.0, %v1498
      %v1500 = vpop.f32.mrb[0].mxu0
      %v1501 = vpop.f32.mrb[0].mxu0
      %v1502 = vadd.f32 0.0, %v1501
      %v1503 = vpop.f32.mrb[0].mxu0
      %1504 = vmatprep.mubr.bf16.mxu0 0
      %1505 = vmatmul.mubr.bf16.gmra.mrb[0].mxu0 %v1360
      %v1506 = vpop.f32.mrb[0].mxu0
      %v1507 = vadd.f32 0.0, %v1506
      %v1508 = vpop.f32.mrb[0].mxu0
      %v1509 = vpop.f32.mrb[0].mxu0
      %v1510 = vadd.f32 0.0, %v1509
      %v1511 = vpop.f32.mrb[0].mxu0
      %1512 = vmatprep.mubr.bf16.mxu0 0
      %1513 = vmatmul.mubr.bf16.gmra.mrb[0].mxu0 %v1363
      %v1514 = vpop.f32.mrb[0].mxu0
      %v1515 = vadd.f32 0.0, %v1514
      %v1516 = vpop.f32.mrb[0].mxu0
      %v1517 = vpop.f32.mrb[0].mxu0
      %v1518 = vadd.f32 0.0, %v1517
      %v1519 = vpop.f32.mrb[0].mxu0
      %1520 = vmatprep.mubr.bf16.mxu0 0
      %1521 = vmatmul.mubr.bf16.gmra.mrb[0].mxu0 %v1366
      %v1522 = vpop.f32.mrb[0].mxu0
      %v1523 = vadd.f32 0.0, %v1522
      %v1524 = vpop.f32.mrb[0].mxu0
      %v1525 = vpop.f32.mrb[0].mxu0
      %v1526 = vadd.f32 0.0, %v1525
      %v1527 = vpop.f32.mrb[0].mxu0
      %1528 = vdwg.mxu0
      %v1533 = vunpack.c.l.b16 %v1299
      %v1534 = vunpack.c.l.b16 %v1300
      %v1535 = vunpack.c.l.b16 %v1301
      %v1536 = vunpack.c.l.b16 %v1302
      %v1537 = vpack.c.b16 %v1534, %v1533
      %v1538 = vpack.c.b16 %v1536, %v1535
      %v1541 = vsel %vm1319, %v1075, 0
      %v1543 = vsel %vm1319, %v1079, 0
      %v1545 = vsel %vm1319, %v1083, 0
      %v1547 = vsel %vm1319, %v1087, 0
      %v1549 = vsel %vm1319, %v1091, 0
      %v1551 = vsel %vm1319, %v1095, 0
      %v1553 = vsel %vm1319, %v1099, 0
      %v1555 = vsel %vm1319, %v1103, 0
      %v1557 = vsel %vm1319, %v1107, 0
      %v1559 = vsel %vm1319, %v1111, 0
      %v1561 = vsel %vm1319, %v1115, 0
      %v1563 = vsel %vm1319, %v1119, 0
      %v1565 = vsel %vm1319, %v1123, 0
      %v1567 = vsel %vm1319, %v1127, 0
      %v1569 = vsel %vm1319, %v1131, 0
      %v1571 = vsel %vm1319, %v1135, 0
      %1573 = vmatprep.subr.bf16.mxu0 0
      %1574 = vmatpush1.bf16.msra.mxu0 %v1537
      %1575 = vmatprep.subr.bf16.mxu0 0
      %1576 = vmatpush1.bf16.msra.mxu0 %v1538
      %1577 = vmatprep.subr.bf16.mxu0 0
      %1578 = vmatpush1.bf16.msra.mxu0 0
      %1579 = vmatprep.subr.bf16.mxu0 0
      %1580 = vmatpush1.bf16.msra.mxu0 0
      %1581 = vmatprep.subr.bf16.mxu0 0
      %1582 = vmatpush1.bf16.msra.mxu0 0
      %1583 = vmatprep.subr.bf16.mxu0 0
      %1584 = vmatpush1.bf16.msra.mxu0 0
      %1585 = vmatprep.subr.bf16.mxu0 0
      %1586 = vmatpush1.bf16.msra.mxu0 0
      %1587 = vmatprep.subr.bf16.mxu0 0
      %1588 = vmatpush1.bf16.msra.mxu0 0
      %1589 = vmatprep.subr.bf16.mxu0 0
      %1590 = vmatpush1.bf16.msra.mxu0 0
      %1591 = vmatprep.subr.bf16.mxu0 0
      %1592 = vmatpush1.bf16.msra.mxu0 0
      %1593 = vmatprep.subr.bf16.mxu0 0
      %1594 = vmatpush1.bf16.msra.mxu0 0
      %1595 = vmatprep.subr.bf16.mxu0 0
      %1596 = vmatpush1.bf16.msra.mxu0 0
      %1597 = vmatprep.subr.bf16.mxu0 0
      %1598 = vmatpush1.bf16.msra.mxu0 0
      %1599 = vmatprep.subr.bf16.mxu0 0
      %1600 = vmatpush1.bf16.msra.mxu0 0
      %1601 = vmatprep.subr.bf16.mxu0 0
      %1602 = vmatpush1.bf16.msra.mxu0 0
      %1603 = vmatprep.subr.bf16.mxu0 0
      %1604 = vmatpush1.bf16.msra.mxu0 0
      %1605 = vmatprep.mubr.bf16.mxu0 0
      %1606 = vmatmul.mubr.bf16.gmra.mrb[0].mxu0 %v1541
      %v1607 = vpop.f32.mrb[0].mxu0
      %v1608 = vadd.f32 %v1403, %v1607
      %v1609 = vpop.f32.mrb[0].mxu0
      %v1610 = vpop.f32.mrb[0].mxu0
      %v1611 = vadd.f32 %v1406, %v1610
      %v1612 = vpop.f32.mrb[0].mxu0
      %1613 = vmatprep.mubr.bf16.mxu0 0
      %1614 = vmatmul.mubr.bf16.gmra.mrb[0].mxu0 %v1543
      %v1615 = vpop.f32.mrb[0].mxu0
      %v1616 = vadd.f32 %v1411, %v1615
      %v1617 = vpop.f32.mrb[0].mxu0
      %v1618 = vpop.f32.mrb[0].mxu0
      %v1619 = vadd.f32 %v1414, %v1618
      %v1620 = vpop.f32.mrb[0].mxu0
      %1621 = vmatprep.mubr.bf16.mxu0 0
      %1622 = vmatmul.mubr.bf16.gmra.mrb[0].mxu0 %v1545
      %v1623 = vpop.f32.mrb[0].mxu0
      %v1624 = vadd.f32 %v1419, %v1623
      %v1625 = vpop.f32.mrb[0].mxu0
      %v1626 = vpop.f32.mrb[0].mxu0
      %v1627 = vadd.f32 %v1422, %v1626
      %v1628 = vpop.f32.mrb[0].mxu0
      %1629 = vmatprep.mubr.bf16.mxu0 0
      %1630 = vmatmul.mubr.bf16.gmra.mrb[0].mxu0 %v1547
      %v1631 = vpop.f32.mrb[0].mxu0
      %v1632 = vadd.f32 %v1427, %v1631
      %v1633 = vpop.f32.mrb[0].mxu0
      %v1634 = vpop.f32.mrb[0].mxu0
      %v1635 = vadd.f32 %v1430, %v1634
      %v1636 = vpop.f32.mrb[0].mxu0
      %1637 = vmatprep.mubr.bf16.mxu0 0
      %1638 = vmatmul.mubr.bf16.gmra.mrb[0].mxu0 %v1549
      %v1639 = vpop.f32.mrb[0].mxu0
      %v1640 = vadd.f32 %v1435, %v1639
      %v1641 = vpop.f32.mrb[0].mxu0
      %v1642 = vpop.f32.mrb[0].mxu0
      %v1643 = vadd.f32 %v1438, %v1642
      %v1644 = vpop.f32.mrb[0].mxu0
      %1645 = vmatprep.mubr.bf16.mxu0 0
      %1646 = vmatmul.mubr.bf16.gmra.mrb[0].mxu0 %v1551
      %v1647 = vpop.f32.mrb[0].mxu0
      %v1648 = vadd.f32 %v1443, %v1647
      %v1649 = vpop.f32.mrb[0].mxu0
      %v1650 = vpop.f32.mrb[0].mxu0
      %v1651 = vadd.f32 %v1446, %v1650
      %v1652 = vpop.f32.mrb[0].mxu0
      %1653 = vmatprep.mubr.bf16.mxu0 0
      %1654 = vmatmul.mubr.bf16.gmra.mrb[0].mxu0 %v1553
      %v1655 = vpop.f32.mrb[0].mxu0
      %v1656 = vadd.f32 %v1451, %v1655
      %v1657 = vpop.f32.mrb[0].mxu0
      %v1658 = vpop.f32.mrb[0].mxu0
      %v1659 = vadd.f32 %v1454, %v1658
      %v1660 = vpop.f32.mrb[0].mxu0
      %1661 = vmatprep.mubr.bf16.mxu0 0
      %1662 = vmatmul.mubr.bf16.gmra.mrb[0].mxu0 %v1555
      %v1663 = vpop.f32.mrb[0].mxu0
      %v1664 = vadd.f32 %v1459, %v1663
      %v1665 = vpop.f32.mrb[0].mxu0
      %v1666 = vpop.f32.mrb[0].mxu0
      %v1667 = vadd.f32 %v1462, %v1666
      %v1668 = vpop.f32.mrb[0].mxu0
      %1669 = vmatprep.mubr.bf16.mxu0 0
      %1670 = vmatmul.mubr.bf16.gmra.mrb[0].mxu0 %v1557
      %v1671 = vpop.f32.mrb[0].mxu0
      %v1672 = vadd.f32 %v1467, %v1671
      %v1673 = vpop.f32.mrb[0].mxu0
      %v1674 = vpop.f32.mrb[0].mxu0
      %v1675 = vadd.f32 %v1470, %v1674
      %v1676 = vpop.f32.mrb[0].mxu0
      %1677 = vmatprep.mubr.bf16.mxu0 0
      %1678 = vmatmul.mubr.bf16.gmra.mrb[0].mxu0 %v1559
      %v1679 = vpop.f32.mrb[0].mxu0
      %v1680 = vadd.f32 %v1475, %v1679
      %v1681 = vpop.f32.mrb[0].mxu0
      %v1682 = vpop.f32.mrb[0].mxu0
      %v1683 = vadd.f32 %v1478, %v1682
      %v1684 = vpop.f32.mrb[0].mxu0
      %1685 = vmatprep.mubr.bf16.mxu0 0
      %1686 = vmatmul.mubr.bf16.gmra.mrb[0].mxu0 %v1561
      %v1687 = vpop.f32.mrb[0].mxu0
      %v1688 = vadd.f32 %v1483, %v1687
      %v1689 = vpop.f32.mrb[0].mxu0
      %v1690 = vpop.f32.mrb[0].mxu0
      %v1691 = vadd.f32 %v1486, %v1690
      %v1692 = vpop.f32.mrb[0].mxu0
      %1693 = vmatprep.mubr.bf16.mxu0 0
      %1694 = vmatmul.mubr.bf16.gmra.mrb[0].mxu0 %v1563
      %v1695 = vpop.f32.mrb[0].mxu0
      %v1696 = vadd.f32 %v1491, %v1695
      %v1697 = vpop.f32.mrb[0].mxu0
      %v1698 = vpop.f32.mrb[0].mxu0
      %v1699 = vadd.f32 %v1494, %v1698
      %v1700 = vpop.f32.mrb[0].mxu0
      %1701 = vmatprep.mubr.bf16.mxu0 0
      %1702 = vmatmul.mubr.bf16.gmra.mrb[0].mxu0 %v1565
      %v1703 = vpop.f32.mrb[0].mxu0
      %v1704 = vadd.f32 %v1499, %v1703
      %v1705 = vpop.f32.mrb[0].mxu0
      %v1706 = vpop.f32.mrb[0].mxu0
      %v1707 = vadd.f32 %v1502, %v1706
      %v1708 = vpop.f32.mrb[0].mxu0
      %1709 = vmatprep.mubr.bf16.mxu0 0
      %1710 = vmatmul.mubr.bf16.gmra.mrb[0].mxu0 %v1567
      %v1711 = vpop.f32.mrb[0].mxu0
      %v1712 = vadd.f32 %v1507, %v1711
      %v1713 = vpop.f32.mrb[0].mxu0
      %v1714 = vpop.f32.mrb[0].mxu0
      %v1715 = vadd.f32 %v1510, %v1714
      %v1716 = vpop.f32.mrb[0].mxu0
      %1717 = vmatprep.mubr.bf16.mxu0 0
      %1718 = vmatmul.mubr.bf16.gmra.mrb[0].mxu0 %v1569
      %v1719 = vpop.f32.mrb[0].mxu0
      %v1720 = vadd.f32 %v1515, %v1719
      %v1721 = vpop.f32.mrb[0].mxu0
      %v1722 = vpop.f32.mrb[0].mxu0
      %v1723 = vadd.f32 %v1518, %v1722
      %v1724 = vpop.f32.mrb[0].mxu0
      %1725 = vmatprep.mubr.bf16.mxu0 0
      %1726 = vmatmul.mubr.bf16.gmra.mrb[0].mxu0 %v1571
      %v1727 = vpop.f32.mrb[0].mxu0
      %v1728 = vadd.f32 %v1523, %v1727
      %v1729 = vpop.f32.mrb[0].mxu0
      %v1730 = vpop.f32.mrb[0].mxu0
      %v1731 = vadd.f32 %v1526, %v1730
      %v1732 = vpop.f32.mrb[0].mxu0
      %1733 = vdwg.mxu0
      %v1734 = vld [vmem:[%s4] sm:$0x1]
      %v1736 = vlaneseq
      %v1737 = vshrl.u32 %v1736, 7
      %v1738 = vsub.s32 0, %v1737
      %v1739 = vrot.slane %v1734, %v1738
      %v1741 = vadd.f32 %v1608, %v1739
      %v1742 = vadd.f32 %v1611, %v1739
      %v1743 = vadd.f32 %v1616, %v1739
      %v1744 = vadd.f32 %v1619, %v1739
      %v1745 = vadd.f32 %v1624, %v1739
      %v1746 = vadd.f32 %v1627, %v1739
      %v1747 = vadd.f32 %v1632, %v1739
      %v1748 = vadd.f32 %v1635, %v1739
      %v1749 = vadd.f32 %v1640, %v1739
      %v1750 = vadd.f32 %v1643, %v1739
      %v1751 = vadd.f32 %v1648, %v1739
      %v1752 = vadd.f32 %v1651, %v1739
      %v1753 = vadd.f32 %v1656, %v1739
      %v1754 = vadd.f32 %v1659, %v1739
      %v1755 = vadd.f32 %v1664, %v1739
      %v1756 = vadd.f32 %v1667, %v1739
      %v1757 = vadd.f32 %v1672, %v1739
      %v1758 = vadd.f32 %v1675, %v1739
      %v1759 = vadd.f32 %v1680, %v1739
      %v1760 = vadd.f32 %v1683, %v1739
      %v1761 = vadd.f32 %v1688, %v1739
      %v1762 = vadd.f32 %v1691, %v1739
      %v1763 = vadd.f32 %v1696, %v1739
      %v1764 = vadd.f32 %v1699, %v1739
      %v1765 = vadd.f32 %v1704, %v1739
      %v1766 = vadd.f32 %v1707, %v1739
      %v1767 = vadd.f32 %v1712, %v1739
      %v1768 = vadd.f32 %v1715, %v1739
      %v1769 = vadd.f32 %v1720, %v1739
      %v1770 = vadd.f32 %v1723, %v1739
      %v1771 = vadd.f32 %v1728, %v1739
      %v1772 = vadd.f32 %v1731, %v1739
      %v1773 = vmul.f32 %v1741, 0.2
      %v1774 = vmul.f32 %v1742, 0.2
      %v1775 = vmul.f32 %v1743, 0.2
      %v1776 = vmul.f32 %v1744, 0.2
      %v1777 = vmul.f32 %v1745, 0.2
      %v1778 = vmul.f32 %v1746, 0.2
      %v1779 = vmul.f32 %v1747, 0.2
      %v1780 = vmul.f32 %v1748, 0.2
      %v1781 = vmul.f32 %v1749, 0.2
      %v1782 = vmul.f32 %v1750, 0.2
      %v1783 = vmul.f32 %v1751, 0.2
      %v1784 = vmul.f32 %v1752, 0.2
      %v1785 = vmul.f32 %v1753, 0.2
      %v1786 = vmul.f32 %v1754, 0.2
      %v1787 = vmul.f32 %v1755, 0.2
      %v1788 = vmul.f32 %v1756, 0.2
      %v1789 = vmul.f32 %v1757, 0.2
      %v1790 = vmul.f32 %v1758, 0.2
      %v1791 = vmul.f32 %v1759, 0.2
      %v1792 = vmul.f32 %v1760, 0.2
      %v1793 = vmul.f32 %v1761, 0.2
      %v1794 = vmul.f32 %v1762, 0.2
      %v1795 = vmul.f32 %v1763, 0.2
      %v1796 = vmul.f32 %v1764, 0.2
      %v1797 = vmul.f32 %v1765, 0.2
      %v1798 = vmul.f32 %v1766, 0.2
      %v1799 = vmul.f32 %v1767, 0.2
      %v1800 = vmul.f32 %v1768, 0.2
      %v1801 = vmul.f32 %v1769, 0.2
      %v1802 = vmul.f32 %v1770, 0.2
      %v1803 = vmul.f32 %v1771, 0.2
      %v1804 = vmul.f32 %v1772, 0.2
      %v1805 = vmax.f32 %v1741, %v1773
      %v1806 = vmax.f32 %v1742, %v1774
      %v1807 = vmax.f32 %v1743, %v1775
      %v1808 = vmax.f32 %v1744, %v1776
      %v1809 = vmax.f32 %v1745, %v1777
      %v1810 = vmax.f32 %v1746, %v1778
      %v1811 = vmax.f32 %v1747, %v1779
      %v1812 = vmax.f32 %v1748, %v1780
      %v1813 = vmax.f32 %v1749, %v1781
      %v1814 = vmax.f32 %v1750, %v1782
      %v1815 = vmax.f32 %v1751, %v1783
      %v1816 = vmax.f32 %v1752, %v1784
      %v1817 = vmax.f32 %v1753, %v1785
      %v1818 = vmax.f32 %v1754, %v1786
      %v1819 = vmax.f32 %v1755, %v1787
      %v1820 = vmax.f32 %v1756, %v1788
      %v1821 = vmax.f32 %v1757, %v1789
      %v1822 = vmax.f32 %v1758, %v1790
      %v1823 = vmax.f32 %v1759, %v1791
      %v1824 = vmax.f32 %v1760, %v1792
      %v1825 = vmax.f32 %v1761, %v1793
      %v1826 = vmax.f32 %v1762, %v1794
      %v1827 = vmax.f32 %v1763, %v1795
      %v1828 = vmax.f32 %v1764, %v1796
      %v1829 = vmax.f32 %v1765, %v1797
      %v1830 = vmax.f32 %v1766, %v1798
      %v1831 = vmax.f32 %v1767, %v1799
      %v1832 = vmax.f32 %v1768, %v1800
      %v1833 = vmax.f32 %v1769, %v1801
      %v1834 = vmax.f32 %v1770, %v1802
      %v1835 = vmax.f32 %v1771, %v1803
      %v1836 = vmax.f32 %v1772, %v1804
      %v1837 = vpack.c.bf16 %v1806, %v1805
      %v1838 = vpack.c.bf16 %v1808, %v1807
      %v1839 = vpack.c.bf16 %v1810, %v1809
      %v1840 = vpack.c.bf16 %v1812, %v1811
      %v1841 = vpack.c.bf16 %v1814, %v1813
      %v1842 = vpack.c.bf16 %v1816, %v1815
      %v1843 = vpack.c.bf16 %v1818, %v1817
      %v1844 = vpack.c.bf16 %v1820, %v1819
      %v1845 = vpack.c.bf16 %v1822, %v1821
      %v1846 = vpack.c.bf16 %v1824, %v1823
      %v1847 = vpack.c.bf16 %v1826, %v1825
      %v1848 = vpack.c.bf16 %v1828, %v1827
      %v1849 = vpack.c.bf16 %v1830, %v1829
      %v1850 = vpack.c.bf16 %v1832, %v1831
      %v1851 = vpack.c.bf16 %v1834, %v1833
      %v1852 = vpack.c.bf16 %v1836, %v1835
      %v1869 = vunpack.c.l.b16 %v1837
      %v1870 = vunpack.c.h.b16 %v1837
      %v1871 = vunpack.c.l.b16 %v1838
      %v1872 = vunpack.c.h.b16 %v1838
      %v1873 = vunpack.c.l.b16 %v1839
      %v1874 = vunpack.c.h.b16 %v1839
      %v1875 = vunpack.c.l.b16 %v1840
      %v1876 = vunpack.c.h.b16 %v1840
      %v1877 = vunpack.c.l.b16 %v1841
      %v1878 = vunpack.c.h.b16 %v1841
      %v1879 = vunpack.c.l.b16 %v1842
      %v1880 = vunpack.c.h.b16 %v1842
      %v1881 = vunpack.c.l.b16 %v1843
      %v1882 = vunpack.c.h.b16 %v1843
      %v1883 = vunpack.c.l.b16 %v1844
      %v1884 = vunpack.c.h.b16 %v1844
      %v1885 = vunpack.c.l.b16 %v1845
      %v1886 = vunpack.c.h.b16 %v1845
      %v1887 = vunpack.c.l.b16 %v1846
      %v1888 = vunpack.c.h.b16 %v1846
      %v1889 = vunpack.c.l.b16 %v1847
      %v1890 = vunpack.c.h.b16 %v1847
      %v1891 = vunpack.c.l.b16 %v1848
      %v1892 = vunpack.c.h.b16 %v1848
      %v1893 = vunpack.c.l.b16 %v1849
      %v1894 = vunpack.c.h.b16 %v1849
      %v1895 = vunpack.c.l.b16 %v1850
      %v1896 = vunpack.c.h.b16 %v1850
      %v1897 = vunpack.c.l.b16 %v1851
      %v1898 = vunpack.c.h.b16 %v1851
      %v1899 = vunpack.c.l.b16 %v1852
      %v1900 = vunpack.c.h.b16 %v1852
      %v1901 = vpack.c.b16 %v1869, %v1869
      %v1902 = vpack.c.b16 %v1870, %v1870
      %v1903 = vpack.c.b16 %v1871, %v1871
      %v1904 = vpack.c.b16 %v1872, %v1872
      %v1905 = vpack.c.b16 %v1873, %v1873
      %v1906 = vpack.c.b16 %v1874, %v1874
      %v1907 = vpack.c.b16 %v1875, %v1875
      %v1908 = vpack.c.b16 %v1876, %v1876
      %v1909 = vpack.c.b16 %v1877, %v1877
      %v1910 = vpack.c.b16 %v1878, %v1878
      %v1911 = vpack.c.b16 %v1879, %v1879
      %v1912 = vpack.c.b16 %v1880, %v1880
      %v1913 = vpack.c.b16 %v1881, %v1881
      %v1914 = vpack.c.b16 %v1882, %v1882
      %v1915 = vpack.c.b16 %v1883, %v1883
      %v1916 = vpack.c.b16 %v1884, %v1884
      %v1917 = vpack.c.b16 %v1885, %v1885
      %v1918 = vpack.c.b16 %v1886, %v1886
      %v1919 = vpack.c.b16 %v1887, %v1887
      %v1920 = vpack.c.b16 %v1888, %v1888
      %v1921 = vpack.c.b16 %v1889, %v1889
      %v1922 = vpack.c.b16 %v1890, %v1890
      %v1923 = vpack.c.b16 %v1891, %v1891
      %v1924 = vpack.c.b16 %v1892, %v1892
      %v1925 = vpack.c.b16 %v1893, %v1893
      %v1926 = vpack.c.b16 %v1894, %v1894
      %v1927 = vpack.c.b16 %v1895, %v1895
      %v1928 = vpack.c.b16 %v1896, %v1896
      %v1929 = vpack.c.b16 %v1897, %v1897
      %v1930 = vpack.c.b16 %v1898, %v1898
      %v1931 = vpack.c.b16 %v1899, %v1899
      %v1932 = vpack.c.b16 %v1900, %v1900
      %1965 = vst [vmem:[%s343] sm:$0xf] %v1901
      %1966 = vst [vmem:[%s343 + $0x4] sm:$0xf] %v1902
      %1967 = vst [vmem:[%s343 + $0x8] sm:$0xf] %v1903
      %1968 = vst [vmem:[%s343 + $0xc] sm:$0xf] %v1904
      %1969 = vst [vmem:[%s343 + $0x10] sm:$0xf] %v1905
      %1970 = vst [vmem:[%s343 + $0x14] sm:$0xf] %v1906
      %1971 = vst [vmem:[%s343 + $0x18] sm:$0xf] %v1907
      %1972 = vst [vmem:[%s343 + $0x1c] sm:$0xf] %v1908
      %1973 = vst [vmem:[%s343 + $0x20] sm:$0xf] %v1909
      %1974 = vst [vmem:[%s343 + $0x24] sm:$0xf] %v1910
      %1975 = vst [vmem:[%s343 + $0x28] sm:$0xf] %v1911
      %1976 = vst [vmem:[%s343 + $0x2c] sm:$0xf] %v1912
      %1977 = vst [vmem:[%s343 + $0x30] sm:$0xf] %v1913
      %1978 = vst [vmem:[%s343 + $0x34] sm:$0xf] %v1914
      %1979 = vst [vmem:[%s343 + $0x38] sm:$0xf] %v1915
      %1980 = vst [vmem:[%s343 + $0x3c] sm:$0xf] %v1916
      %1981 = vst [vmem:[%s343 + $0x40] sm:$0xf] %v1917
      %1982 = vst [vmem:[%s343 + $0x44] sm:$0xf] %v1918
      %1983 = vst [vmem:[%s343 + $0x48] sm:$0xf] %v1919
      %1984 = vst [vmem:[%s343 + $0x4c] sm:$0xf] %v1920
      %1985 = vst [vmem:[%s343 + $0x50] sm:$0xf] %v1921
      %1986 = vst [vmem:[%s343 + $0x54] sm:$0xf] %v1922
      %1987 = vst [vmem:[%s343 + $0x58] sm:$0xf] %v1923
      %1988 = vst [vmem:[%s343 + $0x5c] sm:$0xf] %v1924
      %1989 = vst [vmem:[%s343 + $0x60] sm:$0xf] %v1925
      %1990 = vst [vmem:[%s343 + $0x64] sm:$0xf] %v1926
      %1991 = vst [vmem:[%s343 + $0x68] sm:$0xf] %v1927
      %1992 = vst [vmem:[%s343 + $0x6c] sm:$0xf] %v1928
      %1993 = vst [vmem:[%s343 + $0x70] sm:$0xf] %v1929
      %1994 = vst [vmem:[%s343 + $0x74] sm:$0xf] %v1930
      %1995 = vst [vmem:[%s343 + $0x78] sm:$0xf] %v1931
      %1996 = vst [vmem:[%s343 + $0x7c] sm:$0xf] %v1932
      %p1997 = scmp.lt.s32.totalorder %s20, 1
      %s1998 = scalar_select %p1997, %s20, 1
      %p1999 = scmp.lt.s32.totalorder %s21, 0
      %s2000 = scalar_select %p1999, %s21, 0
      %s2001 = smul.addr %s2000, 32
      %s2002 = smul.addr %s1998, 32
      %s2003 = sadd.s32 %s2001, %s2002
      %s2004 = smul.addr %s2003, 4
      %s2005 = scalar_lea.vmem %s5, %s2004
      // Predicated region
      $region41: #{_lambda_.5} parent=39 // pred_check
        %p2006 = pneg %p171
      $region42: #{_lambda_.5} parent=39 // pred_check_branch
        %2008 = sbr.rel (%p2006) target = $region44
      $region43: #{_lambda_.5} parent=39 // pred_region
        _
      $region44: #{_lambda_.5} parent=39 // pred_fallthru
        _
    $region40: #{_lambda_.5} parent=5 // pred_fallthru
      _
    %p2009 = scmp.le.s32.totalorder 2, %s11
    // Predicated region
    $region45: #{_lambda_.5} parent=5 // pred_check
      %p2010 = pneg %p2009
    $region46: #{_lambda_.5} parent=5 // pred_check_branch
      %2012 = sbr.rel (%p2010) target = $region48
    $region47: #{_lambda_.5} parent=5 // pred_region
      %s2013 = ssub.s32 %s11, 2
      // Predicated region
      $region49: #{_lambda_.5} parent=47 // pred_check
        %p2014 = pneg %p177
      $region50: #{_lambda_.5} parent=47 // pred_check_branch
        %2016 = sbr.rel (%p2014) target = $region52
      $region51: #{_lambda_.5} parent=47 // pred_region
        %p2017 = scmp.lt.s32.totalorder %s22, 1
        %s2018 = scalar_select %p2017, %s22, 1
        %p2019 = scmp.lt.s32.totalorder %s23, 0
        %s2020 = scalar_select %p2019, %s23, 0
        %s2021 = smul.addr %s2020, 32
        %s2022 = smul.addr %s2018, 32
        %s2023 = sadd.s32 %s2021, %s2022
        %s2024 = smul.addr %s2023, 4
        %s2025 = scalar_lea.vmem %s5, %s2024
      $region52: #{_lambda_.5} parent=47 // pred_fallthru
        _
    $region48: #{_lambda_.5} parent=5 // pred_fallthru
      _
  $region6: #{_lambda_.5} parent=0 // loop_footer
    %s15 = sadd.s32 1, %s11
  $region7: #{_lambda_.5} parent=0 // loop_footer_branch
    %10 = sbr.rel target = $region3
  $region8: #{_lambda_.5} parent=0 // loop_exit
    _

// kernel: _lambda_.6
$region0: #{_lambda_.6}
  #allocation0 [shape = 'u32[]', space=smem, size = 0x4, offset = 0x4, fixed_abs, tag = 'smem constant byte address 0x4 - core index']
  #allocation1 [shape = 'u32[144,128]{1,0:T(1,128)}', space=vmem, size = 0x12000, scoped, tag = 'internal scratch']
  %s0 = inlined_call_operand.vmem [shape: bf16[2,9,2,9,256], index: 0, kind: input, shape index: {}, may-alias: {0,1}]
  %s1 = inlined_call_operand.vmem [shape: bf16[2,9,2,9,256], index: 1, kind: input, shape index: {}, may-alias: {0,1}]
  %s2 = inlined_call_operand.vmem [shape: bf16[1024,128], index: 2, kind: input, shape index: {}]
  %s3 = inlined_call_operand.vmem [shape: bf16[1024,128], index: 3, kind: input, shape index: {}]
  %s4 = inlined_call_operand.vmem [shape: f32[1,128], index: 4, kind: input, shape index: {}]
  %s5 = inlined_call_operand.vmem [shape: bf16[2,1,64,128], index: 5, kind: output, shape index: {}]
  %s6 = sld [smem:[#allocation0]]
  $region53: #{_lambda_.6} parent=0
    _
  %s8 = ssub.s32 1, %s6
  %s9 = scalar_select 0, %s8, %s6
  loop: start=0, step=1, limit=4
  $region2: #{_lambda_.6} parent=0 // loop_pre_header
    _
  $region3: #{_lambda_.6} parent=0 // loop_header
    %s11 = sphi 0, %s15
    %p12 = scmp.ge.s32.totalorder %s11, 4
    %s18 = sphi 0, %s30
    %s19 = sphi 0, %s26
    %s20 = sphi 0, %s18
    %s21 = sphi 0, %s19
    %s22 = sphi 0, %s20
    %s23 = sphi 0, %s21
    %s35 = sphi 0, %s37
    %s38 = sphi 0, %s35
    %s39 = sphi 0, %s38
    %s55 = sphi 0, %s39
    %s67 = sphi 0, %s69
    %s70 = sphi 0, %s67
    %s71 = sphi 0, %s70
    %s87 = sphi 0, %s71
    %s91 = sphi 0, %s91
    %s93 = sphi 0, %s91
    %s94 = sphi 0, %s93
    %s108 = sphi 0, %s94
    %s112 = sphi 0, %s112
    %s114 = sphi 0, %s112
    %s115 = sphi 0, %s114
    %s129 = sphi 0, %s115
    %s133 = sphi 0, %s133
    %s135 = sphi 0, %s133
    %s136 = sphi 0, %s135
    %s150 = sphi 0, %s136
    %s158 = sphi 0, %s160
    %s161 = sphi 0, %s158
    %s162 = sphi 0, %s161
    %s178 = sphi 0, %s162
  $region4: #{_lambda_.6} parent=0 // loop_header_branch
    %14 = sbr.rel (%p12) target = $region8
  $region5: #{_lambda_.6} parent=0 // loop_body
    %s16 = ssub.s32 %s11, 1
    %s17 = ssub.s32 %s11, 2
    %s24 = sadd.s32 1, %s19
    %p25 = scmp.ge.s32.totalorder %s24, 1
    %s26 = scalar_select %p25, 0, %s24
    %s27 = sadd.s32 1, %s18
    %s28 = scalar_select %p25, %s27, %s18
    %p29 = scmp.ge.s32.totalorder %s28, 2
    %s30 = scalar_select %p29, 0, %s28
    %s31 = ssub.s32 %s18, %s30
    %s32 = ssub.s32 %s19, %s26
    %s33 = sor.u32 %s31, %s32
    %p34 = scmp.eq.s32.totalorder %s33, 0
    %s36 = sadd.s32 %s35, 1
    %s37 = scalar_select %p34, %s35, %s36
    %p40 = pneg %p34
    %p41 = scmp.eq.s32.totalorder %s11, 1
    %p42 = por %p40, %p41
    %p43 = scmp.ne.s32.totalorder %s35, %s38
    %p44 = scmp.eq.s32.totalorder %s11, 0
    %p45 = por %p43, %p44
    %p46 = scmp.ne.s32.totalorder %s35, %s38
    %p47 = scmp.eq.s32.totalorder %s16, 1
    %p48 = por %p46, %p47
    %p49 = scmp.ne.s32.totalorder %s38, %s39
    %p50 = scmp.eq.s32.totalorder %s16, 0
    %p51 = por %p49, %p50
    %p52 = scmp.ne.s32.totalorder %s38, %s39
    %p53 = scmp.eq.s32.totalorder %s17, 1
    %p54 = por %p52, %p53
    %p56 = scmp.ne.s32.totalorder %s39, %s55
    %p57 = scmp.eq.s32.totalorder %s17, 0
    %p58 = por %p56, %p57
    %s59 = sadd.s32 %s19, 1
    %s60 = smul.u32 %s59, 8
    %s61 = sadd.s32 %s26, 1
    %s62 = smul.u32 %s61, 8
    %s63 = ssub.s32 %s18, %s30
    %s64 = ssub.s32 %s60, %s62
    %s65 = sor.u32 %s63, %s64
    %p66 = scmp.eq.s32.totalorder %s65, 0
    %s68 = sadd.s32 %s67, 1
    %s69 = scalar_select %p66, %s67, %s68
    %p72 = pneg %p66
    %p73 = scmp.eq.s32.totalorder %s11, 1
    %p74 = por %p72, %p73
    %p75 = scmp.ne.s32.totalorder %s67, %s70
    %p76 = scmp.eq.s32.totalorder %s11, 0
    %p77 = por %p75, %p76
    %p78 = scmp.ne.s32.totalorder %s67, %s70
    %p79 = scmp.eq.s32.totalorder %s16, 1
    %p80 = por %p78, %p79
    %p81 = scmp.ne.s32.totalorder %s70, %s71
    %p82 = scmp.eq.s32.totalorder %s16, 0
    %p83 = por %p81, %p82
    %p84 = scmp.ne.s32.totalorder %s70, %s71
    %p85 = scmp.eq.s32.totalorder %s17, 1
    %p86 = por %p84, %p85
    %p88 = scmp.ne.s32.totalorder %s71, %s87
    %p89 = scmp.eq.s32.totalorder %s17, 0
    %p90 = por %p88, %p89
    %s92 = sadd.s32 %s91, 1
    %p95 = scmp.eq.s32.totalorder %s11, 1
    %p96 = scmp.ne.s32.totalorder %s91, %s93
    %p97 = scmp.eq.s32.totalorder %s11, 0
    %p98 = por %p96, %p97
    %p99 = scmp.ne.s32.totalorder %s91, %s93
    %p100 = scmp.eq.s32.totalorder %s16, 1
    %p101 = por %p99, %p100
    %p102 = scmp.ne.s32.totalorder %s93, %s94
    %p103 = scmp.eq.s32.totalorder %s16, 0
    %p104 = por %p102, %p103
    %p105 = scmp.ne.s32.totalorder %s93, %s94
    %p106 = scmp.eq.s32.totalorder %s17, 1
    %p107 = por %p105, %p106
    %p109 = scmp.ne.s32.totalorder %s94, %s108
    %p110 = scmp.eq.s32.totalorder %s17, 0
    %p111 = por %p109, %p110
    %s113 = sadd.s32 %s112, 1
    %p116 = scmp.eq.s32.totalorder %s11, 1
    %p117 = scmp.ne.s32.totalorder %s112, %s114
    %p118 = scmp.eq.s32.totalorder %s11, 0
    %p119 = por %p117, %p118
    %p120 = scmp.ne.s32.totalorder %s112, %s114
    %p121 = scmp.eq.s32.totalorder %s16, 1
    %p122 = por %p120, %p121
    %p123 = scmp.ne.s32.totalorder %s114, %s115
    %p124 = scmp.eq.s32.totalorder %s16, 0
    %p125 = por %p123, %p124
    %p126 = scmp.ne.s32.totalorder %s114, %s115
    %p127 = scmp.eq.s32.totalorder %s17, 1
    %p128 = por %p126, %p127
    %p130 = scmp.ne.s32.totalorder %s115, %s129
    %p131 = scmp.eq.s32.totalorder %s17, 0
    %p132 = por %p130, %p131
    %s134 = sadd.s32 %s133, 1
    %p137 = scmp.eq.s32.totalorder %s11, 1
    %p138 = scmp.ne.s32.totalorder %s133, %s135
    %p139 = scmp.eq.s32.totalorder %s11, 0
    %p140 = por %p138, %p139
    %p141 = scmp.ne.s32.totalorder %s133, %s135
    %p142 = scmp.eq.s32.totalorder %s16, 1
    %p143 = por %p141, %p142
    %p144 = scmp.ne.s32.totalorder %s135, %s136
    %p145 = scmp.eq.s32.totalorder %s16, 0
    %p146 = por %p144, %p145
    %p147 = scmp.ne.s32.totalorder %s135, %s136
    %p148 = scmp.eq.s32.totalorder %s17, 1
    %p149 = por %p147, %p148
    %p151 = scmp.ne.s32.totalorder %s136, %s150
    %p152 = scmp.eq.s32.totalorder %s17, 0
    %p153 = por %p151, %p152
    %s154 = ssub.s32 %s18, %s30
    %s155 = ssub.s32 %s19, %s26
    %s156 = sor.u32 %s154, %s155
    %p157 = scmp.eq.s32.totalorder %s156, 0
    %s159 = sadd.s32 %s158, 1
    %s160 = scalar_select %p157, %s158, %s159
    %p163 = pneg %p157
    %p164 = scmp.eq.s32.totalorder %s11, 1
    %p165 = por %p163, %p164
    %p166 = scmp.ne.s32.totalorder %s158, %s161
    %p167 = scmp.eq.s32.totalorder %s11, 0
    %p168 = por %p166, %p167
    %p169 = scmp.ne.s32.totalorder %s158, %s161
    %p170 = scmp.eq.s32.totalorder %s16, 1
    %p171 = por %p169, %p170
    %p172 = scmp.ne.s32.totalorder %s161, %s162
    %p173 = scmp.eq.s32.totalorder %s16, 0
    %p174 = por %p172, %p173
    %p175 = scmp.ne.s32.totalorder %s161, %s162
    %p176 = scmp.eq.s32.totalorder %s17, 1
    %p177 = por %p175, %p176
    %p179 = scmp.ne.s32.totalorder %s162, %s178
    %p180 = scmp.eq.s32.totalorder %s17, 0
    %p181 = por %p179, %p180
    %p182 = scmp.le.s32.totalorder 1, %s11
    %p183 = scmp.lt.s32.totalorder %s11, 3
    %p184 = pnand %p182, %p183
    %p185 = pneg %p184
    // Predicated region
    $region9: #{_lambda_.6} parent=5 // pred_check
      _
    $region10: #{_lambda_.6} parent=5 // pred_check_branch
      %187 = sbr.rel (%p184) target = $region12
    $region11: #{_lambda_.6} parent=5 // pred_region
      %s188 = ssub.s32 %s11, 1
      // Predicated region
      $region13: #{_lambda_.6} parent=11 // pred_check
        %p189 = pneg %p104
      $region14: #{_lambda_.6} parent=11 // pred_check_branch
        %191 = sbr.rel (%p189) target = $region16
      $region15: #{_lambda_.6} parent=11 // pred_region
        _
      $region16: #{_lambda_.6} parent=11 // pred_fallthru
        _
      // Predicated region
      $region17: #{_lambda_.6} parent=11 // pred_check
        %p192 = pneg %p125
      $region18: #{_lambda_.6} parent=11 // pred_check_branch
        %194 = sbr.rel (%p192) target = $region20
      $region19: #{_lambda_.6} parent=11 // pred_region
        _
      $region20: #{_lambda_.6} parent=11 // pred_fallthru
        _
      // Predicated region
      $region21: #{_lambda_.6} parent=11 // pred_check
        %p195 = pneg %p146
      $region22: #{_lambda_.6} parent=11 // pred_check_branch
        %197 = sbr.rel (%p195) target = $region24
      $region23: #{_lambda_.6} parent=11 // pred_region
        _
      $region24: #{_lambda_.6} parent=11 // pred_fallthru
        _
    $region12: #{_lambda_.6} parent=5 // pred_fallthru
      _
    %p198 = scmp.lt.s32.totalorder %s11, 2
    // Predicated region
    $region25: #{_lambda_.6} parent=5 // pred_check
      %p199 = pneg %p198
    $region26: #{_lambda_.6} parent=5 // pred_check_branch
      %201 = sbr.rel (%p199) target = $region28
    $region27: #{_lambda_.6} parent=5 // pred_region
      // Predicated region
      $region29: #{_lambda_.6} parent=27 // pred_check
        %p202 = pneg %p45
      $region30: #{_lambda_.6} parent=27 // pred_check_branch
        %204 = sbr.rel (%p202) target = $region32
      $region31: #{_lambda_.6} parent=27 // pred_region
        %s205 = smul.u32 8, %s19
        %s206 = ssub.s32 9, %s205
        %p207 = scmp.lt.s32.totalorder %s206, 8
        %s208 = scalar_select %p207, %s206, 8
        %s209 = smul.u32 64, %s208
        %s210 = smul.u32 %s209, 2
        %s211 = smul.u32 %s210, 2
        %s212 = smul.u32 %s211, 2
        %p213 = scmp.lt.s32.totalorder %s18, 1
        %s214 = scalar_select %p213, %s18, 1
        %p215 = scmp.lt.s32.totalorder %s205, 8
        %s216 = scalar_select %p215, %s205, 8
        %s217 = smul.addr %s216, 8
        %s218 = smul.addr %s214, 72
        %s219 = sadd.s32 %s217, %s218
        %s220 = smul.addr %s219, 4
        %s221 = scalar_lea.vmem %s0, %s220
        %s222 = smul.u32 8, %s19
        %s223 = ssub.s32 9, %s222
        %p224 = scmp.lt.s32.totalorder %s223, 8
        %s225 = scalar_select %p224, %s223, 8
        %s226 = smul.u32 64, %s225
        %s227 = smul.u32 %s226, 2
        %s228 = smul.u32 %s227, 2
        %s229 = smul.u32 %s228, 2
      $region32: #{_lambda_.6} parent=27 // pred_fallthru
        _
      // Predicated region
      $region33: #{_lambda_.6} parent=27 // pred_check
        %p230 = pneg %p77
      $region34: #{_lambda_.6} parent=27 // pred_check_branch
        %232 = sbr.rel (%p230) target = $region36
      $region35: #{_lambda_.6} parent=27 // pred_region
        %s233 = sadd.s32 %s19, 1
        %s234 = smul.u32 %s233, 8
        %p235 = scmp.lt.s32.totalorder %s18, 1
        %s236 = scalar_select %p235, %s18, 1
        %p237 = scmp.lt.s32.totalorder %s234, 8
        %s238 = scalar_select %p237, %s234, 8
        %s239 = smul.addr %s238, 8
        %s240 = smul.addr %s236, 72
        %s241 = sadd.s32 %s239, %s240
        %s242 = smul.addr %s241, 4
        %s243 = scalar_lea.vmem %s1, %s242
        %s244 = sadd.s32 %s19, 1
        %s245 = smul.u32 %s244, 8
      $region36: #{_lambda_.6} parent=27 // pred_fallthru
        _
    $region28: #{_lambda_.6} parent=5 // pred_fallthru
      _
    %p246 = scmp.le.s32.totalorder 1, %s11
    %p247 = scmp.lt.s32.totalorder %s11, 3
    %p248 = pnand %p246, %p247
    %p249 = pneg %p248
    // Predicated region
    $region37: #{_lambda_.6} parent=5 // pred_check
      _
    $region38: #{_lambda_.6} parent=5 // pred_check_branch
      %251 = sbr.rel (%p248) target = $region40
    $region39: #{_lambda_.6} parent=5 // pred_region
      %s252 = ssub.s32 %s11, 1
      %s253 = smul.u32 8, %s21
      %s254 = ssub.s32 9, %s253
      %p255 = scmp.lt.s32.totalorder %s254, 8
      %s256 = scalar_select %p255, %s254, 8
      %s257 = smul.u32 64, %s256
      %s258 = smul.u32 %s257, 2
      %s259 = smul.u32 %s258, 2
      %s260 = smul.u32 %s259, 2
      %p261 = scmp.lt.s32.totalorder %s20, 1
      %s262 = scalar_select %p261, %s20, 1
      %p263 = scmp.lt.s32.totalorder %s253, 8
      %s264 = scalar_select %p263, %s253, 8
      %s265 = smul.addr %s264, 8
      %s266 = smul.addr %s262, 72
      %s267 = sadd.s32 %s265, %s266
      %s268 = smul.addr %s267, 4
      %s269 = scalar_lea.vmem %s0, %s268
      %p270 = pneg %p51
      %p271 = pneg %p48
      %s272 = sadd.s32 %s21, 1
      %s273 = smul.u32 %s272, 8
      %p274 = scmp.lt.s32.totalorder %s20, 1
      %s275 = scalar_select %p274, %s20, 1
      %p276 = scmp.lt.s32.totalorder %s273, 8
      %s277 = scalar_select %p276, %s273, 8
      %s278 = smul.addr %s277, 8
      %s279 = smul.addr %s275, 72
      %s280 = sadd.s32 %s278, %s279
      %s281 = smul.addr %s280, 4
      %s282 = scalar_lea.vmem %s1, %s281
      %p283 = pneg %p83
      %p284 = pneg %p80
      %p285 = pneg %p104
      %p286 = pneg %p101
      %p287 = pneg %p125
      %p288 = pneg %p122
      %p289 = pneg %p146
      %p290 = pneg %p143
      %p291 = pneg %p174
      %p292 = pneg %p171
      %p293 = scmp.lt.s32.totalorder %s20, 1
      %s294 = scalar_select %p293, %s20, 1
      %p295 = scmp.lt.s32.totalorder %s21, 0
      %s296 = scalar_select %p295, %s21, 0
      %s297 = smul.addr %s296, 8
      %s298 = smul.addr %s294, 8
      %s299 = sadd.s32 %s297, %s298
      %s300 = smul.addr %s299, 4
      %s301 = scalar_lea.vmem %s5, %s300
      %s302 = smul.u32 8, %s21
      %s303 = ssub.s32 9, %s302
      %p304 = scmp.lt.s32.totalorder %s303, 8
      %s305 = scalar_select %p304, %s303, 8
      %s306 = smul.u32 64, %s305
      %s307 = smul.u32 %s306, 2
      %s308 = smul.u32 %s307, 2
      %s309 = smul.u32 %s308, 2
      %p310 = scmp.lt.s32.totalorder %s20, 1
      %s311 = scalar_select %p310, %s20, 1
      %p312 = scmp.lt.s32.totalorder %s302, 8
      %s313 = scalar_select %p312, %s302, 8
      %s314 = smul.addr %s313, 8
      %s315 = smul.addr %s311, 72
      %s316 = sadd.s32 %s314, %s315
      %s317 = smul.addr %s316, 4
      %s318 = scalar_lea.vmem %s0, %s317
      %s319 = smul.u32 8, %s21
      %s320 = ssub.s32 9, %s319
      %p321 = scmp.lt.s32.totalorder %s320, 8
      %s322 = scalar_select %p321, %s320, 8
      %s323 = smul.u32 64, %s322
      %s324 = smul.u32 %s323, 2
      %s325 = smul.u32 %s324, 2
      %s326 = smul.u32 %s325, 2
      %s327 = sadd.s32 %s21, 1
      %s328 = smul.u32 %s327, 8
      %p329 = scmp.lt.s32.totalorder %s20, 1
      %s330 = scalar_select %p329, %s20, 1
      %p331 = scmp.lt.s32.totalorder %s328, 8
      %s332 = scalar_select %p331, %s328, 8
      %s333 = smul.addr %s332, 8
      %s334 = smul.addr %s330, 72
      %s335 = sadd.s32 %s333, %s334
      %s336 = smul.addr %s335, 4
      %s337 = scalar_lea.vmem %s1, %s336
      %s338 = sadd.s32 %s21, 1
      %s339 = smul.u32 %s338, 8
      %p340 = scmp.lt.s32.totalorder %s20, 1
      %s341 = scalar_select %p340, %s20, 1
      %p342 = scmp.lt.s32.totalorder %s21, 0
      %s343 = scalar_select %p342, %s21, 0
      %s344 = smul.addr %s343, 8
      %s345 = smul.addr %s341, 8
      %s346 = sadd.s32 %s344, %s345
      %s347 = smul.addr %s346, 4
      %s348 = scalar_lea.vmem %s5, %s347
      %v350 = vld [vmem:[%s318] sm:$0xff]
      %v351 = vld [vmem:[%s318 + $0x8] sm:$0x11]
      %v352 = vld [vmem:[%s318 + $0x10] sm:$0xff]
      %v353 = vld [vmem:[%s318 + $0x18] sm:$0x11]
      %v354 = vld [vmem:[%s318 + $0x20] sm:$0xff]
      %v355 = vld [vmem:[%s318 + $0x28] sm:$0x11]
      %v356 = vld [vmem:[%s318 + $0x30] sm:$0xff]
      %v357 = vld [vmem:[%s318 + $0x38] sm:$0x11]
      %v358 = vld [vmem:[%s318 + $0x40] sm:$0xff]
      %v359 = vld [vmem:[%s318 + $0x48] sm:$0x11]
      %v360 = vld [vmem:[%s318 + $0x50] sm:$0xff]
      %v361 = vld [vmem:[%s318 + $0x58] sm:$0x11]
      %v362 = vld [vmem:[%s318 + $0x60] sm:$0xff]
      %v363 = vld [vmem:[%s318 + $0x68] sm:$0x11]
      %v364 = vld [vmem:[%s318 + $0x70] sm:$0xff]
      %v365 = vld [vmem:[%s318 + $0x78] sm:$0x11]
      %v366 = vld [vmem:[%s318 + $0x80] sm:$0xff]
      %v367 = vld [vmem:[%s318 + $0x88] sm:$0x11]
      %v368 = vld [vmem:[%s318 + $0x90] sm:$0xff]
      %v369 = vld [vmem:[%s318 + $0x98] sm:$0x11]
      %v370 = vld [vmem:[%s318 + $0xa0] sm:$0xff]
      %v371 = vld [vmem:[%s318 + $0xa8] sm:$0x11]
      %v372 = vld [vmem:[%s318 + $0xb0] sm:$0xff]
      %v373 = vld [vmem:[%s318 + $0xb8] sm:$0x11]
      %v374 = vld [vmem:[%s318 + $0xc0] sm:$0xff]
      %v375 = vld [vmem:[%s318 + $0xc8] sm:$0x11]
      %v376 = vld [vmem:[%s318 + $0xd0] sm:$0xff]
      %v377 = vld [vmem:[%s318 + $0xd8] sm:$0x11]
      %v378 = vld [vmem:[%s318 + $0xe0] sm:$0xff]
      %v379 = vld [vmem:[%s318 + $0xe8] sm:$0x11]
      %v380 = vld [vmem:[%s318 + $0xf0] sm:$0xff]
      %v381 = vld [vmem:[%s318 + $0xf8] sm:$0x11]
      %v382 = vld [vmem:[%s337] sm:$0xff]
      %v383 = vld [vmem:[%s337 + $0x8] sm:$0x11]
      %v384 = vld [vmem:[%s337 + $0x10] sm:$0xff]
      %v385 = vld [vmem:[%s337 + $0x18] sm:$0x11]
      %v402 = vunpack.c.l.b16 %v350
      %v403 = vunpack.c.h.b16 %v350
      %v404 = vunpack.c.l.b16 %v351
      %v405 = vunpack.c.h.b16 %v351
      %v406 = vunpack.c.l.b16 %v354
      %v407 = vunpack.c.h.b16 %v354
      %v408 = vunpack.c.l.b16 %v355
      %v409 = vunpack.c.h.b16 %v355
      %v410 = vunpack.c.l.b16 %v358
      %v411 = vunpack.c.h.b16 %v358
      %v412 = vunpack.c.l.b16 %v359
      %v413 = vunpack.c.h.b16 %v359
      %v414 = vunpack.c.l.b16 %v362
      %v415 = vunpack.c.h.b16 %v362
      %v416 = vunpack.c.l.b16 %v363
      %v417 = vunpack.c.h.b16 %v363
      %v418 = vunpack.c.l.b16 %v366
      %v419 = vunpack.c.h.b16 %v366
      %v420 = vunpack.c.l.b16 %v367
      %v421 = vunpack.c.h.b16 %v367
      %v422 = vunpack.c.l.b16 %v370
      %v423 = vunpack.c.h.b16 %v370
      %v424 = vunpack.c.l.b16 %v371
      %v425 = vunpack.c.h.b16 %v371
      %v426 = vunpack.c.l.b16 %v374
      %v427 = vunpack.c.h.b16 %v374
      %v428 = vunpack.c.l.b16 %v375
      %v429 = vunpack.c.h.b16 %v375
      %v430 = vunpack.c.l.b16 %v378
      %v431 = vunpack.c.h.b16 %v378
      %v432 = vunpack.c.l.b16 %v379
      %v433 = vunpack.c.h.b16 %v379
      %v450 = vunpack.c.l.b16 %v352
      %v451 = vunpack.c.h.b16 %v352
      %v452 = vunpack.c.l.b16 %v353
      %v453 = vunpack.c.h.b16 %v353
      %v454 = vunpack.c.l.b16 %v356
      %v455 = vunpack.c.h.b16 %v356
      %v456 = vunpack.c.l.b16 %v357
      %v457 = vunpack.c.h.b16 %v357
      %v458 = vunpack.c.l.b16 %v360
      %v459 = vunpack.c.h.b16 %v360
      %v460 = vunpack.c.l.b16 %v361
      %v461 = vunpack.c.h.b16 %v361
      %v462 = vunpack.c.l.b16 %v364
      %v463 = vunpack.c.h.b16 %v364
      %v464 = vunpack.c.l.b16 %v365
      %v465 = vunpack.c.h.b16 %v365
      %v466 = vunpack.c.l.b16 %v368
      %v467 = vunpack.c.h.b16 %v368
      %v468 = vunpack.c.l.b16 %v369
      %v469 = vunpack.c.h.b16 %v369
      %v470 = vunpack.c.l.b16 %v372
      %v471 = vunpack.c.h.b16 %v372
      %v472 = vunpack.c.l.b16 %v373
      %v473 = vunpack.c.h.b16 %v373
      %v474 = vunpack.c.l.b16 %v376
      %v475 = vunpack.c.h.b16 %v376
      %v476 = vunpack.c.l.b16 %v377
      %v477 = vunpack.c.h.b16 %v377
      %v478 = vunpack.c.l.b16 %v380
      %v479 = vunpack.c.h.b16 %v380
      %v480 = vunpack.c.l.b16 %v381
      %v481 = vunpack.c.h.b16 %v381
      %v484 = vunpack.c.l.b16 %v382
      %v485 = vunpack.c.h.b16 %v382
      %v486 = vunpack.c.l.b16 %v383
      %v487 = vunpack.c.h.b16 %v383
      %v490 = vunpack.c.l.b16 %v384
      %v491 = vunpack.c.h.b16 %v384
      %v492 = vunpack.c.l.b16 %v385
      %v493 = vunpack.c.h.b16 %v385
      %v494 = vpack.c.b16 %v403, %v402
      %v495 = vpack.c.b16 %v451, %v450
      %v496 = vpack.c.b16 %v407, %v406
      %v497 = vpack.c.b16 %v455, %v454
      %v498 = vpack.c.b16 %v405, %v404
      %v499 = vpack.c.b16 %v453, %v452
      %v500 = vpack.c.b16 %v409, %v408
      %v501 = vpack.c.b16 %v457, %v456
      %v502 = vpack.c.b16 %v411, %v410
      %v503 = vpack.c.b16 %v459, %v458
      %v504 = vpack.c.b16 %v413, %v412
      %v505 = vpack.c.b16 %v461, %v460
      %v506 = vpack.c.b16 %v415, %v414
      %v507 = vpack.c.b16 %v463, %v462
      %v508 = vpack.c.b16 %v417, %v416
      %v509 = vpack.c.b16 %v465, %v464
      %v510 = vpack.c.b16 %v419, %v418
      %v511 = vpack.c.b16 %v467, %v466
      %v512 = vpack.c.b16 %v421, %v420
      %v513 = vpack.c.b16 %v469, %v468
      %v514 = vpack.c.b16 %v423, %v422
      %v515 = vpack.c.b16 %v471, %v470
      %v516 = vpack.c.b16 %v425, %v424
      %v517 = vpack.c.b16 %v473, %v472
      %v518 = vpack.c.b16 %v427, %v426
      %v519 = vpack.c.b16 %v475, %v474
      %v520 = vpack.c.b16 %v429, %v428
      %v521 = vpack.c.b16 %v477, %v476
      %v522 = vpack.c.b16 %v431, %v430
      %v523 = vpack.c.b16 %v479, %v478
      %v524 = vpack.c.b16 %v433, %v432
      %v525 = vpack.c.b16 %v481, %v480
      %v526 = vpack.c.b16 %v485, %v484
      %v527 = vpack.c.b16 %v491, %v490
      %v528 = vpack.c.b16 %v487, %v486
      %v529 = vpack.c.b16 %v493, %v492
      %vm530 = vsmask.f32 3328
      %vm531 = vsmask.f32 7440
      %vm532 = vmor %vm530, %vm531
      %v534 = vshrl.u32 %v494, 16
      %v536 = vrot.slane %v534, 4
      %v537 = vshll.u32 %v494, 16
      %v539 = vrot.slane %v537, 5
      %v540 = vor.u32 %v536, %v539
      %v541 = vrot.slane %v540, 4
      %v543 = vshll.u32 %v498, 16
      %v545 = vrot.slane %v543, 5
      %v546 = vsel %vm532, %v541, %v545
      %v548 = vshrl.u32 %v495, 16
      %v550 = vrot.slane %v548, 4
      %v551 = vshll.u32 %v495, 16
      %v553 = vrot.slane %v551, 5
      %v554 = vor.u32 %v550, %v553
      %v555 = vrot.slane %v554, 4
      %v557 = vshll.u32 %v499, 16
      %v559 = vrot.slane %v557, 5
      %v560 = vsel %vm532, %v555, %v559
      %v562 = vshrl.u32 %v496, 16
      %v564 = vrot.slane %v562, 4
      %v565 = vshll.u32 %v496, 16
      %v567 = vrot.slane %v565, 5
      %v568 = vor.u32 %v564, %v567
      %v569 = vrot.slane %v568, 4
      %v571 = vshll.u32 %v500, 16
      %v573 = vrot.slane %v571, 5
      %v574 = vsel %vm532, %v569, %v573
      %v576 = vshrl.u32 %v497, 16
      %v578 = vrot.slane %v576, 4
      %v579 = vshll.u32 %v497, 16
      %v581 = vrot.slane %v579, 5
      %v582 = vor.u32 %v578, %v581
      %v583 = vrot.slane %v582, 4
      %v585 = vshll.u32 %v501, 16
      %v587 = vrot.slane %v585, 5
      %v588 = vsel %vm532, %v583, %v587
      %v590 = vshrl.u32 %v502, 16
      %v592 = vrot.slane %v590, 4
      %v593 = vshll.u32 %v502, 16
      %v595 = vrot.slane %v593, 5
      %v596 = vor.u32 %v592, %v595
      %v597 = vrot.slane %v596, 4
      %v599 = vshll.u32 %v504, 16
      %v601 = vrot.slane %v599, 5
      %v602 = vsel %vm532, %v597, %v601
      %v604 = vshrl.u32 %v503, 16
      %v606 = vrot.slane %v604, 4
      %v607 = vshll.u32 %v503, 16
      %v609 = vrot.slane %v607, 5
      %v610 = vor.u32 %v606, %v609
      %v611 = vrot.slane %v610, 4
      %v613 = vshll.u32 %v505, 16
      %v615 = vrot.slane %v613, 5
      %v616 = vsel %vm532, %v611, %v615
      %v618 = vshrl.u32 %v506, 16
      %v620 = vrot.slane %v618, 4
      %v621 = vshll.u32 %v506, 16
      %v623 = vrot.slane %v621, 5
      %v624 = vor.u32 %v620, %v623
      %v625 = vrot.slane %v624, 4
      %v627 = vshll.u32 %v508, 16
      %v629 = vrot.slane %v627, 5
      %v630 = vsel %vm532, %v625, %v629
      %v632 = vshrl.u32 %v507, 16
      %v634 = vrot.slane %v632, 4
      %v635 = vshll.u32 %v507, 16
      %v637 = vrot.slane %v635, 5
      %v638 = vor.u32 %v634, %v637
      %v639 = vrot.slane %v638, 4
      %v641 = vshll.u32 %v509, 16
      %v643 = vrot.slane %v641, 5
      %v644 = vsel %vm532, %v639, %v643
      %v646 = vshrl.u32 %v510, 16
      %v648 = vrot.slane %v646, 4
      %v649 = vshll.u32 %v510, 16
      %v651 = vrot.slane %v649, 5
      %v652 = vor.u32 %v648, %v651
      %v653 = vrot.slane %v652, 4
      %v655 = vshll.u32 %v512, 16
      %v657 = vrot.slane %v655, 5
      %v658 = vsel %vm532, %v653, %v657
      %v660 = vshrl.u32 %v511, 16
      %v662 = vrot.slane %v660, 4
      %v663 = vshll.u32 %v511, 16
      %v665 = vrot.slane %v663, 5
      %v666 = vor.u32 %v662, %v665
      %v667 = vrot.slane %v666, 4
      %v669 = vshll.u32 %v513, 16
      %v671 = vrot.slane %v669, 5
      %v672 = vsel %vm532, %v667, %v671
      %v674 = vshrl.u32 %v514, 16
      %v676 = vrot.slane %v674, 4
      %v677 = vshll.u32 %v514, 16
      %v679 = vrot.slane %v677, 5
      %v680 = vor.u32 %v676, %v679
      %v681 = vrot.slane %v680, 4
      %v683 = vshll.u32 %v516, 16
      %v685 = vrot.slane %v683, 5
      %v686 = vsel %vm532, %v681, %v685
      %v688 = vshrl.u32 %v515, 16
      %v690 = vrot.slane %v688, 4
      %v691 = vshll.u32 %v515, 16
      %v693 = vrot.slane %v691, 5
      %v694 = vor.u32 %v690, %v693
      %v695 = vrot.slane %v694, 4
      %v697 = vshll.u32 %v517, 16
      %v699 = vrot.slane %v697, 5
      %v700 = vsel %vm532, %v695, %v699
      %v702 = vshrl.u32 %v518, 16
      %v704 = vrot.slane %v702, 4
      %v705 = vshll.u32 %v518, 16
      %v707 = vrot.slane %v705, 5
      %v708 = vor.u32 %v704, %v707
      %v709 = vrot.slane %v708, 4
      %v711 = vshll.u32 %v520, 16
      %v713 = vrot.slane %v711, 5
      %v714 = vsel %vm532, %v709, %v713
      %v716 = vshrl.u32 %v519, 16
      %v718 = vrot.slane %v716, 4
      %v719 = vshll.u32 %v519, 16
      %v721 = vrot.slane %v719, 5
      %v722 = vor.u32 %v718, %v721
      %v723 = vrot.slane %v722, 4
      %v725 = vshll.u32 %v521, 16
      %v727 = vrot.slane %v725, 5
      %v728 = vsel %vm532, %v723, %v727
      %v730 = vshrl.u32 %v522, 16
      %v732 = vrot.slane %v730, 4
      %v733 = vshll.u32 %v522, 16
      %v735 = vrot.slane %v733, 5
      %v736 = vor.u32 %v732, %v735
      %v737 = vrot.slane %v736, 4
      %v739 = vshll.u32 %v524, 16
      %v741 = vrot.slane %v739, 5
      %v742 = vsel %vm532, %v737, %v741
      %v744 = vshrl.u32 %v523, 16
      %v746 = vrot.slane %v744, 4
      %v747 = vshll.u32 %v523, 16
      %v749 = vrot.slane %v747, 5
      %v750 = vor.u32 %v746, %v749
      %v751 = vrot.slane %v750, 4
      %v753 = vshll.u32 %v525, 16
      %v755 = vrot.slane %v753, 5
      %v756 = vsel %vm532, %v751, %v755
      %v758 = vshrl.u32 %v526, 16
      %v760 = vrot.slane %v758, 4
      %v761 = vshll.u32 %v526, 16
      %v763 = vrot.slane %v761, 5
      %v764 = vor.u32 %v760, %v763
      %v765 = vrot.slane %v764, 4
      %v767 = vshll.u32 %v528, 16
      %v769 = vrot.slane %v767, 5
      %v770 = vsel %vm532, %v765, %v769
      %v772 = vshrl.u32 %v527, 16
      %v774 = vrot.slane %v772, 4
      %v775 = vshll.u32 %v527, 16
      %v777 = vrot.slane %v775, 5
      %v778 = vor.u32 %v774, %v777
      %v779 = vrot.slane %v778, 4
      %v781 = vshll.u32 %v529, 16
      %v783 = vrot.slane %v781, 5
      %v784 = vsel %vm532, %v779, %v783
      %v785 = vld [vmem:[%s2] sm:$0xf]
      %v786 = vld [vmem:[%s2 + $0x4] sm:$0xf]
      %v787 = vld [vmem:[%s2 + $0x8] sm:$0xf]
      %v788 = vld [vmem:[%s2 + $0xc] sm:$0xf]
      %v789 = vld [vmem:[%s2 + $0x10] sm:$0xf]
      %v790 = vld [vmem:[%s2 + $0x14] sm:$0xf]
      %v791 = vld [vmem:[%s2 + $0x18] sm:$0xf]
      %v792 = vld [vmem:[%s2 + $0x1c] sm:$0xf]
      %v793 = vld [vmem:[%s2 + $0x20] sm:$0xf]
      %v794 = vld [vmem:[%s2 + $0x24] sm:$0xf]
      %v795 = vld [vmem:[%s2 + $0x28] sm:$0xf]
      %v796 = vld [vmem:[%s2 + $0x2c] sm:$0xf]
      %v797 = vld [vmem:[%s2 + $0x30] sm:$0xf]
      %v798 = vld [vmem:[%s2 + $0x34] sm:$0xf]
      %v799 = vld [vmem:[%s2 + $0x38] sm:$0xf]
      %v800 = vld [vmem:[%s2 + $0x3c] sm:$0xf]
      %v801 = vld [vmem:[%s2 + $0x40] sm:$0xf]
      %v802 = vld [vmem:[%s2 + $0x44] sm:$0xf]
      %v803 = vld [vmem:[%s2 + $0x48] sm:$0xf]
      %v804 = vld [vmem:[%s2 + $0x4c] sm:$0xf]
      %v805 = vld [vmem:[%s2 + $0x50] sm:$0xf]
      %v806 = vld [vmem:[%s2 + $0x54] sm:$0xf]
      %v807 = vld [vmem:[%s2 + $0x58] sm:$0xf]
      %v808 = vld [vmem:[%s2 + $0x5c] sm:$0xf]
      %v809 = vld [vmem:[%s2 + $0x60] sm:$0xf]
      %v810 = vld [vmem:[%s2 + $0x64] sm:$0xf]
      %v811 = vld [vmem:[%s2 + $0x68] sm:$0xf]
      %v812 = vld [vmem:[%s2 + $0x6c] sm:$0xf]
      %v813 = vld [vmem:[%s2 + $0x70] sm:$0xf]
      %v814 = vld [vmem:[%s2 + $0x74] sm:$0xf]
      %v815 = vld [vmem:[%s2 + $0x78] sm:$0xf]
      %v816 = vld [vmem:[%s2 + $0x7c] sm:$0xf]
      %v817 = vld [vmem:[%s2 + $0x80] sm:$0xf]
      %v818 = vld [vmem:[%s2 + $0x84] sm:$0xf]
      %v819 = vld [vmem:[%s2 + $0x88] sm:$0xf]
      %v820 = vld [vmem:[%s2 + $0x8c] sm:$0xf]
      %v821 = vld [vmem:[%s2 + $0x90] sm:$0xf]
      %v822 = vld [vmem:[%s2 + $0x94] sm:$0xf]
      %v823 = vld [vmem:[%s2 + $0x98] sm:$0xf]
      %v824 = vld [vmem:[%s2 + $0x9c] sm:$0xf]
      %v825 = vld [vmem:[%s2 + $0xa0] sm:$0xf]
      %v826 = vld [vmem:[%s2 + $0xa4] sm:$0xf]
      %v827 = vld [vmem:[%s2 + $0xa8] sm:$0xf]
      %v828 = vld [vmem:[%s2 + $0xac] sm:$0xf]
      %v829 = vld [vmem:[%s2 + $0xb0] sm:$0xf]
      %v830 = vld [vmem:[%s2 + $0xb4] sm:$0xf]
      %v831 = vld [vmem:[%s2 + $0xb8] sm:$0xf]
      %v832 = vld [vmem:[%s2 + $0xbc] sm:$0xf]
      %v833 = vld [vmem:[%s2 + $0xc0] sm:$0xf]
      %v834 = vld [vmem:[%s2 + $0xc4] sm:$0xf]
      %v835 = vld [vmem:[%s2 + $0xc8] sm:$0xf]
      %v836 = vld [vmem:[%s2 + $0xcc] sm:$0xf]
      %v837 = vld [vmem:[%s2 + $0xd0] sm:$0xf]
      %v838 = vld [vmem:[%s2 + $0xd4] sm:$0xf]
      %v839 = vld [vmem:[%s2 + $0xd8] sm:$0xf]
      %v840 = vld [vmem:[%s2 + $0xdc] sm:$0xf]
      %v841 = vld [vmem:[%s2 + $0xe0] sm:$0xf]
      %v842 = vld [vmem:[%s2 + $0xe4] sm:$0xf]
      %v843 = vld [vmem:[%s2 + $0xe8] sm:$0xf]
      %v844 = vld [vmem:[%s2 + $0xec] sm:$0xf]
      %v845 = vld [vmem:[%s2 + $0xf0] sm:$0xf]
      %v846 = vld [vmem:[%s2 + $0xf4] sm:$0xf]
      %v847 = vld [vmem:[%s2 + $0xf8] sm:$0xf]
      %v848 = vld [vmem:[%s2 + $0xfc] sm:$0xf]
      %v849 = vld [vmem:[%s2 + $0x100] sm:$0xf]
      %v850 = vld [vmem:[%s2 + $0x104] sm:$0xf]
      %v851 = vld [vmem:[%s2 + $0x108] sm:$0xf]
      %v852 = vld [vmem:[%s2 + $0x10c] sm:$0xf]
      %v853 = vld [vmem:[%s2 + $0x110] sm:$0xf]
      %v854 = vld [vmem:[%s2 + $0x114] sm:$0xf]
      %v855 = vld [vmem:[%s2 + $0x118] sm:$0xf]
      %v856 = vld [vmem:[%s2 + $0x11c] sm:$0xf]
      %v857 = vld [vmem:[%s2 + $0x120] sm:$0xf]
      %v858 = vld [vmem:[%s2 + $0x124] sm:$0xf]
      %v859 = vld [vmem:[%s2 + $0x128] sm:$0xf]
      %v860 = vld [vmem:[%s2 + $0x12c] sm:$0xf]
      %v861 = vld [vmem:[%s2 + $0x130] sm:$0xf]
      %v862 = vld [vmem:[%s2 + $0x134] sm:$0xf]
      %v863 = vld [vmem:[%s2 + $0x138] sm:$0xf]
      %v864 = vld [vmem:[%s2 + $0x13c] sm:$0xf]
      %v865 = vld [vmem:[%s2 + $0x140] sm:$0xf]
      %v866 = vld [vmem:[%s2 + $0x144] sm:$0xf]
      %v867 = vld [vmem:[%s2 + $0x148] sm:$0xf]
      %v868 = vld [vmem:[%s2 + $0x14c] sm:$0xf]
      %v869 = vld [vmem:[%s2 + $0x150] sm:$0xf]
      %v870 = vld [vmem:[%s2 + $0x154] sm:$0xf]
      %v871 = vld [vmem:[%s2 + $0x158] sm:$0xf]
      %v872 = vld [vmem:[%s2 + $0x15c] sm:$0xf]
      %v873 = vld [vmem:[%s2 + $0x160] sm:$0xf]
      %v874 = vld [vmem:[%s2 + $0x164] sm:$0xf]
      %v875 = vld [vmem:[%s2 + $0x168] sm:$0xf]
      %v876 = vld [vmem:[%s2 + $0x16c] sm:$0xf]
      %v877 = vld [vmem:[%s2 + $0x170] sm:$0xf]
      %v878 = vld [vmem:[%s2 + $0x174] sm:$0xf]
      %v879 = vld [vmem:[%s2 + $0x178] sm:$0xf]
      %v880 = vld [vmem:[%s2 + $0x17c] sm:$0xf]
      %v881 = vld [vmem:[%s2 + $0x180] sm:$0xf]
      %v882 = vld [vmem:[%s2 + $0x184] sm:$0xf]
      %v883 = vld [vmem:[%s2 + $0x188] sm:$0xf]
      %v884 = vld [vmem:[%s2 + $0x18c] sm:$0xf]
      %v885 = vld [vmem:[%s2 + $0x190] sm:$0xf]
      %v886 = vld [vmem:[%s2 + $0x194] sm:$0xf]
      %v887 = vld [vmem:[%s2 + $0x198] sm:$0xf]
      %v888 = vld [vmem:[%s2 + $0x19c] sm:$0xf]
      %v889 = vld [vmem:[%s2 + $0x1a0] sm:$0xf]
      %v890 = vld [vmem:[%s2 + $0x1a4] sm:$0xf]
      %v891 = vld [vmem:[%s2 + $0x1a8] sm:$0xf]
      %v892 = vld [vmem:[%s2 + $0x1ac] sm:$0xf]
      %v893 = vld [vmem:[%s2 + $0x1b0] sm:$0xf]
      %v894 = vld [vmem:[%s2 + $0x1b4] sm:$0xf]
      %v895 = vld [vmem:[%s2 + $0x1b8] sm:$0xf]
      %v896 = vld [vmem:[%s2 + $0x1bc] sm:$0xf]
      %v897 = vld [vmem:[%s2 + $0x1c0] sm:$0xf]
      %v898 = vld [vmem:[%s2 + $0x1c4] sm:$0xf]
      %v899 = vld [vmem:[%s2 + $0x1c8] sm:$0xf]
      %v900 = vld [vmem:[%s2 + $0x1cc] sm:$0xf]
      %v901 = vld [vmem:[%s2 + $0x1d0] sm:$0xf]
      %v902 = vld [vmem:[%s2 + $0x1d4] sm:$0xf]
      %v903 = vld [vmem:[%s2 + $0x1d8] sm:$0xf]
      %v904 = vld [vmem:[%s2 + $0x1dc] sm:$0xf]
      %v905 = vld [vmem:[%s2 + $0x1e0] sm:$0xf]
      %v906 = vld [vmem:[%s2 + $0x1e4] sm:$0xf]
      %v907 = vld [vmem:[%s2 + $0x1e8] sm:$0xf]
      %v908 = vld [vmem:[%s2 + $0x1ec] sm:$0xf]
      %v909 = vld [vmem:[%s2 + $0x1f0] sm:$0xf]
      %v910 = vld [vmem:[%s2 + $0x1f4] sm:$0xf]
      %v911 = vld [vmem:[%s2 + $0x1f8] sm:$0xf]
      %v912 = vld [vmem:[%s2 + $0x1fc] sm:$0xf]
      %v913 = vld [vmem:[%s3] sm:$0xf]
      %v914 = vld [vmem:[%s3 + $0x4] sm:$0xf]
      %v915 = vld [vmem:[%s3 + $0x8] sm:$0xf]
      %v916 = vld [vmem:[%s3 + $0xc] sm:$0xf]
      %v917 = vld [vmem:[%s3 + $0x10] sm:$0xf]
      %v918 = vld [vmem:[%s3 + $0x14] sm:$0xf]
      %v919 = vld [vmem:[%s3 + $0x18] sm:$0xf]
      %v920 = vld [vmem:[%s3 + $0x1c] sm:$0xf]
      %v921 = vld [vmem:[%s3 + $0x20] sm:$0xf]
      %v922 = vld [vmem:[%s3 + $0x24] sm:$0xf]
      %v923 = vld [vmem:[%s3 + $0x28] sm:$0xf]
      %v924 = vld [vmem:[%s3 + $0x2c] sm:$0xf]
      %v925 = vld [vmem:[%s3 + $0x30] sm:$0xf]
      %v926 = vld [vmem:[%s3 + $0x34] sm:$0xf]
      %v927 = vld [vmem:[%s3 + $0x38] sm:$0xf]
      %v928 = vld [vmem:[%s3 + $0x3c] sm:$0xf]
      %v929 = vld [vmem:[%s3 + $0x40] sm:$0xf]
      %v930 = vld [vmem:[%s3 + $0x44] sm:$0xf]
      %v931 = vld [vmem:[%s3 + $0x48] sm:$0xf]
      %v932 = vld [vmem:[%s3 + $0x4c] sm:$0xf]
      %v933 = vld [vmem:[%s3 + $0x50] sm:$0xf]
      %v934 = vld [vmem:[%s3 + $0x54] sm:$0xf]
      %v935 = vld [vmem:[%s3 + $0x58] sm:$0xf]
      %v936 = vld [vmem:[%s3 + $0x5c] sm:$0xf]
      %v937 = vld [vmem:[%s3 + $0x60] sm:$0xf]
      %v938 = vld [vmem:[%s3 + $0x64] sm:$0xf]
      %v939 = vld [vmem:[%s3 + $0x68] sm:$0xf]
      %v940 = vld [vmem:[%s3 + $0x6c] sm:$0xf]
      %v941 = vld [vmem:[%s3 + $0x70] sm:$0xf]
      %v942 = vld [vmem:[%s3 + $0x74] sm:$0xf]
      %v943 = vld [vmem:[%s3 + $0x78] sm:$0xf]
      %v944 = vld [vmem:[%s3 + $0x7c] sm:$0xf]
      %v945 = vld [vmem:[%s3 + $0x80] sm:$0xf]
      %v946 = vld [vmem:[%s3 + $0x84] sm:$0xf]
      %v947 = vld [vmem:[%s3 + $0x88] sm:$0xf]
      %v948 = vld [vmem:[%s3 + $0x8c] sm:$0xf]
      %v949 = vld [vmem:[%s3 + $0x90] sm:$0xf]
      %v950 = vld [vmem:[%s3 + $0x94] sm:$0xf]
      %v951 = vld [vmem:[%s3 + $0x98] sm:$0xf]
      %v952 = vld [vmem:[%s3 + $0x9c] sm:$0xf]
      %v953 = vld [vmem:[%s3 + $0xa0] sm:$0xf]
      %v954 = vld [vmem:[%s3 + $0xa4] sm:$0xf]
      %v955 = vld [vmem:[%s3 + $0xa8] sm:$0xf]
      %v956 = vld [vmem:[%s3 + $0xac] sm:$0xf]
      %v957 = vld [vmem:[%s3 + $0xb0] sm:$0xf]
      %v958 = vld [vmem:[%s3 + $0xb4] sm:$0xf]
      %v959 = vld [vmem:[%s3 + $0xb8] sm:$0xf]
      %v960 = vld [vmem:[%s3 + $0xbc] sm:$0xf]
      %v961 = vld [vmem:[%s3 + $0xc0] sm:$0xf]
      %v962 = vld [vmem:[%s3 + $0xc4] sm:$0xf]
      %v963 = vld [vmem:[%s3 + $0xc8] sm:$0xf]
      %v964 = vld [vmem:[%s3 + $0xcc] sm:$0xf]
      %v965 = vld [vmem:[%s3 + $0xd0] sm:$0xf]
      %v966 = vld [vmem:[%s3 + $0xd4] sm:$0xf]
      %v967 = vld [vmem:[%s3 + $0xd8] sm:$0xf]
      %v968 = vld [vmem:[%s3 + $0xdc] sm:$0xf]
      %v969 = vld [vmem:[%s3 + $0xe0] sm:$0xf]
      %v970 = vld [vmem:[%s3 + $0xe4] sm:$0xf]
      %v971 = vld [vmem:[%s3 + $0xe8] sm:$0xf]
      %v972 = vld [vmem:[%s3 + $0xec] sm:$0xf]
      %v973 = vld [vmem:[%s3 + $0xf0] sm:$0xf]
      %v974 = vld [vmem:[%s3 + $0xf4] sm:$0xf]
      %v975 = vld [vmem:[%s3 + $0xf8] sm:$0xf]
      %v976 = vld [vmem:[%s3 + $0xfc] sm:$0xf]
      %v977 = vld [vmem:[%s3 + $0x100] sm:$0xf]
      %v978 = vld [vmem:[%s3 + $0x104] sm:$0xf]
      %v979 = vld [vmem:[%s3 + $0x108] sm:$0xf]
      %v980 = vld [vmem:[%s3 + $0x10c] sm:$0xf]
      %v981 = vld [vmem:[%s3 + $0x110] sm:$0xf]
      %v982 = vld [vmem:[%s3 + $0x114] sm:$0xf]
      %v983 = vld [vmem:[%s3 + $0x118] sm:$0xf]
      %v984 = vld [vmem:[%s3 + $0x11c] sm:$0xf]
      %v985 = vld [vmem:[%s3 + $0x120] sm:$0xf]
      %v986 = vld [vmem:[%s3 + $0x124] sm:$0xf]
      %v987 = vld [vmem:[%s3 + $0x128] sm:$0xf]
      %v988 = vld [vmem:[%s3 + $0x12c] sm:$0xf]
      %v989 = vld [vmem:[%s3 + $0x130] sm:$0xf]
      %v990 = vld [vmem:[%s3 + $0x134] sm:$0xf]
      %v991 = vld [vmem:[%s3 + $0x138] sm:$0xf]
      %v992 = vld [vmem:[%s3 + $0x13c] sm:$0xf]
      %v993 = vld [vmem:[%s3 + $0x140] sm:$0xf]
      %v994 = vld [vmem:[%s3 + $0x144] sm:$0xf]
      %v995 = vld [vmem:[%s3 + $0x148] sm:$0xf]
      %v996 = vld [vmem:[%s3 + $0x14c] sm:$0xf]
      %v997 = vld [vmem:[%s3 + $0x150] sm:$0xf]
      %v998 = vld [vmem:[%s3 + $0x154] sm:$0xf]
      %v999 = vld [vmem:[%s3 + $0x158] sm:$0xf]
      %v1000 = vld [vmem:[%s3 + $0x15c] sm:$0xf]
      %v1001 = vld [vmem:[%s3 + $0x160] sm:$0xf]
      %v1002 = vld [vmem:[%s3 + $0x164] sm:$0xf]
      %v1003 = vld [vmem:[%s3 + $0x168] sm:$0xf]
      %v1004 = vld [vmem:[%s3 + $0x16c] sm:$0xf]
      %v1005 = vld [vmem:[%s3 + $0x170] sm:$0xf]
      %v1006 = vld [vmem:[%s3 + $0x174] sm:$0xf]
      %v1007 = vld [vmem:[%s3 + $0x178] sm:$0xf]
      %v1008 = vld [vmem:[%s3 + $0x17c] sm:$0xf]
      %v1009 = vld [vmem:[%s3 + $0x180] sm:$0xf]
      %v1010 = vld [vmem:[%s3 + $0x184] sm:$0xf]
      %v1011 = vld [vmem:[%s3 + $0x188] sm:$0xf]
      %v1012 = vld [vmem:[%s3 + $0x18c] sm:$0xf]
      %v1013 = vld [vmem:[%s3 + $0x190] sm:$0xf]
      %v1014 = vld [vmem:[%s3 + $0x194] sm:$0xf]
      %v1015 = vld [vmem:[%s3 + $0x198] sm:$0xf]
      %v1016 = vld [vmem:[%s3 + $0x19c] sm:$0xf]
      %v1017 = vld [vmem:[%s3 + $0x1a0] sm:$0xf]
      %v1018 = vld [vmem:[%s3 + $0x1a4] sm:$0xf]
      %v1019 = vld [vmem:[%s3 + $0x1a8] sm:$0xf]
      %v1020 = vld [vmem:[%s3 + $0x1ac] sm:$0xf]
      %v1021 = vld [vmem:[%s3 + $0x1b0] sm:$0xf]
      %v1022 = vld [vmem:[%s3 + $0x1b4] sm:$0xf]
      %v1023 = vld [vmem:[%s3 + $0x1b8] sm:$0xf]
      %v1024 = vld [vmem:[%s3 + $0x1bc] sm:$0xf]
      %v1025 = vld [vmem:[%s3 + $0x1c0] sm:$0xf]
      %v1026 = vld [vmem:[%s3 + $0x1c4] sm:$0xf]
      %v1027 = vld [vmem:[%s3 + $0x1c8] sm:$0xf]
      %v1028 = vld [vmem:[%s3 + $0x1cc] sm:$0xf]
      %v1029 = vld [vmem:[%s3 + $0x1d0] sm:$0xf]
      %v1030 = vld [vmem:[%s3 + $0x1d4] sm:$0xf]
      %v1031 = vld [vmem:[%s3 + $0x1d8] sm:$0xf]
      %v1032 = vld [vmem:[%s3 + $0x1dc] sm:$0xf]
      %v1033 = vld [vmem:[%s3 + $0x1e0] sm:$0xf]
      %v1034 = vld [vmem:[%s3 + $0x1e4] sm:$0xf]
      %v1035 = vld [vmem:[%s3 + $0x1e8] sm:$0xf]
      %v1036 = vld [vmem:[%s3 + $0x1ec] sm:$0xf]
      %v1037 = vld [vmem:[%s3 + $0x1f0] sm:$0xf]
      %v1038 = vld [vmem:[%s3 + $0x1f4] sm:$0xf]
      %v1039 = vld [vmem:[%s3 + $0x1f8] sm:$0xf]
      %v1040 = vld [vmem:[%s3 + $0x1fc] sm:$0xf]
      %v1041 = vunpack.c.l.b16 %v546
      %v1042 = vunpack.c.h.b16 %v546
      %v1043 = vunpack.c.l.b16 %v560
      %v1044 = vunpack.c.h.b16 %v560
      %v1045 = vunpack.c.l.b16 %v574
      %v1046 = vunpack.c.h.b16 %v574
      %v1047 = vunpack.c.l.b16 %v588
      %v1048 = vunpack.c.h.b16 %v588
      %v1049 = vunpack.c.l.b16 %v602
      %v1050 = vunpack.c.h.b16 %v602
      %v1051 = vunpack.c.l.b16 %v616
      %v1052 = vunpack.c.h.b16 %v616
      %v1053 = vunpack.c.l.b16 %v630
      %v1054 = vunpack.c.h.b16 %v630
      %v1055 = vunpack.c.l.b16 %v644
      %v1056 = vunpack.c.h.b16 %v644
      %v1057 = vunpack.c.l.b16 %v658
      %v1058 = vunpack.c.h.b16 %v658
      %v1059 = vunpack.c.l.b16 %v672
      %v1060 = vunpack.c.h.b16 %v672
      %v1061 = vunpack.c.l.b16 %v686
      %v1062 = vunpack.c.h.b16 %v686
      %v1063 = vunpack.c.l.b16 %v700
      %v1064 = vunpack.c.h.b16 %v700
      %v1065 = vunpack.c.l.b16 %v714
      %v1066 = vunpack.c.h.b16 %v714
      %v1067 = vunpack.c.l.b16 %v728
      %v1068 = vunpack.c.h.b16 %v728
      %v1069 = vunpack.c.l.b16 %v742
      %v1070 = vunpack.c.h.b16 %v742
      %v1071 = vunpack.c.l.b16 %v756
      %v1072 = vunpack.c.h.b16 %v756
      %v1073 = vunpack.c.l.b16 %v770
      %v1074 = vunpack.c.h.b16 %v770
      %v1075 = vunpack.c.l.b16 %v784
      %v1076 = vunpack.c.h.b16 %v784
      %v1077 = vpack.c.b16 %v1045, %v1041
      %v1078 = vpack.c.b16 %v1046, %v1042
      %v1079 = vpack.c.b16 %v1047, %v1043
      %v1080 = vpack.c.b16 %v1048, %v1044
      %v1081 = vpack.c.b16 %v1049, %v1045
      %v1082 = vpack.c.b16 %v1050, %v1046
      %v1083 = vpack.c.b16 %v1051, %v1047
      %v1084 = vpack.c.b16 %v1052, %v1048
      %v1085 = vpack.c.b16 %v1053, %v1049
      %v1086 = vpack.c.b16 %v1054, %v1050
      %v1087 = vpack.c.b16 %v1055, %v1051
      %v1088 = vpack.c.b16 %v1056, %v1052
      %v1089 = vpack.c.b16 %v1057, %v1053
      %v1090 = vpack.c.b16 %v1058, %v1054
      %v1091 = vpack.c.b16 %v1059, %v1055
      %v1092 = vpack.c.b16 %v1060, %v1056
      %v1093 = vpack.c.b16 %v1061, %v1057
      %v1094 = vpack.c.b16 %v1062, %v1058
      %v1095 = vpack.c.b16 %v1063, %v1059
      %v1096 = vpack.c.b16 %v1064, %v1060
      %v1097 = vpack.c.b16 %v1065, %v1061
      %v1098 = vpack.c.b16 %v1066, %v1062
      %v1099 = vpack.c.b16 %v1067, %v1063
      %v1100 = vpack.c.b16 %v1068, %v1064
      %v1101 = vpack.c.b16 %v1069, %v1065
      %v1102 = vpack.c.b16 %v1070, %v1066
      %v1103 = vpack.c.b16 %v1071, %v1067
      %v1104 = vpack.c.b16 %v1072, %v1068
      %v1105 = vpack.c.b16 %v1073, %v1069
      %v1106 = vpack.c.b16 %v1074, %v1070
      %v1107 = vpack.c.b16 %v1075, %v1071
      %v1108 = vpack.c.b16 %v1076, %v1072
      %v1269 = vunpack.c.l.b16 %v913
      %v1270 = vunpack.c.l.b16 %v914
      %v1271 = vunpack.c.l.b16 %v915
      %v1272 = vunpack.c.l.b16 %v916
      %v1273 = vunpack.c.l.b16 %v917
      %v1274 = vunpack.c.l.b16 %v918
      %v1275 = vunpack.c.l.b16 %v919
      %v1276 = vunpack.c.l.b16 %v920
      %v1277 = vunpack.c.l.b16 %v921
      %v1278 = vunpack.c.l.b16 %v922
      %v1279 = vunpack.c.l.b16 %v923
      %v1280 = vunpack.c.l.b16 %v924
      %v1281 = vunpack.c.l.b16 %v925
      %v1282 = vunpack.c.l.b16 %v926
      %v1283 = vunpack.c.l.b16 %v927
      %v1284 = vunpack.c.l.b16 %v928
      %v1285 = vunpack.c.l.b16 %v929
      %v1286 = vunpack.c.l.b16 %v930
      %v1287 = vunpack.c.l.b16 %v931
      %v1288 = vunpack.c.l.b16 %v932
      %v1289 = vunpack.c.l.b16 %v933
      %v1290 = vunpack.c.l.b16 %v934
      %v1291 = vunpack.c.l.b16 %v935
      %v1292 = vunpack.c.l.b16 %v936
      %v1293 = vunpack.c.l.b16 %v937
      %v1294 = vunpack.c.l.b16 %v938
      %v1295 = vunpack.c.l.b16 %v939
      %v1296 = vunpack.c.l.b16 %v940
      %v1297 = vunpack.c.l.b16 %v941
      %v1298 = vunpack.c.l.b16 %v942
      %v1299 = vunpack.c.l.b16 %v943
      %v1300 = vunpack.c.l.b16 %v944
      %v1301 = vunpack.c.l.b16 %v945
      %v1302 = vunpack.c.l.b16 %v946
      %v1303 = vunpack.c.l.b16 %v947
      %v1304 = vunpack.c.l.b16 %v948
      %v1305 = vunpack.c.l.b16 %v949
      %v1306 = vunpack.c.l.b16 %v950
      %v1307 = vunpack.c.l.b16 %v951
      %v1308 = vunpack.c.l.b16 %v952
      %v1309 = vunpack.c.l.b16 %v953
      %v1310 = vunpack.c.l.b16 %v954
      %v1311 = vunpack.c.l.b16 %v955
      %v1312 = vunpack.c.l.b16 %v956
      %v1313 = vunpack.c.l.b16 %v957
      %v1314 = vunpack.c.l.b16 %v958
      %v1315 = vunpack.c.l.b16 %v959
      %v1316 = vunpack.c.l.b16 %v960
      %v1317 = vunpack.c.l.b16 %v961
      %v1318 = vunpack.c.l.b16 %v962
      %v1319 = vunpack.c.l.b16 %v963
      %v1320 = vunpack.c.l.b16 %v964
      %v1321 = vunpack.c.l.b16 %v965
      %v1322 = vunpack.c.l.b16 %v966
      %v1323 = vunpack.c.l.b16 %v967
      %v1324 = vunpack.c.l.b16 %v968
      %v1325 = vunpack.c.l.b16 %v969
      %v1326 = vunpack.c.l.b16 %v970
      %v1327 = vunpack.c.l.b16 %v971
      %v1328 = vunpack.c.l.b16 %v972
      %v1329 = vunpack.c.l.b16 %v973
      %v1330 = vunpack.c.l.b16 %v974
      %v1331 = vunpack.c.l.b16 %v975
      %v1332 = vunpack.c.l.b16 %v976
      %v1333 = vunpack.c.l.b16 %v977
      %v1334 = vunpack.c.l.b16 %v978
      %v1335 = vunpack.c.l.b16 %v979
      %v1336 = vunpack.c.l.b16 %v980
      %v1337 = vunpack.c.l.b16 %v981
      %v1338 = vunpack.c.l.b16 %v982
      %v1339 = vunpack.c.l.b16 %v983
      %v1340 = vunpack.c.l.b16 %v984
      %v1341 = vunpack.c.l.b16 %v985
      %v1342 = vunpack.c.l.b16 %v986
      %v1343 = vunpack.c.l.b16 %v987
      %v1344 = vunpack.c.l.b16 %v988
      %v1345 = vunpack.c.l.b16 %v989
      %v1346 = vunpack.c.l.b16 %v990
      %v1347 = vunpack.c.l.b16 %v991
      %v1348 = vunpack.c.l.b16 %v992
      %v1349 = vunpack.c.l.b16 %v993
      %v1350 = vunpack.c.l.b16 %v994
      %v1351 = vunpack.c.l.b16 %v995
      %v1352 = vunpack.c.l.b16 %v996
      %v1353 = vunpack.c.l.b16 %v997
      %v1354 = vunpack.c.l.b16 %v998
      %v1355 = vunpack.c.l.b16 %v999
      %v1356 = vunpack.c.l.b16 %v1000
      %v1357 = vunpack.c.l.b16 %v1001
      %v1358 = vunpack.c.l.b16 %v1002
      %v1359 = vunpack.c.l.b16 %v1003
      %v1360 = vunpack.c.l.b16 %v1004
      %v1361 = vunpack.c.l.b16 %v1005
      %v1362 = vunpack.c.l.b16 %v1006
      %v1363 = vunpack.c.l.b16 %v1007
      %v1364 = vunpack.c.l.b16 %v1008
      %v1365 = vunpack.c.l.b16 %v1009
      %v1366 = vunpack.c.l.b16 %v1010
      %v1367 = vunpack.c.l.b16 %v1011
      %v1368 = vunpack.c.l.b16 %v1012
      %v1369 = vunpack.c.l.b16 %v1013
      %v1370 = vunpack.c.l.b16 %v1014
      %v1371 = vunpack.c.l.b16 %v1015
      %v1372 = vunpack.c.l.b16 %v1016
      %v1373 = vunpack.c.l.b16 %v1017
      %v1374 = vunpack.c.l.b16 %v1018
      %v1375 = vunpack.c.l.b16 %v1019
      %v1376 = vunpack.c.l.b16 %v1020
      %v1377 = vunpack.c.l.b16 %v1021
      %v1378 = vunpack.c.l.b16 %v1022
      %v1379 = vunpack.c.l.b16 %v1023
      %v1380 = vunpack.c.l.b16 %v1024
      %v1381 = vunpack.c.l.b16 %v1025
      %v1382 = vunpack.c.l.b16 %v1026
      %v1383 = vunpack.c.l.b16 %v1027
      %v1384 = vunpack.c.l.b16 %v1028
      %v1385 = vunpack.c.l.b16 %v1029
      %v1386 = vunpack.c.l.b16 %v1030
      %v1387 = vunpack.c.l.b16 %v1031
      %v1388 = vunpack.c.l.b16 %v1032
      %v1389 = vunpack.c.l.b16 %v1033
      %v1390 = vunpack.c.l.b16 %v1034
      %v1391 = vunpack.c.l.b16 %v1035
      %v1392 = vunpack.c.l.b16 %v1036
      %v1393 = vunpack.c.l.b16 %v1037
      %v1394 = vunpack.c.l.b16 %v1038
      %v1395 = vunpack.c.l.b16 %v1039
      %v1396 = vunpack.c.l.b16 %v1040
      %v1397 = vpack.c.b16 %v1270, %v1269
      %v1398 = vpack.c.b16 %v1272, %v1271
      %v1399 = vpack.c.b16 %v1274, %v1273
      %v1400 = vpack.c.b16 %v1276, %v1275
      %v1401 = vpack.c.b16 %v1278, %v1277
      %v1402 = vpack.c.b16 %v1280, %v1279
      %v1403 = vpack.c.b16 %v1282, %v1281
      %v1404 = vpack.c.b16 %v1284, %v1283
      %v1405 = vpack.c.b16 %v1286, %v1285
      %v1406 = vpack.c.b16 %v1288, %v1287
      %v1407 = vpack.c.b16 %v1290, %v1289
      %v1408 = vpack.c.b16 %v1292, %v1291
      %v1409 = vpack.c.b16 %v1294, %v1293
      %v1410 = vpack.c.b16 %v1296, %v1295
      %v1411 = vpack.c.b16 %v1298, %v1297
      %v1412 = vpack.c.b16 %v1300, %v1299
      %v1413 = vpack.c.b16 %v1302, %v1301
      %v1414 = vpack.c.b16 %v1304, %v1303
      %v1415 = vpack.c.b16 %v1306, %v1305
      %v1416 = vpack.c.b16 %v1308, %v1307
      %v1417 = vpack.c.b16 %v1310, %v1309
      %v1418 = vpack.c.b16 %v1312, %v1311
      %v1419 = vpack.c.b16 %v1314, %v1313
      %v1420 = vpack.c.b16 %v1316, %v1315
      %v1421 = vpack.c.b16 %v1318, %v1317
      %v1422 = vpack.c.b16 %v1320, %v1319
      %v1423 = vpack.c.b16 %v1322, %v1321
      %v1424 = vpack.c.b16 %v1324, %v1323
      %v1425 = vpack.c.b16 %v1326, %v1325
      %v1426 = vpack.c.b16 %v1328, %v1327
      %v1427 = vpack.c.b16 %v1330, %v1329
      %v1428 = vpack.c.b16 %v1332, %v1331
      %v1429 = vpack.c.b16 %v1334, %v1333
      %v1430 = vpack.c.b16 %v1336, %v1335
      %v1431 = vpack.c.b16 %v1338, %v1337
      %v1432 = vpack.c.b16 %v1340, %v1339
      %v1433 = vpack.c.b16 %v1342, %v1341
      %v1434 = vpack.c.b16 %v1344, %v1343
      %v1435 = vpack.c.b16 %v1346, %v1345
      %v1436 = vpack.c.b16 %v1348, %v1347
      %v1437 = vpack.c.b16 %v1350, %v1349
      %v1438 = vpack.c.b16 %v1352, %v1351
      %v1439 = vpack.c.b16 %v1354, %v1353
      %v1440 = vpack.c.b16 %v1356, %v1355
      %v1441 = vpack.c.b16 %v1358, %v1357
      %v1442 = vpack.c.b16 %v1360, %v1359
      %v1443 = vpack.c.b16 %v1362, %v1361
      %v1444 = vpack.c.b16 %v1364, %v1363
      %v1445 = vpack.c.b16 %v1366, %v1365
      %v1446 = vpack.c.b16 %v1368, %v1367
      %v1447 = vpack.c.b16 %v1370, %v1369
      %v1448 = vpack.c.b16 %v1372, %v1371
      %v1449 = vpack.c.b16 %v1374, %v1373
      %v1450 = vpack.c.b16 %v1376, %v1375
      %v1451 = vpack.c.b16 %v1378, %v1377
      %v1452 = vpack.c.b16 %v1380, %v1379
      %v1453 = vpack.c.b16 %v1382, %v1381
      %v1454 = vpack.c.b16 %v1384, %v1383
      %v1455 = vpack.c.b16 %v1386, %v1385
      %v1456 = vpack.c.b16 %v1388, %v1387
      %v1457 = vpack.c.b16 %v1390, %v1389
      %v1458 = vpack.c.b16 %v1392, %v1391
      %v1459 = vpack.c.b16 %v1394, %v1393
      %v1460 = vpack.c.b16 %v1396, %v1395
      %1525 = vmatprep.subr.bf16.mxu0 0
      %1526 = vmatpush1.bf16.msra.mxu0 %v1397
      %1527 = vmatprep.subr.bf16.mxu0 0
      %1528 = vmatpush1.bf16.msra.mxu0 %v1398
      %1529 = vmatprep.subr.bf16.mxu0 0
      %1530 = vmatpush1.bf16.msra.mxu0 %v1399
      %1531 = vmatprep.subr.bf16.mxu0 0
      %1532 = vmatpush1.bf16.msra.mxu0 %v1400
      %1533 = vmatprep.subr.bf16.mxu0 0
      %1534 = vmatpush1.bf16.msra.mxu0 %v1401
      %1535 = vmatprep.subr.bf16.mxu0 0
      %1536 = vmatpush1.bf16.msra.mxu0 %v1402
      %1537 = vmatprep.subr.bf16.mxu0 0
      %1538 = vmatpush1.bf16.msra.mxu0 %v1403
      %1539 = vmatprep.subr.bf16.mxu0 0
      %1540 = vmatpush1.bf16.msra.mxu0 %v1404
      %1541 = vmatprep.subr.bf16.mxu0 0
      %1542 = vmatpush1.bf16.msra.mxu0 %v1405
      %1543 = vmatprep.subr.bf16.mxu0 0
      %1544 = vmatpush1.bf16.msra.mxu0 %v1406
      %1545 = vmatprep.subr.bf16.mxu0 0
      %1546 = vmatpush1.bf16.msra.mxu0 %v1407
      %1547 = vmatprep.subr.bf16.mxu0 0
      %1548 = vmatpush1.bf16.msra.mxu0 %v1408
      %1549 = vmatprep.subr.bf16.mxu0 0
      %1550 = vmatpush1.bf16.msra.mxu0 %v1409
      %1551 = vmatprep.subr.bf16.mxu0 0
      %1552 = vmatpush1.bf16.msra.mxu0 %v1410
      %1553 = vmatprep.subr.bf16.mxu0 0
      %1554 = vmatpush1.bf16.msra.mxu0 %v1411
      %1555 = vmatprep.subr.bf16.mxu0 0
      %1556 = vmatpush1.bf16.msra.mxu0 %v1412
      %1557 = vmatprep.mubr.bf16.mxu0 %v1078
      %1558 = vmatmul.mubr.bf16.gmra.mrb[0].mxu0 %v1077
      %v1559 = vpop.f32.mrb[0].mxu0
      %v1560 = vadd.f32 0.0, %v1559
      %v1561 = vpop.f32.mrb[0].mxu0
      %v1562 = vpop.f32.mrb[0].mxu0
      %v1563 = vadd.f32 0.0, %v1562
      %v1564 = vpop.f32.mrb[0].mxu0
      %1565 = vmatprep.mubr.bf16.mxu0 %v1086
      %1566 = vmatmul.mubr.bf16.gmra.mrb[0].mxu0 %v1085
      %v1567 = vpop.f32.mrb[0].mxu0
      %v1568 = vadd.f32 0.0, %v1567
      %v1569 = vpop.f32.mrb[0].mxu0
      %v1570 = vpop.f32.mrb[0].mxu0
      %v1571 = vadd.f32 0.0, %v1570
      %v1572 = vpop.f32.mrb[0].mxu0
      %1573 = vmatprep.mubr.bf16.mxu0 %v1094
      %1574 = vmatmul.mubr.bf16.gmra.mrb[0].mxu0 %v1093
      %v1575 = vpop.f32.mrb[0].mxu0
      %v1576 = vadd.f32 0.0, %v1575
      %v1577 = vpop.f32.mrb[0].mxu0
      %v1578 = vpop.f32.mrb[0].mxu0
      %v1579 = vadd.f32 0.0, %v1578
      %v1580 = vpop.f32.mrb[0].mxu0
      %1581 = vmatprep.mubr.bf16.mxu0 %v1102
      %1582 = vmatmul.mubr.bf16.gmra.mrb[0].mxu0 %v1101
      %v1583 = vpop.f32.mrb[0].mxu0
      %v1584 = vadd.f32 0.0, %v1583
      %v1585 = vpop.f32.mrb[0].mxu0
      %v1586 = vpop.f32.mrb[0].mxu0
      %v1587 = vadd.f32 0.0, %v1586
      %v1588 = vpop.f32.mrb[0].mxu0
      %1589 = vdwg.mxu0
      %1590 = vmatprep.subr.bf16.mxu0 0
      %1591 = vmatpush1.bf16.msra.mxu0 %v1413
      %1592 = vmatprep.subr.bf16.mxu0 0
      %1593 = vmatpush1.bf16.msra.mxu0 %v1414
      %1594 = vmatprep.subr.bf16.mxu0 0
      %1595 = vmatpush1.bf16.msra.mxu0 %v1415
      %1596 = vmatprep.subr.bf16.mxu0 0
      %1597 = vmatpush1.bf16.msra.mxu0 %v1416
      %1598 = vmatprep.subr.bf16.mxu0 0
      %1599 = vmatpush1.bf16.msra.mxu0 %v1417
      %1600 = vmatprep.subr.bf16.mxu0 0
      %1601 = vmatpush1.bf16.msra.mxu0 %v1418
      %1602 = vmatprep.subr.bf16.mxu0 0
      %1603 = vmatpush1.bf16.msra.mxu0 %v1419
      %1604 = vmatprep.subr.bf16.mxu0 0
      %1605 = vmatpush1.bf16.msra.mxu0 %v1420
      %1606 = vmatprep.subr.bf16.mxu0 0
      %1607 = vmatpush1.bf16.msra.mxu0 %v1421
      %1608 = vmatprep.subr.bf16.mxu0 0
      %1609 = vmatpush1.bf16.msra.mxu0 %v1422
      %1610 = vmatprep.subr.bf16.mxu0 0
      %1611 = vmatpush1.bf16.msra.mxu0 %v1423
      %1612 = vmatprep.subr.bf16.mxu0 0
      %1613 = vmatpush1.bf16.msra.mxu0 %v1424
      %1614 = vmatprep.subr.bf16.mxu0 0
      %1615 = vmatpush1.bf16.msra.mxu0 %v1425
      %1616 = vmatprep.subr.bf16.mxu0 0
      %1617 = vmatpush1.bf16.msra.mxu0 %v1426
      %1618 = vmatprep.subr.bf16.mxu0 0
      %1619 = vmatpush1.bf16.msra.mxu0 %v1427
      %1620 = vmatprep.subr.bf16.mxu0 0
      %1621 = vmatpush1.bf16.msra.mxu0 %v1428
      %1622 = vmatprep.mubr.bf16.mxu0 %v1080
      %1623 = vmatmul.mubr.bf16.gmra.mrb[0].mxu0 %v1079
      %v1624 = vpop.f32.mrb[0].mxu0
      %v1625 = vadd.f32 %v1560, %v1624
      %v1626 = vpop.f32.mrb[0].mxu0
      %v1627 = vpop.f32.mrb[0].mxu0
      %v1628 = vadd.f32 %v1563, %v1627
      %v1629 = vpop.f32.mrb[0].mxu0
      %1630 = vmatprep.mubr.bf16.mxu0 %v1088
      %1631 = vmatmul.mubr.bf16.gmra.mrb[0].mxu0 %v1087
      %v1632 = vpop.f32.mrb[0].mxu0
      %v1633 = vadd.f32 %v1568, %v1632
      %v1634 = vpop.f32.mrb[0].mxu0
      %v1635 = vpop.f32.mrb[0].mxu0
      %v1636 = vadd.f32 %v1571, %v1635
      %v1637 = vpop.f32.mrb[0].mxu0
      %1638 = vmatprep.mubr.bf16.mxu0 %v1096
      %1639 = vmatmul.mubr.bf16.gmra.mrb[0].mxu0 %v1095
      %v1640 = vpop.f32.mrb[0].mxu0
      %v1641 = vadd.f32 %v1576, %v1640
      %v1642 = vpop.f32.mrb[0].mxu0
      %v1643 = vpop.f32.mrb[0].mxu0
      %v1644 = vadd.f32 %v1579, %v1643
      %v1645 = vpop.f32.mrb[0].mxu0
      %1646 = vmatprep.mubr.bf16.mxu0 %v1104
      %1647 = vmatmul.mubr.bf16.gmra.mrb[0].mxu0 %v1103
      %v1648 = vpop.f32.mrb[0].mxu0
      %v1649 = vadd.f32 %v1584, %v1648
      %v1650 = vpop.f32.mrb[0].mxu0
      %v1651 = vpop.f32.mrb[0].mxu0
      %v1652 = vadd.f32 %v1587, %v1651
      %v1653 = vpop.f32.mrb[0].mxu0
      %1654 = vdwg.mxu0
      %1655 = vmatprep.subr.bf16.mxu0 0
      %1656 = vmatpush1.bf16.msra.mxu0 %v1429
      %1657 = vmatprep.subr.bf16.mxu0 0
      %1658 = vmatpush1.bf16.msra.mxu0 %v1430
      %1659 = vmatprep.subr.bf16.mxu0 0
      %1660 = vmatpush1.bf16.msra.mxu0 %v1431
      %1661 = vmatprep.subr.bf16.mxu0 0
      %1662 = vmatpush1.bf16.msra.mxu0 %v1432
      %1663 = vmatprep.subr.bf16.mxu0 0
      %1664 = vmatpush1.bf16.msra.mxu0 %v1433
      %1665 = vmatprep.subr.bf16.mxu0 0
      %1666 = vmatpush1.bf16.msra.mxu0 %v1434
      %1667 = vmatprep.subr.bf16.mxu0 0
      %1668 = vmatpush1.bf16.msra.mxu0 %v1435
      %1669 = vmatprep.subr.bf16.mxu0 0
      %1670 = vmatpush1.bf16.msra.mxu0 %v1436
      %1671 = vmatprep.subr.bf16.mxu0 0
      %1672 = vmatpush1.bf16.msra.mxu0 %v1437
      %1673 = vmatprep.subr.bf16.mxu0 0
      %1674 = vmatpush1.bf16.msra.mxu0 %v1438
      %1675 = vmatprep.subr.bf16.mxu0 0
      %1676 = vmatpush1.bf16.msra.mxu0 %v1439
      %1677 = vmatprep.subr.bf16.mxu0 0
      %1678 = vmatpush1.bf16.msra.mxu0 %v1440
      %1679 = vmatprep.subr.bf16.mxu0 0
      %1680 = vmatpush1.bf16.msra.mxu0 %v1441
      %1681 = vmatprep.subr.bf16.mxu0 0
      %1682 = vmatpush1.bf16.msra.mxu0 %v1442
      %1683 = vmatprep.subr.bf16.mxu0 0
      %1684 = vmatpush1.bf16.msra.mxu0 %v1443
      %1685 = vmatprep.subr.bf16.mxu0 0
      %1686 = vmatpush1.bf16.msra.mxu0 %v1444
      %1687 = vmatprep.mubr.bf16.mxu0 %v1082
      %1688 = vmatmul.mubr.bf16.gmra.mrb[0].mxu0 %v1081
      %v1689 = vpop.f32.mrb[0].mxu0
      %v1690 = vadd.f32 %v1625, %v1689
      %v1691 = vpop.f32.mrb[0].mxu0
      %v1692 = vpop.f32.mrb[0].mxu0
      %v1693 = vadd.f32 %v1628, %v1692
      %v1694 = vpop.f32.mrb[0].mxu0
      %1695 = vmatprep.mubr.bf16.mxu0 %v1090
      %1696 = vmatmul.mubr.bf16.gmra.mrb[0].mxu0 %v1089
      %v1697 = vpop.f32.mrb[0].mxu0
      %v1698 = vadd.f32 %v1633, %v1697
      %v1699 = vpop.f32.mrb[0].mxu0
      %v1700 = vpop.f32.mrb[0].mxu0
      %v1701 = vadd.f32 %v1636, %v1700
      %v1702 = vpop.f32.mrb[0].mxu0
      %1703 = vmatprep.mubr.bf16.mxu0 %v1098
      %1704 = vmatmul.mubr.bf16.gmra.mrb[0].mxu0 %v1097
      %v1705 = vpop.f32.mrb[0].mxu0
      %v1706 = vadd.f32 %v1641, %v1705
      %v1707 = vpop.f32.mrb[0].mxu0
      %v1708 = vpop.f32.mrb[0].mxu0
      %v1709 = vadd.f32 %v1644, %v1708
      %v1710 = vpop.f32.mrb[0].mxu0
      %1711 = vmatprep.mubr.bf16.mxu0 %v1106
      %1712 = vmatmul.mubr.bf16.gmra.mrb[0].mxu0 %v1105
      %v1713 = vpop.f32.mrb[0].mxu0
      %v1714 = vadd.f32 %v1649, %v1713
      %v1715 = vpop.f32.mrb[0].mxu0
      %v1716 = vpop.f32.mrb[0].mxu0
      %v1717 = vadd.f32 %v1652, %v1716
      %v1718 = vpop.f32.mrb[0].mxu0
      %1719 = vdwg.mxu0
      %1720 = vmatprep.subr.bf16.mxu0 0
      %1721 = vmatpush1.bf16.msra.mxu0 %v1445
      %1722 = vmatprep.subr.bf16.mxu0 0
      %1723 = vmatpush1.bf16.msra.mxu0 %v1446
      %1724 = vmatprep.subr.bf16.mxu0 0
      %1725 = vmatpush1.bf16.msra.mxu0 %v1447
      %1726 = vmatprep.subr.bf16.mxu0 0
      %1727 = vmatpush1.bf16.msra.mxu0 %v1448
      %1728 = vmatprep.subr.bf16.mxu0 0
      %1729 = vmatpush1.bf16.msra.mxu0 %v1449
      %1730 = vmatprep.subr.bf16.mxu0 0
      %1731 = vmatpush1.bf16.msra.mxu0 %v1450
      %1732 = vmatprep.subr.bf16.mxu0 0
      %1733 = vmatpush1.bf16.msra.mxu0 %v1451
      %1734 = vmatprep.subr.bf16.mxu0 0
      %1735 = vmatpush1.bf16.msra.mxu0 %v1452
      %1736 = vmatprep.subr.bf16.mxu0 0
      %1737 = vmatpush1.bf16.msra.mxu0 %v1453
      %1738 = vmatprep.subr.bf16.mxu0 0
      %1739 = vmatpush1.bf16.msra.mxu0 %v1454
      %1740 = vmatprep.subr.bf16.mxu0 0
      %1741 = vmatpush1.bf16.msra.mxu0 %v1455
      %1742 = vmatprep.subr.bf16.mxu0 0
      %1743 = vmatpush1.bf16.msra.mxu0 %v1456
      %1744 = vmatprep.subr.bf16.mxu0 0
      %1745 = vmatpush1.bf16.msra.mxu0 %v1457
      %1746 = vmatprep.subr.bf16.mxu0 0
      %1747 = vmatpush1.bf16.msra.mxu0 %v1458
      %1748 = vmatprep.subr.bf16.mxu0 0
      %1749 = vmatpush1.bf16.msra.mxu0 %v1459
      %1750 = vmatprep.subr.bf16.mxu0 0
      %1751 = vmatpush1.bf16.msra.mxu0 %v1460
      %1752 = vmatprep.mubr.bf16.mxu0 %v1084
      %1753 = vmatmul.mubr.bf16.gmra.mrb[0].mxu0 %v1083
      %v1754 = vpop.f32.mrb[0].mxu0
      %v1755 = vadd.f32 %v1690, %v1754
      %v1756 = vpop.f32.mrb[0].mxu0
      %v1757 = vpop.f32.mrb[0].mxu0
      %v1758 = vadd.f32 %v1693, %v1757
      %v1759 = vpop.f32.mrb[0].mxu0
      %1760 = vmatprep.mubr.bf16.mxu0 %v1092
      %1761 = vmatmul.mubr.bf16.gmra.mrb[0].mxu0 %v1091
      %v1762 = vpop.f32.mrb[0].mxu0
      %v1763 = vadd.f32 %v1698, %v1762
      %v1764 = vpop.f32.mrb[0].mxu0
      %v1765 = vpop.f32.mrb[0].mxu0
      %v1766 = vadd.f32 %v1701, %v1765
      %v1767 = vpop.f32.mrb[0].mxu0
      %1768 = vmatprep.mubr.bf16.mxu0 %v1100
      %1769 = vmatmul.mubr.bf16.gmra.mrb[0].mxu0 %v1099
      %v1770 = vpop.f32.mrb[0].mxu0
      %v1771 = vadd.f32 %v1706, %v1770
      %v1772 = vpop.f32.mrb[0].mxu0
      %v1773 = vpop.f32.mrb[0].mxu0
      %v1774 = vadd.f32 %v1709, %v1773
      %v1775 = vpop.f32.mrb[0].mxu0
      %1776 = vmatprep.mubr.bf16.mxu0 %v1108
      %1777 = vmatmul.mubr.bf16.gmra.mrb[0].mxu0 %v1107
      %v1778 = vpop.f32.mrb[0].mxu0
      %v1779 = vadd.f32 %v1714, %v1778
      %v1780 = vpop.f32.mrb[0].mxu0
      %v1781 = vpop.f32.mrb[0].mxu0
      %v1782 = vadd.f32 %v1717, %v1781
      %v1783 = vpop.f32.mrb[0].mxu0
      %1784 = vdwg.mxu0
      %v1785 = vpack.c.b16 %v406, %v402
      %v1786 = vpack.c.b16 %v407, %v403
      %v1787 = vpack.c.b16 %v454, %v450
      %v1788 = vpack.c.b16 %v455, %v451
      %v1789 = vpack.c.b16 %v410, %v406
      %v1790 = vpack.c.b16 %v411, %v407
      %v1791 = vpack.c.b16 %v458, %v454
      %v1792 = vpack.c.b16 %v459, %v455
      %v1793 = vpack.c.b16 %v414, %v410
      %v1794 = vpack.c.b16 %v415, %v411
      %v1795 = vpack.c.b16 %v462, %v458
      %v1796 = vpack.c.b16 %v463, %v459
      %v1797 = vpack.c.b16 %v418, %v414
      %v1798 = vpack.c.b16 %v419, %v415
      %v1799 = vpack.c.b16 %v466, %v462
      %v1800 = vpack.c.b16 %v467, %v463
      %v1801 = vpack.c.b16 %v422, %v418
      %v1802 = vpack.c.b16 %v423, %v419
      %v1803 = vpack.c.b16 %v470, %v466
      %v1804 = vpack.c.b16 %v471, %v467
      %v1805 = vpack.c.b16 %v426, %v422
      %v1806 = vpack.c.b16 %v427, %v423
      %v1807 = vpack.c.b16 %v474, %v470
      %v1808 = vpack.c.b16 %v475, %v471
      %v1809 = vpack.c.b16 %v430, %v426
      %v1810 = vpack.c.b16 %v431, %v427
      %v1811 = vpack.c.b16 %v478, %v474
      %v1812 = vpack.c.b16 %v479, %v475
      %v1813 = vpack.c.b16 %v484, %v430
      %v1814 = vpack.c.b16 %v485, %v431
      %v1815 = vpack.c.b16 %v490, %v478
      %v1816 = vpack.c.b16 %v491, %v479
      %v1977 = vunpack.c.l.b16 %v785
      %v1978 = vunpack.c.l.b16 %v786
      %v1979 = vunpack.c.l.b16 %v787
      %v1980 = vunpack.c.l.b16 %v788
      %v1981 = vunpack.c.l.b16 %v789
      %v1982 = vunpack.c.l.b16 %v790
      %v1983 = vunpack.c.l.b16 %v791
      %v1984 = vunpack.c.l.b16 %v792
      %v1985 = vunpack.c.l.b16 %v793
      %v1986 = vunpack.c.l.b16 %v794
      %v1987 = vunpack.c.l.b16 %v795
      %v1988 = vunpack.c.l.b16 %v796
      %v1989 = vunpack.c.l.b16 %v797
      %v1990 = vunpack.c.l.b16 %v798
      %v1991 = vunpack.c.l.b16 %v799
      %v1992 = vunpack.c.l.b16 %v800
      %v1993 = vunpack.c.l.b16 %v801
      %v1994 = vunpack.c.l.b16 %v802
      %v1995 = vunpack.c.l.b16 %v803
      %v1996 = vunpack.c.l.b16 %v804
      %v1997 = vunpack.c.l.b16 %v805
      %v1998 = vunpack.c.l.b16 %v806
      %v1999 = vunpack.c.l.b16 %v807
      %v2000 = vunpack.c.l.b16 %v808
      %v2001 = vunpack.c.l.b16 %v809
      %v2002 = vunpack.c.l.b16 %v810
      %v2003 = vunpack.c.l.b16 %v811
      %v2004 = vunpack.c.l.b16 %v812
      %v2005 = vunpack.c.l.b16 %v813
      %v2006 = vunpack.c.l.b16 %v814
      %v2007 = vunpack.c.l.b16 %v815
      %v2008 = vunpack.c.l.b16 %v816
      %v2009 = vunpack.c.l.b16 %v817
      %v2010 = vunpack.c.l.b16 %v818
      %v2011 = vunpack.c.l.b16 %v819
      %v2012 = vunpack.c.l.b16 %v820
      %v2013 = vunpack.c.l.b16 %v821
      %v2014 = vunpack.c.l.b16 %v822
      %v2015 = vunpack.c.l.b16 %v823
      %v2016 = vunpack.c.l.b16 %v824
      %v2017 = vunpack.c.l.b16 %v825
      %v2018 = vunpack.c.l.b16 %v826
      %v2019 = vunpack.c.l.b16 %v827
      %v2020 = vunpack.c.l.b16 %v828
      %v2021 = vunpack.c.l.b16 %v829
      %v2022 = vunpack.c.l.b16 %v830
      %v2023 = vunpack.c.l.b16 %v831
      %v2024 = vunpack.c.l.b16 %v832
      %v2025 = vunpack.c.l.b16 %v833
      %v2026 = vunpack.c.l.b16 %v834
      %v2027 = vunpack.c.l.b16 %v835
      %v2028 = vunpack.c.l.b16 %v836
      %v2029 = vunpack.c.l.b16 %v837
      %v2030 = vunpack.c.l.b16 %v838
      %v2031 = vunpack.c.l.b16 %v839
      %v2032 = vunpack.c.l.b16 %v840
      %v2033 = vunpack.c.l.b16 %v841
      %v2034 = vunpack.c.l.b16 %v842
      %v2035 = vunpack.c.l.b16 %v843
      %v2036 = vunpack.c.l.b16 %v844
      %v2037 = vunpack.c.l.b16 %v845
      %v2038 = vunpack.c.l.b16 %v846
      %v2039 = vunpack.c.l.b16 %v847
      %v2040 = vunpack.c.l.b16 %v848
      %v2041 = vunpack.c.l.b16 %v849
      %v2042 = vunpack.c.l.b16 %v850
      %v2043 = vunpack.c.l.b16 %v851
      %v2044 = vunpack.c.l.b16 %v852
      %v2045 = vunpack.c.l.b16 %v853
      %v2046 = vunpack.c.l.b16 %v854
      %v2047 = vunpack.c.l.b16 %v855
      %v2048 = vunpack.c.l.b16 %v856
      %v2049 = vunpack.c.l.b16 %v857
      %v2050 = vunpack.c.l.b16 %v858
      %v2051 = vunpack.c.l.b16 %v859
      %v2052 = vunpack.c.l.b16 %v860
      %v2053 = vunpack.c.l.b16 %v861
      %v2054 = vunpack.c.l.b16 %v862
      %v2055 = vunpack.c.l.b16 %v863
      %v2056 = vunpack.c.l.b16 %v864
      %v2057 = vunpack.c.l.b16 %v865
      %v2058 = vunpack.c.l.b16 %v866
      %v2059 = vunpack.c.l.b16 %v867
      %v2060 = vunpack.c.l.b16 %v868
      %v2061 = vunpack.c.l.b16 %v869
      %v2062 = vunpack.c.l.b16 %v870
      %v2063 = vunpack.c.l.b16 %v871
      %v2064 = vunpack.c.l.b16 %v872
      %v2065 = vunpack.c.l.b16 %v873
      %v2066 = vunpack.c.l.b16 %v874
      %v2067 = vunpack.c.l.b16 %v875
      %v2068 = vunpack.c.l.b16 %v876
      %v2069 = vunpack.c.l.b16 %v877
      %v2070 = vunpack.c.l.b16 %v878
      %v2071 = vunpack.c.l.b16 %v879
      %v2072 = vunpack.c.l.b16 %v880
      %v2073 = vunpack.c.l.b16 %v881
      %v2074 = vunpack.c.l.b16 %v882
      %v2075 = vunpack.c.l.b16 %v883
      %v2076 = vunpack.c.l.b16 %v884
      %v2077 = vunpack.c.l.b16 %v885
      %v2078 = vunpack.c.l.b16 %v886
      %v2079 = vunpack.c.l.b16 %v887
      %v2080 = vunpack.c.l.b16 %v888
      %v2081 = vunpack.c.l.b16 %v889
      %v2082 = vunpack.c.l.b16 %v890
      %v2083 = vunpack.c.l.b16 %v891
      %v2084 = vunpack.c.l.b16 %v892
      %v2085 = vunpack.c.l.b16 %v893
      %v2086 = vunpack.c.l.b16 %v894
      %v2087 = vunpack.c.l.b16 %v895
      %v2088 = vunpack.c.l.b16 %v896
      %v2089 = vunpack.c.l.b16 %v897
      %v2090 = vunpack.c.l.b16 %v898
      %v2091 = vunpack.c.l.b16 %v899
      %v2092 = vunpack.c.l.b16 %v900
      %v2093 = vunpack.c.l.b16 %v901
      %v2094 = vunpack.c.l.b16 %v902
      %v2095 = vunpack.c.l.b16 %v903
      %v2096 = vunpack.c.l.b16 %v904
      %v2097 = vunpack.c.l.b16 %v905
      %v2098 = vunpack.c.l.b16 %v906
      %v2099 = vunpack.c.l.b16 %v907
      %v2100 = vunpack.c.l.b16 %v908
      %v2101 = vunpack.c.l.b16 %v909
      %v2102 = vunpack.c.l.b16 %v910
      %v2103 = vunpack.c.l.b16 %v911
      %v2104 = vunpack.c.l.b16 %v912
      %v2105 = vpack.c.b16 %v1978, %v1977
      %v2106 = vpack.c.b16 %v1980, %v1979
      %v2107 = vpack.c.b16 %v1982, %v1981
      %v2108 = vpack.c.b16 %v1984, %v1983
      %v2109 = vpack.c.b16 %v1986, %v1985
      %v2110 = vpack.c.b16 %v1988, %v1987
      %v2111 = vpack.c.b16 %v1990, %v1989
      %v2112 = vpack.c.b16 %v1992, %v1991
      %v2113 = vpack.c.b16 %v1994, %v1993
      %v2114 = vpack.c.b16 %v1996, %v1995
      %v2115 = vpack.c.b16 %v1998, %v1997
      %v2116 = vpack.c.b16 %v2000, %v1999
      %v2117 = vpack.c.b16 %v2002, %v2001
      %v2118 = vpack.c.b16 %v2004, %v2003
      %v2119 = vpack.c.b16 %v2006, %v2005
      %v2120 = vpack.c.b16 %v2008, %v2007
      %v2121 = vpack.c.b16 %v2010, %v2009
      %v2122 = vpack.c.b16 %v2012, %v2011
      %v2123 = vpack.c.b16 %v2014, %v2013
      %v2124 = vpack.c.b16 %v2016, %v2015
      %v2125 = vpack.c.b16 %v2018, %v2017
      %v2126 = vpack.c.b16 %v2020, %v2019
      %v2127 = vpack.c.b16 %v2022, %v2021
      %v2128 = vpack.c.b16 %v2024, %v2023
      %v2129 = vpack.c.b16 %v2026, %v2025
      %v2130 = vpack.c.b16 %v2028, %v2027
      %v2131 = vpack.c.b16 %v2030, %v2029
      %v2132 = vpack.c.b16 %v2032, %v2031
      %v2133 = vpack.c.b16 %v2034, %v2033
      %v2134 = vpack.c.b16 %v2036, %v2035
      %v2135 = vpack.c.b16 %v2038, %v2037
      %v2136 = vpack.c.b16 %v2040, %v2039
      %v2137 = vpack.c.b16 %v2042, %v2041
      %v2138 = vpack.c.b16 %v2044, %v2043
      %v2139 = vpack.c.b16 %v2046, %v2045
      %v2140 = vpack.c.b16 %v2048, %v2047
      %v2141 = vpack.c.b16 %v2050, %v2049
      %v2142 = vpack.c.b16 %v2052, %v2051
      %v2143 = vpack.c.b16 %v2054, %v2053
      %v2144 = vpack.c.b16 %v2056, %v2055
      %v2145 = vpack.c.b16 %v2058, %v2057
      %v2146 = vpack.c.b16 %v2060, %v2059
      %v2147 = vpack.c.b16 %v2062, %v2061
      %v2148 = vpack.c.b16 %v2064, %v2063
      %v2149 = vpack.c.b16 %v2066, %v2065
      %v2150 = vpack.c.b16 %v2068, %v2067
      %v2151 = vpack.c.b16 %v2070, %v2069
      %v2152 = vpack.c.b16 %v2072, %v2071
      %v2153 = vpack.c.b16 %v2074, %v2073
      %v2154 = vpack.c.b16 %v2076, %v2075
      %v2155 = vpack.c.b16 %v2078, %v2077
      %v2156 = vpack.c.b16 %v2080, %v2079
      %v2157 = vpack.c.b16 %v2082, %v2081
      %v2158 = vpack.c.b16 %v2084, %v2083
      %v2159 = vpack.c.b16 %v2086, %v2085
      %v2160 = vpack.c.b16 %v2088, %v2087
      %v2161 = vpack.c.b16 %v2090, %v2089
      %v2162 = vpack.c.b16 %v2092, %v2091
      %v2163 = vpack.c.b16 %v2094, %v2093
      %v2164 = vpack.c.b16 %v2096, %v2095
      %v2165 = vpack.c.b16 %v2098, %v2097
      %v2166 = vpack.c.b16 %v2100, %v2099
      %v2167 = vpack.c.b16 %v2102, %v2101
      %v2168 = vpack.c.b16 %v2104, %v2103
      %2233 = vmatprep.subr.bf16.mxu0 0
      %2234 = vmatpush1.bf16.msra.mxu0 %v2105
      %2235 = vmatprep.subr.bf16.mxu0 0
      %2236 = vmatpush1.bf16.msra.mxu0 %v2106
      %2237 = vmatprep.subr.bf16.mxu0 0
      %2238 = vmatpush1.bf16.msra.mxu0 %v2107
      %2239 = vmatprep.subr.bf16.mxu0 0
      %2240 = vmatpush1.bf16.msra.mxu0 %v2108
      %2241 = vmatprep.subr.bf16.mxu0 0
      %2242 = vmatpush1.bf16.msra.mxu0 %v2109
      %2243 = vmatprep.subr.bf16.mxu0 0
      %2244 = vmatpush1.bf16.msra.mxu0 %v2110
      %2245 = vmatprep.subr.bf16.mxu0 0
      %2246 = vmatpush1.bf16.msra.mxu0 %v2111
      %2247 = vmatprep.subr.bf16.mxu0 0
      %2248 = vmatpush1.bf16.msra.mxu0 %v2112
      %2249 = vmatprep.subr.bf16.mxu0 0
      %2250 = vmatpush1.bf16.msra.mxu0 %v2113
      %2251 = vmatprep.subr.bf16.mxu0 0
      %2252 = vmatpush1.bf16.msra.mxu0 %v2114
      %2253 = vmatprep.subr.bf16.mxu0 0
      %2254 = vmatpush1.bf16.msra.mxu0 %v2115
      %2255 = vmatprep.subr.bf16.mxu0 0
      %2256 = vmatpush1.bf16.msra.mxu0 %v2116
      %2257 = vmatprep.subr.bf16.mxu0 0
      %2258 = vmatpush1.bf16.msra.mxu0 %v2117
      %2259 = vmatprep.subr.bf16.mxu0 0
      %2260 = vmatpush1.bf16.msra.mxu0 %v2118
      %2261 = vmatprep.subr.bf16.mxu0 0
      %2262 = vmatpush1.bf16.msra.mxu0 %v2119
      %2263 = vmatprep.subr.bf16.mxu0 0
      %2264 = vmatpush1.bf16.msra.mxu0 %v2120
      %2265 = vmatprep.mubr.bf16.mxu0 %v1786
      %2266 = vmatmul.mubr.bf16.gmra.mrb[0].mxu0 %v1785
      %v2267 = vpop.f32.mrb[0].mxu0
      %v2268 = vadd.f32 %v1755, %v2267
      %v2269 = vpop.f32.mrb[0].mxu0
      %v2270 = vpop.f32.mrb[0].mxu0
      %v2271 = vadd.f32 %v1758, %v2270
      %v2272 = vpop.f32.mrb[0].mxu0
      %2273 = vmatprep.mubr.bf16.mxu0 %v1794
      %2274 = vmatmul.mubr.bf16.gmra.mrb[0].mxu0 %v1793
      %v2275 = vpop.f32.mrb[0].mxu0
      %v2276 = vadd.f32 %v1763, %v2275
      %v2277 = vpop.f32.mrb[0].mxu0
      %v2278 = vpop.f32.mrb[0].mxu0
      %v2279 = vadd.f32 %v1766, %v2278
      %v2280 = vpop.f32.mrb[0].mxu0
      %2281 = vmatprep.mubr.bf16.mxu0 %v1802
      %2282 = vmatmul.mubr.bf16.gmra.mrb[0].mxu0 %v1801
      %v2283 = vpop.f32.mrb[0].mxu0
      %v2284 = vadd.f32 %v1771, %v2283
      %v2285 = vpop.f32.mrb[0].mxu0
      %v2286 = vpop.f32.mrb[0].mxu0
      %v2287 = vadd.f32 %v1774, %v2286
      %v2288 = vpop.f32.mrb[0].mxu0
      %2289 = vmatprep.mubr.bf16.mxu0 %v1810
      %2290 = vmatmul.mubr.bf16.gmra.mrb[0].mxu0 %v1809
      %v2291 = vpop.f32.mrb[0].mxu0
      %v2292 = vadd.f32 %v1779, %v2291
      %v2293 = vpop.f32.mrb[0].mxu0
      %v2294 = vpop.f32.mrb[0].mxu0
      %v2295 = vadd.f32 %v1782, %v2294
      %v2296 = vpop.f32.mrb[0].mxu0
      %2297 = vdwg.mxu0
      %2298 = vmatprep.subr.bf16.mxu0 0
      %2299 = vmatpush1.bf16.msra.mxu0 %v2121
      %2300 = vmatprep.subr.bf16.mxu0 0
      %2301 = vmatpush1.bf16.msra.mxu0 %v2122
      %2302 = vmatprep.subr.bf16.mxu0 0
      %2303 = vmatpush1.bf16.msra.mxu0 %v2123
      %2304 = vmatprep.subr.bf16.mxu0 0
      %2305 = vmatpush1.bf16.msra.mxu0 %v2124
      %2306 = vmatprep.subr.bf16.mxu0 0
      %2307 = vmatpush1.bf16.msra.mxu0 %v2125
      %2308 = vmatprep.subr.bf16.mxu0 0
      %2309 = vmatpush1.bf16.msra.mxu0 %v2126
      %2310 = vmatprep.subr.bf16.mxu0 0
      %2311 = vmatpush1.bf16.msra.mxu0 %v2127
      %2312 = vmatprep.subr.bf16.mxu0 0
      %2313 = vmatpush1.bf16.msra.mxu0 %v2128
      %2314 = vmatprep.subr.bf16.mxu0 0
      %2315 = vmatpush1.bf16.msra.mxu0 %v2129
      %2316 = vmatprep.subr.bf16.mxu0 0
      %2317 = vmatpush1.bf16.msra.mxu0 %v2130
      %2318 = vmatprep.subr.bf16.mxu0 0
      %2319 = vmatpush1.bf16.msra.mxu0 %v2131
      %2320 = vmatprep.subr.bf16.mxu0 0
      %2321 = vmatpush1.bf16.msra.mxu0 %v2132
      %2322 = vmatprep.subr.bf16.mxu0 0
      %2323 = vmatpush1.bf16.msra.mxu0 %v2133
      %2324 = vmatprep.subr.bf16.mxu0 0
      %2325 = vmatpush1.bf16.msra.mxu0 %v2134
      %2326 = vmatprep.subr.bf16.mxu0 0
      %2327 = vmatpush1.bf16.msra.mxu0 %v2135
      %2328 = vmatprep.subr.bf16.mxu0 0
      %2329 = vmatpush1.bf16.msra.mxu0 %v2136
      %2330 = vmatprep.mubr.bf16.mxu0 %v1788
      %2331 = vmatmul.mubr.bf16.gmra.mrb[0].mxu0 %v1787
      %v2332 = vpop.f32.mrb[0].mxu0
      %v2333 = vadd.f32 %v2268, %v2332
      %v2334 = vpop.f32.mrb[0].mxu0
      %v2335 = vpop.f32.mrb[0].mxu0
      %v2336 = vadd.f32 %v2271, %v2335
      %v2337 = vpop.f32.mrb[0].mxu0
      %2338 = vmatprep.mubr.bf16.mxu0 %v1796
      %2339 = vmatmul.mubr.bf16.gmra.mrb[0].mxu0 %v1795
      %v2340 = vpop.f32.mrb[0].mxu0
      %v2341 = vadd.f32 %v2276, %v2340
      %v2342 = vpop.f32.mrb[0].mxu0
      %v2343 = vpop.f32.mrb[0].mxu0
      %v2344 = vadd.f32 %v2279, %v2343
      %v2345 = vpop.f32.mrb[0].mxu0
      %2346 = vmatprep.mubr.bf16.mxu0 %v1804
      %2347 = vmatmul.mubr.bf16.gmra.mrb[0].mxu0 %v1803
      %v2348 = vpop.f32.mrb[0].mxu0
      %v2349 = vadd.f32 %v2284, %v2348
      %v2350 = vpop.f32.mrb[0].mxu0
      %v2351 = vpop.f32.mrb[0].mxu0
      %v2352 = vadd.f32 %v2287, %v2351
      %v2353 = vpop.f32.mrb[0].mxu0
      %2354 = vmatprep.mubr.bf16.mxu0 %v1812
      %2355 = vmatmul.mubr.bf16.gmra.mrb[0].mxu0 %v1811
      %v2356 = vpop.f32.mrb[0].mxu0
      %v2357 = vadd.f32 %v2292, %v2356
      %v2358 = vpop.f32.mrb[0].mxu0
      %v2359 = vpop.f32.mrb[0].mxu0
      %v2360 = vadd.f32 %v2295, %v2359
      %v2361 = vpop.f32.mrb[0].mxu0
      %2362 = vdwg.mxu0
      %2363 = vmatprep.subr.bf16.mxu0 0
      %2364 = vmatpush1.bf16.msra.mxu0 %v2137
      %2365 = vmatprep.subr.bf16.mxu0 0
      %2366 = vmatpush1.bf16.msra.mxu0 %v2138
      %2367 = vmatprep.subr.bf16.mxu0 0
      %2368 = vmatpush1.bf16.msra.mxu0 %v2139
      %2369 = vmatprep.subr.bf16.mxu0 0
      %2370 = vmatpush1.bf16.msra.mxu0 %v2140
      %2371 = vmatprep.subr.bf16.mxu0 0
      %2372 = vmatpush1.bf16.msra.mxu0 %v2141
      %2373 = vmatprep.subr.bf16.mxu0 0
      %2374 = vmatpush1.bf16.msra.mxu0 %v2142
      %2375 = vmatprep.subr.bf16.mxu0 0
      %2376 = vmatpush1.bf16.msra.mxu0 %v2143
      %2377 = vmatprep.subr.bf16.mxu0 0
      %2378 = vmatpush1.bf16.msra.mxu0 %v2144
      %2379 = vmatprep.subr.bf16.mxu0 0
      %2380 = vmatpush1.bf16.msra.mxu0 %v2145
      %2381 = vmatprep.subr.bf16.mxu0 0
      %2382 = vmatpush1.bf16.msra.mxu0 %v2146
      %2383 = vmatprep.subr.bf16.mxu0 0
      %2384 = vmatpush1.bf16.msra.mxu0 %v2147
      %2385 = vmatprep.subr.bf16.mxu0 0
      %2386 = vmatpush1.bf16.msra.mxu0 %v2148
      %2387 = vmatprep.subr.bf16.mxu0 0
      %2388 = vmatpush1.bf16.msra.mxu0 %v2149
      %2389 = vmatprep.subr.bf16.mxu0 0
      %2390 = vmatpush1.bf16.msra.mxu0 %v2150
      %2391 = vmatprep.subr.bf16.mxu0 0
      %2392 = vmatpush1.bf16.msra.mxu0 %v2151
      %2393 = vmatprep.subr.bf16.mxu0 0
      %2394 = vmatpush1.bf16.msra.mxu0 %v2152
      %2395 = vmatprep.mubr.bf16.mxu0 %v1790
      %2396 = vmatmul.mubr.bf16.gmra.mrb[0].mxu0 %v1789
      %v2397 = vpop.f32.mrb[0].mxu0
      %v2398 = vadd.f32 %v2333, %v2397
      %v2399 = vpop.f32.mrb[0].mxu0
      %v2400 = vpop.f32.mrb[0].mxu0
      %v2401 = vadd.f32 %v2336, %v2400
      %v2402 = vpop.f32.mrb[0].mxu0
      %2403 = vmatprep.mubr.bf16.mxu0 %v1798
      %2404 = vmatmul.mubr.bf16.gmra.mrb[0].mxu0 %v1797
      %v2405 = vpop.f32.mrb[0].mxu0
      %v2406 = vadd.f32 %v2341, %v2405
      %v2407 = vpop.f32.mrb[0].mxu0
      %v2408 = vpop.f32.mrb[0].mxu0
      %v2409 = vadd.f32 %v2344, %v2408
      %v2410 = vpop.f32.mrb[0].mxu0
      %2411 = vmatprep.mubr.bf16.mxu0 %v1806
      %2412 = vmatmul.mubr.bf16.gmra.mrb[0].mxu0 %v1805
      %v2413 = vpop.f32.mrb[0].mxu0
      %v2414 = vadd.f32 %v2349, %v2413
      %v2415 = vpop.f32.mrb[0].mxu0
      %v2416 = vpop.f32.mrb[0].mxu0
      %v2417 = vadd.f32 %v2352, %v2416
      %v2418 = vpop.f32.mrb[0].mxu0
      %2419 = vmatprep.mubr.bf16.mxu0 %v1814
      %2420 = vmatmul.mubr.bf16.gmra.mrb[0].mxu0 %v1813
      %v2421 = vpop.f32.mrb[0].mxu0
      %v2422 = vadd.f32 %v2357, %v2421
      %v2423 = vpop.f32.mrb[0].mxu0
      %v2424 = vpop.f32.mrb[0].mxu0
      %v2425 = vadd.f32 %v2360, %v2424
      %v2426 = vpop.f32.mrb[0].mxu0
      %2427 = vdwg.mxu0
      %2428 = vmatprep.subr.bf16.mxu0 0
      %2429 = vmatpush1.bf16.msra.mxu0 %v2153
      %2430 = vmatprep.subr.bf16.mxu0 0
      %2431 = vmatpush1.bf16.msra.mxu0 %v2154
      %2432 = vmatprep.subr.bf16.mxu0 0
      %2433 = vmatpush1.bf16.msra.mxu0 %v2155
      %2434 = vmatprep.subr.bf16.mxu0 0
      %2435 = vmatpush1.bf16.msra.mxu0 %v2156
      %2436 = vmatprep.subr.bf16.mxu0 0
      %2437 = vmatpush1.bf16.msra.mxu0 %v2157
      %2438 = vmatprep.subr.bf16.mxu0 0
      %2439 = vmatpush1.bf16.msra.mxu0 %v2158
      %2440 = vmatprep.subr.bf16.mxu0 0
      %2441 = vmatpush1.bf16.msra.mxu0 %v2159
      %2442 = vmatprep.subr.bf16.mxu0 0
      %2443 = vmatpush1.bf16.msra.mxu0 %v2160
      %2444 = vmatprep.subr.bf16.mxu0 0
      %2445 = vmatpush1.bf16.msra.mxu0 %v2161
      %2446 = vmatprep.subr.bf16.mxu0 0
      %2447 = vmatpush1.bf16.msra.mxu0 %v2162
      %2448 = vmatprep.subr.bf16.mxu0 0
      %2449 = vmatpush1.bf16.msra.mxu0 %v2163
      %2450 = vmatprep.subr.bf16.mxu0 0
      %2451 = vmatpush1.bf16.msra.mxu0 %v2164
      %2452 = vmatprep.subr.bf16.mxu0 0
      %2453 = vmatpush1.bf16.msra.mxu0 %v2165
      %2454 = vmatprep.subr.bf16.mxu0 0
      %2455 = vmatpush1.bf16.msra.mxu0 %v2166
      %2456 = vmatprep.subr.bf16.mxu0 0
      %2457 = vmatpush1.bf16.msra.mxu0 %v2167
      %2458 = vmatprep.subr.bf16.mxu0 0
      %2459 = vmatpush1.bf16.msra.mxu0 %v2168
      %2460 = vmatprep.mubr.bf16.mxu0 %v1792
      %2461 = vmatmul.mubr.bf16.gmra.mrb[0].mxu0 %v1791
      %v2462 = vpop.f32.mrb[0].mxu0
      %v2463 = vadd.f32 %v2398, %v2462
      %v2464 = vpop.f32.mrb[0].mxu0
      %v2465 = vpop.f32.mrb[0].mxu0
      %v2466 = vadd.f32 %v2401, %v2465
      %v2467 = vpop.f32.mrb[0].mxu0
      %2468 = vmatprep.mubr.bf16.mxu0 %v1800
      %2469 = vmatmul.mubr.bf16.gmra.mrb[0].mxu0 %v1799
      %v2470 = vpop.f32.mrb[0].mxu0
      %v2471 = vadd.f32 %v2406, %v2470
      %v2472 = vpop.f32.mrb[0].mxu0
      %v2473 = vpop.f32.mrb[0].mxu0
      %v2474 = vadd.f32 %v2409, %v2473
      %v2475 = vpop.f32.mrb[0].mxu0
      %2476 = vmatprep.mubr.bf16.mxu0 %v1808
      %2477 = vmatmul.mubr.bf16.gmra.mrb[0].mxu0 %v1807
      %v2478 = vpop.f32.mrb[0].mxu0
      %v2479 = vadd.f32 %v2414, %v2478
      %v2480 = vpop.f32.mrb[0].mxu0
      %v2481 = vpop.f32.mrb[0].mxu0
      %v2482 = vadd.f32 %v2417, %v2481
      %v2483 = vpop.f32.mrb[0].mxu0
      %2484 = vmatprep.mubr.bf16.mxu0 %v1816
      %2485 = vmatmul.mubr.bf16.gmra.mrb[0].mxu0 %v1815
      %v2486 = vpop.f32.mrb[0].mxu0
      %v2487 = vadd.f32 %v2422, %v2486
      %v2488 = vpop.f32.mrb[0].mxu0
      %v2489 = vpop.f32.mrb[0].mxu0
      %v2490 = vadd.f32 %v2425, %v2489
      %v2491 = vpop.f32.mrb[0].mxu0
      %2492 = vdwg.mxu0
      %v2493 = vld [vmem:[%s4] sm:$0x1]
      %v2495 = vlaneseq
      %v2496 = vshrl.u32 %v2495, 7
      %v2497 = vsub.s32 0, %v2496
      %v2498 = vrot.slane %v2493, %v2497
      %v2500 = vadd.f32 %v2463, %v2498
      %v2501 = vadd.f32 %v2466, %v2498
      %v2502 = vadd.f32 %v2471, %v2498
      %v2503 = vadd.f32 %v2474, %v2498
      %v2504 = vadd.f32 %v2479, %v2498
      %v2505 = vadd.f32 %v2482, %v2498
      %v2506 = vadd.f32 %v2487, %v2498
      %v2507 = vadd.f32 %v2490, %v2498
      %v2508 = vmul.f32 %v2500, 0.2
      %v2509 = vmul.f32 %v2501, 0.2
      %v2510 = vmul.f32 %v2502, 0.2
      %v2511 = vmul.f32 %v2503, 0.2
      %v2512 = vmul.f32 %v2504, 0.2
      %v2513 = vmul.f32 %v2505, 0.2
      %v2514 = vmul.f32 %v2506, 0.2
      %v2515 = vmul.f32 %v2507, 0.2
      %v2516 = vmax.f32 %v2500, %v2508
      %v2517 = vmax.f32 %v2501, %v2509
      %v2518 = vmax.f32 %v2502, %v2510
      %v2519 = vmax.f32 %v2503, %v2511
      %v2520 = vmax.f32 %v2504, %v2512
      %v2521 = vmax.f32 %v2505, %v2513
      %v2522 = vmax.f32 %v2506, %v2514
      %v2523 = vmax.f32 %v2507, %v2515
      %v2524 = vpack.c.bf16 %v2517, %v2516
      %v2525 = vpack.c.bf16 %v2519, %v2518
      %v2526 = vpack.c.bf16 %v2521, %v2520
      %v2527 = vpack.c.bf16 %v2523, %v2522
      %v2532 = vunpack.c.l.b16 %v2524
      %v2533 = vunpack.c.h.b16 %v2524
      %v2534 = vunpack.c.l.b16 %v2525
      %v2535 = vunpack.c.h.b16 %v2525
      %v2536 = vunpack.c.l.b16 %v2526
      %v2537 = vunpack.c.h.b16 %v2526
      %v2538 = vunpack.c.l.b16 %v2527
      %v2539 = vunpack.c.h.b16 %v2527
      %v2540 = vpack.c.b16 %v2532, %v2532
      %v2541 = vpack.c.b16 %v2533, %v2533
      %v2542 = vpack.c.b16 %v2534, %v2534
      %v2543 = vpack.c.b16 %v2535, %v2535
      %v2544 = vpack.c.b16 %v2536, %v2536
      %v2545 = vpack.c.b16 %v2537, %v2537
      %v2546 = vpack.c.b16 %v2538, %v2538
      %v2547 = vpack.c.b16 %v2539, %v2539
      %2556 = vst [vmem:[%s348] sm:$0xf] %v2540
      %2557 = vst [vmem:[%s348 + $0x4] sm:$0xf] %v2541
      %2558 = vst [vmem:[%s348 + $0x8] sm:$0xf] %v2542
      %2559 = vst [vmem:[%s348 + $0xc] sm:$0xf] %v2543
      %2560 = vst [vmem:[%s348 + $0x10] sm:$0xf] %v2544
      %2561 = vst [vmem:[%s348 + $0x14] sm:$0xf] %v2545
      %2562 = vst [vmem:[%s348 + $0x18] sm:$0xf] %v2546
      %2563 = vst [vmem:[%s348 + $0x1c] sm:$0xf] %v2547
      %p2564 = scmp.lt.s32.totalorder %s20, 1
      %s2565 = scalar_select %p2564, %s20, 1
      %p2566 = scmp.lt.s32.totalorder %s21, 0
      %s2567 = scalar_select %p2566, %s21, 0
      %s2568 = smul.addr %s2567, 8
      %s2569 = smul.addr %s2565, 8
      %s2570 = sadd.s32 %s2568, %s2569
      %s2571 = smul.addr %s2570, 4
      %s2572 = scalar_lea.vmem %s5, %s2571
      // Predicated region
      $region41: #{_lambda_.6} parent=39 // pred_check
        %p2573 = pneg %p171
      $region42: #{_lambda_.6} parent=39 // pred_check_branch
        %2575 = sbr.rel (%p2573) target = $region44
      $region43: #{_lambda_.6} parent=39 // pred_region
        _
      $region44: #{_lambda_.6} parent=39 // pred_fallthru
        _
    $region40: #{_lambda_.6} parent=5 // pred_fallthru
      _
    %p2576 = scmp.le.s32.totalorder 2, %s11
    // Predicated region
    $region45: #{_lambda_.6} parent=5 // pred_check
      %p2577 = pneg %p2576
    $region46: #{_lambda_.6} parent=5 // pred_check_branch
      %2579 = sbr.rel (%p2577) target = $region48
    $region47: #{_lambda_.6} parent=5 // pred_region
      %s2580 = ssub.s32 %s11, 2
      // Predicated region
      $region49: #{_lambda_.6} parent=47 // pred_check
        %p2581 = pneg %p177
      $region50: #{_lambda_.6} parent=47 // pred_check_branch
        %2583 = sbr.rel (%p2581) target = $region52
      $region51: #{_lambda_.6} parent=47 // pred_region
        %p2584 = scmp.lt.s32.totalorder %s22, 1
        %s2585 = scalar_select %p2584, %s22, 1
        %p2586 = scmp.lt.s32.totalorder %s23, 0
        %s2587 = scalar_select %p2586, %s23, 0
        %s2588 = smul.addr %s2587, 8
        %s2589 = smul.addr %s2585, 8
        %s2590 = sadd.s32 %s2588, %s2589
        %s2591 = smul.addr %s2590, 4
        %s2592 = scalar_lea.vmem %s5, %s2591
      $region52: #{_lambda_.6} parent=47 // pred_fallthru
        _
    $region48: #{_lambda_.6} parent=5 // pred_fallthru
      _
  $region6: #{_lambda_.6} parent=0 // loop_footer
    %s15 = sadd.s32 1, %s11
  $region7: #{_lambda_.6} parent=0 // loop_footer_branch
    %10 = sbr.rel target = $region3
  $region8: #{_lambda_.6} parent=0 // loop_exit
    _

// kernel: _lambda_.8
$region0: #{_lambda_.8}
  #allocation0 [shape = 'u32[]', space=smem, size = 0x4, offset = 0x4, fixed_abs, tag = 'smem constant byte address 0x4 - core index']
  #allocation1 [shape = 'u32[144,128]{1,0:T(1,128)}', space=vmem, size = 0x12000, scoped, tag = 'internal scratch']
  %s0 = inlined_call_operand.vmem [shape: bf16[2,3,2,3,256], index: 0, kind: input, shape index: {}, may-alias: {0,1}]
  %s1 = inlined_call_operand.vmem [shape: bf16[2,3,2,3,256], index: 1, kind: input, shape index: {}, may-alias: {0,1}]
  %s2 = inlined_call_operand.vmem [shape: bf16[1024,128], index: 2, kind: input, shape index: {}]
  %s3 = inlined_call_operand.vmem [shape: bf16[1024,128], index: 3, kind: input, shape index: {}]
  %s4 = inlined_call_operand.vmem [shape: f32[1,128], index: 4, kind: input, shape index: {}]
  %s5 = inlined_call_operand.vmem [shape: bf16[2,2,2,128], index: 5, kind: output, shape index: {}]
  %s6 = sld [smem:[#allocation0]]
  $region53: #{_lambda_.8} parent=0
    _
  %s8 = ssub.s32 1, %s6
  %s9 = scalar_select 0, %s8, %s6
  loop: start=0, step=1, limit=6
  $region2: #{_lambda_.8} parent=0 // loop_pre_header
    _
  $region3: #{_lambda_.8} parent=0 // loop_header
    %s11 = sphi 0, %s15
    %p12 = scmp.ge.s32.totalorder %s11, 6
    %s18 = sphi 0, %s30
    %s19 = sphi 0, %s26
    %s20 = sphi 0, %s18
    %s21 = sphi 0, %s19
    %s22 = sphi 0, %s20
    %s23 = sphi 0, %s21
    %s35 = sphi 0, %s37
    %s38 = sphi 0, %s35
    %s39 = sphi 0, %s38
    %s55 = sphi 0, %s39
    %s65 = sphi 0, %s67
    %s68 = sphi 0, %s65
    %s69 = sphi 0, %s68
    %s85 = sphi 0, %s69
    %s89 = sphi 0, %s89
    %s91 = sphi 0, %s89
    %s92 = sphi 0, %s91
    %s106 = sphi 0, %s92
    %s110 = sphi 0, %s110
    %s112 = sphi 0, %s110
    %s113 = sphi 0, %s112
    %s127 = sphi 0, %s113
    %s131 = sphi 0, %s131
    %s133 = sphi 0, %s131
    %s134 = sphi 0, %s133
    %s148 = sphi 0, %s134
    %s156 = sphi 0, %s158
    %s159 = sphi 0, %s156
    %s160 = sphi 0, %s159
    %s176 = sphi 0, %s160
  $region4: #{_lambda_.8} parent=0 // loop_header_branch
    %14 = sbr.rel (%p12) target = $region8
  $region5: #{_lambda_.8} parent=0 // loop_body
    %s16 = ssub.s32 %s11, 1
    %s17 = ssub.s32 %s11, 2
    %s24 = sadd.s32 1, %s19
    %p25 = scmp.ge.s32.totalorder %s24, 2
    %s26 = scalar_select %p25, 0, %s24
    %s27 = sadd.s32 1, %s18
    %s28 = scalar_select %p25, %s27, %s18
    %p29 = scmp.ge.s32.totalorder %s28, 2
    %s30 = scalar_select %p29, 0, %s28
    %s31 = ssub.s32 %s18, %s30
    %s32 = ssub.s32 %s19, %s26
    %s33 = sor.u32 %s31, %s32
    %p34 = scmp.eq.s32.totalorder %s33, 0
    %s36 = sadd.s32 %s35, 1
    %s37 = scalar_select %p34, %s35, %s36
    %p40 = pneg %p34
    %p41 = scmp.eq.s32.totalorder %s11, 3
    %p42 = por %p40, %p41
    %p43 = scmp.ne.s32.totalorder %s35, %s38
    %p44 = scmp.eq.s32.totalorder %s11, 0
    %p45 = por %p43, %p44
    %p46 = scmp.ne.s32.totalorder %s35, %s38
    %p47 = scmp.eq.s32.totalorder %s16, 3
    %p48 = por %p46, %p47
    %p49 = scmp.ne.s32.totalorder %s38, %s39
    %p50 = scmp.eq.s32.totalorder %s16, 0
    %p51 = por %p49, %p50
    %p52 = scmp.ne.s32.totalorder %s38, %s39
    %p53 = scmp.eq.s32.totalorder %s17, 3
    %p54 = por %p52, %p53
    %p56 = scmp.ne.s32.totalorder %s39, %s55
    %p57 = scmp.eq.s32.totalorder %s17, 0
    %p58 = por %p56, %p57
    %s59 = sadd.s32 %s19, 1
    %s60 = sadd.s32 %s26, 1
    %s61 = ssub.s32 %s18, %s30
    %s62 = ssub.s32 %s59, %s60
    %s63 = sor.u32 %s61, %s62
    %p64 = scmp.eq.s32.totalorder %s63, 0
    %s66 = sadd.s32 %s65, 1
    %s67 = scalar_select %p64, %s65, %s66
    %p70 = pneg %p64
    %p71 = scmp.eq.s32.totalorder %s11, 3
    %p72 = por %p70, %p71
    %p73 = scmp.ne.s32.totalorder %s65, %s68
    %p74 = scmp.eq.s32.totalorder %s11, 0
    %p75 = por %p73, %p74
    %p76 = scmp.ne.s32.totalorder %s65, %s68
    %p77 = scmp.eq.s32.totalorder %s16, 3
    %p78 = por %p76, %p77
    %p79 = scmp.ne.s32.totalorder %s68, %s69
    %p80 = scmp.eq.s32.totalorder %s16, 0
    %p81 = por %p79, %p80
    %p82 = scmp.ne.s32.totalorder %s68, %s69
    %p83 = scmp.eq.s32.totalorder %s17, 3
    %p84 = por %p82, %p83
    %p86 = scmp.ne.s32.totalorder %s69, %s85
    %p87 = scmp.eq.s32.totalorder %s17, 0
    %p88 = por %p86, %p87
    %s90 = sadd.s32 %s89, 1
    %p93 = scmp.eq.s32.totalorder %s11, 3
    %p94 = scmp.ne.s32.totalorder %s89, %s91
    %p95 = scmp.eq.s32.totalorder %s11, 0
    %p96 = por %p94, %p95
    %p97 = scmp.ne.s32.totalorder %s89, %s91
    %p98 = scmp.eq.s32.totalorder %s16, 3
    %p99 = por %p97, %p98
    %p100 = scmp.ne.s32.totalorder %s91, %s92
    %p101 = scmp.eq.s32.totalorder %s16, 0
    %p102 = por %p100, %p101
    %p103 = scmp.ne.s32.totalorder %s91, %s92
    %p104 = scmp.eq.s32.totalorder %s17, 3
    %p105 = por %p103, %p104
    %p107 = scmp.ne.s32.totalorder %s92, %s106
    %p108 = scmp.eq.s32.totalorder %s17, 0
    %p109 = por %p107, %p108
    %s111 = sadd.s32 %s110, 1
    %p114 = scmp.eq.s32.totalorder %s11, 3
    %p115 = scmp.ne.s32.totalorder %s110, %s112
    %p116 = scmp.eq.s32.totalorder %s11, 0
    %p117 = por %p115, %p116
    %p118 = scmp.ne.s32.totalorder %s110, %s112
    %p119 = scmp.eq.s32.totalorder %s16, 3
    %p120 = por %p118, %p119
    %p121 = scmp.ne.s32.totalorder %s112, %s113
    %p122 = scmp.eq.s32.totalorder %s16, 0
    %p123 = por %p121, %p122
    %p124 = scmp.ne.s32.totalorder %s112, %s113
    %p125 = scmp.eq.s32.totalorder %s17, 3
    %p126 = por %p124, %p125
    %p128 = scmp.ne.s32.totalorder %s113, %s127
    %p129 = scmp.eq.s32.totalorder %s17, 0
    %p130 = por %p128, %p129
    %s132 = sadd.s32 %s131, 1
    %p135 = scmp.eq.s32.totalorder %s11, 3
    %p136 = scmp.ne.s32.totalorder %s131, %s133
    %p137 = scmp.eq.s32.totalorder %s11, 0
    %p138 = por %p136, %p137
    %p139 = scmp.ne.s32.totalorder %s131, %s133
    %p140 = scmp.eq.s32.totalorder %s16, 3
    %p141 = por %p139, %p140
    %p142 = scmp.ne.s32.totalorder %s133, %s134
    %p143 = scmp.eq.s32.totalorder %s16, 0
    %p144 = por %p142, %p143
    %p145 = scmp.ne.s32.totalorder %s133, %s134
    %p146 = scmp.eq.s32.totalorder %s17, 3
    %p147 = por %p145, %p146
    %p149 = scmp.ne.s32.totalorder %s134, %s148
    %p150 = scmp.eq.s32.totalorder %s17, 0
    %p151 = por %p149, %p150
    %s152 = ssub.s32 %s18, %s30
    %s153 = ssub.s32 %s19, %s26
    %s154 = sor.u32 %s152, %s153
    %p155 = scmp.eq.s32.totalorder %s154, 0
    %s157 = sadd.s32 %s156, 1
    %s158 = scalar_select %p155, %s156, %s157
    %p161 = pneg %p155
    %p162 = scmp.eq.s32.totalorder %s11, 3
    %p163 = por %p161, %p162
    %p164 = scmp.ne.s32.totalorder %s156, %s159
    %p165 = scmp.eq.s32.totalorder %s11, 0
    %p166 = por %p164, %p165
    %p167 = scmp.ne.s32.totalorder %s156, %s159
    %p168 = scmp.eq.s32.totalorder %s16, 3
    %p169 = por %p167, %p168
    %p170 = scmp.ne.s32.totalorder %s159, %s160
    %p171 = scmp.eq.s32.totalorder %s16, 0
    %p172 = por %p170, %p171
    %p173 = scmp.ne.s32.totalorder %s159, %s160
    %p174 = scmp.eq.s32.totalorder %s17, 3
    %p175 = por %p173, %p174
    %p177 = scmp.ne.s32.totalorder %s160, %s176
    %p178 = scmp.eq.s32.totalorder %s17, 0
    %p179 = por %p177, %p178
    %p180 = scmp.le.s32.totalorder 1, %s11
    %p181 = scmp.lt.s32.totalorder %s11, 5
    %p182 = pnand %p180, %p181
    %p183 = pneg %p182
    // Predicated region
    $region9: #{_lambda_.8} parent=5 // pred_check
      _
    $region10: #{_lambda_.8} parent=5 // pred_check_branch
      %185 = sbr.rel (%p182) target = $region12
    $region11: #{_lambda_.8} parent=5 // pred_region
      %s186 = ssub.s32 %s11, 1
      // Predicated region
      $region13: #{_lambda_.8} parent=11 // pred_check
        %p187 = pneg %p102
      $region14: #{_lambda_.8} parent=11 // pred_check_branch
        %189 = sbr.rel (%p187) target = $region16
      $region15: #{_lambda_.8} parent=11 // pred_region
        _
      $region16: #{_lambda_.8} parent=11 // pred_fallthru
        _
      // Predicated region
      $region17: #{_lambda_.8} parent=11 // pred_check
        %p190 = pneg %p123
      $region18: #{_lambda_.8} parent=11 // pred_check_branch
        %192 = sbr.rel (%p190) target = $region20
      $region19: #{_lambda_.8} parent=11 // pred_region
        _
      $region20: #{_lambda_.8} parent=11 // pred_fallthru
        _
      // Predicated region
      $region21: #{_lambda_.8} parent=11 // pred_check
        %p193 = pneg %p144
      $region22: #{_lambda_.8} parent=11 // pred_check_branch
        %195 = sbr.rel (%p193) target = $region24
      $region23: #{_lambda_.8} parent=11 // pred_region
        _
      $region24: #{_lambda_.8} parent=11 // pred_fallthru
        _
    $region12: #{_lambda_.8} parent=5 // pred_fallthru
      _
    %p196 = scmp.lt.s32.totalorder %s11, 4
    // Predicated region
    $region25: #{_lambda_.8} parent=5 // pred_check
      %p197 = pneg %p196
    $region26: #{_lambda_.8} parent=5 // pred_check_branch
      %199 = sbr.rel (%p197) target = $region28
    $region27: #{_lambda_.8} parent=5 // pred_region
      // Predicated region
      $region29: #{_lambda_.8} parent=27 // pred_check
        %p200 = pneg %p45
      $region30: #{_lambda_.8} parent=27 // pred_check_branch
        %202 = sbr.rel (%p200) target = $region32
      $region31: #{_lambda_.8} parent=27 // pred_region
        %p203 = scmp.lt.s32.totalorder %s18, 1
        %s204 = scalar_select %p203, %s18, 1
        %p205 = scmp.lt.s32.totalorder %s19, 2
        %s206 = scalar_select %p205, %s19, 2
        %s207 = smul.addr %s206, 4
        %s208 = smul.addr %s204, 12
        %s209 = sadd.s32 %s207, %s208
        %s210 = smul.addr %s209, 2
        %s211 = scalar_lea.vmem %s0, %s210
      $region32: #{_lambda_.8} parent=27 // pred_fallthru
        _
      // Predicated region
      $region33: #{_lambda_.8} parent=27 // pred_check
        %p212 = pneg %p75
      $region34: #{_lambda_.8} parent=27 // pred_check_branch
        %214 = sbr.rel (%p212) target = $region36
      $region35: #{_lambda_.8} parent=27 // pred_region
        %s215 = sadd.s32 %s19, 1
        %p216 = scmp.lt.s32.totalorder %s18, 1
        %s217 = scalar_select %p216, %s18, 1
        %p218 = scmp.lt.s32.totalorder %s215, 2
        %s219 = scalar_select %p218, %s215, 2
        %s220 = smul.addr %s219, 4
        %s221 = smul.addr %s217, 12
        %s222 = sadd.s32 %s220, %s221
        %s223 = smul.addr %s222, 2
        %s224 = scalar_lea.vmem %s1, %s223
        %s225 = sadd.s32 %s19, 1
      $region36: #{_lambda_.8} parent=27 // pred_fallthru
        _
    $region28: #{_lambda_.8} parent=5 // pred_fallthru
      _
    %p226 = scmp.le.s32.totalorder 1, %s11
    %p227 = scmp.lt.s32.totalorder %s11, 5
    %p228 = pnand %p226, %p227
    %p229 = pneg %p228
    // Predicated region
    $region37: #{_lambda_.8} parent=5 // pred_check
      _
    $region38: #{_lambda_.8} parent=5 // pred_check_branch
      %231 = sbr.rel (%p228) target = $region40
    $region39: #{_lambda_.8} parent=5 // pred_region
      %s232 = ssub.s32 %s11, 1
      %p233 = scmp.lt.s32.totalorder %s20, 1
      %s234 = scalar_select %p233, %s20, 1
      %p235 = scmp.lt.s32.totalorder %s21, 2
      %s236 = scalar_select %p235, %s21, 2
      %s237 = smul.addr %s236, 4
      %s238 = smul.addr %s234, 12
      %s239 = sadd.s32 %s237, %s238
      %s240 = smul.addr %s239, 2
      %s241 = scalar_lea.vmem %s0, %s240
      %p242 = pneg %p51
      %p243 = pneg %p48
      %s244 = sadd.s32 %s21, 1
      %p245 = scmp.lt.s32.totalorder %s20, 1
      %s246 = scalar_select %p245, %s20, 1
      %p247 = scmp.lt.s32.totalorder %s244, 2
      %s248 = scalar_select %p247, %s244, 2
      %s249 = smul.addr %s248, 4
      %s250 = smul.addr %s246, 12
      %s251 = sadd.s32 %s249, %s250
      %s252 = smul.addr %s251, 2
      %s253 = scalar_lea.vmem %s1, %s252
      %p254 = pneg %p81
      %p255 = pneg %p78
      %p256 = pneg %p102
      %p257 = pneg %p99
      %p258 = pneg %p123
      %p259 = pneg %p120
      %p260 = pneg %p144
      %p261 = pneg %p141
      %p262 = pneg %p172
      %p263 = pneg %p169
      %p264 = scmp.lt.s32.totalorder %s20, 1
      %s265 = scalar_select %p264, %s20, 1
      %p266 = scmp.lt.s32.totalorder %s21, 1
      %s267 = scalar_select %p266, %s21, 1
      %s268 = smul.addr %s265, 2
      %s269 = sadd.s32 %s267, %s268
      %s270 = scalar_lea.vmem %s5, %s269
      %p271 = scmp.lt.s32.totalorder %s20, 1
      %s272 = scalar_select %p271, %s20, 1
      %p273 = scmp.lt.s32.totalorder %s21, 2
      %s274 = scalar_select %p273, %s21, 2
      %s275 = smul.addr %s274, 4
      %s276 = smul.addr %s272, 12
      %s277 = sadd.s32 %s275, %s276
      %s278 = smul.addr %s277, 2
      %s279 = scalar_lea.vmem %s0, %s278
      %s280 = sadd.s32 %s21, 1
      %p281 = scmp.lt.s32.totalorder %s20, 1
      %s282 = scalar_select %p281, %s20, 1
      %p283 = scmp.lt.s32.totalorder %s280, 2
      %s284 = scalar_select %p283, %s280, 2
      %s285 = smul.addr %s284, 4
      %s286 = smul.addr %s282, 12
      %s287 = sadd.s32 %s285, %s286
      %s288 = smul.addr %s287, 2
      %s289 = scalar_lea.vmem %s1, %s288
      %s290 = sadd.s32 %s21, 1
      %p291 = scmp.lt.s32.totalorder %s20, 1
      %s292 = scalar_select %p291, %s20, 1
      %p293 = scmp.lt.s32.totalorder %s21, 1
      %s294 = scalar_select %p293, %s21, 1
      %s295 = smul.addr %s292, 2
      %s296 = sadd.s32 %s294, %s295
      %s297 = scalar_lea.vmem %s5, %s296
      %v299 = vld [vmem:[%s279] sm:$0xf]
      %v300 = vld [vmem:[%s279 + $0x4] sm:$0xf]
      %v301 = vld [vmem:[%s289] sm:$0xf]
      %v302 = vld [vmem:[%s289 + $0x4] sm:$0xf]
      %v305 = vunpack.c.l.s4 1983009808
      %v306 = vunpack.c.0.s8 %v305
      %v307 = vlaneseq
      %v308 = vshrl.u32 %v307, 7
      %v309 = vsub.s32 %v306, %v308
      %v310 = vrot.slane %v299, %v309
      %v311 = vcombine.high %v310, %v310
      %v316 = vunpack.c.l.s4 1983009808
      %v317 = vunpack.c.0.s8 %v316
      %v318 = vlaneseq
      %v319 = vshrl.u32 %v318, 7
      %v320 = vsub.s32 %v317, %v319
      %v321 = vrot.slane %v300, %v320
      %v322 = vcombine.high %v321, %v321
      %v327 = vunpack.c.l.s4 1983009808
      %v328 = vunpack.c.0.s8 %v327
      %v329 = vlaneseq
      %v330 = vshrl.u32 %v329, 7
      %v331 = vsub.s32 %v328, %v330
      %v332 = vrot.slane %v301, %v331
      %v333 = vcombine.high %v332, %v332
      %v338 = vunpack.c.l.s4 1983009808
      %v339 = vunpack.c.0.s8 %v338
      %v340 = vlaneseq
      %v341 = vshrl.u32 %v340, 7
      %v342 = vsub.s32 %v339, %v341
      %v343 = vrot.slane %v302, %v342
      %v344 = vcombine.high %v343, %v343
      %v347 = vld [vmem:[%s2] sm:$0xf]
      %v348 = vld [vmem:[%s2 + $0x4] sm:$0xf]
      %v349 = vld [vmem:[%s2 + $0x8] sm:$0xf]
      %v350 = vld [vmem:[%s2 + $0xc] sm:$0xf]
      %v351 = vld [vmem:[%s2 + $0x10] sm:$0xf]
      %v352 = vld [vmem:[%s2 + $0x14] sm:$0xf]
      %v353 = vld [vmem:[%s2 + $0x18] sm:$0xf]
      %v354 = vld [vmem:[%s2 + $0x1c] sm:$0xf]
      %v355 = vld [vmem:[%s2 + $0x20] sm:$0xf]
      %v356 = vld [vmem:[%s2 + $0x24] sm:$0xf]
      %v357 = vld [vmem:[%s2 + $0x28] sm:$0xf]
      %v358 = vld [vmem:[%s2 + $0x2c] sm:$0xf]
      %v359 = vld [vmem:[%s2 + $0x30] sm:$0xf]
      %v360 = vld [vmem:[%s2 + $0x34] sm:$0xf]
      %v361 = vld [vmem:[%s2 + $0x38] sm:$0xf]
      %v362 = vld [vmem:[%s2 + $0x3c] sm:$0xf]
      %v363 = vld [vmem:[%s2 + $0x40] sm:$0xf]
      %v364 = vld [vmem:[%s2 + $0x44] sm:$0xf]
      %v365 = vld [vmem:[%s2 + $0x48] sm:$0xf]
      %v366 = vld [vmem:[%s2 + $0x4c] sm:$0xf]
      %v367 = vld [vmem:[%s2 + $0x50] sm:$0xf]
      %v368 = vld [vmem:[%s2 + $0x54] sm:$0xf]
      %v369 = vld [vmem:[%s2 + $0x58] sm:$0xf]
      %v370 = vld [vmem:[%s2 + $0x5c] sm:$0xf]
      %v371 = vld [vmem:[%s2 + $0x60] sm:$0xf]
      %v372 = vld [vmem:[%s2 + $0x64] sm:$0xf]
      %v373 = vld [vmem:[%s2 + $0x68] sm:$0xf]
      %v374 = vld [vmem:[%s2 + $0x6c] sm:$0xf]
      %v375 = vld [vmem:[%s2 + $0x70] sm:$0xf]
      %v376 = vld [vmem:[%s2 + $0x74] sm:$0xf]
      %v377 = vld [vmem:[%s2 + $0x78] sm:$0xf]
      %v378 = vld [vmem:[%s2 + $0x7c] sm:$0xf]
      %v379 = vld [vmem:[%s2 + $0x80] sm:$0xf]
      %v380 = vld [vmem:[%s2 + $0x84] sm:$0xf]
      %v381 = vld [vmem:[%s2 + $0x88] sm:$0xf]
      %v382 = vld [vmem:[%s2 + $0x8c] sm:$0xf]
      %v383 = vld [vmem:[%s2 + $0x90] sm:$0xf]
      %v384 = vld [vmem:[%s2 + $0x94] sm:$0xf]
      %v385 = vld [vmem:[%s2 + $0x98] sm:$0xf]
      %v386 = vld [vmem:[%s2 + $0x9c] sm:$0xf]
      %v387 = vld [vmem:[%s2 + $0xa0] sm:$0xf]
      %v388 = vld [vmem:[%s2 + $0xa4] sm:$0xf]
      %v389 = vld [vmem:[%s2 + $0xa8] sm:$0xf]
      %v390 = vld [vmem:[%s2 + $0xac] sm:$0xf]
      %v391 = vld [vmem:[%s2 + $0xb0] sm:$0xf]
      %v392 = vld [vmem:[%s2 + $0xb4] sm:$0xf]
      %v393 = vld [vmem:[%s2 + $0xb8] sm:$0xf]
      %v394 = vld [vmem:[%s2 + $0xbc] sm:$0xf]
      %v395 = vld [vmem:[%s2 + $0xc0] sm:$0xf]
      %v396 = vld [vmem:[%s2 + $0xc4] sm:$0xf]
      %v397 = vld [vmem:[%s2 + $0xc8] sm:$0xf]
      %v398 = vld [vmem:[%s2 + $0xcc] sm:$0xf]
      %v399 = vld [vmem:[%s2 + $0xd0] sm:$0xf]
      %v400 = vld [vmem:[%s2 + $0xd4] sm:$0xf]
      %v401 = vld [vmem:[%s2 + $0xd8] sm:$0xf]
      %v402 = vld [vmem:[%s2 + $0xdc] sm:$0xf]
      %v403 = vld [vmem:[%s2 + $0xe0] sm:$0xf]
      %v404 = vld [vmem:[%s2 + $0xe4] sm:$0xf]
      %v405 = vld [vmem:[%s2 + $0xe8] sm:$0xf]
      %v406 = vld [vmem:[%s2 + $0xec] sm:$0xf]
      %v407 = vld [vmem:[%s2 + $0xf0] sm:$0xf]
      %v408 = vld [vmem:[%s2 + $0xf4] sm:$0xf]
      %v409 = vld [vmem:[%s2 + $0xf8] sm:$0xf]
      %v410 = vld [vmem:[%s2 + $0xfc] sm:$0xf]
      %v411 = vld [vmem:[%s2 + $0x100] sm:$0xf]
      %v412 = vld [vmem:[%s2 + $0x104] sm:$0xf]
      %v413 = vld [vmem:[%s2 + $0x108] sm:$0xf]
      %v414 = vld [vmem:[%s2 + $0x10c] sm:$0xf]
      %v415 = vld [vmem:[%s2 + $0x110] sm:$0xf]
      %v416 = vld [vmem:[%s2 + $0x114] sm:$0xf]
      %v417 = vld [vmem:[%s2 + $0x118] sm:$0xf]
      %v418 = vld [vmem:[%s2 + $0x11c] sm:$0xf]
      %v419 = vld [vmem:[%s2 + $0x120] sm:$0xf]
      %v420 = vld [vmem:[%s2 + $0x124] sm:$0xf]
      %v421 = vld [vmem:[%s2 + $0x128] sm:$0xf]
      %v422 = vld [vmem:[%s2 + $0x12c] sm:$0xf]
      %v423 = vld [vmem:[%s2 + $0x130] sm:$0xf]
      %v424 = vld [vmem:[%s2 + $0x134] sm:$0xf]
      %v425 = vld [vmem:[%s2 + $0x138] sm:$0xf]
      %v426 = vld [vmem:[%s2 + $0x13c] sm:$0xf]
      %v427 = vld [vmem:[%s2 + $0x140] sm:$0xf]
      %v428 = vld [vmem:[%s2 + $0x144] sm:$0xf]
      %v429 = vld [vmem:[%s2 + $0x148] sm:$0xf]
      %v430 = vld [vmem:[%s2 + $0x14c] sm:$0xf]
      %v431 = vld [vmem:[%s2 + $0x150] sm:$0xf]
      %v432 = vld [vmem:[%s2 + $0x154] sm:$0xf]
      %v433 = vld [vmem:[%s2 + $0x158] sm:$0xf]
      %v434 = vld [vmem:[%s2 + $0x15c] sm:$0xf]
      %v435 = vld [vmem:[%s2 + $0x160] sm:$0xf]
      %v436 = vld [vmem:[%s2 + $0x164] sm:$0xf]
      %v437 = vld [vmem:[%s2 + $0x168] sm:$0xf]
      %v438 = vld [vmem:[%s2 + $0x16c] sm:$0xf]
      %v439 = vld [vmem:[%s2 + $0x170] sm:$0xf]
      %v440 = vld [vmem:[%s2 + $0x174] sm:$0xf]
      %v441 = vld [vmem:[%s2 + $0x178] sm:$0xf]
      %v442 = vld [vmem:[%s2 + $0x17c] sm:$0xf]
      %v443 = vld [vmem:[%s2 + $0x180] sm:$0xf]
      %v444 = vld [vmem:[%s2 + $0x184] sm:$0xf]
      %v445 = vld [vmem:[%s2 + $0x188] sm:$0xf]
      %v446 = vld [vmem:[%s2 + $0x18c] sm:$0xf]
      %v447 = vld [vmem:[%s2 + $0x190] sm:$0xf]
      %v448 = vld [vmem:[%s2 + $0x194] sm:$0xf]
      %v449 = vld [vmem:[%s2 + $0x198] sm:$0xf]
      %v450 = vld [vmem:[%s2 + $0x19c] sm:$0xf]
      %v451 = vld [vmem:[%s2 + $0x1a0] sm:$0xf]
      %v452 = vld [vmem:[%s2 + $0x1a4] sm:$0xf]
      %v453 = vld [vmem:[%s2 + $0x1a8] sm:$0xf]
      %v454 = vld [vmem:[%s2 + $0x1ac] sm:$0xf]
      %v455 = vld [vmem:[%s2 + $0x1b0] sm:$0xf]
      %v456 = vld [vmem:[%s2 + $0x1b4] sm:$0xf]
      %v457 = vld [vmem:[%s2 + $0x1b8] sm:$0xf]
      %v458 = vld [vmem:[%s2 + $0x1bc] sm:$0xf]
      %v459 = vld [vmem:[%s2 + $0x1c0] sm:$0xf]
      %v460 = vld [vmem:[%s2 + $0x1c4] sm:$0xf]
      %v461 = vld [vmem:[%s2 + $0x1c8] sm:$0xf]
      %v462 = vld [vmem:[%s2 + $0x1cc] sm:$0xf]
      %v463 = vld [vmem:[%s2 + $0x1d0] sm:$0xf]
      %v464 = vld [vmem:[%s2 + $0x1d4] sm:$0xf]
      %v465 = vld [vmem:[%s2 + $0x1d8] sm:$0xf]
      %v466 = vld [vmem:[%s2 + $0x1dc] sm:$0xf]
      %v467 = vld [vmem:[%s2 + $0x1e0] sm:$0xf]
      %v468 = vld [vmem:[%s2 + $0x1e4] sm:$0xf]
      %v469 = vld [vmem:[%s2 + $0x1e8] sm:$0xf]
      %v470 = vld [vmem:[%s2 + $0x1ec] sm:$0xf]
      %v471 = vld [vmem:[%s2 + $0x1f0] sm:$0xf]
      %v472 = vld [vmem:[%s2 + $0x1f4] sm:$0xf]
      %v473 = vld [vmem:[%s2 + $0x1f8] sm:$0xf]
      %v474 = vld [vmem:[%s2 + $0x1fc] sm:$0xf]
      %v475 = vld [vmem:[%s3] sm:$0xf]
      %v476 = vld [vmem:[%s3 + $0x4] sm:$0xf]
      %v477 = vld [vmem:[%s3 + $0x8] sm:$0xf]
      %v478 = vld [vmem:[%s3 + $0xc] sm:$0xf]
      %v479 = vld [vmem:[%s3 + $0x10] sm:$0xf]
      %v480 = vld [vmem:[%s3 + $0x14] sm:$0xf]
      %v481 = vld [vmem:[%s3 + $0x18] sm:$0xf]
      %v482 = vld [vmem:[%s3 + $0x1c] sm:$0xf]
      %v483 = vld [vmem:[%s3 + $0x20] sm:$0xf]
      %v484 = vld [vmem:[%s3 + $0x24] sm:$0xf]
      %v485 = vld [vmem:[%s3 + $0x28] sm:$0xf]
      %v486 = vld [vmem:[%s3 + $0x2c] sm:$0xf]
      %v487 = vld [vmem:[%s3 + $0x30] sm:$0xf]
      %v488 = vld [vmem:[%s3 + $0x34] sm:$0xf]
      %v489 = vld [vmem:[%s3 + $0x38] sm:$0xf]
      %v490 = vld [vmem:[%s3 + $0x3c] sm:$0xf]
      %v491 = vld [vmem:[%s3 + $0x40] sm:$0xf]
      %v492 = vld [vmem:[%s3 + $0x44] sm:$0xf]
      %v493 = vld [vmem:[%s3 + $0x48] sm:$0xf]
      %v494 = vld [vmem:[%s3 + $0x4c] sm:$0xf]
      %v495 = vld [vmem:[%s3 + $0x50] sm:$0xf]
      %v496 = vld [vmem:[%s3 + $0x54] sm:$0xf]
      %v497 = vld [vmem:[%s3 + $0x58] sm:$0xf]
      %v498 = vld [vmem:[%s3 + $0x5c] sm:$0xf]
      %v499 = vld [vmem:[%s3 + $0x60] sm:$0xf]
      %v500 = vld [vmem:[%s3 + $0x64] sm:$0xf]
      %v501 = vld [vmem:[%s3 + $0x68] sm:$0xf]
      %v502 = vld [vmem:[%s3 + $0x6c] sm:$0xf]
      %v503 = vld [vmem:[%s3 + $0x70] sm:$0xf]
      %v504 = vld [vmem:[%s3 + $0x74] sm:$0xf]
      %v505 = vld [vmem:[%s3 + $0x78] sm:$0xf]
      %v506 = vld [vmem:[%s3 + $0x7c] sm:$0xf]
      %v507 = vld [vmem:[%s3 + $0x80] sm:$0xf]
      %v508 = vld [vmem:[%s3 + $0x84] sm:$0xf]
      %v509 = vld [vmem:[%s3 + $0x88] sm:$0xf]
      %v510 = vld [vmem:[%s3 + $0x8c] sm:$0xf]
      %v511 = vld [vmem:[%s3 + $0x90] sm:$0xf]
      %v512 = vld [vmem:[%s3 + $0x94] sm:$0xf]
      %v513 = vld [vmem:[%s3 + $0x98] sm:$0xf]
      %v514 = vld [vmem:[%s3 + $0x9c] sm:$0xf]
      %v515 = vld [vmem:[%s3 + $0xa0] sm:$0xf]
      %v516 = vld [vmem:[%s3 + $0xa4] sm:$0xf]
      %v517 = vld [vmem:[%s3 + $0xa8] sm:$0xf]
      %v518 = vld [vmem:[%s3 + $0xac] sm:$0xf]
      %v519 = vld [vmem:[%s3 + $0xb0] sm:$0xf]
      %v520 = vld [vmem:[%s3 + $0xb4] sm:$0xf]
      %v521 = vld [vmem:[%s3 + $0xb8] sm:$0xf]
      %v522 = vld [vmem:[%s3 + $0xbc] sm:$0xf]
      %v523 = vld [vmem:[%s3 + $0xc0] sm:$0xf]
      %v524 = vld [vmem:[%s3 + $0xc4] sm:$0xf]
      %v525 = vld [vmem:[%s3 + $0xc8] sm:$0xf]
      %v526 = vld [vmem:[%s3 + $0xcc] sm:$0xf]
      %v527 = vld [vmem:[%s3 + $0xd0] sm:$0xf]
      %v528 = vld [vmem:[%s3 + $0xd4] sm:$0xf]
      %v529 = vld [vmem:[%s3 + $0xd8] sm:$0xf]
      %v530 = vld [vmem:[%s3 + $0xdc] sm:$0xf]
      %v531 = vld [vmem:[%s3 + $0xe0] sm:$0xf]
      %v532 = vld [vmem:[%s3 + $0xe4] sm:$0xf]
      %v533 = vld [vmem:[%s3 + $0xe8] sm:$0xf]
      %v534 = vld [vmem:[%s3 + $0xec] sm:$0xf]
      %v535 = vld [vmem:[%s3 + $0xf0] sm:$0xf]
      %v536 = vld [vmem:[%s3 + $0xf4] sm:$0xf]
      %v537 = vld [vmem:[%s3 + $0xf8] sm:$0xf]
      %v538 = vld [vmem:[%s3 + $0xfc] sm:$0xf]
      %v539 = vld [vmem:[%s3 + $0x100] sm:$0xf]
      %v540 = vld [vmem:[%s3 + $0x104] sm:$0xf]
      %v541 = vld [vmem:[%s3 + $0x108] sm:$0xf]
      %v542 = vld [vmem:[%s3 + $0x10c] sm:$0xf]
      %v543 = vld [vmem:[%s3 + $0x110] sm:$0xf]
      %v544 = vld [vmem:[%s3 + $0x114] sm:$0xf]
      %v545 = vld [vmem:[%s3 + $0x118] sm:$0xf]
      %v546 = vld [vmem:[%s3 + $0x11c] sm:$0xf]
      %v547 = vld [vmem:[%s3 + $0x120] sm:$0xf]
      %v548 = vld [vmem:[%s3 + $0x124] sm:$0xf]
      %v549 = vld [vmem:[%s3 + $0x128] sm:$0xf]
      %v550 = vld [vmem:[%s3 + $0x12c] sm:$0xf]
      %v551 = vld [vmem:[%s3 + $0x130] sm:$0xf]
      %v552 = vld [vmem:[%s3 + $0x134] sm:$0xf]
      %v553 = vld [vmem:[%s3 + $0x138] sm:$0xf]
      %v554 = vld [vmem:[%s3 + $0x13c] sm:$0xf]
      %v555 = vld [vmem:[%s3 + $0x140] sm:$0xf]
      %v556 = vld [vmem:[%s3 + $0x144] sm:$0xf]
      %v557 = vld [vmem:[%s3 + $0x148] sm:$0xf]
      %v558 = vld [vmem:[%s3 + $0x14c] sm:$0xf]
      %v559 = vld [vmem:[%s3 + $0x150] sm:$0xf]
      %v560 = vld [vmem:[%s3 + $0x154] sm:$0xf]
      %v561 = vld [vmem:[%s3 + $0x158] sm:$0xf]
      %v562 = vld [vmem:[%s3 + $0x15c] sm:$0xf]
      %v563 = vld [vmem:[%s3 + $0x160] sm:$0xf]
      %v564 = vld [vmem:[%s3 + $0x164] sm:$0xf]
      %v565 = vld [vmem:[%s3 + $0x168] sm:$0xf]
      %v566 = vld [vmem:[%s3 + $0x16c] sm:$0xf]
      %v567 = vld [vmem:[%s3 + $0x170] sm:$0xf]
      %v568 = vld [vmem:[%s3 + $0x174] sm:$0xf]
      %v569 = vld [vmem:[%s3 + $0x178] sm:$0xf]
      %v570 = vld [vmem:[%s3 + $0x17c] sm:$0xf]
      %v571 = vld [vmem:[%s3 + $0x180] sm:$0xf]
      %v572 = vld [vmem:[%s3 + $0x184] sm:$0xf]
      %v573 = vld [vmem:[%s3 + $0x188] sm:$0xf]
      %v574 = vld [vmem:[%s3 + $0x18c] sm:$0xf]
      %v575 = vld [vmem:[%s3 + $0x190] sm:$0xf]
      %v576 = vld [vmem:[%s3 + $0x194] sm:$0xf]
      %v577 = vld [vmem:[%s3 + $0x198] sm:$0xf]
      %v578 = vld [vmem:[%s3 + $0x19c] sm:$0xf]
      %v579 = vld [vmem:[%s3 + $0x1a0] sm:$0xf]
      %v580 = vld [vmem:[%s3 + $0x1a4] sm:$0xf]
      %v581 = vld [vmem:[%s3 + $0x1a8] sm:$0xf]
      %v582 = vld [vmem:[%s3 + $0x1ac] sm:$0xf]
      %v583 = vld [vmem:[%s3 + $0x1b0] sm:$0xf]
      %v584 = vld [vmem:[%s3 + $0x1b4] sm:$0xf]
      %v585 = vld [vmem:[%s3 + $0x1b8] sm:$0xf]
      %v586 = vld [vmem:[%s3 + $0x1bc] sm:$0xf]
      %v587 = vld [vmem:[%s3 + $0x1c0] sm:$0xf]
      %v588 = vld [vmem:[%s3 + $0x1c4] sm:$0xf]
      %v589 = vld [vmem:[%s3 + $0x1c8] sm:$0xf]
      %v590 = vld [vmem:[%s3 + $0x1cc] sm:$0xf]
      %v591 = vld [vmem:[%s3 + $0x1d0] sm:$0xf]
      %v592 = vld [vmem:[%s3 + $0x1d4] sm:$0xf]
      %v593 = vld [vmem:[%s3 + $0x1d8] sm:$0xf]
      %v594 = vld [vmem:[%s3 + $0x1dc] sm:$0xf]
      %v595 = vld [vmem:[%s3 + $0x1e0] sm:$0xf]
      %v596 = vld [vmem:[%s3 + $0x1e4] sm:$0xf]
      %v597 = vld [vmem:[%s3 + $0x1e8] sm:$0xf]
      %v598 = vld [vmem:[%s3 + $0x1ec] sm:$0xf]
      %v599 = vld [vmem:[%s3 + $0x1f0] sm:$0xf]
      %v600 = vld [vmem:[%s3 + $0x1f4] sm:$0xf]
      %v601 = vld [vmem:[%s3 + $0x1f8] sm:$0xf]
      %v602 = vld [vmem:[%s3 + $0x1fc] sm:$0xf]
      %v604 = vshrl.u32 %v310, 16
      %v606 = vshll.u32 %v310, 16
      %v608 = vrot.slane %v606, 1
      %v609 = vor.u32 %v604, %v608
      %v611 = vshrl.u32 %v311, 16
      %v613 = vshll.u32 %v311, 16
      %v615 = vrot.slane %v613, 1
      %v616 = vor.u32 %v611, %v615
      %v618 = vshrl.u32 %v321, 16
      %v620 = vshll.u32 %v321, 16
      %v622 = vrot.slane %v620, 1
      %v623 = vor.u32 %v618, %v622
      %v625 = vshrl.u32 %v322, 16
      %v627 = vshll.u32 %v322, 16
      %v629 = vrot.slane %v627, 1
      %v630 = vor.u32 %v625, %v629
      %v632 = vshrl.u32 %v332, 16
      %v634 = vshll.u32 %v332, 16
      %v636 = vrot.slane %v634, 1
      %v637 = vor.u32 %v632, %v636
      %v639 = vshrl.u32 %v333, 16
      %v641 = vshll.u32 %v333, 16
      %v643 = vrot.slane %v641, 1
      %v644 = vor.u32 %v639, %v643
      %v646 = vshrl.u32 %v343, 16
      %v648 = vshll.u32 %v343, 16
      %v650 = vrot.slane %v648, 1
      %v651 = vor.u32 %v646, %v650
      %v653 = vshrl.u32 %v344, 16
      %v655 = vshll.u32 %v344, 16
      %v657 = vrot.slane %v655, 1
      %v658 = vor.u32 %v653, %v657
      %v795 = vunpack.c.l.b16 %v475
      %v796 = vunpack.c.l.b16 %v476
      %v797 = vunpack.c.l.b16 %v477
      %v798 = vunpack.c.l.b16 %v478
      %v799 = vunpack.c.l.b16 %v479
      %v800 = vunpack.c.l.b16 %v480
      %v801 = vunpack.c.l.b16 %v481
      %v802 = vunpack.c.l.b16 %v482
      %v803 = vunpack.c.l.b16 %v483
      %v804 = vunpack.c.l.b16 %v484
      %v805 = vunpack.c.l.b16 %v485
      %v806 = vunpack.c.l.b16 %v486
      %v807 = vunpack.c.l.b16 %v487
      %v808 = vunpack.c.l.b16 %v488
      %v809 = vunpack.c.l.b16 %v489
      %v810 = vunpack.c.l.b16 %v490
      %v811 = vunpack.c.l.b16 %v491
      %v812 = vunpack.c.l.b16 %v492
      %v813 = vunpack.c.l.b16 %v493
      %v814 = vunpack.c.l.b16 %v494
      %v815 = vunpack.c.l.b16 %v495
      %v816 = vunpack.c.l.b16 %v496
      %v817 = vunpack.c.l.b16 %v497
      %v818 = vunpack.c.l.b16 %v498
      %v819 = vunpack.c.l.b16 %v499
      %v820 = vunpack.c.l.b16 %v500
      %v821 = vunpack.c.l.b16 %v501
      %v822 = vunpack.c.l.b16 %v502
      %v823 = vunpack.c.l.b16 %v503
      %v824 = vunpack.c.l.b16 %v504
      %v825 = vunpack.c.l.b16 %v505
      %v826 = vunpack.c.l.b16 %v506
      %v827 = vunpack.c.l.b16 %v507
      %v828 = vunpack.c.l.b16 %v508
      %v829 = vunpack.c.l.b16 %v509
      %v830 = vunpack.c.l.b16 %v510
      %v831 = vunpack.c.l.b16 %v511
      %v832 = vunpack.c.l.b16 %v512
      %v833 = vunpack.c.l.b16 %v513
      %v834 = vunpack.c.l.b16 %v514
      %v835 = vunpack.c.l.b16 %v515
      %v836 = vunpack.c.l.b16 %v516
      %v837 = vunpack.c.l.b16 %v517
      %v838 = vunpack.c.l.b16 %v518
      %v839 = vunpack.c.l.b16 %v519
      %v840 = vunpack.c.l.b16 %v520
      %v841 = vunpack.c.l.b16 %v521
      %v842 = vunpack.c.l.b16 %v522
      %v843 = vunpack.c.l.b16 %v523
      %v844 = vunpack.c.l.b16 %v524
      %v845 = vunpack.c.l.b16 %v525
      %v846 = vunpack.c.l.b16 %v526
      %v847 = vunpack.c.l.b16 %v527
      %v848 = vunpack.c.l.b16 %v528
      %v849 = vunpack.c.l.b16 %v529
      %v850 = vunpack.c.l.b16 %v530
      %v851 = vunpack.c.l.b16 %v531
      %v852 = vunpack.c.l.b16 %v532
      %v853 = vunpack.c.l.b16 %v533
      %v854 = vunpack.c.l.b16 %v534
      %v855 = vunpack.c.l.b16 %v535
      %v856 = vunpack.c.l.b16 %v536
      %v857 = vunpack.c.l.b16 %v537
      %v858 = vunpack.c.l.b16 %v538
      %v859 = vunpack.c.l.b16 %v539
      %v860 = vunpack.c.l.b16 %v540
      %v861 = vunpack.c.l.b16 %v541
      %v862 = vunpack.c.l.b16 %v542
      %v863 = vunpack.c.l.b16 %v543
      %v864 = vunpack.c.l.b16 %v544
      %v865 = vunpack.c.l.b16 %v545
      %v866 = vunpack.c.l.b16 %v546
      %v867 = vunpack.c.l.b16 %v547
      %v868 = vunpack.c.l.b16 %v548
      %v869 = vunpack.c.l.b16 %v549
      %v870 = vunpack.c.l.b16 %v550
      %v871 = vunpack.c.l.b16 %v551
      %v872 = vunpack.c.l.b16 %v552
      %v873 = vunpack.c.l.b16 %v553
      %v874 = vunpack.c.l.b16 %v554
      %v875 = vunpack.c.l.b16 %v555
      %v876 = vunpack.c.l.b16 %v556
      %v877 = vunpack.c.l.b16 %v557
      %v878 = vunpack.c.l.b16 %v558
      %v879 = vunpack.c.l.b16 %v559
      %v880 = vunpack.c.l.b16 %v560
      %v881 = vunpack.c.l.b16 %v561
      %v882 = vunpack.c.l.b16 %v562
      %v883 = vunpack.c.l.b16 %v563
      %v884 = vunpack.c.l.b16 %v564
      %v885 = vunpack.c.l.b16 %v565
      %v886 = vunpack.c.l.b16 %v566
      %v887 = vunpack.c.l.b16 %v567
      %v888 = vunpack.c.l.b16 %v568
      %v889 = vunpack.c.l.b16 %v569
      %v890 = vunpack.c.l.b16 %v570
      %v891 = vunpack.c.l.b16 %v571
      %v892 = vunpack.c.l.b16 %v572
      %v893 = vunpack.c.l.b16 %v573
      %v894 = vunpack.c.l.b16 %v574
      %v895 = vunpack.c.l.b16 %v575
      %v896 = vunpack.c.l.b16 %v576
      %v897 = vunpack.c.l.b16 %v577
      %v898 = vunpack.c.l.b16 %v578
      %v899 = vunpack.c.l.b16 %v579
      %v900 = vunpack.c.l.b16 %v580
      %v901 = vunpack.c.l.b16 %v581
      %v902 = vunpack.c.l.b16 %v582
      %v903 = vunpack.c.l.b16 %v583
      %v904 = vunpack.c.l.b16 %v584
      %v905 = vunpack.c.l.b16 %v585
      %v906 = vunpack.c.l.b16 %v586
      %v907 = vunpack.c.l.b16 %v587
      %v908 = vunpack.c.l.b16 %v588
      %v909 = vunpack.c.l.b16 %v589
      %v910 = vunpack.c.l.b16 %v590
      %v911 = vunpack.c.l.b16 %v591
      %v912 = vunpack.c.l.b16 %v592
      %v913 = vunpack.c.l.b16 %v593
      %v914 = vunpack.c.l.b16 %v594
      %v915 = vunpack.c.l.b16 %v595
      %v916 = vunpack.c.l.b16 %v596
      %v917 = vunpack.c.l.b16 %v597
      %v918 = vunpack.c.l.b16 %v598
      %v919 = vunpack.c.l.b16 %v599
      %v920 = vunpack.c.l.b16 %v600
      %v921 = vunpack.c.l.b16 %v601
      %v922 = vunpack.c.l.b16 %v602
      %v923 = vpack.c.b16 %v796, %v795
      %v924 = vpack.c.b16 %v798, %v797
      %v925 = vpack.c.b16 %v800, %v799
      %v926 = vpack.c.b16 %v802, %v801
      %v927 = vpack.c.b16 %v804, %v803
      %v928 = vpack.c.b16 %v806, %v805
      %v929 = vpack.c.b16 %v808, %v807
      %v930 = vpack.c.b16 %v810, %v809
      %v931 = vpack.c.b16 %v812, %v811
      %v932 = vpack.c.b16 %v814, %v813
      %v933 = vpack.c.b16 %v816, %v815
      %v934 = vpack.c.b16 %v818, %v817
      %v935 = vpack.c.b16 %v820, %v819
      %v936 = vpack.c.b16 %v822, %v821
      %v937 = vpack.c.b16 %v824, %v823
      %v938 = vpack.c.b16 %v826, %v825
      %v939 = vpack.c.b16 %v828, %v827
      %v940 = vpack.c.b16 %v830, %v829
      %v941 = vpack.c.b16 %v832, %v831
      %v942 = vpack.c.b16 %v834, %v833
      %v943 = vpack.c.b16 %v836, %v835
      %v944 = vpack.c.b16 %v838, %v837
      %v945 = vpack.c.b16 %v840, %v839
      %v946 = vpack.c.b16 %v842, %v841
      %v947 = vpack.c.b16 %v844, %v843
      %v948 = vpack.c.b16 %v846, %v845
      %v949 = vpack.c.b16 %v848, %v847
      %v950 = vpack.c.b16 %v850, %v849
      %v951 = vpack.c.b16 %v852, %v851
      %v952 = vpack.c.b16 %v854, %v853
      %v953 = vpack.c.b16 %v856, %v855
      %v954 = vpack.c.b16 %v858, %v857
      %v955 = vpack.c.b16 %v860, %v859
      %v956 = vpack.c.b16 %v862, %v861
      %v957 = vpack.c.b16 %v864, %v863
      %v958 = vpack.c.b16 %v866, %v865
      %v959 = vpack.c.b16 %v868, %v867
      %v960 = vpack.c.b16 %v870, %v869
      %v961 = vpack.c.b16 %v872, %v871
      %v962 = vpack.c.b16 %v874, %v873
      %v963 = vpack.c.b16 %v876, %v875
      %v964 = vpack.c.b16 %v878, %v877
      %v965 = vpack.c.b16 %v880, %v879
      %v966 = vpack.c.b16 %v882, %v881
      %v967 = vpack.c.b16 %v884, %v883
      %v968 = vpack.c.b16 %v886, %v885
      %v969 = vpack.c.b16 %v888, %v887
      %v970 = vpack.c.b16 %v890, %v889
      %v971 = vpack.c.b16 %v892, %v891
      %v972 = vpack.c.b16 %v894, %v893
      %v973 = vpack.c.b16 %v896, %v895
      %v974 = vpack.c.b16 %v898, %v897
      %v975 = vpack.c.b16 %v900, %v899
      %v976 = vpack.c.b16 %v902, %v901
      %v977 = vpack.c.b16 %v904, %v903
      %v978 = vpack.c.b16 %v906, %v905
      %v979 = vpack.c.b16 %v908, %v907
      %v980 = vpack.c.b16 %v910, %v909
      %v981 = vpack.c.b16 %v912, %v911
      %v982 = vpack.c.b16 %v914, %v913
      %v983 = vpack.c.b16 %v916, %v915
      %v984 = vpack.c.b16 %v918, %v917
      %v985 = vpack.c.b16 %v920, %v919
      %v986 = vpack.c.b16 %v922, %v921
      %1051 = vmatprep.subr.bf16.mxu0 0
      %1052 = vmatpush1.bf16.msra.mxu0 %v923
      %1053 = vmatprep.subr.bf16.mxu0 0
      %1054 = vmatpush1.bf16.msra.mxu0 %v924
      %1055 = vmatprep.subr.bf16.mxu0 0
      %1056 = vmatpush1.bf16.msra.mxu0 %v925
      %1057 = vmatprep.subr.bf16.mxu0 0
      %1058 = vmatpush1.bf16.msra.mxu0 %v926
      %1059 = vmatprep.subr.bf16.mxu0 0
      %1060 = vmatpush1.bf16.msra.mxu0 %v927
      %1061 = vmatprep.subr.bf16.mxu0 0
      %1062 = vmatpush1.bf16.msra.mxu0 %v928
      %1063 = vmatprep.subr.bf16.mxu0 0
      %1064 = vmatpush1.bf16.msra.mxu0 %v929
      %1065 = vmatprep.subr.bf16.mxu0 0
      %1066 = vmatpush1.bf16.msra.mxu0 %v930
      %1067 = vmatprep.subr.bf16.mxu0 0
      %1068 = vmatpush1.bf16.msra.mxu0 %v931
      %1069 = vmatprep.subr.bf16.mxu0 0
      %1070 = vmatpush1.bf16.msra.mxu0 %v932
      %1071 = vmatprep.subr.bf16.mxu0 0
      %1072 = vmatpush1.bf16.msra.mxu0 %v933
      %1073 = vmatprep.subr.bf16.mxu0 0
      %1074 = vmatpush1.bf16.msra.mxu0 %v934
      %1075 = vmatprep.subr.bf16.mxu0 0
      %1076 = vmatpush1.bf16.msra.mxu0 %v935
      %1077 = vmatprep.subr.bf16.mxu0 0
      %1078 = vmatpush1.bf16.msra.mxu0 %v936
      %1079 = vmatprep.subr.bf16.mxu0 0
      %1080 = vmatpush1.bf16.msra.mxu0 %v937
      %1081 = vmatprep.subr.bf16.mxu0 0
      %1082 = vmatpush1.bf16.msra.mxu0 %v938
      %1083 = vmatprep.mubr.bf16.mxu0 %v616
      %1084 = vmatmul.mubr.bf16.gmra.mrb[0].mxu0 %v609
      %v1085 = vpop.f32.mrb[0].mxu0
      %v1086 = vadd.f32 0.0, %v1085
      %v1087 = vpop.f32.mrb[0].mxu0
      %v1088 = vpop.f32.mrb[0].mxu0
      %v1089 = vpop.f32.mrb[0].mxu0
      %1090 = vdwg.mxu0
      %1091 = vmatprep.subr.bf16.mxu0 0
      %1092 = vmatpush1.bf16.msra.mxu0 %v939
      %1093 = vmatprep.subr.bf16.mxu0 0
      %1094 = vmatpush1.bf16.msra.mxu0 %v940
      %1095 = vmatprep.subr.bf16.mxu0 0
      %1096 = vmatpush1.bf16.msra.mxu0 %v941
      %1097 = vmatprep.subr.bf16.mxu0 0
      %1098 = vmatpush1.bf16.msra.mxu0 %v942
      %1099 = vmatprep.subr.bf16.mxu0 0
      %1100 = vmatpush1.bf16.msra.mxu0 %v943
      %1101 = vmatprep.subr.bf16.mxu0 0
      %1102 = vmatpush1.bf16.msra.mxu0 %v944
      %1103 = vmatprep.subr.bf16.mxu0 0
      %1104 = vmatpush1.bf16.msra.mxu0 %v945
      %1105 = vmatprep.subr.bf16.mxu0 0
      %1106 = vmatpush1.bf16.msra.mxu0 %v946
      %1107 = vmatprep.subr.bf16.mxu0 0
      %1108 = vmatpush1.bf16.msra.mxu0 %v947
      %1109 = vmatprep.subr.bf16.mxu0 0
      %1110 = vmatpush1.bf16.msra.mxu0 %v948
      %1111 = vmatprep.subr.bf16.mxu0 0
      %1112 = vmatpush1.bf16.msra.mxu0 %v949
      %1113 = vmatprep.subr.bf16.mxu0 0
      %1114 = vmatpush1.bf16.msra.mxu0 %v950
      %1115 = vmatprep.subr.bf16.mxu0 0
      %1116 = vmatpush1.bf16.msra.mxu0 %v951
      %1117 = vmatprep.subr.bf16.mxu0 0
      %1118 = vmatpush1.bf16.msra.mxu0 %v952
      %1119 = vmatprep.subr.bf16.mxu0 0
      %1120 = vmatpush1.bf16.msra.mxu0 %v953
      %1121 = vmatprep.subr.bf16.mxu0 0
      %1122 = vmatpush1.bf16.msra.mxu0 %v954
      %1123 = vmatprep.mubr.bf16.mxu0 %v630
      %1124 = vmatmul.mubr.bf16.gmra.mrb[0].mxu0 %v623
      %v1125 = vpop.f32.mrb[0].mxu0
      %v1126 = vadd.f32 %v1086, %v1125
      %v1127 = vpop.f32.mrb[0].mxu0
      %v1128 = vpop.f32.mrb[0].mxu0
      %v1129 = vpop.f32.mrb[0].mxu0
      %1130 = vdwg.mxu0
      %1131 = vmatprep.subr.bf16.mxu0 0
      %1132 = vmatpush1.bf16.msra.mxu0 %v955
      %1133 = vmatprep.subr.bf16.mxu0 0
      %1134 = vmatpush1.bf16.msra.mxu0 %v956
      %1135 = vmatprep.subr.bf16.mxu0 0
      %1136 = vmatpush1.bf16.msra.mxu0 %v957
      %1137 = vmatprep.subr.bf16.mxu0 0
      %1138 = vmatpush1.bf16.msra.mxu0 %v958
      %1139 = vmatprep.subr.bf16.mxu0 0
      %1140 = vmatpush1.bf16.msra.mxu0 %v959
      %1141 = vmatprep.subr.bf16.mxu0 0
      %1142 = vmatpush1.bf16.msra.mxu0 %v960
      %1143 = vmatprep.subr.bf16.mxu0 0
      %1144 = vmatpush1.bf16.msra.mxu0 %v961
      %1145 = vmatprep.subr.bf16.mxu0 0
      %1146 = vmatpush1.bf16.msra.mxu0 %v962
      %1147 = vmatprep.subr.bf16.mxu0 0
      %1148 = vmatpush1.bf16.msra.mxu0 %v963
      %1149 = vmatprep.subr.bf16.mxu0 0
      %1150 = vmatpush1.bf16.msra.mxu0 %v964
      %1151 = vmatprep.subr.bf16.mxu0 0
      %1152 = vmatpush1.bf16.msra.mxu0 %v965
      %1153 = vmatprep.subr.bf16.mxu0 0
      %1154 = vmatpush1.bf16.msra.mxu0 %v966
      %1155 = vmatprep.subr.bf16.mxu0 0
      %1156 = vmatpush1.bf16.msra.mxu0 %v967
      %1157 = vmatprep.subr.bf16.mxu0 0
      %1158 = vmatpush1.bf16.msra.mxu0 %v968
      %1159 = vmatprep.subr.bf16.mxu0 0
      %1160 = vmatpush1.bf16.msra.mxu0 %v969
      %1161 = vmatprep.subr.bf16.mxu0 0
      %1162 = vmatpush1.bf16.msra.mxu0 %v970
      %1163 = vmatprep.mubr.bf16.mxu0 %v644
      %1164 = vmatmul.mubr.bf16.gmra.mrb[0].mxu0 %v637
      %v1165 = vpop.f32.mrb[0].mxu0
      %v1166 = vadd.f32 %v1126, %v1165
      %v1167 = vpop.f32.mrb[0].mxu0
      %v1168 = vpop.f32.mrb[0].mxu0
      %v1169 = vpop.f32.mrb[0].mxu0
      %1170 = vdwg.mxu0
      %1171 = vmatprep.subr.bf16.mxu0 0
      %1172 = vmatpush1.bf16.msra.mxu0 %v971
      %1173 = vmatprep.subr.bf16.mxu0 0
      %1174 = vmatpush1.bf16.msra.mxu0 %v972
      %1175 = vmatprep.subr.bf16.mxu0 0
      %1176 = vmatpush1.bf16.msra.mxu0 %v973
      %1177 = vmatprep.subr.bf16.mxu0 0
      %1178 = vmatpush1.bf16.msra.mxu0 %v974
      %1179 = vmatprep.subr.bf16.mxu0 0
      %1180 = vmatpush1.bf16.msra.mxu0 %v975
      %1181 = vmatprep.subr.bf16.mxu0 0
      %1182 = vmatpush1.bf16.msra.mxu0 %v976
      %1183 = vmatprep.subr.bf16.mxu0 0
      %1184 = vmatpush1.bf16.msra.mxu0 %v977
      %1185 = vmatprep.subr.bf16.mxu0 0
      %1186 = vmatpush1.bf16.msra.mxu0 %v978
      %1187 = vmatprep.subr.bf16.mxu0 0
      %1188 = vmatpush1.bf16.msra.mxu0 %v979
      %1189 = vmatprep.subr.bf16.mxu0 0
      %1190 = vmatpush1.bf16.msra.mxu0 %v980
      %1191 = vmatprep.subr.bf16.mxu0 0
      %1192 = vmatpush1.bf16.msra.mxu0 %v981
      %1193 = vmatprep.subr.bf16.mxu0 0
      %1194 = vmatpush1.bf16.msra.mxu0 %v982
      %1195 = vmatprep.subr.bf16.mxu0 0
      %1196 = vmatpush1.bf16.msra.mxu0 %v983
      %1197 = vmatprep.subr.bf16.mxu0 0
      %1198 = vmatpush1.bf16.msra.mxu0 %v984
      %1199 = vmatprep.subr.bf16.mxu0 0
      %1200 = vmatpush1.bf16.msra.mxu0 %v985
      %1201 = vmatprep.subr.bf16.mxu0 0
      %1202 = vmatpush1.bf16.msra.mxu0 %v986
      %1203 = vmatprep.mubr.bf16.mxu0 %v658
      %1204 = vmatmul.mubr.bf16.gmra.mrb[0].mxu0 %v651
      %v1205 = vpop.f32.mrb[0].mxu0
      %v1206 = vadd.f32 %v1166, %v1205
      %v1207 = vpop.f32.mrb[0].mxu0
      %v1208 = vpop.f32.mrb[0].mxu0
      %v1209 = vpop.f32.mrb[0].mxu0
      %1210 = vdwg.mxu0
      %v1339 = vunpack.c.l.b16 %v347
      %v1340 = vunpack.c.l.b16 %v348
      %v1341 = vunpack.c.l.b16 %v349
      %v1342 = vunpack.c.l.b16 %v350
      %v1343 = vunpack.c.l.b16 %v351
      %v1344 = vunpack.c.l.b16 %v352
      %v1345 = vunpack.c.l.b16 %v353
      %v1346 = vunpack.c.l.b16 %v354
      %v1347 = vunpack.c.l.b16 %v355
      %v1348 = vunpack.c.l.b16 %v356
      %v1349 = vunpack.c.l.b16 %v357
      %v1350 = vunpack.c.l.b16 %v358
      %v1351 = vunpack.c.l.b16 %v359
      %v1352 = vunpack.c.l.b16 %v360
      %v1353 = vunpack.c.l.b16 %v361
      %v1354 = vunpack.c.l.b16 %v362
      %v1355 = vunpack.c.l.b16 %v363
      %v1356 = vunpack.c.l.b16 %v364
      %v1357 = vunpack.c.l.b16 %v365
      %v1358 = vunpack.c.l.b16 %v366
      %v1359 = vunpack.c.l.b16 %v367
      %v1360 = vunpack.c.l.b16 %v368
      %v1361 = vunpack.c.l.b16 %v369
      %v1362 = vunpack.c.l.b16 %v370
      %v1363 = vunpack.c.l.b16 %v371
      %v1364 = vunpack.c.l.b16 %v372
      %v1365 = vunpack.c.l.b16 %v373
      %v1366 = vunpack.c.l.b16 %v374
      %v1367 = vunpack.c.l.b16 %v375
      %v1368 = vunpack.c.l.b16 %v376
      %v1369 = vunpack.c.l.b16 %v377
      %v1370 = vunpack.c.l.b16 %v378
      %v1371 = vunpack.c.l.b16 %v379
      %v1372 = vunpack.c.l.b16 %v380
      %v1373 = vunpack.c.l.b16 %v381
      %v1374 = vunpack.c.l.b16 %v382
      %v1375 = vunpack.c.l.b16 %v383
      %v1376 = vunpack.c.l.b16 %v384
      %v1377 = vunpack.c.l.b16 %v385
      %v1378 = vunpack.c.l.b16 %v386
      %v1379 = vunpack.c.l.b16 %v387
      %v1380 = vunpack.c.l.b16 %v388
      %v1381 = vunpack.c.l.b16 %v389
      %v1382 = vunpack.c.l.b16 %v390
      %v1383 = vunpack.c.l.b16 %v391
      %v1384 = vunpack.c.l.b16 %v392
      %v1385 = vunpack.c.l.b16 %v393
      %v1386 = vunpack.c.l.b16 %v394
      %v1387 = vunpack.c.l.b16 %v395
      %v1388 = vunpack.c.l.b16 %v396
      %v1389 = vunpack.c.l.b16 %v397
      %v1390 = vunpack.c.l.b16 %v398
      %v1391 = vunpack.c.l.b16 %v399
      %v1392 = vunpack.c.l.b16 %v400
      %v1393 = vunpack.c.l.b16 %v401
      %v1394 = vunpack.c.l.b16 %v402
      %v1395 = vunpack.c.l.b16 %v403
      %v1396 = vunpack.c.l.b16 %v404
      %v1397 = vunpack.c.l.b16 %v405
      %v1398 = vunpack.c.l.b16 %v406
      %v1399 = vunpack.c.l.b16 %v407
      %v1400 = vunpack.c.l.b16 %v408
      %v1401 = vunpack.c.l.b16 %v409
      %v1402 = vunpack.c.l.b16 %v410
      %v1403 = vunpack.c.l.b16 %v411
      %v1404 = vunpack.c.l.b16 %v412
      %v1405 = vunpack.c.l.b16 %v413
      %v1406 = vunpack.c.l.b16 %v414
      %v1407 = vunpack.c.l.b16 %v415
      %v1408 = vunpack.c.l.b16 %v416
      %v1409 = vunpack.c.l.b16 %v417
      %v1410 = vunpack.c.l.b16 %v418
      %v1411 = vunpack.c.l.b16 %v419
      %v1412 = vunpack.c.l.b16 %v420
      %v1413 = vunpack.c.l.b16 %v421
      %v1414 = vunpack.c.l.b16 %v422
      %v1415 = vunpack.c.l.b16 %v423
      %v1416 = vunpack.c.l.b16 %v424
      %v1417 = vunpack.c.l.b16 %v425
      %v1418 = vunpack.c.l.b16 %v426
      %v1419 = vunpack.c.l.b16 %v427
      %v1420 = vunpack.c.l.b16 %v428
      %v1421 = vunpack.c.l.b16 %v429
      %v1422 = vunpack.c.l.b16 %v430
      %v1423 = vunpack.c.l.b16 %v431
      %v1424 = vunpack.c.l.b16 %v432
      %v1425 = vunpack.c.l.b16 %v433
      %v1426 = vunpack.c.l.b16 %v434
      %v1427 = vunpack.c.l.b16 %v435
      %v1428 = vunpack.c.l.b16 %v436
      %v1429 = vunpack.c.l.b16 %v437
      %v1430 = vunpack.c.l.b16 %v438
      %v1431 = vunpack.c.l.b16 %v439
      %v1432 = vunpack.c.l.b16 %v440
      %v1433 = vunpack.c.l.b16 %v441
      %v1434 = vunpack.c.l.b16 %v442
      %v1435 = vunpack.c.l.b16 %v443
      %v1436 = vunpack.c.l.b16 %v444
      %v1437 = vunpack.c.l.b16 %v445
      %v1438 = vunpack.c.l.b16 %v446
      %v1439 = vunpack.c.l.b16 %v447
      %v1440 = vunpack.c.l.b16 %v448
      %v1441 = vunpack.c.l.b16 %v449
      %v1442 = vunpack.c.l.b16 %v450
      %v1443 = vunpack.c.l.b16 %v451
      %v1444 = vunpack.c.l.b16 %v452
      %v1445 = vunpack.c.l.b16 %v453
      %v1446 = vunpack.c.l.b16 %v454
      %v1447 = vunpack.c.l.b16 %v455
      %v1448 = vunpack.c.l.b16 %v456
      %v1449 = vunpack.c.l.b16 %v457
      %v1450 = vunpack.c.l.b16 %v458
      %v1451 = vunpack.c.l.b16 %v459
      %v1452 = vunpack.c.l.b16 %v460
      %v1453 = vunpack.c.l.b16 %v461
      %v1454 = vunpack.c.l.b16 %v462
      %v1455 = vunpack.c.l.b16 %v463
      %v1456 = vunpack.c.l.b16 %v464
      %v1457 = vunpack.c.l.b16 %v465
      %v1458 = vunpack.c.l.b16 %v466
      %v1459 = vunpack.c.l.b16 %v467
      %v1460 = vunpack.c.l.b16 %v468
      %v1461 = vunpack.c.l.b16 %v469
      %v1462 = vunpack.c.l.b16 %v470
      %v1463 = vunpack.c.l.b16 %v471
      %v1464 = vunpack.c.l.b16 %v472
      %v1465 = vunpack.c.l.b16 %v473
      %v1466 = vunpack.c.l.b16 %v474
      %v1467 = vpack.c.b16 %v1340, %v1339
      %v1468 = vpack.c.b16 %v1342, %v1341
      %v1469 = vpack.c.b16 %v1344, %v1343
      %v1470 = vpack.c.b16 %v1346, %v1345
      %v1471 = vpack.c.b16 %v1348, %v1347
      %v1472 = vpack.c.b16 %v1350, %v1349
      %v1473 = vpack.c.b16 %v1352, %v1351
      %v1474 = vpack.c.b16 %v1354, %v1353
      %v1475 = vpack.c.b16 %v1356, %v1355
      %v1476 = vpack.c.b16 %v1358, %v1357
      %v1477 = vpack.c.b16 %v1360, %v1359
      %v1478 = vpack.c.b16 %v1362, %v1361
      %v1479 = vpack.c.b16 %v1364, %v1363
      %v1480 = vpack.c.b16 %v1366, %v1365
      %v1481 = vpack.c.b16 %v1368, %v1367
      %v1482 = vpack.c.b16 %v1370, %v1369
      %v1483 = vpack.c.b16 %v1372, %v1371
      %v1484 = vpack.c.b16 %v1374, %v1373
      %v1485 = vpack.c.b16 %v1376, %v1375
      %v1486 = vpack.c.b16 %v1378, %v1377
      %v1487 = vpack.c.b16 %v1380, %v1379
      %v1488 = vpack.c.b16 %v1382, %v1381
      %v1489 = vpack.c.b16 %v1384, %v1383
      %v1490 = vpack.c.b16 %v1386, %v1385
      %v1491 = vpack.c.b16 %v1388, %v1387
      %v1492 = vpack.c.b16 %v1390, %v1389
      %v1493 = vpack.c.b16 %v1392, %v1391
      %v1494 = vpack.c.b16 %v1394, %v1393
      %v1495 = vpack.c.b16 %v1396, %v1395
      %v1496 = vpack.c.b16 %v1398, %v1397
      %v1497 = vpack.c.b16 %v1400, %v1399
      %v1498 = vpack.c.b16 %v1402, %v1401
      %v1499 = vpack.c.b16 %v1404, %v1403
      %v1500 = vpack.c.b16 %v1406, %v1405
      %v1501 = vpack.c.b16 %v1408, %v1407
      %v1502 = vpack.c.b16 %v1410, %v1409
      %v1503 = vpack.c.b16 %v1412, %v1411
      %v1504 = vpack.c.b16 %v1414, %v1413
      %v1505 = vpack.c.b16 %v1416, %v1415
      %v1506 = vpack.c.b16 %v1418, %v1417
      %v1507 = vpack.c.b16 %v1420, %v1419
      %v1508 = vpack.c.b16 %v1422, %v1421
      %v1509 = vpack.c.b16 %v1424, %v1423
      %v1510 = vpack.c.b16 %v1426, %v1425
      %v1511 = vpack.c.b16 %v1428, %v1427
      %v1512 = vpack.c.b16 %v1430, %v1429
      %v1513 = vpack.c.b16 %v1432, %v1431
      %v1514 = vpack.c.b16 %v1434, %v1433
      %v1515 = vpack.c.b16 %v1436, %v1435
      %v1516 = vpack.c.b16 %v1438, %v1437
      %v1517 = vpack.c.b16 %v1440, %v1439
      %v1518 = vpack.c.b16 %v1442, %v1441
      %v1519 = vpack.c.b16 %v1444, %v1443
      %v1520 = vpack.c.b16 %v1446, %v1445
      %v1521 = vpack.c.b16 %v1448, %v1447
      %v1522 = vpack.c.b16 %v1450, %v1449
      %v1523 = vpack.c.b16 %v1452, %v1451
      %v1524 = vpack.c.b16 %v1454, %v1453
      %v1525 = vpack.c.b16 %v1456, %v1455
      %v1526 = vpack.c.b16 %v1458, %v1457
      %v1527 = vpack.c.b16 %v1460, %v1459
      %v1528 = vpack.c.b16 %v1462, %v1461
      %v1529 = vpack.c.b16 %v1464, %v1463
      %v1530 = vpack.c.b16 %v1466, %v1465
      %1595 = vmatprep.subr.bf16.mxu0 0
      %1596 = vmatpush1.bf16.msra.mxu0 %v1467
      %1597 = vmatprep.subr.bf16.mxu0 0
      %1598 = vmatpush1.bf16.msra.mxu0 %v1468
      %1599 = vmatprep.subr.bf16.mxu0 0
      %1600 = vmatpush1.bf16.msra.mxu0 %v1469
      %1601 = vmatprep.subr.bf16.mxu0 0
      %1602 = vmatpush1.bf16.msra.mxu0 %v1470
      %1603 = vmatprep.subr.bf16.mxu0 0
      %1604 = vmatpush1.bf16.msra.mxu0 %v1471
      %1605 = vmatprep.subr.bf16.mxu0 0
      %1606 = vmatpush1.bf16.msra.mxu0 %v1472
      %1607 = vmatprep.subr.bf16.mxu0 0
      %1608 = vmatpush1.bf16.msra.mxu0 %v1473
      %1609 = vmatprep.subr.bf16.mxu0 0
      %1610 = vmatpush1.bf16.msra.mxu0 %v1474
      %1611 = vmatprep.subr.bf16.mxu0 0
      %1612 = vmatpush1.bf16.msra.mxu0 %v1475
      %1613 = vmatprep.subr.bf16.mxu0 0
      %1614 = vmatpush1.bf16.msra.mxu0 %v1476
      %1615 = vmatprep.subr.bf16.mxu0 0
      %1616 = vmatpush1.bf16.msra.mxu0 %v1477
      %1617 = vmatprep.subr.bf16.mxu0 0
      %1618 = vmatpush1.bf16.msra.mxu0 %v1478
      %1619 = vmatprep.subr.bf16.mxu0 0
      %1620 = vmatpush1.bf16.msra.mxu0 %v1479
      %1621 = vmatprep.subr.bf16.mxu0 0
      %1622 = vmatpush1.bf16.msra.mxu0 %v1480
      %1623 = vmatprep.subr.bf16.mxu0 0
      %1624 = vmatpush1.bf16.msra.mxu0 %v1481
      %1625 = vmatprep.subr.bf16.mxu0 0
      %1626 = vmatpush1.bf16.msra.mxu0 %v1482
      %1627 = vmatprep.mubr.bf16.mxu0 %v311
      %1628 = vmatmul.mubr.bf16.gmra.mrb[0].mxu0 %v310
      %v1629 = vpop.f32.mrb[0].mxu0
      %v1630 = vadd.f32 %v1206, %v1629
      %v1631 = vpop.f32.mrb[0].mxu0
      %v1632 = vpop.f32.mrb[0].mxu0
      %v1633 = vpop.f32.mrb[0].mxu0
      %1634 = vdwg.mxu0
      %1635 = vmatprep.subr.bf16.mxu0 0
      %1636 = vmatpush1.bf16.msra.mxu0 %v1483
      %1637 = vmatprep.subr.bf16.mxu0 0
      %1638 = vmatpush1.bf16.msra.mxu0 %v1484
      %1639 = vmatprep.subr.bf16.mxu0 0
      %1640 = vmatpush1.bf16.msra.mxu0 %v1485
      %1641 = vmatprep.subr.bf16.mxu0 0
      %1642 = vmatpush1.bf16.msra.mxu0 %v1486
      %1643 = vmatprep.subr.bf16.mxu0 0
      %1644 = vmatpush1.bf16.msra.mxu0 %v1487
      %1645 = vmatprep.subr.bf16.mxu0 0
      %1646 = vmatpush1.bf16.msra.mxu0 %v1488
      %1647 = vmatprep.subr.bf16.mxu0 0
      %1648 = vmatpush1.bf16.msra.mxu0 %v1489
      %1649 = vmatprep.subr.bf16.mxu0 0
      %1650 = vmatpush1.bf16.msra.mxu0 %v1490
      %1651 = vmatprep.subr.bf16.mxu0 0
      %1652 = vmatpush1.bf16.msra.mxu0 %v1491
      %1653 = vmatprep.subr.bf16.mxu0 0
      %1654 = vmatpush1.bf16.msra.mxu0 %v1492
      %1655 = vmatprep.subr.bf16.mxu0 0
      %1656 = vmatpush1.bf16.msra.mxu0 %v1493
      %1657 = vmatprep.subr.bf16.mxu0 0
      %1658 = vmatpush1.bf16.msra.mxu0 %v1494
      %1659 = vmatprep.subr.bf16.mxu0 0
      %1660 = vmatpush1.bf16.msra.mxu0 %v1495
      %1661 = vmatprep.subr.bf16.mxu0 0
      %1662 = vmatpush1.bf16.msra.mxu0 %v1496
      %1663 = vmatprep.subr.bf16.mxu0 0
      %1664 = vmatpush1.bf16.msra.mxu0 %v1497
      %1665 = vmatprep.subr.bf16.mxu0 0
      %1666 = vmatpush1.bf16.msra.mxu0 %v1498
      %1667 = vmatprep.mubr.bf16.mxu0 %v322
      %1668 = vmatmul.mubr.bf16.gmra.mrb[0].mxu0 %v321
      %v1669 = vpop.f32.mrb[0].mxu0
      %v1670 = vadd.f32 %v1630, %v1669
      %v1671 = vpop.f32.mrb[0].mxu0
      %v1672 = vpop.f32.mrb[0].mxu0
      %v1673 = vpop.f32.mrb[0].mxu0
      %1674 = vdwg.mxu0
      %1675 = vmatprep.subr.bf16.mxu0 0
      %1676 = vmatpush1.bf16.msra.mxu0 %v1499
      %1677 = vmatprep.subr.bf16.mxu0 0
      %1678 = vmatpush1.bf16.msra.mxu0 %v1500
      %1679 = vmatprep.subr.bf16.mxu0 0
      %1680 = vmatpush1.bf16.msra.mxu0 %v1501
      %1681 = vmatprep.subr.bf16.mxu0 0
      %1682 = vmatpush1.bf16.msra.mxu0 %v1502
      %1683 = vmatprep.subr.bf16.mxu0 0
      %1684 = vmatpush1.bf16.msra.mxu0 %v1503
      %1685 = vmatprep.subr.bf16.mxu0 0
      %1686 = vmatpush1.bf16.msra.mxu0 %v1504
      %1687 = vmatprep.subr.bf16.mxu0 0
      %1688 = vmatpush1.bf16.msra.mxu0 %v1505
      %1689 = vmatprep.subr.bf16.mxu0 0
      %1690 = vmatpush1.bf16.msra.mxu0 %v1506
      %1691 = vmatprep.subr.bf16.mxu0 0
      %1692 = vmatpush1.bf16.msra.mxu0 %v1507
      %1693 = vmatprep.subr.bf16.mxu0 0
      %1694 = vmatpush1.bf16.msra.mxu0 %v1508
      %1695 = vmatprep.subr.bf16.mxu0 0
      %1696 = vmatpush1.bf16.msra.mxu0 %v1509
      %1697 = vmatprep.subr.bf16.mxu0 0
      %1698 = vmatpush1.bf16.msra.mxu0 %v1510
      %1699 = vmatprep.subr.bf16.mxu0 0
      %1700 = vmatpush1.bf16.msra.mxu0 %v1511
      %1701 = vmatprep.subr.bf16.mxu0 0
      %1702 = vmatpush1.bf16.msra.mxu0 %v1512
      %1703 = vmatprep.subr.bf16.mxu0 0
      %1704 = vmatpush1.bf16.msra.mxu0 %v1513
      %1705 = vmatprep.subr.bf16.mxu0 0
      %1706 = vmatpush1.bf16.msra.mxu0 %v1514
      %1707 = vmatprep.mubr.bf16.mxu0 %v333
      %1708 = vmatmul.mubr.bf16.gmra.mrb[0].mxu0 %v332
      %v1709 = vpop.f32.mrb[0].mxu0
      %v1710 = vadd.f32 %v1670, %v1709
      %v1711 = vpop.f32.mrb[0].mxu0
      %v1712 = vpop.f32.mrb[0].mxu0
      %v1713 = vpop.f32.mrb[0].mxu0
      %1714 = vdwg.mxu0
      %1715 = vmatprep.subr.bf16.mxu0 0
      %1716 = vmatpush1.bf16.msra.mxu0 %v1515
      %1717 = vmatprep.subr.bf16.mxu0 0
      %1718 = vmatpush1.bf16.msra.mxu0 %v1516
      %1719 = vmatprep.subr.bf16.mxu0 0
      %1720 = vmatpush1.bf16.msra.mxu0 %v1517
      %1721 = vmatprep.subr.bf16.mxu0 0
      %1722 = vmatpush1.bf16.msra.mxu0 %v1518
      %1723 = vmatprep.subr.bf16.mxu0 0
      %1724 = vmatpush1.bf16.msra.mxu0 %v1519
      %1725 = vmatprep.subr.bf16.mxu0 0
      %1726 = vmatpush1.bf16.msra.mxu0 %v1520
      %1727 = vmatprep.subr.bf16.mxu0 0
      %1728 = vmatpush1.bf16.msra.mxu0 %v1521
      %1729 = vmatprep.subr.bf16.mxu0 0
      %1730 = vmatpush1.bf16.msra.mxu0 %v1522
      %1731 = vmatprep.subr.bf16.mxu0 0
      %1732 = vmatpush1.bf16.msra.mxu0 %v1523
      %1733 = vmatprep.subr.bf16.mxu0 0
      %1734 = vmatpush1.bf16.msra.mxu0 %v1524
      %1735 = vmatprep.subr.bf16.mxu0 0
      %1736 = vmatpush1.bf16.msra.mxu0 %v1525
      %1737 = vmatprep.subr.bf16.mxu0 0
      %1738 = vmatpush1.bf16.msra.mxu0 %v1526
      %1739 = vmatprep.subr.bf16.mxu0 0
      %1740 = vmatpush1.bf16.msra.mxu0 %v1527
      %1741 = vmatprep.subr.bf16.mxu0 0
      %1742 = vmatpush1.bf16.msra.mxu0 %v1528
      %1743 = vmatprep.subr.bf16.mxu0 0
      %1744 = vmatpush1.bf16.msra.mxu0 %v1529
      %1745 = vmatprep.subr.bf16.mxu0 0
      %1746 = vmatpush1.bf16.msra.mxu0 %v1530
      %1747 = vmatprep.mubr.bf16.mxu0 %v344
      %1748 = vmatmul.mubr.bf16.gmra.mrb[0].mxu0 %v343
      %v1749 = vpop.f32.mrb[0].mxu0
      %v1750 = vadd.f32 %v1710, %v1749
      %v1751 = vpop.f32.mrb[0].mxu0
      %v1752 = vpop.f32.mrb[0].mxu0
      %v1753 = vpop.f32.mrb[0].mxu0
      %1754 = vdwg.mxu0
      %v1755 = vld [vmem:[%s4] sm:$0x1]
      %v1757 = vlaneseq
      %v1758 = vshrl.u32 %v1757, 7
      %v1759 = vsub.s32 0, %v1758
      %v1760 = vrot.slane %v1755, %v1759
      %v1762 = vadd.f32 %v1750, %v1760
      %v1763 = vmul.f32 %v1762, 0.2
      %v1764 = vmax.f32 %v1762, %v1763
      %v1765 = vpack.c.bf16 %v1764, %v1764
      %1766 = vst [vmem:[%s297] sm:$0x1] %v1765
      %p1767 = scmp.lt.s32.totalorder %s20, 1
      %s1768 = scalar_select %p1767, %s20, 1
      %p1769 = scmp.lt.s32.totalorder %s21, 1
      %s1770 = scalar_select %p1769, %s21, 1
      %s1771 = smul.addr %s1768, 2
      %s1772 = sadd.s32 %s1770, %s1771
      %s1773 = scalar_lea.vmem %s5, %s1772
      // Predicated region
      $region41: #{_lambda_.8} parent=39 // pred_check
        %p1774 = pneg %p169
      $region42: #{_lambda_.8} parent=39 // pred_check_branch
        %1776 = sbr.rel (%p1774) target = $region44
      $region43: #{_lambda_.8} parent=39 // pred_region
        _
      $region44: #{_lambda_.8} parent=39 // pred_fallthru
        _
    $region40: #{_lambda_.8} parent=5 // pred_fallthru
      _
    %p1777 = scmp.le.s32.totalorder 2, %s11
    // Predicated region
    $region45: #{_lambda_.8} parent=5 // pred_check
      %p1778 = pneg %p1777
    $region46: #{_lambda_.8} parent=5 // pred_check_branch
      %1780 = sbr.rel (%p1778) target = $region48
    $region47: #{_lambda_.8} parent=5 // pred_region
      %s1781 = ssub.s32 %s11, 2
      // Predicated region
      $region49: #{_lambda_.8} parent=47 // pred_check
        %p1782 = pneg %p175
      $region50: #{_lambda_.8} parent=47 // pred_check_branch
        %1784 = sbr.rel (%p1782) target = $region52
      $region51: #{_lambda_.8} parent=47 // pred_region
        %p1785 = scmp.lt.s32.totalorder %s22, 1
        %s1786 = scalar_select %p1785, %s22, 1
        %p1787 = scmp.lt.s32.totalorder %s23, 1
        %s1788 = scalar_select %p1787, %s23, 1
        %s1789 = smul.addr %s1786, 2
        %s1790 = sadd.s32 %s1788, %s1789
        %s1791 = scalar_lea.vmem %s5, %s1790
      $region52: #{_lambda_.8} parent=47 // pred_fallthru
        _
    $region48: #{_lambda_.8} parent=5 // pred_fallthru
      _
  $region6: #{_lambda_.8} parent=0 // loop_footer
    %s15 = sadd.s32 1, %s11
  $region7: #{_lambda_.8} parent=0 // loop_footer_branch
    %10 = sbr.rel target = $region3
  $region8: #{_lambda_.8} parent=0 // loop_exit
    _

// kernel: _lambda_.7
$region0: #{_lambda_.7}
  #allocation0 [shape = 'u32[]', space=smem, size = 0x4, offset = 0x4, fixed_abs, tag = 'smem constant byte address 0x4 - core index']
  #allocation1 [shape = 'u32[144,128]{1,0:T(1,128)}', space=vmem, size = 0x12000, scoped, tag = 'internal scratch']
  %s0 = inlined_call_operand.vmem [shape: bf16[2,5,2,5,256], index: 0, kind: input, shape index: {}, may-alias: {0,1}]
  %s1 = inlined_call_operand.vmem [shape: bf16[2,5,2,5,256], index: 1, kind: input, shape index: {}, may-alias: {0,1}]
  %s2 = inlined_call_operand.vmem [shape: bf16[1024,128], index: 2, kind: input, shape index: {}]
  %s3 = inlined_call_operand.vmem [shape: bf16[1024,128], index: 3, kind: input, shape index: {}]
  %s4 = inlined_call_operand.vmem [shape: f32[1,128], index: 4, kind: input, shape index: {}]
  %s5 = inlined_call_operand.vmem [shape: bf16[2,4,4,128], index: 5, kind: output, shape index: {}]
  %s6 = sld [smem:[#allocation0]]
  $region53: #{_lambda_.7} parent=0
    _
  %s8 = ssub.s32 1, %s6
  %s9 = scalar_select 0, %s8, %s6
  loop: start=0, step=1, limit=10
  $region2: #{_lambda_.7} parent=0 // loop_pre_header
    _
  $region3: #{_lambda_.7} parent=0 // loop_header
    %s11 = sphi 0, %s15
    %p12 = scmp.ge.s32.totalorder %s11, 10
    %s18 = sphi 0, %s30
    %s19 = sphi 0, %s26
    %s20 = sphi 0, %s18
    %s21 = sphi 0, %s19
    %s22 = sphi 0, %s20
    %s23 = sphi 0, %s21
    %s35 = sphi 0, %s37
    %s38 = sphi 0, %s35
    %s39 = sphi 0, %s38
    %s55 = sphi 0, %s39
    %s65 = sphi 0, %s67
    %s68 = sphi 0, %s65
    %s69 = sphi 0, %s68
    %s85 = sphi 0, %s69
    %s89 = sphi 0, %s89
    %s91 = sphi 0, %s89
    %s92 = sphi 0, %s91
    %s106 = sphi 0, %s92
    %s110 = sphi 0, %s110
    %s112 = sphi 0, %s110
    %s113 = sphi 0, %s112
    %s127 = sphi 0, %s113
    %s131 = sphi 0, %s131
    %s133 = sphi 0, %s131
    %s134 = sphi 0, %s133
    %s148 = sphi 0, %s134
    %s156 = sphi 0, %s158
    %s159 = sphi 0, %s156
    %s160 = sphi 0, %s159
    %s176 = sphi 0, %s160
  $region4: #{_lambda_.7} parent=0 // loop_header_branch
    %14 = sbr.rel (%p12) target = $region8
  $region5: #{_lambda_.7} parent=0 // loop_body
    %s16 = ssub.s32 %s11, 1
    %s17 = ssub.s32 %s11, 2
    %s24 = sadd.s32 1, %s19
    %p25 = scmp.ge.s32.totalorder %s24, 4
    %s26 = scalar_select %p25, 0, %s24
    %s27 = sadd.s32 1, %s18
    %s28 = scalar_select %p25, %s27, %s18
    %p29 = scmp.ge.s32.totalorder %s28, 2
    %s30 = scalar_select %p29, 0, %s28
    %s31 = ssub.s32 %s18, %s30
    %s32 = ssub.s32 %s19, %s26
    %s33 = sor.u32 %s31, %s32
    %p34 = scmp.eq.s32.totalorder %s33, 0
    %s36 = sadd.s32 %s35, 1
    %s37 = scalar_select %p34, %s35, %s36
    %p40 = pneg %p34
    %p41 = scmp.eq.s32.totalorder %s11, 7
    %p42 = por %p40, %p41
    %p43 = scmp.ne.s32.totalorder %s35, %s38
    %p44 = scmp.eq.s32.totalorder %s11, 0
    %p45 = por %p43, %p44
    %p46 = scmp.ne.s32.totalorder %s35, %s38
    %p47 = scmp.eq.s32.totalorder %s16, 7
    %p48 = por %p46, %p47
    %p49 = scmp.ne.s32.totalorder %s38, %s39
    %p50 = scmp.eq.s32.totalorder %s16, 0
    %p51 = por %p49, %p50
    %p52 = scmp.ne.s32.totalorder %s38, %s39
    %p53 = scmp.eq.s32.totalorder %s17, 7
    %p54 = por %p52, %p53
    %p56 = scmp.ne.s32.totalorder %s39, %s55
    %p57 = scmp.eq.s32.totalorder %s17, 0
    %p58 = por %p56, %p57
    %s59 = sadd.s32 %s19, 1
    %s60 = sadd.s32 %s26, 1
    %s61 = ssub.s32 %s18, %s30
    %s62 = ssub.s32 %s59, %s60
    %s63 = sor.u32 %s61, %s62
    %p64 = scmp.eq.s32.totalorder %s63, 0
    %s66 = sadd.s32 %s65, 1
    %s67 = scalar_select %p64, %s65, %s66
    %p70 = pneg %p64
    %p71 = scmp.eq.s32.totalorder %s11, 7
    %p72 = por %p70, %p71
    %p73 = scmp.ne.s32.totalorder %s65, %s68
    %p74 = scmp.eq.s32.totalorder %s11, 0
    %p75 = por %p73, %p74
    %p76 = scmp.ne.s32.totalorder %s65, %s68
    %p77 = scmp.eq.s32.totalorder %s16, 7
    %p78 = por %p76, %p77
    %p79 = scmp.ne.s32.totalorder %s68, %s69
    %p80 = scmp.eq.s32.totalorder %s16, 0
    %p81 = por %p79, %p80
    %p82 = scmp.ne.s32.totalorder %s68, %s69
    %p83 = scmp.eq.s32.totalorder %s17, 7
    %p84 = por %p82, %p83
    %p86 = scmp.ne.s32.totalorder %s69, %s85
    %p87 = scmp.eq.s32.totalorder %s17, 0
    %p88 = por %p86, %p87
    %s90 = sadd.s32 %s89, 1
    %p93 = scmp.eq.s32.totalorder %s11, 7
    %p94 = scmp.ne.s32.totalorder %s89, %s91
    %p95 = scmp.eq.s32.totalorder %s11, 0
    %p96 = por %p94, %p95
    %p97 = scmp.ne.s32.totalorder %s89, %s91
    %p98 = scmp.eq.s32.totalorder %s16, 7
    %p99 = por %p97, %p98
    %p100 = scmp.ne.s32.totalorder %s91, %s92
    %p101 = scmp.eq.s32.totalorder %s16, 0
    %p102 = por %p100, %p101
    %p103 = scmp.ne.s32.totalorder %s91, %s92
    %p104 = scmp.eq.s32.totalorder %s17, 7
    %p105 = por %p103, %p104
    %p107 = scmp.ne.s32.totalorder %s92, %s106
    %p108 = scmp.eq.s32.totalorder %s17, 0
    %p109 = por %p107, %p108
    %s111 = sadd.s32 %s110, 1
    %p114 = scmp.eq.s32.totalorder %s11, 7
    %p115 = scmp.ne.s32.totalorder %s110, %s112
    %p116 = scmp.eq.s32.totalorder %s11, 0
    %p117 = por %p115, %p116
    %p118 = scmp.ne.s32.totalorder %s110, %s112
    %p119 = scmp.eq.s32.totalorder %s16, 7
    %p120 = por %p118, %p119
    %p121 = scmp.ne.s32.totalorder %s112, %s113
    %p122 = scmp.eq.s32.totalorder %s16, 0
    %p123 = por %p121, %p122
    %p124 = scmp.ne.s32.totalorder %s112, %s113
    %p125 = scmp.eq.s32.totalorder %s17, 7
    %p126 = por %p124, %p125
    %p128 = scmp.ne.s32.totalorder %s113, %s127
    %p129 = scmp.eq.s32.totalorder %s17, 0
    %p130 = por %p128, %p129
    %s132 = sadd.s32 %s131, 1
    %p135 = scmp.eq.s32.totalorder %s11, 7
    %p136 = scmp.ne.s32.totalorder %s131, %s133
    %p137 = scmp.eq.s32.totalorder %s11, 0
    %p138 = por %p136, %p137
    %p139 = scmp.ne.s32.totalorder %s131, %s133
    %p140 = scmp.eq.s32.totalorder %s16, 7
    %p141 = por %p139, %p140
    %p142 = scmp.ne.s32.totalorder %s133, %s134
    %p143 = scmp.eq.s32.totalorder %s16, 0
    %p144 = por %p142, %p143
    %p145 = scmp.ne.s32.totalorder %s133, %s134
    %p146 = scmp.eq.s32.totalorder %s17, 7
    %p147 = por %p145, %p146
    %p149 = scmp.ne.s32.totalorder %s134, %s148
    %p150 = scmp.eq.s32.totalorder %s17, 0
    %p151 = por %p149, %p150
    %s152 = ssub.s32 %s18, %s30
    %s153 = ssub.s32 %s19, %s26
    %s154 = sor.u32 %s152, %s153
    %p155 = scmp.eq.s32.totalorder %s154, 0
    %s157 = sadd.s32 %s156, 1
    %s158 = scalar_select %p155, %s156, %s157
    %p161 = pneg %p155
    %p162 = scmp.eq.s32.totalorder %s11, 7
    %p163 = por %p161, %p162
    %p164 = scmp.ne.s32.totalorder %s156, %s159
    %p165 = scmp.eq.s32.totalorder %s11, 0
    %p166 = por %p164, %p165
    %p167 = scmp.ne.s32.totalorder %s156, %s159
    %p168 = scmp.eq.s32.totalorder %s16, 7
    %p169 = por %p167, %p168
    %p170 = scmp.ne.s32.totalorder %s159, %s160
    %p171 = scmp.eq.s32.totalorder %s16, 0
    %p172 = por %p170, %p171
    %p173 = scmp.ne.s32.totalorder %s159, %s160
    %p174 = scmp.eq.s32.totalorder %s17, 7
    %p175 = por %p173, %p174
    %p177 = scmp.ne.s32.totalorder %s160, %s176
    %p178 = scmp.eq.s32.totalorder %s17, 0
    %p179 = por %p177, %p178
    %p180 = scmp.le.s32.totalorder 1, %s11
    %p181 = scmp.lt.s32.totalorder %s11, 9
    %p182 = pnand %p180, %p181
    %p183 = pneg %p182
    // Predicated region
    $region9: #{_lambda_.7} parent=5 // pred_check
      _
    $region10: #{_lambda_.7} parent=5 // pred_check_branch
      %185 = sbr.rel (%p182) target = $region12
    $region11: #{_lambda_.7} parent=5 // pred_region
      %s186 = ssub.s32 %s11, 1
      // Predicated region
      $region13: #{_lambda_.7} parent=11 // pred_check
        %p187 = pneg %p102
      $region14: #{_lambda_.7} parent=11 // pred_check_branch
        %189 = sbr.rel (%p187) target = $region16
      $region15: #{_lambda_.7} parent=11 // pred_region
        _
      $region16: #{_lambda_.7} parent=11 // pred_fallthru
        _
      // Predicated region
      $region17: #{_lambda_.7} parent=11 // pred_check
        %p190 = pneg %p123
      $region18: #{_lambda_.7} parent=11 // pred_check_branch
        %192 = sbr.rel (%p190) target = $region20
      $region19: #{_lambda_.7} parent=11 // pred_region
        _
      $region20: #{_lambda_.7} parent=11 // pred_fallthru
        _
      // Predicated region
      $region21: #{_lambda_.7} parent=11 // pred_check
        %p193 = pneg %p144
      $region22: #{_lambda_.7} parent=11 // pred_check_branch
        %195 = sbr.rel (%p193) target = $region24
      $region23: #{_lambda_.7} parent=11 // pred_region
        _
      $region24: #{_lambda_.7} parent=11 // pred_fallthru
        _
    $region12: #{_lambda_.7} parent=5 // pred_fallthru
      _
    %p196 = scmp.lt.s32.totalorder %s11, 8
    // Predicated region
    $region25: #{_lambda_.7} parent=5 // pred_check
      %p197 = pneg %p196
    $region26: #{_lambda_.7} parent=5 // pred_check_branch
      %199 = sbr.rel (%p197) target = $region28
    $region27: #{_lambda_.7} parent=5 // pred_region
      // Predicated region
      $region29: #{_lambda_.7} parent=27 // pred_check
        %p200 = pneg %p45
      $region30: #{_lambda_.7} parent=27 // pred_check_branch
        %202 = sbr.rel (%p200) target = $region32
      $region31: #{_lambda_.7} parent=27 // pred_region
        %p203 = scmp.lt.s32.totalorder %s18, 1
        %s204 = scalar_select %p203, %s18, 1
        %p205 = scmp.lt.s32.totalorder %s19, 4
        %s206 = scalar_select %p205, %s19, 4
        %s207 = smul.addr %s206, 4
        %s208 = smul.addr %s204, 20
        %s209 = sadd.s32 %s207, %s208
        %s210 = smul.addr %s209, 4
        %s211 = scalar_lea.vmem %s0, %s210
      $region32: #{_lambda_.7} parent=27 // pred_fallthru
        _
      // Predicated region
      $region33: #{_lambda_.7} parent=27 // pred_check
        %p212 = pneg %p75
      $region34: #{_lambda_.7} parent=27 // pred_check_branch
        %214 = sbr.rel (%p212) target = $region36
      $region35: #{_lambda_.7} parent=27 // pred_region
        %s215 = sadd.s32 %s19, 1
        %p216 = scmp.lt.s32.totalorder %s18, 1
        %s217 = scalar_select %p216, %s18, 1
        %p218 = scmp.lt.s32.totalorder %s215, 4
        %s219 = scalar_select %p218, %s215, 4
        %s220 = smul.addr %s219, 4
        %s221 = smul.addr %s217, 20
        %s222 = sadd.s32 %s220, %s221
        %s223 = smul.addr %s222, 4
        %s224 = scalar_lea.vmem %s1, %s223
        %s225 = sadd.s32 %s19, 1
      $region36: #{_lambda_.7} parent=27 // pred_fallthru
        _
    $region28: #{_lambda_.7} parent=5 // pred_fallthru
      _
    %p226 = scmp.le.s32.totalorder 1, %s11
    %p227 = scmp.lt.s32.totalorder %s11, 9
    %p228 = pnand %p226, %p227
    %p229 = pneg %p228
    // Predicated region
    $region37: #{_lambda_.7} parent=5 // pred_check
      _
    $region38: #{_lambda_.7} parent=5 // pred_check_branch
      %231 = sbr.rel (%p228) target = $region40
    $region39: #{_lambda_.7} parent=5 // pred_region
      %s232 = ssub.s32 %s11, 1
      %p233 = scmp.lt.s32.totalorder %s20, 1
      %s234 = scalar_select %p233, %s20, 1
      %p235 = scmp.lt.s32.totalorder %s21, 4
      %s236 = scalar_select %p235, %s21, 4
      %s237 = smul.addr %s236, 4
      %s238 = smul.addr %s234, 20
      %s239 = sadd.s32 %s237, %s238
      %s240 = smul.addr %s239, 4
      %s241 = scalar_lea.vmem %s0, %s240
      %p242 = pneg %p51
      %p243 = pneg %p48
      %s244 = sadd.s32 %s21, 1
      %p245 = scmp.lt.s32.totalorder %s20, 1
      %s246 = scalar_select %p245, %s20, 1
      %p247 = scmp.lt.s32.totalorder %s244, 4
      %s248 = scalar_select %p247, %s244, 4
      %s249 = smul.addr %s248, 4
      %s250 = smul.addr %s246, 20
      %s251 = sadd.s32 %s249, %s250
      %s252 = smul.addr %s251, 4
      %s253 = scalar_lea.vmem %s1, %s252
      %p254 = pneg %p81
      %p255 = pneg %p78
      %p256 = pneg %p102
      %p257 = pneg %p99
      %p258 = pneg %p123
      %p259 = pneg %p120
      %p260 = pneg %p144
      %p261 = pneg %p141
      %p262 = pneg %p172
      %p263 = pneg %p169
      %p264 = scmp.lt.s32.totalorder %s20, 1
      %s265 = scalar_select %p264, %s20, 1
      %p266 = scmp.lt.s32.totalorder %s21, 3
      %s267 = scalar_select %p266, %s21, 3
      %s268 = smul.addr %s265, 4
      %s269 = sadd.s32 %s267, %s268
      %s270 = smul.addr %s269, 2
      %s271 = scalar_lea.vmem %s5, %s270
      %p272 = scmp.lt.s32.totalorder %s20, 1
      %s273 = scalar_select %p272, %s20, 1
      %p274 = scmp.lt.s32.totalorder %s21, 4
      %s275 = scalar_select %p274, %s21, 4
      %s276 = smul.addr %s275, 4
      %s277 = smul.addr %s273, 20
      %s278 = sadd.s32 %s276, %s277
      %s279 = smul.addr %s278, 4
      %s280 = scalar_lea.vmem %s0, %s279
      %s281 = sadd.s32 %s21, 1
      %p282 = scmp.lt.s32.totalorder %s20, 1
      %s283 = scalar_select %p282, %s20, 1
      %p284 = scmp.lt.s32.totalorder %s281, 4
      %s285 = scalar_select %p284, %s281, 4
      %s286 = smul.addr %s285, 4
      %s287 = smul.addr %s283, 20
      %s288 = sadd.s32 %s286, %s287
      %s289 = smul.addr %s288, 4
      %s290 = scalar_lea.vmem %s1, %s289
      %s291 = sadd.s32 %s21, 1
      %p292 = scmp.lt.s32.totalorder %s20, 1
      %s293 = scalar_select %p292, %s20, 1
      %p294 = scmp.lt.s32.totalorder %s21, 3
      %s295 = scalar_select %p294, %s21, 3
      %s296 = smul.addr %s293, 4
      %s297 = sadd.s32 %s295, %s296
      %s298 = smul.addr %s297, 2
      %s299 = scalar_lea.vmem %s5, %s298
      %v301 = vld [vmem:[%s280] sm:$0x77]
      %v302 = vld [vmem:[%s280 + $0x8] sm:$0x77]
      %v303 = vld [vmem:[%s290] sm:$0x77]
      %v304 = vld [vmem:[%s290 + $0x8] sm:$0x77]
      %v306 = vunpack.c.l.b16 %v301
      %v307 = vunpack.c.h.b16 %v301
      %v308 = vpack.c.b16 %v306, %v306
      %v309 = vpack.c.b16 %v307, %v307
      %v313 = vunpack.c.l.b16 %v302
      %v314 = vunpack.c.h.b16 %v302
      %v315 = vpack.c.b16 %v313, %v313
      %v316 = vpack.c.b16 %v314, %v314
      %v320 = vunpack.c.l.b16 %v303
      %v321 = vunpack.c.h.b16 %v303
      %v322 = vpack.c.b16 %v320, %v320
      %v323 = vpack.c.b16 %v321, %v321
      %v327 = vunpack.c.l.b16 %v304
      %v328 = vunpack.c.h.b16 %v304
      %v329 = vpack.c.b16 %v327, %v327
      %v330 = vpack.c.b16 %v328, %v328
      %v333 = vld [vmem:[%s2] sm:$0xf]
      %v334 = vld [vmem:[%s2 + $0x4] sm:$0xf]
      %v335 = vld [vmem:[%s2 + $0x8] sm:$0xf]
      %v336 = vld [vmem:[%s2 + $0xc] sm:$0xf]
      %v337 = vld [vmem:[%s2 + $0x10] sm:$0xf]
      %v338 = vld [vmem:[%s2 + $0x14] sm:$0xf]
      %v339 = vld [vmem:[%s2 + $0x18] sm:$0xf]
      %v340 = vld [vmem:[%s2 + $0x1c] sm:$0xf]
      %v341 = vld [vmem:[%s2 + $0x20] sm:$0xf]
      %v342 = vld [vmem:[%s2 + $0x24] sm:$0xf]
      %v343 = vld [vmem:[%s2 + $0x28] sm:$0xf]
      %v344 = vld [vmem:[%s2 + $0x2c] sm:$0xf]
      %v345 = vld [vmem:[%s2 + $0x30] sm:$0xf]
      %v346 = vld [vmem:[%s2 + $0x34] sm:$0xf]
      %v347 = vld [vmem:[%s2 + $0x38] sm:$0xf]
      %v348 = vld [vmem:[%s2 + $0x3c] sm:$0xf]
      %v349 = vld [vmem:[%s2 + $0x40] sm:$0xf]
      %v350 = vld [vmem:[%s2 + $0x44] sm:$0xf]
      %v351 = vld [vmem:[%s2 + $0x48] sm:$0xf]
      %v352 = vld [vmem:[%s2 + $0x4c] sm:$0xf]
      %v353 = vld [vmem:[%s2 + $0x50] sm:$0xf]
      %v354 = vld [vmem:[%s2 + $0x54] sm:$0xf]
      %v355 = vld [vmem:[%s2 + $0x58] sm:$0xf]
      %v356 = vld [vmem:[%s2 + $0x5c] sm:$0xf]
      %v357 = vld [vmem:[%s2 + $0x60] sm:$0xf]
      %v358 = vld [vmem:[%s2 + $0x64] sm:$0xf]
      %v359 = vld [vmem:[%s2 + $0x68] sm:$0xf]
      %v360 = vld [vmem:[%s2 + $0x6c] sm:$0xf]
      %v361 = vld [vmem:[%s2 + $0x70] sm:$0xf]
      %v362 = vld [vmem:[%s2 + $0x74] sm:$0xf]
      %v363 = vld [vmem:[%s2 + $0x78] sm:$0xf]
      %v364 = vld [vmem:[%s2 + $0x7c] sm:$0xf]
      %v365 = vld [vmem:[%s2 + $0x80] sm:$0xf]
      %v366 = vld [vmem:[%s2 + $0x84] sm:$0xf]
      %v367 = vld [vmem:[%s2 + $0x88] sm:$0xf]
      %v368 = vld [vmem:[%s2 + $0x8c] sm:$0xf]
      %v369 = vld [vmem:[%s2 + $0x90] sm:$0xf]
      %v370 = vld [vmem:[%s2 + $0x94] sm:$0xf]
      %v371 = vld [vmem:[%s2 + $0x98] sm:$0xf]
      %v372 = vld [vmem:[%s2 + $0x9c] sm:$0xf]
      %v373 = vld [vmem:[%s2 + $0xa0] sm:$0xf]
      %v374 = vld [vmem:[%s2 + $0xa4] sm:$0xf]
      %v375 = vld [vmem:[%s2 + $0xa8] sm:$0xf]
      %v376 = vld [vmem:[%s2 + $0xac] sm:$0xf]
      %v377 = vld [vmem:[%s2 + $0xb0] sm:$0xf]
      %v378 = vld [vmem:[%s2 + $0xb4] sm:$0xf]
      %v379 = vld [vmem:[%s2 + $0xb8] sm:$0xf]
      %v380 = vld [vmem:[%s2 + $0xbc] sm:$0xf]
      %v381 = vld [vmem:[%s2 + $0xc0] sm:$0xf]
      %v382 = vld [vmem:[%s2 + $0xc4] sm:$0xf]
      %v383 = vld [vmem:[%s2 + $0xc8] sm:$0xf]
      %v384 = vld [vmem:[%s2 + $0xcc] sm:$0xf]
      %v385 = vld [vmem:[%s2 + $0xd0] sm:$0xf]
      %v386 = vld [vmem:[%s2 + $0xd4] sm:$0xf]
      %v387 = vld [vmem:[%s2 + $0xd8] sm:$0xf]
      %v388 = vld [vmem:[%s2 + $0xdc] sm:$0xf]
      %v389 = vld [vmem:[%s2 + $0xe0] sm:$0xf]
      %v390 = vld [vmem:[%s2 + $0xe4] sm:$0xf]
      %v391 = vld [vmem:[%s2 + $0xe8] sm:$0xf]
      %v392 = vld [vmem:[%s2 + $0xec] sm:$0xf]
      %v393 = vld [vmem:[%s2 + $0xf0] sm:$0xf]
      %v394 = vld [vmem:[%s2 + $0xf4] sm:$0xf]
      %v395 = vld [vmem:[%s2 + $0xf8] sm:$0xf]
      %v396 = vld [vmem:[%s2 + $0xfc] sm:$0xf]
      %v397 = vld [vmem:[%s2 + $0x100] sm:$0xf]
      %v398 = vld [vmem:[%s2 + $0x104] sm:$0xf]
      %v399 = vld [vmem:[%s2 + $0x108] sm:$0xf]
      %v400 = vld [vmem:[%s2 + $0x10c] sm:$0xf]
      %v401 = vld [vmem:[%s2 + $0x110] sm:$0xf]
      %v402 = vld [vmem:[%s2 + $0x114] sm:$0xf]
      %v403 = vld [vmem:[%s2 + $0x118] sm:$0xf]
      %v404 = vld [vmem:[%s2 + $0x11c] sm:$0xf]
      %v405 = vld [vmem:[%s2 + $0x120] sm:$0xf]
      %v406 = vld [vmem:[%s2 + $0x124] sm:$0xf]
      %v407 = vld [vmem:[%s2 + $0x128] sm:$0xf]
      %v408 = vld [vmem:[%s2 + $0x12c] sm:$0xf]
      %v409 = vld [vmem:[%s2 + $0x130] sm:$0xf]
      %v410 = vld [vmem:[%s2 + $0x134] sm:$0xf]
      %v411 = vld [vmem:[%s2 + $0x138] sm:$0xf]
      %v412 = vld [vmem:[%s2 + $0x13c] sm:$0xf]
      %v413 = vld [vmem:[%s2 + $0x140] sm:$0xf]
      %v414 = vld [vmem:[%s2 + $0x144] sm:$0xf]
      %v415 = vld [vmem:[%s2 + $0x148] sm:$0xf]
      %v416 = vld [vmem:[%s2 + $0x14c] sm:$0xf]
      %v417 = vld [vmem:[%s2 + $0x150] sm:$0xf]
      %v418 = vld [vmem:[%s2 + $0x154] sm:$0xf]
      %v419 = vld [vmem:[%s2 + $0x158] sm:$0xf]
      %v420 = vld [vmem:[%s2 + $0x15c] sm:$0xf]
      %v421 = vld [vmem:[%s2 + $0x160] sm:$0xf]
      %v422 = vld [vmem:[%s2 + $0x164] sm:$0xf]
      %v423 = vld [vmem:[%s2 + $0x168] sm:$0xf]
      %v424 = vld [vmem:[%s2 + $0x16c] sm:$0xf]
      %v425 = vld [vmem:[%s2 + $0x170] sm:$0xf]
      %v426 = vld [vmem:[%s2 + $0x174] sm:$0xf]
      %v427 = vld [vmem:[%s2 + $0x178] sm:$0xf]
      %v428 = vld [vmem:[%s2 + $0x17c] sm:$0xf]
      %v429 = vld [vmem:[%s2 + $0x180] sm:$0xf]
      %v430 = vld [vmem:[%s2 + $0x184] sm:$0xf]
      %v431 = vld [vmem:[%s2 + $0x188] sm:$0xf]
      %v432 = vld [vmem:[%s2 + $0x18c] sm:$0xf]
      %v433 = vld [vmem:[%s2 + $0x190] sm:$0xf]
      %v434 = vld [vmem:[%s2 + $0x194] sm:$0xf]
      %v435 = vld [vmem:[%s2 + $0x198] sm:$0xf]
      %v436 = vld [vmem:[%s2 + $0x19c] sm:$0xf]
      %v437 = vld [vmem:[%s2 + $0x1a0] sm:$0xf]
      %v438 = vld [vmem:[%s2 + $0x1a4] sm:$0xf]
      %v439 = vld [vmem:[%s2 + $0x1a8] sm:$0xf]
      %v440 = vld [vmem:[%s2 + $0x1ac] sm:$0xf]
      %v441 = vld [vmem:[%s2 + $0x1b0] sm:$0xf]
      %v442 = vld [vmem:[%s2 + $0x1b4] sm:$0xf]
      %v443 = vld [vmem:[%s2 + $0x1b8] sm:$0xf]
      %v444 = vld [vmem:[%s2 + $0x1bc] sm:$0xf]
      %v445 = vld [vmem:[%s2 + $0x1c0] sm:$0xf]
      %v446 = vld [vmem:[%s2 + $0x1c4] sm:$0xf]
      %v447 = vld [vmem:[%s2 + $0x1c8] sm:$0xf]
      %v448 = vld [vmem:[%s2 + $0x1cc] sm:$0xf]
      %v449 = vld [vmem:[%s2 + $0x1d0] sm:$0xf]
      %v450 = vld [vmem:[%s2 + $0x1d4] sm:$0xf]
      %v451 = vld [vmem:[%s2 + $0x1d8] sm:$0xf]
      %v452 = vld [vmem:[%s2 + $0x1dc] sm:$0xf]
      %v453 = vld [vmem:[%s2 + $0x1e0] sm:$0xf]
      %v454 = vld [vmem:[%s2 + $0x1e4] sm:$0xf]
      %v455 = vld [vmem:[%s2 + $0x1e8] sm:$0xf]
      %v456 = vld [vmem:[%s2 + $0x1ec] sm:$0xf]
      %v457 = vld [vmem:[%s2 + $0x1f0] sm:$0xf]
      %v458 = vld [vmem:[%s2 + $0x1f4] sm:$0xf]
      %v459 = vld [vmem:[%s2 + $0x1f8] sm:$0xf]
      %v460 = vld [vmem:[%s2 + $0x1fc] sm:$0xf]
      %v461 = vld [vmem:[%s3] sm:$0xf]
      %v462 = vld [vmem:[%s3 + $0x4] sm:$0xf]
      %v463 = vld [vmem:[%s3 + $0x8] sm:$0xf]
      %v464 = vld [vmem:[%s3 + $0xc] sm:$0xf]
      %v465 = vld [vmem:[%s3 + $0x10] sm:$0xf]
      %v466 = vld [vmem:[%s3 + $0x14] sm:$0xf]
      %v467 = vld [vmem:[%s3 + $0x18] sm:$0xf]
      %v468 = vld [vmem:[%s3 + $0x1c] sm:$0xf]
      %v469 = vld [vmem:[%s3 + $0x20] sm:$0xf]
      %v470 = vld [vmem:[%s3 + $0x24] sm:$0xf]
      %v471 = vld [vmem:[%s3 + $0x28] sm:$0xf]
      %v472 = vld [vmem:[%s3 + $0x2c] sm:$0xf]
      %v473 = vld [vmem:[%s3 + $0x30] sm:$0xf]
      %v474 = vld [vmem:[%s3 + $0x34] sm:$0xf]
      %v475 = vld [vmem:[%s3 + $0x38] sm:$0xf]
      %v476 = vld [vmem:[%s3 + $0x3c] sm:$0xf]
      %v477 = vld [vmem:[%s3 + $0x40] sm:$0xf]
      %v478 = vld [vmem:[%s3 + $0x44] sm:$0xf]
      %v479 = vld [vmem:[%s3 + $0x48] sm:$0xf]
      %v480 = vld [vmem:[%s3 + $0x4c] sm:$0xf]
      %v481 = vld [vmem:[%s3 + $0x50] sm:$0xf]
      %v482 = vld [vmem:[%s3 + $0x54] sm:$0xf]
      %v483 = vld [vmem:[%s3 + $0x58] sm:$0xf]
      %v484 = vld [vmem:[%s3 + $0x5c] sm:$0xf]
      %v485 = vld [vmem:[%s3 + $0x60] sm:$0xf]
      %v486 = vld [vmem:[%s3 + $0x64] sm:$0xf]
      %v487 = vld [vmem:[%s3 + $0x68] sm:$0xf]
      %v488 = vld [vmem:[%s3 + $0x6c] sm:$0xf]
      %v489 = vld [vmem:[%s3 + $0x70] sm:$0xf]
      %v490 = vld [vmem:[%s3 + $0x74] sm:$0xf]
      %v491 = vld [vmem:[%s3 + $0x78] sm:$0xf]
      %v492 = vld [vmem:[%s3 + $0x7c] sm:$0xf]
      %v493 = vld [vmem:[%s3 + $0x80] sm:$0xf]
      %v494 = vld [vmem:[%s3 + $0x84] sm:$0xf]
      %v495 = vld [vmem:[%s3 + $0x88] sm:$0xf]
      %v496 = vld [vmem:[%s3 + $0x8c] sm:$0xf]
      %v497 = vld [vmem:[%s3 + $0x90] sm:$0xf]
      %v498 = vld [vmem:[%s3 + $0x94] sm:$0xf]
      %v499 = vld [vmem:[%s3 + $0x98] sm:$0xf]
      %v500 = vld [vmem:[%s3 + $0x9c] sm:$0xf]
      %v501 = vld [vmem:[%s3 + $0xa0] sm:$0xf]
      %v502 = vld [vmem:[%s3 + $0xa4] sm:$0xf]
      %v503 = vld [vmem:[%s3 + $0xa8] sm:$0xf]
      %v504 = vld [vmem:[%s3 + $0xac] sm:$0xf]
      %v505 = vld [vmem:[%s3 + $0xb0] sm:$0xf]
      %v506 = vld [vmem:[%s3 + $0xb4] sm:$0xf]
      %v507 = vld [vmem:[%s3 + $0xb8] sm:$0xf]
      %v508 = vld [vmem:[%s3 + $0xbc] sm:$0xf]
      %v509 = vld [vmem:[%s3 + $0xc0] sm:$0xf]
      %v510 = vld [vmem:[%s3 + $0xc4] sm:$0xf]
      %v511 = vld [vmem:[%s3 + $0xc8] sm:$0xf]
      %v512 = vld [vmem:[%s3 + $0xcc] sm:$0xf]
      %v513 = vld [vmem:[%s3 + $0xd0] sm:$0xf]
      %v514 = vld [vmem:[%s3 + $0xd4] sm:$0xf]
      %v515 = vld [vmem:[%s3 + $0xd8] sm:$0xf]
      %v516 = vld [vmem:[%s3 + $0xdc] sm:$0xf]
      %v517 = vld [vmem:[%s3 + $0xe0] sm:$0xf]
      %v518 = vld [vmem:[%s3 + $0xe4] sm:$0xf]
      %v519 = vld [vmem:[%s3 + $0xe8] sm:$0xf]
      %v520 = vld [vmem:[%s3 + $0xec] sm:$0xf]
      %v521 = vld [vmem:[%s3 + $0xf0] sm:$0xf]
      %v522 = vld [vmem:[%s3 + $0xf4] sm:$0xf]
      %v523 = vld [vmem:[%s3 + $0xf8] sm:$0xf]
      %v524 = vld [vmem:[%s3 + $0xfc] sm:$0xf]
      %v525 = vld [vmem:[%s3 + $0x100] sm:$0xf]
      %v526 = vld [vmem:[%s3 + $0x104] sm:$0xf]
      %v527 = vld [vmem:[%s3 + $0x108] sm:$0xf]
      %v528 = vld [vmem:[%s3 + $0x10c] sm:$0xf]
      %v529 = vld [vmem:[%s3 + $0x110] sm:$0xf]
      %v530 = vld [vmem:[%s3 + $0x114] sm:$0xf]
      %v531 = vld [vmem:[%s3 + $0x118] sm:$0xf]
      %v532 = vld [vmem:[%s3 + $0x11c] sm:$0xf]
      %v533 = vld [vmem:[%s3 + $0x120] sm:$0xf]
      %v534 = vld [vmem:[%s3 + $0x124] sm:$0xf]
      %v535 = vld [vmem:[%s3 + $0x128] sm:$0xf]
      %v536 = vld [vmem:[%s3 + $0x12c] sm:$0xf]
      %v537 = vld [vmem:[%s3 + $0x130] sm:$0xf]
      %v538 = vld [vmem:[%s3 + $0x134] sm:$0xf]
      %v539 = vld [vmem:[%s3 + $0x138] sm:$0xf]
      %v540 = vld [vmem:[%s3 + $0x13c] sm:$0xf]
      %v541 = vld [vmem:[%s3 + $0x140] sm:$0xf]
      %v542 = vld [vmem:[%s3 + $0x144] sm:$0xf]
      %v543 = vld [vmem:[%s3 + $0x148] sm:$0xf]
      %v544 = vld [vmem:[%s3 + $0x14c] sm:$0xf]
      %v545 = vld [vmem:[%s3 + $0x150] sm:$0xf]
      %v546 = vld [vmem:[%s3 + $0x154] sm:$0xf]
      %v547 = vld [vmem:[%s3 + $0x158] sm:$0xf]
      %v548 = vld [vmem:[%s3 + $0x15c] sm:$0xf]
      %v549 = vld [vmem:[%s3 + $0x160] sm:$0xf]
      %v550 = vld [vmem:[%s3 + $0x164] sm:$0xf]
      %v551 = vld [vmem:[%s3 + $0x168] sm:$0xf]
      %v552 = vld [vmem:[%s3 + $0x16c] sm:$0xf]
      %v553 = vld [vmem:[%s3 + $0x170] sm:$0xf]
      %v554 = vld [vmem:[%s3 + $0x174] sm:$0xf]
      %v555 = vld [vmem:[%s3 + $0x178] sm:$0xf]
      %v556 = vld [vmem:[%s3 + $0x17c] sm:$0xf]
      %v557 = vld [vmem:[%s3 + $0x180] sm:$0xf]
      %v558 = vld [vmem:[%s3 + $0x184] sm:$0xf]
      %v559 = vld [vmem:[%s3 + $0x188] sm:$0xf]
      %v560 = vld [vmem:[%s3 + $0x18c] sm:$0xf]
      %v561 = vld [vmem:[%s3 + $0x190] sm:$0xf]
      %v562 = vld [vmem:[%s3 + $0x194] sm:$0xf]
      %v563 = vld [vmem:[%s3 + $0x198] sm:$0xf]
      %v564 = vld [vmem:[%s3 + $0x19c] sm:$0xf]
      %v565 = vld [vmem:[%s3 + $0x1a0] sm:$0xf]
      %v566 = vld [vmem:[%s3 + $0x1a4] sm:$0xf]
      %v567 = vld [vmem:[%s3 + $0x1a8] sm:$0xf]
      %v568 = vld [vmem:[%s3 + $0x1ac] sm:$0xf]
      %v569 = vld [vmem:[%s3 + $0x1b0] sm:$0xf]
      %v570 = vld [vmem:[%s3 + $0x1b4] sm:$0xf]
      %v571 = vld [vmem:[%s3 + $0x1b8] sm:$0xf]
      %v572 = vld [vmem:[%s3 + $0x1bc] sm:$0xf]
      %v573 = vld [vmem:[%s3 + $0x1c0] sm:$0xf]
      %v574 = vld [vmem:[%s3 + $0x1c4] sm:$0xf]
      %v575 = vld [vmem:[%s3 + $0x1c8] sm:$0xf]
      %v576 = vld [vmem:[%s3 + $0x1cc] sm:$0xf]
      %v577 = vld [vmem:[%s3 + $0x1d0] sm:$0xf]
      %v578 = vld [vmem:[%s3 + $0x1d4] sm:$0xf]
      %v579 = vld [vmem:[%s3 + $0x1d8] sm:$0xf]
      %v580 = vld [vmem:[%s3 + $0x1dc] sm:$0xf]
      %v581 = vld [vmem:[%s3 + $0x1e0] sm:$0xf]
      %v582 = vld [vmem:[%s3 + $0x1e4] sm:$0xf]
      %v583 = vld [vmem:[%s3 + $0x1e8] sm:$0xf]
      %v584 = vld [vmem:[%s3 + $0x1ec] sm:$0xf]
      %v585 = vld [vmem:[%s3 + $0x1f0] sm:$0xf]
      %v586 = vld [vmem:[%s3 + $0x1f4] sm:$0xf]
      %v587 = vld [vmem:[%s3 + $0x1f8] sm:$0xf]
      %v588 = vld [vmem:[%s3 + $0x1fc] sm:$0xf]
      %v590 = vshrl.u32 %v308, 16
      %v592 = vshll.u32 %v308, 16
      %v594 = vrot.slane %v592, 1
      %v595 = vor.u32 %v590, %v594
      %v597 = vshrl.u32 %v309, 16
      %v599 = vshll.u32 %v309, 16
      %v601 = vrot.slane %v599, 1
      %v602 = vor.u32 %v597, %v601
      %v604 = vshrl.u32 %v315, 16
      %v606 = vshll.u32 %v315, 16
      %v608 = vrot.slane %v606, 1
      %v609 = vor.u32 %v604, %v608
      %v611 = vshrl.u32 %v316, 16
      %v613 = vshll.u32 %v316, 16
      %v615 = vrot.slane %v613, 1
      %v616 = vor.u32 %v611, %v615
      %v618 = vshrl.u32 %v322, 16
      %v620 = vshll.u32 %v322, 16
      %v622 = vrot.slane %v620, 1
      %v623 = vor.u32 %v618, %v622
      %v625 = vshrl.u32 %v323, 16
      %v627 = vshll.u32 %v323, 16
      %v629 = vrot.slane %v627, 1
      %v630 = vor.u32 %v625, %v629
      %v632 = vshrl.u32 %v329, 16
      %v634 = vshll.u32 %v329, 16
      %v636 = vrot.slane %v634, 1
      %v637 = vor.u32 %v632, %v636
      %v639 = vshrl.u32 %v330, 16
      %v641 = vshll.u32 %v330, 16
      %v643 = vrot.slane %v641, 1
      %v644 = vor.u32 %v639, %v643
      %v781 = vunpack.c.l.b16 %v461
      %v782 = vunpack.c.l.b16 %v462
      %v783 = vunpack.c.l.b16 %v463
      %v784 = vunpack.c.l.b16 %v464
      %v785 = vunpack.c.l.b16 %v465
      %v786 = vunpack.c.l.b16 %v466
      %v787 = vunpack.c.l.b16 %v467
      %v788 = vunpack.c.l.b16 %v468
      %v789 = vunpack.c.l.b16 %v469
      %v790 = vunpack.c.l.b16 %v470
      %v791 = vunpack.c.l.b16 %v471
      %v792 = vunpack.c.l.b16 %v472
      %v793 = vunpack.c.l.b16 %v473
      %v794 = vunpack.c.l.b16 %v474
      %v795 = vunpack.c.l.b16 %v475
      %v796 = vunpack.c.l.b16 %v476
      %v797 = vunpack.c.l.b16 %v477
      %v798 = vunpack.c.l.b16 %v478
      %v799 = vunpack.c.l.b16 %v479
      %v800 = vunpack.c.l.b16 %v480
      %v801 = vunpack.c.l.b16 %v481
      %v802 = vunpack.c.l.b16 %v482
      %v803 = vunpack.c.l.b16 %v483
      %v804 = vunpack.c.l.b16 %v484
      %v805 = vunpack.c.l.b16 %v485
      %v806 = vunpack.c.l.b16 %v486
      %v807 = vunpack.c.l.b16 %v487
      %v808 = vunpack.c.l.b16 %v488
      %v809 = vunpack.c.l.b16 %v489
      %v810 = vunpack.c.l.b16 %v490
      %v811 = vunpack.c.l.b16 %v491
      %v812 = vunpack.c.l.b16 %v492
      %v813 = vunpack.c.l.b16 %v493
      %v814 = vunpack.c.l.b16 %v494
      %v815 = vunpack.c.l.b16 %v495
      %v816 = vunpack.c.l.b16 %v496
      %v817 = vunpack.c.l.b16 %v497
      %v818 = vunpack.c.l.b16 %v498
      %v819 = vunpack.c.l.b16 %v499
      %v820 = vunpack.c.l.b16 %v500
      %v821 = vunpack.c.l.b16 %v501
      %v822 = vunpack.c.l.b16 %v502
      %v823 = vunpack.c.l.b16 %v503
      %v824 = vunpack.c.l.b16 %v504
      %v825 = vunpack.c.l.b16 %v505
      %v826 = vunpack.c.l.b16 %v506
      %v827 = vunpack.c.l.b16 %v507
      %v828 = vunpack.c.l.b16 %v508
      %v829 = vunpack.c.l.b16 %v509
      %v830 = vunpack.c.l.b16 %v510
      %v831 = vunpack.c.l.b16 %v511
      %v832 = vunpack.c.l.b16 %v512
      %v833 = vunpack.c.l.b16 %v513
      %v834 = vunpack.c.l.b16 %v514
      %v835 = vunpack.c.l.b16 %v515
      %v836 = vunpack.c.l.b16 %v516
      %v837 = vunpack.c.l.b16 %v517
      %v838 = vunpack.c.l.b16 %v518
      %v839 = vunpack.c.l.b16 %v519
      %v840 = vunpack.c.l.b16 %v520
      %v841 = vunpack.c.l.b16 %v521
      %v842 = vunpack.c.l.b16 %v522
      %v843 = vunpack.c.l.b16 %v523
      %v844 = vunpack.c.l.b16 %v524
      %v845 = vunpack.c.l.b16 %v525
      %v846 = vunpack.c.l.b16 %v526
      %v847 = vunpack.c.l.b16 %v527
      %v848 = vunpack.c.l.b16 %v528
      %v849 = vunpack.c.l.b16 %v529
      %v850 = vunpack.c.l.b16 %v530
      %v851 = vunpack.c.l.b16 %v531
      %v852 = vunpack.c.l.b16 %v532
      %v853 = vunpack.c.l.b16 %v533
      %v854 = vunpack.c.l.b16 %v534
      %v855 = vunpack.c.l.b16 %v535
      %v856 = vunpack.c.l.b16 %v536
      %v857 = vunpack.c.l.b16 %v537
      %v858 = vunpack.c.l.b16 %v538
      %v859 = vunpack.c.l.b16 %v539
      %v860 = vunpack.c.l.b16 %v540
      %v861 = vunpack.c.l.b16 %v541
      %v862 = vunpack.c.l.b16 %v542
      %v863 = vunpack.c.l.b16 %v543
      %v864 = vunpack.c.l.b16 %v544
      %v865 = vunpack.c.l.b16 %v545
      %v866 = vunpack.c.l.b16 %v546
      %v867 = vunpack.c.l.b16 %v547
      %v868 = vunpack.c.l.b16 %v548
      %v869 = vunpack.c.l.b16 %v549
      %v870 = vunpack.c.l.b16 %v550
      %v871 = vunpack.c.l.b16 %v551
      %v872 = vunpack.c.l.b16 %v552
      %v873 = vunpack.c.l.b16 %v553
      %v874 = vunpack.c.l.b16 %v554
      %v875 = vunpack.c.l.b16 %v555
      %v876 = vunpack.c.l.b16 %v556
      %v877 = vunpack.c.l.b16 %v557
      %v878 = vunpack.c.l.b16 %v558
      %v879 = vunpack.c.l.b16 %v559
      %v880 = vunpack.c.l.b16 %v560
      %v881 = vunpack.c.l.b16 %v561
      %v882 = vunpack.c.l.b16 %v562
      %v883 = vunpack.c.l.b16 %v563
      %v884 = vunpack.c.l.b16 %v564
      %v885 = vunpack.c.l.b16 %v565
      %v886 = vunpack.c.l.b16 %v566
      %v887 = vunpack.c.l.b16 %v567
      %v888 = vunpack.c.l.b16 %v568
      %v889 = vunpack.c.l.b16 %v569
      %v890 = vunpack.c.l.b16 %v570
      %v891 = vunpack.c.l.b16 %v571
      %v892 = vunpack.c.l.b16 %v572
      %v893 = vunpack.c.l.b16 %v573
      %v894 = vunpack.c.l.b16 %v574
      %v895 = vunpack.c.l.b16 %v575
      %v896 = vunpack.c.l.b16 %v576
      %v897 = vunpack.c.l.b16 %v577
      %v898 = vunpack.c.l.b16 %v578
      %v899 = vunpack.c.l.b16 %v579
      %v900 = vunpack.c.l.b16 %v580
      %v901 = vunpack.c.l.b16 %v581
      %v902 = vunpack.c.l.b16 %v582
      %v903 = vunpack.c.l.b16 %v583
      %v904 = vunpack.c.l.b16 %v584
      %v905 = vunpack.c.l.b16 %v585
      %v906 = vunpack.c.l.b16 %v586
      %v907 = vunpack.c.l.b16 %v587
      %v908 = vunpack.c.l.b16 %v588
      %v909 = vpack.c.b16 %v782, %v781
      %v910 = vpack.c.b16 %v784, %v783
      %v911 = vpack.c.b16 %v786, %v785
      %v912 = vpack.c.b16 %v788, %v787
      %v913 = vpack.c.b16 %v790, %v789
      %v914 = vpack.c.b16 %v792, %v791
      %v915 = vpack.c.b16 %v794, %v793
      %v916 = vpack.c.b16 %v796, %v795
      %v917 = vpack.c.b16 %v798, %v797
      %v918 = vpack.c.b16 %v800, %v799
      %v919 = vpack.c.b16 %v802, %v801
      %v920 = vpack.c.b16 %v804, %v803
      %v921 = vpack.c.b16 %v806, %v805
      %v922 = vpack.c.b16 %v808, %v807
      %v923 = vpack.c.b16 %v810, %v809
      %v924 = vpack.c.b16 %v812, %v811
      %v925 = vpack.c.b16 %v814, %v813
      %v926 = vpack.c.b16 %v816, %v815
      %v927 = vpack.c.b16 %v818, %v817
      %v928 = vpack.c.b16 %v820, %v819
      %v929 = vpack.c.b16 %v822, %v821
      %v930 = vpack.c.b16 %v824, %v823
      %v931 = vpack.c.b16 %v826, %v825
      %v932 = vpack.c.b16 %v828, %v827
      %v933 = vpack.c.b16 %v830, %v829
      %v934 = vpack.c.b16 %v832, %v831
      %v935 = vpack.c.b16 %v834, %v833
      %v936 = vpack.c.b16 %v836, %v835
      %v937 = vpack.c.b16 %v838, %v837
      %v938 = vpack.c.b16 %v840, %v839
      %v939 = vpack.c.b16 %v842, %v841
      %v940 = vpack.c.b16 %v844, %v843
      %v941 = vpack.c.b16 %v846, %v845
      %v942 = vpack.c.b16 %v848, %v847
      %v943 = vpack.c.b16 %v850, %v849
      %v944 = vpack.c.b16 %v852, %v851
      %v945 = vpack.c.b16 %v854, %v853
      %v946 = vpack.c.b16 %v856, %v855
      %v947 = vpack.c.b16 %v858, %v857
      %v948 = vpack.c.b16 %v860, %v859
      %v949 = vpack.c.b16 %v862, %v861
      %v950 = vpack.c.b16 %v864, %v863
      %v951 = vpack.c.b16 %v866, %v865
      %v952 = vpack.c.b16 %v868, %v867
      %v953 = vpack.c.b16 %v870, %v869
      %v954 = vpack.c.b16 %v872, %v871
      %v955 = vpack.c.b16 %v874, %v873
      %v956 = vpack.c.b16 %v876, %v875
      %v957 = vpack.c.b16 %v878, %v877
      %v958 = vpack.c.b16 %v880, %v879
      %v959 = vpack.c.b16 %v882, %v881
      %v960 = vpack.c.b16 %v884, %v883
      %v961 = vpack.c.b16 %v886, %v885
      %v962 = vpack.c.b16 %v888, %v887
      %v963 = vpack.c.b16 %v890, %v889
      %v964 = vpack.c.b16 %v892, %v891
      %v965 = vpack.c.b16 %v894, %v893
      %v966 = vpack.c.b16 %v896, %v895
      %v967 = vpack.c.b16 %v898, %v897
      %v968 = vpack.c.b16 %v900, %v899
      %v969 = vpack.c.b16 %v902, %v901
      %v970 = vpack.c.b16 %v904, %v903
      %v971 = vpack.c.b16 %v906, %v905
      %v972 = vpack.c.b16 %v908, %v907
      %1037 = vmatprep.subr.bf16.mxu0 0
      %1038 = vmatpush1.bf16.msra.mxu0 %v909
      %1039 = vmatprep.subr.bf16.mxu0 0
      %1040 = vmatpush1.bf16.msra.mxu0 %v910
      %1041 = vmatprep.subr.bf16.mxu0 0
      %1042 = vmatpush1.bf16.msra.mxu0 %v911
      %1043 = vmatprep.subr.bf16.mxu0 0
      %1044 = vmatpush1.bf16.msra.mxu0 %v912
      %1045 = vmatprep.subr.bf16.mxu0 0
      %1046 = vmatpush1.bf16.msra.mxu0 %v913
      %1047 = vmatprep.subr.bf16.mxu0 0
      %1048 = vmatpush1.bf16.msra.mxu0 %v914
      %1049 = vmatprep.subr.bf16.mxu0 0
      %1050 = vmatpush1.bf16.msra.mxu0 %v915
      %1051 = vmatprep.subr.bf16.mxu0 0
      %1052 = vmatpush1.bf16.msra.mxu0 %v916
      %1053 = vmatprep.subr.bf16.mxu0 0
      %1054 = vmatpush1.bf16.msra.mxu0 %v917
      %1055 = vmatprep.subr.bf16.mxu0 0
      %1056 = vmatpush1.bf16.msra.mxu0 %v918
      %1057 = vmatprep.subr.bf16.mxu0 0
      %1058 = vmatpush1.bf16.msra.mxu0 %v919
      %1059 = vmatprep.subr.bf16.mxu0 0
      %1060 = vmatpush1.bf16.msra.mxu0 %v920
      %1061 = vmatprep.subr.bf16.mxu0 0
      %1062 = vmatpush1.bf16.msra.mxu0 %v921
      %1063 = vmatprep.subr.bf16.mxu0 0
      %1064 = vmatpush1.bf16.msra.mxu0 %v922
      %1065 = vmatprep.subr.bf16.mxu0 0
      %1066 = vmatpush1.bf16.msra.mxu0 %v923
      %1067 = vmatprep.subr.bf16.mxu0 0
      %1068 = vmatpush1.bf16.msra.mxu0 %v924
      %1069 = vmatprep.mubr.bf16.mxu0 %v602
      %1070 = vmatmul.mubr.bf16.gmra.mrb[0].mxu0 %v595
      %v1071 = vpop.f32.mrb[0].mxu0
      %v1072 = vadd.f32 0.0, %v1071
      %v1073 = vpop.f32.mrb[0].mxu0
      %v1074 = vpop.f32.mrb[0].mxu0
      %v1075 = vpop.f32.mrb[0].mxu0
      %1076 = vdwg.mxu0
      %1077 = vmatprep.subr.bf16.mxu0 0
      %1078 = vmatpush1.bf16.msra.mxu0 %v925
      %1079 = vmatprep.subr.bf16.mxu0 0
      %1080 = vmatpush1.bf16.msra.mxu0 %v926
      %1081 = vmatprep.subr.bf16.mxu0 0
      %1082 = vmatpush1.bf16.msra.mxu0 %v927
      %1083 = vmatprep.subr.bf16.mxu0 0
      %1084 = vmatpush1.bf16.msra.mxu0 %v928
      %1085 = vmatprep.subr.bf16.mxu0 0
      %1086 = vmatpush1.bf16.msra.mxu0 %v929
      %1087 = vmatprep.subr.bf16.mxu0 0
      %1088 = vmatpush1.bf16.msra.mxu0 %v930
      %1089 = vmatprep.subr.bf16.mxu0 0
      %1090 = vmatpush1.bf16.msra.mxu0 %v931
      %1091 = vmatprep.subr.bf16.mxu0 0
      %1092 = vmatpush1.bf16.msra.mxu0 %v932
      %1093 = vmatprep.subr.bf16.mxu0 0
      %1094 = vmatpush1.bf16.msra.mxu0 %v933
      %1095 = vmatprep.subr.bf16.mxu0 0
      %1096 = vmatpush1.bf16.msra.mxu0 %v934
      %1097 = vmatprep.subr.bf16.mxu0 0
      %1098 = vmatpush1.bf16.msra.mxu0 %v935
      %1099 = vmatprep.subr.bf16.mxu0 0
      %1100 = vmatpush1.bf16.msra.mxu0 %v936
      %1101 = vmatprep.subr.bf16.mxu0 0
      %1102 = vmatpush1.bf16.msra.mxu0 %v937
      %1103 = vmatprep.subr.bf16.mxu0 0
      %1104 = vmatpush1.bf16.msra.mxu0 %v938
      %1105 = vmatprep.subr.bf16.mxu0 0
      %1106 = vmatpush1.bf16.msra.mxu0 %v939
      %1107 = vmatprep.subr.bf16.mxu0 0
      %1108 = vmatpush1.bf16.msra.mxu0 %v940
      %1109 = vmatprep.mubr.bf16.mxu0 %v616
      %1110 = vmatmul.mubr.bf16.gmra.mrb[0].mxu0 %v609
      %v1111 = vpop.f32.mrb[0].mxu0
      %v1112 = vadd.f32 %v1072, %v1111
      %v1113 = vpop.f32.mrb[0].mxu0
      %v1114 = vpop.f32.mrb[0].mxu0
      %v1115 = vpop.f32.mrb[0].mxu0
      %1116 = vdwg.mxu0
      %1117 = vmatprep.subr.bf16.mxu0 0
      %1118 = vmatpush1.bf16.msra.mxu0 %v941
      %1119 = vmatprep.subr.bf16.mxu0 0
      %1120 = vmatpush1.bf16.msra.mxu0 %v942
      %1121 = vmatprep.subr.bf16.mxu0 0
      %1122 = vmatpush1.bf16.msra.mxu0 %v943
      %1123 = vmatprep.subr.bf16.mxu0 0
      %1124 = vmatpush1.bf16.msra.mxu0 %v944
      %1125 = vmatprep.subr.bf16.mxu0 0
      %1126 = vmatpush1.bf16.msra.mxu0 %v945
      %1127 = vmatprep.subr.bf16.mxu0 0
      %1128 = vmatpush1.bf16.msra.mxu0 %v946
      %1129 = vmatprep.subr.bf16.mxu0 0
      %1130 = vmatpush1.bf16.msra.mxu0 %v947
      %1131 = vmatprep.subr.bf16.mxu0 0
      %1132 = vmatpush1.bf16.msra.mxu0 %v948
      %1133 = vmatprep.subr.bf16.mxu0 0
      %1134 = vmatpush1.bf16.msra.mxu0 %v949
      %1135 = vmatprep.subr.bf16.mxu0 0
      %1136 = vmatpush1.bf16.msra.mxu0 %v950
      %1137 = vmatprep.subr.bf16.mxu0 0
      %1138 = vmatpush1.bf16.msra.mxu0 %v951
      %1139 = vmatprep.subr.bf16.mxu0 0
      %1140 = vmatpush1.bf16.msra.mxu0 %v952
      %1141 = vmatprep.subr.bf16.mxu0 0
      %1142 = vmatpush1.bf16.msra.mxu0 %v953
      %1143 = vmatprep.subr.bf16.mxu0 0
      %1144 = vmatpush1.bf16.msra.mxu0 %v954
      %1145 = vmatprep.subr.bf16.mxu0 0
      %1146 = vmatpush1.bf16.msra.mxu0 %v955
      %1147 = vmatprep.subr.bf16.mxu0 0
      %1148 = vmatpush1.bf16.msra.mxu0 %v956
      %1149 = vmatprep.mubr.bf16.mxu0 %v630
      %1150 = vmatmul.mubr.bf16.gmra.mrb[0].mxu0 %v623
      %v1151 = vpop.f32.mrb[0].mxu0
      %v1152 = vadd.f32 %v1112, %v1151
      %v1153 = vpop.f32.mrb[0].mxu0
      %v1154 = vpop.f32.mrb[0].mxu0
      %v1155 = vpop.f32.mrb[0].mxu0
      %1156 = vdwg.mxu0
      %1157 = vmatprep.subr.bf16.mxu0 0
      %1158 = vmatpush1.bf16.msra.mxu0 %v957
      %1159 = vmatprep.subr.bf16.mxu0 0
      %1160 = vmatpush1.bf16.msra.mxu0 %v958
      %1161 = vmatprep.subr.bf16.mxu0 0
      %1162 = vmatpush1.bf16.msra.mxu0 %v959
      %1163 = vmatprep.subr.bf16.mxu0 0
      %1164 = vmatpush1.bf16.msra.mxu0 %v960
      %1165 = vmatprep.subr.bf16.mxu0 0
      %1166 = vmatpush1.bf16.msra.mxu0 %v961
      %1167 = vmatprep.subr.bf16.mxu0 0
      %1168 = vmatpush1.bf16.msra.mxu0 %v962
      %1169 = vmatprep.subr.bf16.mxu0 0
      %1170 = vmatpush1.bf16.msra.mxu0 %v963
      %1171 = vmatprep.subr.bf16.mxu0 0
      %1172 = vmatpush1.bf16.msra.mxu0 %v964
      %1173 = vmatprep.subr.bf16.mxu0 0
      %1174 = vmatpush1.bf16.msra.mxu0 %v965
      %1175 = vmatprep.subr.bf16.mxu0 0
      %1176 = vmatpush1.bf16.msra.mxu0 %v966
      %1177 = vmatprep.subr.bf16.mxu0 0
      %1178 = vmatpush1.bf16.msra.mxu0 %v967
      %1179 = vmatprep.subr.bf16.mxu0 0
      %1180 = vmatpush1.bf16.msra.mxu0 %v968
      %1181 = vmatprep.subr.bf16.mxu0 0
      %1182 = vmatpush1.bf16.msra.mxu0 %v969
      %1183 = vmatprep.subr.bf16.mxu0 0
      %1184 = vmatpush1.bf16.msra.mxu0 %v970
      %1185 = vmatprep.subr.bf16.mxu0 0
      %1186 = vmatpush1.bf16.msra.mxu0 %v971
      %1187 = vmatprep.subr.bf16.mxu0 0
      %1188 = vmatpush1.bf16.msra.mxu0 %v972
      %1189 = vmatprep.mubr.bf16.mxu0 %v644
      %1190 = vmatmul.mubr.bf16.gmra.mrb[0].mxu0 %v637
      %v1191 = vpop.f32.mrb[0].mxu0
      %v1192 = vadd.f32 %v1152, %v1191
      %v1193 = vpop.f32.mrb[0].mxu0
      %v1194 = vpop.f32.mrb[0].mxu0
      %v1195 = vpop.f32.mrb[0].mxu0
      %1196 = vdwg.mxu0
      %v1325 = vunpack.c.l.b16 %v333
      %v1326 = vunpack.c.l.b16 %v334
      %v1327 = vunpack.c.l.b16 %v335
      %v1328 = vunpack.c.l.b16 %v336
      %v1329 = vunpack.c.l.b16 %v337
      %v1330 = vunpack.c.l.b16 %v338
      %v1331 = vunpack.c.l.b16 %v339
      %v1332 = vunpack.c.l.b16 %v340
      %v1333 = vunpack.c.l.b16 %v341
      %v1334 = vunpack.c.l.b16 %v342
      %v1335 = vunpack.c.l.b16 %v343
      %v1336 = vunpack.c.l.b16 %v344
      %v1337 = vunpack.c.l.b16 %v345
      %v1338 = vunpack.c.l.b16 %v346
      %v1339 = vunpack.c.l.b16 %v347
      %v1340 = vunpack.c.l.b16 %v348
      %v1341 = vunpack.c.l.b16 %v349
      %v1342 = vunpack.c.l.b16 %v350
      %v1343 = vunpack.c.l.b16 %v351
      %v1344 = vunpack.c.l.b16 %v352
      %v1345 = vunpack.c.l.b16 %v353
      %v1346 = vunpack.c.l.b16 %v354
      %v1347 = vunpack.c.l.b16 %v355
      %v1348 = vunpack.c.l.b16 %v356
      %v1349 = vunpack.c.l.b16 %v357
      %v1350 = vunpack.c.l.b16 %v358
      %v1351 = vunpack.c.l.b16 %v359
      %v1352 = vunpack.c.l.b16 %v360
      %v1353 = vunpack.c.l.b16 %v361
      %v1354 = vunpack.c.l.b16 %v362
      %v1355 = vunpack.c.l.b16 %v363
      %v1356 = vunpack.c.l.b16 %v364
      %v1357 = vunpack.c.l.b16 %v365
      %v1358 = vunpack.c.l.b16 %v366
      %v1359 = vunpack.c.l.b16 %v367
      %v1360 = vunpack.c.l.b16 %v368
      %v1361 = vunpack.c.l.b16 %v369
      %v1362 = vunpack.c.l.b16 %v370
      %v1363 = vunpack.c.l.b16 %v371
      %v1364 = vunpack.c.l.b16 %v372
      %v1365 = vunpack.c.l.b16 %v373
      %v1366 = vunpack.c.l.b16 %v374
      %v1367 = vunpack.c.l.b16 %v375
      %v1368 = vunpack.c.l.b16 %v376
      %v1369 = vunpack.c.l.b16 %v377
      %v1370 = vunpack.c.l.b16 %v378
      %v1371 = vunpack.c.l.b16 %v379
      %v1372 = vunpack.c.l.b16 %v380
      %v1373 = vunpack.c.l.b16 %v381
      %v1374 = vunpack.c.l.b16 %v382
      %v1375 = vunpack.c.l.b16 %v383
      %v1376 = vunpack.c.l.b16 %v384
      %v1377 = vunpack.c.l.b16 %v385
      %v1378 = vunpack.c.l.b16 %v386
      %v1379 = vunpack.c.l.b16 %v387
      %v1380 = vunpack.c.l.b16 %v388
      %v1381 = vunpack.c.l.b16 %v389
      %v1382 = vunpack.c.l.b16 %v390
      %v1383 = vunpack.c.l.b16 %v391
      %v1384 = vunpack.c.l.b16 %v392
      %v1385 = vunpack.c.l.b16 %v393
      %v1386 = vunpack.c.l.b16 %v394
      %v1387 = vunpack.c.l.b16 %v395
      %v1388 = vunpack.c.l.b16 %v396
      %v1389 = vunpack.c.l.b16 %v397
      %v1390 = vunpack.c.l.b16 %v398
      %v1391 = vunpack.c.l.b16 %v399
      %v1392 = vunpack.c.l.b16 %v400
      %v1393 = vunpack.c.l.b16 %v401
      %v1394 = vunpack.c.l.b16 %v402
      %v1395 = vunpack.c.l.b16 %v403
      %v1396 = vunpack.c.l.b16 %v404
      %v1397 = vunpack.c.l.b16 %v405
      %v1398 = vunpack.c.l.b16 %v406
      %v1399 = vunpack.c.l.b16 %v407
      %v1400 = vunpack.c.l.b16 %v408
      %v1401 = vunpack.c.l.b16 %v409
      %v1402 = vunpack.c.l.b16 %v410
      %v1403 = vunpack.c.l.b16 %v411
      %v1404 = vunpack.c.l.b16 %v412
      %v1405 = vunpack.c.l.b16 %v413
      %v1406 = vunpack.c.l.b16 %v414
      %v1407 = vunpack.c.l.b16 %v415
      %v1408 = vunpack.c.l.b16 %v416
      %v1409 = vunpack.c.l.b16 %v417
      %v1410 = vunpack.c.l.b16 %v418
      %v1411 = vunpack.c.l.b16 %v419
      %v1412 = vunpack.c.l.b16 %v420
      %v1413 = vunpack.c.l.b16 %v421
      %v1414 = vunpack.c.l.b16 %v422
      %v1415 = vunpack.c.l.b16 %v423
      %v1416 = vunpack.c.l.b16 %v424
      %v1417 = vunpack.c.l.b16 %v425
      %v1418 = vunpack.c.l.b16 %v426
      %v1419 = vunpack.c.l.b16 %v427
      %v1420 = vunpack.c.l.b16 %v428
      %v1421 = vunpack.c.l.b16 %v429
      %v1422 = vunpack.c.l.b16 %v430
      %v1423 = vunpack.c.l.b16 %v431
      %v1424 = vunpack.c.l.b16 %v432
      %v1425 = vunpack.c.l.b16 %v433
      %v1426 = vunpack.c.l.b16 %v434
      %v1427 = vunpack.c.l.b16 %v435
      %v1428 = vunpack.c.l.b16 %v436
      %v1429 = vunpack.c.l.b16 %v437
      %v1430 = vunpack.c.l.b16 %v438
      %v1431 = vunpack.c.l.b16 %v439
      %v1432 = vunpack.c.l.b16 %v440
      %v1433 = vunpack.c.l.b16 %v441
      %v1434 = vunpack.c.l.b16 %v442
      %v1435 = vunpack.c.l.b16 %v443
      %v1436 = vunpack.c.l.b16 %v444
      %v1437 = vunpack.c.l.b16 %v445
      %v1438 = vunpack.c.l.b16 %v446
      %v1439 = vunpack.c.l.b16 %v447
      %v1440 = vunpack.c.l.b16 %v448
      %v1441 = vunpack.c.l.b16 %v449
      %v1442 = vunpack.c.l.b16 %v450
      %v1443 = vunpack.c.l.b16 %v451
      %v1444 = vunpack.c.l.b16 %v452
      %v1445 = vunpack.c.l.b16 %v453
      %v1446 = vunpack.c.l.b16 %v454
      %v1447 = vunpack.c.l.b16 %v455
      %v1448 = vunpack.c.l.b16 %v456
      %v1449 = vunpack.c.l.b16 %v457
      %v1450 = vunpack.c.l.b16 %v458
      %v1451 = vunpack.c.l.b16 %v459
      %v1452 = vunpack.c.l.b16 %v460
      %v1453 = vpack.c.b16 %v1326, %v1325
      %v1454 = vpack.c.b16 %v1328, %v1327
      %v1455 = vpack.c.b16 %v1330, %v1329
      %v1456 = vpack.c.b16 %v1332, %v1331
      %v1457 = vpack.c.b16 %v1334, %v1333
      %v1458 = vpack.c.b16 %v1336, %v1335
      %v1459 = vpack.c.b16 %v1338, %v1337
      %v1460 = vpack.c.b16 %v1340, %v1339
      %v1461 = vpack.c.b16 %v1342, %v1341
      %v1462 = vpack.c.b16 %v1344, %v1343
      %v1463 = vpack.c.b16 %v1346, %v1345
      %v1464 = vpack.c.b16 %v1348, %v1347
      %v1465 = vpack.c.b16 %v1350, %v1349
      %v1466 = vpack.c.b16 %v1352, %v1351
      %v1467 = vpack.c.b16 %v1354, %v1353
      %v1468 = vpack.c.b16 %v1356, %v1355
      %v1469 = vpack.c.b16 %v1358, %v1357
      %v1470 = vpack.c.b16 %v1360, %v1359
      %v1471 = vpack.c.b16 %v1362, %v1361
      %v1472 = vpack.c.b16 %v1364, %v1363
      %v1473 = vpack.c.b16 %v1366, %v1365
      %v1474 = vpack.c.b16 %v1368, %v1367
      %v1475 = vpack.c.b16 %v1370, %v1369
      %v1476 = vpack.c.b16 %v1372, %v1371
      %v1477 = vpack.c.b16 %v1374, %v1373
      %v1478 = vpack.c.b16 %v1376, %v1375
      %v1479 = vpack.c.b16 %v1378, %v1377
      %v1480 = vpack.c.b16 %v1380, %v1379
      %v1481 = vpack.c.b16 %v1382, %v1381
      %v1482 = vpack.c.b16 %v1384, %v1383
      %v1483 = vpack.c.b16 %v1386, %v1385
      %v1484 = vpack.c.b16 %v1388, %v1387
      %v1485 = vpack.c.b16 %v1390, %v1389
      %v1486 = vpack.c.b16 %v1392, %v1391
      %v1487 = vpack.c.b16 %v1394, %v1393
      %v1488 = vpack.c.b16 %v1396, %v1395
      %v1489 = vpack.c.b16 %v1398, %v1397
      %v1490 = vpack.c.b16 %v1400, %v1399
      %v1491 = vpack.c.b16 %v1402, %v1401
      %v1492 = vpack.c.b16 %v1404, %v1403
      %v1493 = vpack.c.b16 %v1406, %v1405
      %v1494 = vpack.c.b16 %v1408, %v1407
      %v1495 = vpack.c.b16 %v1410, %v1409
      %v1496 = vpack.c.b16 %v1412, %v1411
      %v1497 = vpack.c.b16 %v1414, %v1413
      %v1498 = vpack.c.b16 %v1416, %v1415
      %v1499 = vpack.c.b16 %v1418, %v1417
      %v1500 = vpack.c.b16 %v1420, %v1419
      %v1501 = vpack.c.b16 %v1422, %v1421
      %v1502 = vpack.c.b16 %v1424, %v1423
      %v1503 = vpack.c.b16 %v1426, %v1425
      %v1504 = vpack.c.b16 %v1428, %v1427
      %v1505 = vpack.c.b16 %v1430, %v1429
      %v1506 = vpack.c.b16 %v1432, %v1431
      %v1507 = vpack.c.b16 %v1434, %v1433
      %v1508 = vpack.c.b16 %v1436, %v1435
      %v1509 = vpack.c.b16 %v1438, %v1437
      %v1510 = vpack.c.b16 %v1440, %v1439
      %v1511 = vpack.c.b16 %v1442, %v1441
      %v1512 = vpack.c.b16 %v1444, %v1443
      %v1513 = vpack.c.b16 %v1446, %v1445
      %v1514 = vpack.c.b16 %v1448, %v1447
      %v1515 = vpack.c.b16 %v1450, %v1449
      %v1516 = vpack.c.b16 %v1452, %v1451
      %1581 = vmatprep.subr.bf16.mxu0 0
      %1582 = vmatpush1.bf16.msra.mxu0 %v1453
      %1583 = vmatprep.subr.bf16.mxu0 0
      %1584 = vmatpush1.bf16.msra.mxu0 %v1454
      %1585 = vmatprep.subr.bf16.mxu0 0
      %1586 = vmatpush1.bf16.msra.mxu0 %v1455
      %1587 = vmatprep.subr.bf16.mxu0 0
      %1588 = vmatpush1.bf16.msra.mxu0 %v1456
      %1589 = vmatprep.subr.bf16.mxu0 0
      %1590 = vmatpush1.bf16.msra.mxu0 %v1457
      %1591 = vmatprep.subr.bf16.mxu0 0
      %1592 = vmatpush1.bf16.msra.mxu0 %v1458
      %1593 = vmatprep.subr.bf16.mxu0 0
      %1594 = vmatpush1.bf16.msra.mxu0 %v1459
      %1595 = vmatprep.subr.bf16.mxu0 0
      %1596 = vmatpush1.bf16.msra.mxu0 %v1460
      %1597 = vmatprep.subr.bf16.mxu0 0
      %1598 = vmatpush1.bf16.msra.mxu0 %v1461
      %1599 = vmatprep.subr.bf16.mxu0 0
      %1600 = vmatpush1.bf16.msra.mxu0 %v1462
      %1601 = vmatprep.subr.bf16.mxu0 0
      %1602 = vmatpush1.bf16.msra.mxu0 %v1463
      %1603 = vmatprep.subr.bf16.mxu0 0
      %1604 = vmatpush1.bf16.msra.mxu0 %v1464
      %1605 = vmatprep.subr.bf16.mxu0 0
      %1606 = vmatpush1.bf16.msra.mxu0 %v1465
      %1607 = vmatprep.subr.bf16.mxu0 0
      %1608 = vmatpush1.bf16.msra.mxu0 %v1466
      %1609 = vmatprep.subr.bf16.mxu0 0
      %1610 = vmatpush1.bf16.msra.mxu0 %v1467
      %1611 = vmatprep.subr.bf16.mxu0 0
      %1612 = vmatpush1.bf16.msra.mxu0 %v1468
      %1613 = vmatprep.mubr.bf16.mxu0 %v309
      %1614 = vmatmul.mubr.bf16.gmra.mrb[0].mxu0 %v308
      %v1615 = vpop.f32.mrb[0].mxu0
      %v1616 = vadd.f32 %v1192, %v1615
      %v1617 = vpop.f32.mrb[0].mxu0
      %v1618 = vpop.f32.mrb[0].mxu0
      %v1619 = vpop.f32.mrb[0].mxu0
      %1620 = vdwg.mxu0
      %1621 = vmatprep.subr.bf16.mxu0 0
      %1622 = vmatpush1.bf16.msra.mxu0 %v1469
      %1623 = vmatprep.subr.bf16.mxu0 0
      %1624 = vmatpush1.bf16.msra.mxu0 %v1470
      %1625 = vmatprep.subr.bf16.mxu0 0
      %1626 = vmatpush1.bf16.msra.mxu0 %v1471
      %1627 = vmatprep.subr.bf16.mxu0 0
      %1628 = vmatpush1.bf16.msra.mxu0 %v1472
      %1629 = vmatprep.subr.bf16.mxu0 0
      %1630 = vmatpush1.bf16.msra.mxu0 %v1473
      %1631 = vmatprep.subr.bf16.mxu0 0
      %1632 = vmatpush1.bf16.msra.mxu0 %v1474
      %1633 = vmatprep.subr.bf16.mxu0 0
      %1634 = vmatpush1.bf16.msra.mxu0 %v1475
      %1635 = vmatprep.subr.bf16.mxu0 0
      %1636 = vmatpush1.bf16.msra.mxu0 %v1476
      %1637 = vmatprep.subr.bf16.mxu0 0
      %1638 = vmatpush1.bf16.msra.mxu0 %v1477
      %1639 = vmatprep.subr.bf16.mxu0 0
      %1640 = vmatpush1.bf16.msra.mxu0 %v1478
      %1641 = vmatprep.subr.bf16.mxu0 0
      %1642 = vmatpush1.bf16.msra.mxu0 %v1479
      %1643 = vmatprep.subr.bf16.mxu0 0
      %1644 = vmatpush1.bf16.msra.mxu0 %v1480
      %1645 = vmatprep.subr.bf16.mxu0 0
      %1646 = vmatpush1.bf16.msra.mxu0 %v1481
      %1647 = vmatprep.subr.bf16.mxu0 0
      %1648 = vmatpush1.bf16.msra.mxu0 %v1482
      %1649 = vmatprep.subr.bf16.mxu0 0
      %1650 = vmatpush1.bf16.msra.mxu0 %v1483
      %1651 = vmatprep.subr.bf16.mxu0 0
      %1652 = vmatpush1.bf16.msra.mxu0 %v1484
      %1653 = vmatprep.mubr.bf16.mxu0 %v316
      %1654 = vmatmul.mubr.bf16.gmra.mrb[0].mxu0 %v315
      %v1655 = vpop.f32.mrb[0].mxu0
      %v1656 = vadd.f32 %v1616, %v1655
      %v1657 = vpop.f32.mrb[0].mxu0
      %v1658 = vpop.f32.mrb[0].mxu0
      %v1659 = vpop.f32.mrb[0].mxu0
      %1660 = vdwg.mxu0
      %1661 = vmatprep.subr.bf16.mxu0 0
      %1662 = vmatpush1.bf16.msra.mxu0 %v1485
      %1663 = vmatprep.subr.bf16.mxu0 0
      %1664 = vmatpush1.bf16.msra.mxu0 %v1486
      %1665 = vmatprep.subr.bf16.mxu0 0
      %1666 = vmatpush1.bf16.msra.mxu0 %v1487
      %1667 = vmatprep.subr.bf16.mxu0 0
      %1668 = vmatpush1.bf16.msra.mxu0 %v1488
      %1669 = vmatprep.subr.bf16.mxu0 0
      %1670 = vmatpush1.bf16.msra.mxu0 %v1489
      %1671 = vmatprep.subr.bf16.mxu0 0
      %1672 = vmatpush1.bf16.msra.mxu0 %v1490
      %1673 = vmatprep.subr.bf16.mxu0 0
      %1674 = vmatpush1.bf16.msra.mxu0 %v1491
      %1675 = vmatprep.subr.bf16.mxu0 0
      %1676 = vmatpush1.bf16.msra.mxu0 %v1492
      %1677 = vmatprep.subr.bf16.mxu0 0
      %1678 = vmatpush1.bf16.msra.mxu0 %v1493
      %1679 = vmatprep.subr.bf16.mxu0 0
      %1680 = vmatpush1.bf16.msra.mxu0 %v1494
      %1681 = vmatprep.subr.bf16.mxu0 0
      %1682 = vmatpush1.bf16.msra.mxu0 %v1495
      %1683 = vmatprep.subr.bf16.mxu0 0
      %1684 = vmatpush1.bf16.msra.mxu0 %v1496
      %1685 = vmatprep.subr.bf16.mxu0 0
      %1686 = vmatpush1.bf16.msra.mxu0 %v1497
      %1687 = vmatprep.subr.bf16.mxu0 0
      %1688 = vmatpush1.bf16.msra.mxu0 %v1498
      %1689 = vmatprep.subr.bf16.mxu0 0
      %1690 = vmatpush1.bf16.msra.mxu0 %v1499
      %1691 = vmatprep.subr.bf16.mxu0 0
      %1692 = vmatpush1.bf16.msra.mxu0 %v1500
      %1693 = vmatprep.mubr.bf16.mxu0 %v323
      %1694 = vmatmul.mubr.bf16.gmra.mrb[0].mxu0 %v322
      %v1695 = vpop.f32.mrb[0].mxu0
      %v1696 = vadd.f32 %v1656, %v1695
      %v1697 = vpop.f32.mrb[0].mxu0
      %v1698 = vpop.f32.mrb[0].mxu0
      %v1699 = vpop.f32.mrb[0].mxu0
      %1700 = vdwg.mxu0
      %1701 = vmatprep.subr.bf16.mxu0 0
      %1702 = vmatpush1.bf16.msra.mxu0 %v1501
      %1703 = vmatprep.subr.bf16.mxu0 0
      %1704 = vmatpush1.bf16.msra.mxu0 %v1502
      %1705 = vmatprep.subr.bf16.mxu0 0
      %1706 = vmatpush1.bf16.msra.mxu0 %v1503
      %1707 = vmatprep.subr.bf16.mxu0 0
      %1708 = vmatpush1.bf16.msra.mxu0 %v1504
      %1709 = vmatprep.subr.bf16.mxu0 0
      %1710 = vmatpush1.bf16.msra.mxu0 %v1505
      %1711 = vmatprep.subr.bf16.mxu0 0
      %1712 = vmatpush1.bf16.msra.mxu0 %v1506
      %1713 = vmatprep.subr.bf16.mxu0 0
      %1714 = vmatpush1.bf16.msra.mxu0 %v1507
      %1715 = vmatprep.subr.bf16.mxu0 0
      %1716 = vmatpush1.bf16.msra.mxu0 %v1508
      %1717 = vmatprep.subr.bf16.mxu0 0
      %1718 = vmatpush1.bf16.msra.mxu0 %v1509
      %1719 = vmatprep.subr.bf16.mxu0 0
      %1720 = vmatpush1.bf16.msra.mxu0 %v1510
      %1721 = vmatprep.subr.bf16.mxu0 0
      %1722 = vmatpush1.bf16.msra.mxu0 %v1511
      %1723 = vmatprep.subr.bf16.mxu0 0
      %1724 = vmatpush1.bf16.msra.mxu0 %v1512
      %1725 = vmatprep.subr.bf16.mxu0 0
      %1726 = vmatpush1.bf16.msra.mxu0 %v1513
      %1727 = vmatprep.subr.bf16.mxu0 0
      %1728 = vmatpush1.bf16.msra.mxu0 %v1514
      %1729 = vmatprep.subr.bf16.mxu0 0
      %1730 = vmatpush1.bf16.msra.mxu0 %v1515
      %1731 = vmatprep.subr.bf16.mxu0 0
      %1732 = vmatpush1.bf16.msra.mxu0 %v1516
      %1733 = vmatprep.mubr.bf16.mxu0 %v330
      %1734 = vmatmul.mubr.bf16.gmra.mrb[0].mxu0 %v329
      %v1735 = vpop.f32.mrb[0].mxu0
      %v1736 = vadd.f32 %v1696, %v1735
      %v1737 = vpop.f32.mrb[0].mxu0
      %v1738 = vpop.f32.mrb[0].mxu0
      %v1739 = vpop.f32.mrb[0].mxu0
      %1740 = vdwg.mxu0
      %v1741 = vld [vmem:[%s4] sm:$0x1]
      %v1743 = vlaneseq
      %v1744 = vshrl.u32 %v1743, 7
      %v1745 = vsub.s32 0, %v1744
      %v1746 = vrot.slane %v1741, %v1745
      %v1748 = vadd.f32 %v1736, %v1746
      %v1749 = vmul.f32 %v1748, 0.2
      %v1750 = vmax.f32 %v1748, %v1749
      %v1751 = vpack.c.bf16 %v1750, %v1750
      %1752 = vst [vmem:[%s299] sm:$0x3] %v1751
      %p1753 = scmp.lt.s32.totalorder %s20, 1
      %s1754 = scalar_select %p1753, %s20, 1
      %p1755 = scmp.lt.s32.totalorder %s21, 3
      %s1756 = scalar_select %p1755, %s21, 3
      %s1757 = smul.addr %s1754, 4
      %s1758 = sadd.s32 %s1756, %s1757
      %s1759 = smul.addr %s1758, 2
      %s1760 = scalar_lea.vmem %s5, %s1759
      // Predicated region
      $region41: #{_lambda_.7} parent=39 // pred_check
        %p1761 = pneg %p169
      $region42: #{_lambda_.7} parent=39 // pred_check_branch
        %1763 = sbr.rel (%p1761) target = $region44
      $region43: #{_lambda_.7} parent=39 // pred_region
        _
      $region44: #{_lambda_.7} parent=39 // pred_fallthru
        _
    $region40: #{_lambda_.7} parent=5 // pred_fallthru
      _
    %p1764 = scmp.le.s32.totalorder 2, %s11
    // Predicated region
    $region45: #{_lambda_.7} parent=5 // pred_check
      %p1765 = pneg %p1764
    $region46: #{_lambda_.7} parent=5 // pred_check_branch
      %1767 = sbr.rel (%p1765) target = $region48
    $region47: #{_lambda_.7} parent=5 // pred_region
      %s1768 = ssub.s32 %s11, 2
      // Predicated region
      $region49: #{_lambda_.7} parent=47 // pred_check
        %p1769 = pneg %p175
      $region50: #{_lambda_.7} parent=47 // pred_check_branch
        %1771 = sbr.rel (%p1769) target = $region52
      $region51: #{_lambda_.7} parent=47 // pred_region
        %p1772 = scmp.lt.s32.totalorder %s22, 1
        %s1773 = scalar_select %p1772, %s22, 1
        %p1774 = scmp.lt.s32.totalorder %s23, 3
        %s1775 = scalar_select %p1774, %s23, 3
        %s1776 = smul.addr %s1773, 4
        %s1777 = sadd.s32 %s1775, %s1776
        %s1778 = smul.addr %s1777, 2
        %s1779 = scalar_lea.vmem %s5, %s1778
      $region52: #{_lambda_.7} parent=47 // pred_fallthru
        _
    $region48: #{_lambda_.7} parent=5 // pred_fallthru
      _
  $region6: #{_lambda_.7} parent=0 // loop_footer
    %s15 = sadd.s32 1, %s11
  $region7: #{_lambda_.7} parent=0 // loop_footer_branch
    %10 = sbr.rel target = $region3
  $region8: #{_lambda_.7} parent=0 // loop_exit
    _

// kernel: _lambda_.9
$region0: #{_lambda_.9}
  #allocation0 [shape = 'u32[]', space=smem, size = 0x4, offset = 0x4, fixed_abs, tag = 'smem constant byte address 0x4 - core index']
  #allocation1 [shape = 'u32[144,128]{1,0:T(1,128)}', space=vmem, size = 0x12000, scoped, tag = 'internal scratch']
  %s0 = inlined_call_operand.vmem [shape: bf16[2,2,2,2,256], index: 0, kind: input, shape index: {}, may-alias: {0,1}]
  %s1 = inlined_call_operand.vmem [shape: bf16[2,2,2,2,256], index: 1, kind: input, shape index: {}, may-alias: {0,1}]
  %s2 = inlined_call_operand.vmem [shape: bf16[1024,128], index: 2, kind: input, shape index: {}]
  %s3 = inlined_call_operand.vmem [shape: bf16[1024,128], index: 3, kind: input, shape index: {}]
  %s4 = inlined_call_operand.vmem [shape: f32[1,128], index: 4, kind: input, shape index: {}]
  %s5 = inlined_call_operand.vmem [shape: f32[2,1,1,128], index: 5, kind: output, shape index: {}]
  %s6 = sld [smem:[#allocation0]]
  $region53: #{_lambda_.9} parent=0
    _
  %s8 = ssub.s32 1, %s6
  %s9 = scalar_select 0, %s8, %s6
  loop: start=0, step=1, limit=4
  $region2: #{_lambda_.9} parent=0 // loop_pre_header
    _
  $region3: #{_lambda_.9} parent=0 // loop_header
    %s11 = sphi 0, %s15
    %p12 = scmp.ge.s32.totalorder %s11, 4
    %s18 = sphi 0, %s30
    %s19 = sphi 0, %s26
    %s20 = sphi 0, %s18
    %s21 = sphi 0, %s19
    %s22 = sphi 0, %s20
    %s23 = sphi 0, %s21
    %s35 = sphi 0, %s37
    %s38 = sphi 0, %s35
    %s39 = sphi 0, %s38
    %s55 = sphi 0, %s39
    %s65 = sphi 0, %s67
    %s68 = sphi 0, %s65
    %s69 = sphi 0, %s68
    %s85 = sphi 0, %s69
    %s89 = sphi 0, %s89
    %s91 = sphi 0, %s89
    %s92 = sphi 0, %s91
    %s106 = sphi 0, %s92
    %s110 = sphi 0, %s110
    %s112 = sphi 0, %s110
    %s113 = sphi 0, %s112
    %s127 = sphi 0, %s113
    %s131 = sphi 0, %s131
    %s133 = sphi 0, %s131
    %s134 = sphi 0, %s133
    %s148 = sphi 0, %s134
    %s156 = sphi 0, %s158
    %s159 = sphi 0, %s156
    %s160 = sphi 0, %s159
    %s176 = sphi 0, %s160
  $region4: #{_lambda_.9} parent=0 // loop_header_branch
    %14 = sbr.rel (%p12) target = $region8
  $region5: #{_lambda_.9} parent=0 // loop_body
    %s16 = ssub.s32 %s11, 1
    %s17 = ssub.s32 %s11, 2
    %s24 = sadd.s32 1, %s19
    %p25 = scmp.ge.s32.totalorder %s24, 1
    %s26 = scalar_select %p25, 0, %s24
    %s27 = sadd.s32 1, %s18
    %s28 = scalar_select %p25, %s27, %s18
    %p29 = scmp.ge.s32.totalorder %s28, 2
    %s30 = scalar_select %p29, 0, %s28
    %s31 = ssub.s32 %s18, %s30
    %s32 = ssub.s32 %s19, %s26
    %s33 = sor.u32 %s31, %s32
    %p34 = scmp.eq.s32.totalorder %s33, 0
    %s36 = sadd.s32 %s35, 1
    %s37 = scalar_select %p34, %s35, %s36
    %p40 = pneg %p34
    %p41 = scmp.eq.s32.totalorder %s11, 1
    %p42 = por %p40, %p41
    %p43 = scmp.ne.s32.totalorder %s35, %s38
    %p44 = scmp.eq.s32.totalorder %s11, 0
    %p45 = por %p43, %p44
    %p46 = scmp.ne.s32.totalorder %s35, %s38
    %p47 = scmp.eq.s32.totalorder %s16, 1
    %p48 = por %p46, %p47
    %p49 = scmp.ne.s32.totalorder %s38, %s39
    %p50 = scmp.eq.s32.totalorder %s16, 0
    %p51 = por %p49, %p50
    %p52 = scmp.ne.s32.totalorder %s38, %s39
    %p53 = scmp.eq.s32.totalorder %s17, 1
    %p54 = por %p52, %p53
    %p56 = scmp.ne.s32.totalorder %s39, %s55
    %p57 = scmp.eq.s32.totalorder %s17, 0
    %p58 = por %p56, %p57
    %s59 = sadd.s32 %s19, 1
    %s60 = sadd.s32 %s26, 1
    %s61 = ssub.s32 %s18, %s30
    %s62 = ssub.s32 %s59, %s60
    %s63 = sor.u32 %s61, %s62
    %p64 = scmp.eq.s32.totalorder %s63, 0
    %s66 = sadd.s32 %s65, 1
    %s67 = scalar_select %p64, %s65, %s66
    %p70 = pneg %p64
    %p71 = scmp.eq.s32.totalorder %s11, 1
    %p72 = por %p70, %p71
    %p73 = scmp.ne.s32.totalorder %s65, %s68
    %p74 = scmp.eq.s32.totalorder %s11, 0
    %p75 = por %p73, %p74
    %p76 = scmp.ne.s32.totalorder %s65, %s68
    %p77 = scmp.eq.s32.totalorder %s16, 1
    %p78 = por %p76, %p77
    %p79 = scmp.ne.s32.totalorder %s68, %s69
    %p80 = scmp.eq.s32.totalorder %s16, 0
    %p81 = por %p79, %p80
    %p82 = scmp.ne.s32.totalorder %s68, %s69
    %p83 = scmp.eq.s32.totalorder %s17, 1
    %p84 = por %p82, %p83
    %p86 = scmp.ne.s32.totalorder %s69, %s85
    %p87 = scmp.eq.s32.totalorder %s17, 0
    %p88 = por %p86, %p87
    %s90 = sadd.s32 %s89, 1
    %p93 = scmp.eq.s32.totalorder %s11, 1
    %p94 = scmp.ne.s32.totalorder %s89, %s91
    %p95 = scmp.eq.s32.totalorder %s11, 0
    %p96 = por %p94, %p95
    %p97 = scmp.ne.s32.totalorder %s89, %s91
    %p98 = scmp.eq.s32.totalorder %s16, 1
    %p99 = por %p97, %p98
    %p100 = scmp.ne.s32.totalorder %s91, %s92
    %p101 = scmp.eq.s32.totalorder %s16, 0
    %p102 = por %p100, %p101
    %p103 = scmp.ne.s32.totalorder %s91, %s92
    %p104 = scmp.eq.s32.totalorder %s17, 1
    %p105 = por %p103, %p104
    %p107 = scmp.ne.s32.totalorder %s92, %s106
    %p108 = scmp.eq.s32.totalorder %s17, 0
    %p109 = por %p107, %p108
    %s111 = sadd.s32 %s110, 1
    %p114 = scmp.eq.s32.totalorder %s11, 1
    %p115 = scmp.ne.s32.totalorder %s110, %s112
    %p116 = scmp.eq.s32.totalorder %s11, 0
    %p117 = por %p115, %p116
    %p118 = scmp.ne.s32.totalorder %s110, %s112
    %p119 = scmp.eq.s32.totalorder %s16, 1
    %p120 = por %p118, %p119
    %p121 = scmp.ne.s32.totalorder %s112, %s113
    %p122 = scmp.eq.s32.totalorder %s16, 0
    %p123 = por %p121, %p122
    %p124 = scmp.ne.s32.totalorder %s112, %s113
    %p125 = scmp.eq.s32.totalorder %s17, 1
    %p126 = por %p124, %p125
    %p128 = scmp.ne.s32.totalorder %s113, %s127
    %p129 = scmp.eq.s32.totalorder %s17, 0
    %p130 = por %p128, %p129
    %s132 = sadd.s32 %s131, 1
    %p135 = scmp.eq.s32.totalorder %s11, 1
    %p136 = scmp.ne.s32.totalorder %s131, %s133
    %p137 = scmp.eq.s32.totalorder %s11, 0
    %p138 = por %p136, %p137
    %p139 = scmp.ne.s32.totalorder %s131, %s133
    %p140 = scmp.eq.s32.totalorder %s16, 1
    %p141 = por %p139, %p140
    %p142 = scmp.ne.s32.totalorder %s133, %s134
    %p143 = scmp.eq.s32.totalorder %s16, 0
    %p144 = por %p142, %p143
    %p145 = scmp.ne.s32.totalorder %s133, %s134
    %p146 = scmp.eq.s32.totalorder %s17, 1
    %p147 = por %p145, %p146
    %p149 = scmp.ne.s32.totalorder %s134, %s148
    %p150 = scmp.eq.s32.totalorder %s17, 0
    %p151 = por %p149, %p150
    %s152 = ssub.s32 %s18, %s30
    %s153 = ssub.s32 %s19, %s26
    %s154 = sor.u32 %s152, %s153
    %p155 = scmp.eq.s32.totalorder %s154, 0
    %s157 = sadd.s32 %s156, 1
    %s158 = scalar_select %p155, %s156, %s157
    %p161 = pneg %p155
    %p162 = scmp.eq.s32.totalorder %s11, 1
    %p163 = por %p161, %p162
    %p164 = scmp.ne.s32.totalorder %s156, %s159
    %p165 = scmp.eq.s32.totalorder %s11, 0
    %p166 = por %p164, %p165
    %p167 = scmp.ne.s32.totalorder %s156, %s159
    %p168 = scmp.eq.s32.totalorder %s16, 1
    %p169 = por %p167, %p168
    %p170 = scmp.ne.s32.totalorder %s159, %s160
    %p171 = scmp.eq.s32.totalorder %s16, 0
    %p172 = por %p170, %p171
    %p173 = scmp.ne.s32.totalorder %s159, %s160
    %p174 = scmp.eq.s32.totalorder %s17, 1
    %p175 = por %p173, %p174
    %p177 = scmp.ne.s32.totalorder %s160, %s176
    %p178 = scmp.eq.s32.totalorder %s17, 0
    %p179 = por %p177, %p178
    %p180 = scmp.le.s32.totalorder 1, %s11
    %p181 = scmp.lt.s32.totalorder %s11, 3
    %p182 = pnand %p180, %p181
    %p183 = pneg %p182
    // Predicated region
    $region9: #{_lambda_.9} parent=5 // pred_check
      _
    $region10: #{_lambda_.9} parent=5 // pred_check_branch
      %185 = sbr.rel (%p182) target = $region12
    $region11: #{_lambda_.9} parent=5 // pred_region
      %s186 = ssub.s32 %s11, 1
      // Predicated region
      $region13: #{_lambda_.9} parent=11 // pred_check
        %p187 = pneg %p102
      $region14: #{_lambda_.9} parent=11 // pred_check_branch
        %189 = sbr.rel (%p187) target = $region16
      $region15: #{_lambda_.9} parent=11 // pred_region
        _
      $region16: #{_lambda_.9} parent=11 // pred_fallthru
        _
      // Predicated region
      $region17: #{_lambda_.9} parent=11 // pred_check
        %p190 = pneg %p123
      $region18: #{_lambda_.9} parent=11 // pred_check_branch
        %192 = sbr.rel (%p190) target = $region20
      $region19: #{_lambda_.9} parent=11 // pred_region
        _
      $region20: #{_lambda_.9} parent=11 // pred_fallthru
        _
      // Predicated region
      $region21: #{_lambda_.9} parent=11 // pred_check
        %p193 = pneg %p144
      $region22: #{_lambda_.9} parent=11 // pred_check_branch
        %195 = sbr.rel (%p193) target = $region24
      $region23: #{_lambda_.9} parent=11 // pred_region
        _
      $region24: #{_lambda_.9} parent=11 // pred_fallthru
        _
    $region12: #{_lambda_.9} parent=5 // pred_fallthru
      _
    %p196 = scmp.lt.s32.totalorder %s11, 2
    // Predicated region
    $region25: #{_lambda_.9} parent=5 // pred_check
      %p197 = pneg %p196
    $region26: #{_lambda_.9} parent=5 // pred_check_branch
      %199 = sbr.rel (%p197) target = $region28
    $region27: #{_lambda_.9} parent=5 // pred_region
      // Predicated region
      $region29: #{_lambda_.9} parent=27 // pred_check
        %p200 = pneg %p45
      $region30: #{_lambda_.9} parent=27 // pred_check_branch
        %202 = sbr.rel (%p200) target = $region32
      $region31: #{_lambda_.9} parent=27 // pred_region
        %p203 = scmp.lt.s32.totalorder %s18, 1
        %s204 = scalar_select %p203, %s18, 1
        %p205 = scmp.lt.s32.totalorder %s19, 1
        %s206 = scalar_select %p205, %s19, 1
        %s207 = smul.addr %s206, 4
        %s208 = smul.addr %s204, 8
        %s209 = sadd.s32 %s207, %s208
        %s210 = scalar_lea.vmem %s0, %s209
      $region32: #{_lambda_.9} parent=27 // pred_fallthru
        _
      // Predicated region
      $region33: #{_lambda_.9} parent=27 // pred_check
        %p211 = pneg %p75
      $region34: #{_lambda_.9} parent=27 // pred_check_branch
        %213 = sbr.rel (%p211) target = $region36
      $region35: #{_lambda_.9} parent=27 // pred_region
        %s214 = sadd.s32 %s19, 1
        %p215 = scmp.lt.s32.totalorder %s18, 1
        %s216 = scalar_select %p215, %s18, 1
        %p217 = scmp.lt.s32.totalorder %s214, 1
        %s218 = scalar_select %p217, %s214, 1
        %s219 = smul.addr %s218, 4
        %s220 = smul.addr %s216, 8
        %s221 = sadd.s32 %s219, %s220
        %s222 = scalar_lea.vmem %s1, %s221
        %s223 = sadd.s32 %s19, 1
      $region36: #{_lambda_.9} parent=27 // pred_fallthru
        _
    $region28: #{_lambda_.9} parent=5 // pred_fallthru
      _
    %p224 = scmp.le.s32.totalorder 1, %s11
    %p225 = scmp.lt.s32.totalorder %s11, 3
    %p226 = pnand %p224, %p225
    %p227 = pneg %p226
    // Predicated region
    $region37: #{_lambda_.9} parent=5 // pred_check
      _
    $region38: #{_lambda_.9} parent=5 // pred_check_branch
      %229 = sbr.rel (%p226) target = $region40
    $region39: #{_lambda_.9} parent=5 // pred_region
      %s230 = ssub.s32 %s11, 1
      %p231 = scmp.lt.s32.totalorder %s20, 1
      %s232 = scalar_select %p231, %s20, 1
      %p233 = scmp.lt.s32.totalorder %s21, 1
      %s234 = scalar_select %p233, %s21, 1
      %s235 = smul.addr %s234, 4
      %s236 = smul.addr %s232, 8
      %s237 = sadd.s32 %s235, %s236
      %s238 = scalar_lea.vmem %s0, %s237
      %p239 = pneg %p51
      %p240 = pneg %p48
      %s241 = sadd.s32 %s21, 1
      %p242 = scmp.lt.s32.totalorder %s20, 1
      %s243 = scalar_select %p242, %s20, 1
      %p244 = scmp.lt.s32.totalorder %s241, 1
      %s245 = scalar_select %p244, %s241, 1
      %s246 = smul.addr %s245, 4
      %s247 = smul.addr %s243, 8
      %s248 = sadd.s32 %s246, %s247
      %s249 = scalar_lea.vmem %s1, %s248
      %p250 = pneg %p81
      %p251 = pneg %p78
      %p252 = pneg %p102
      %p253 = pneg %p99
      %p254 = pneg %p123
      %p255 = pneg %p120
      %p256 = pneg %p144
      %p257 = pneg %p141
      %p258 = pneg %p172
      %p259 = pneg %p169
      %p260 = scmp.lt.s32.totalorder %s20, 1
      %s261 = scalar_select %p260, %s20, 1
      %p262 = scmp.lt.s32.totalorder %s21, 0
      %s263 = scalar_select %p262, %s21, 0
      %s264 = sadd.s32 %s263, %s261
      %s265 = scalar_lea.vmem %s5, %s264
      %p266 = scmp.lt.s32.totalorder %s20, 1
      %s267 = scalar_select %p266, %s20, 1
      %p268 = scmp.lt.s32.totalorder %s21, 1
      %s269 = scalar_select %p268, %s21, 1
      %s270 = smul.addr %s269, 4
      %s271 = smul.addr %s267, 8
      %s272 = sadd.s32 %s270, %s271
      %s273 = scalar_lea.vmem %s0, %s272
      %s274 = sadd.s32 %s21, 1
      %p275 = scmp.lt.s32.totalorder %s20, 1
      %s276 = scalar_select %p275, %s20, 1
      %p277 = scmp.lt.s32.totalorder %s274, 1
      %s278 = scalar_select %p277, %s274, 1
      %s279 = smul.addr %s278, 4
      %s280 = smul.addr %s276, 8
      %s281 = sadd.s32 %s279, %s280
      %s282 = scalar_lea.vmem %s1, %s281
      %s283 = sadd.s32 %s21, 1
      %p284 = scmp.lt.s32.totalorder %s20, 1
      %s285 = scalar_select %p284, %s20, 1
      %p286 = scmp.lt.s32.totalorder %s21, 0
      %s287 = scalar_select %p286, %s21, 0
      %s288 = sadd.s32 %s287, %s285
      %s289 = scalar_lea.vmem %s5, %s288
      %v291 = vld [vmem:[%s273] sm:$0x3]
      %v292 = vld [vmem:[%s273 + $0x2] sm:$0x3]
      %v293 = vld [vmem:[%s282] sm:$0x3]
      %v294 = vld [vmem:[%s282 + $0x2] sm:$0x3]
      %v297 = vunpack.c.l.s4 1966171168
      %v298 = vunpack.c.0.s8 %v297
      %v299 = vlaneseq
      %v300 = vshrl.u32 %v299, 7
      %v301 = vsub.s32 %v298, %v300
      %v302 = vrot.slane %v291, %v301
      %v303 = vcombine.high %v302, %v302
      %v305 = vunpack.c.l.s4 1966171168
      %v306 = vunpack.c.0.s8 %v305
      %v307 = vlaneseq
      %v308 = vshrl.u32 %v307, 7
      %v309 = vsub.s32 %v306, %v308
      %v310 = vrot.slane %v302, %v309
      %v312 = vunpack.c.l.s4 1966171168
      %v313 = vunpack.c.0.s8 %v312
      %v314 = vlaneseq
      %v315 = vshrl.u32 %v314, 7
      %v316 = vsub.s32 %v313, %v315
      %v317 = vrot.slane %v303, %v316
      %v322 = vunpack.c.l.s4 1966171168
      %v323 = vunpack.c.0.s8 %v322
      %v324 = vlaneseq
      %v325 = vshrl.u32 %v324, 7
      %v326 = vsub.s32 %v323, %v325
      %v327 = vrot.slane %v292, %v326
      %v328 = vcombine.high %v327, %v327
      %v330 = vunpack.c.l.s4 1966171168
      %v331 = vunpack.c.0.s8 %v330
      %v332 = vlaneseq
      %v333 = vshrl.u32 %v332, 7
      %v334 = vsub.s32 %v331, %v333
      %v335 = vrot.slane %v327, %v334
      %v337 = vunpack.c.l.s4 1966171168
      %v338 = vunpack.c.0.s8 %v337
      %v339 = vlaneseq
      %v340 = vshrl.u32 %v339, 7
      %v341 = vsub.s32 %v338, %v340
      %v342 = vrot.slane %v328, %v341
      %v347 = vunpack.c.l.s4 1966171168
      %v348 = vunpack.c.0.s8 %v347
      %v349 = vlaneseq
      %v350 = vshrl.u32 %v349, 7
      %v351 = vsub.s32 %v348, %v350
      %v352 = vrot.slane %v293, %v351
      %v353 = vcombine.high %v352, %v352
      %v355 = vunpack.c.l.s4 1966171168
      %v356 = vunpack.c.0.s8 %v355
      %v357 = vlaneseq
      %v358 = vshrl.u32 %v357, 7
      %v359 = vsub.s32 %v356, %v358
      %v360 = vrot.slane %v352, %v359
      %v362 = vunpack.c.l.s4 1966171168
      %v363 = vunpack.c.0.s8 %v362
      %v364 = vlaneseq
      %v365 = vshrl.u32 %v364, 7
      %v366 = vsub.s32 %v363, %v365
      %v367 = vrot.slane %v353, %v366
      %v372 = vunpack.c.l.s4 1966171168
      %v373 = vunpack.c.0.s8 %v372
      %v374 = vlaneseq
      %v375 = vshrl.u32 %v374, 7
      %v376 = vsub.s32 %v373, %v375
      %v377 = vrot.slane %v294, %v376
      %v378 = vcombine.high %v377, %v377
      %v380 = vunpack.c.l.s4 1966171168
      %v381 = vunpack.c.0.s8 %v380
      %v382 = vlaneseq
      %v383 = vshrl.u32 %v382, 7
      %v384 = vsub.s32 %v381, %v383
      %v385 = vrot.slane %v377, %v384
      %v387 = vunpack.c.l.s4 1966171168
      %v388 = vunpack.c.0.s8 %v387
      %v389 = vlaneseq
      %v390 = vshrl.u32 %v389, 7
      %v391 = vsub.s32 %v388, %v390
      %v392 = vrot.slane %v378, %v391
      %v395 = vld [vmem:[%s2] sm:$0xf]
      %v396 = vld [vmem:[%s2 + $0x4] sm:$0xf]
      %v397 = vld [vmem:[%s2 + $0x8] sm:$0xf]
      %v398 = vld [vmem:[%s2 + $0xc] sm:$0xf]
      %v399 = vld [vmem:[%s2 + $0x10] sm:$0xf]
      %v400 = vld [vmem:[%s2 + $0x14] sm:$0xf]
      %v401 = vld [vmem:[%s2 + $0x18] sm:$0xf]
      %v402 = vld [vmem:[%s2 + $0x1c] sm:$0xf]
      %v403 = vld [vmem:[%s2 + $0x20] sm:$0xf]
      %v404 = vld [vmem:[%s2 + $0x24] sm:$0xf]
      %v405 = vld [vmem:[%s2 + $0x28] sm:$0xf]
      %v406 = vld [vmem:[%s2 + $0x2c] sm:$0xf]
      %v407 = vld [vmem:[%s2 + $0x30] sm:$0xf]
      %v408 = vld [vmem:[%s2 + $0x34] sm:$0xf]
      %v409 = vld [vmem:[%s2 + $0x38] sm:$0xf]
      %v410 = vld [vmem:[%s2 + $0x3c] sm:$0xf]
      %v411 = vld [vmem:[%s2 + $0x40] sm:$0xf]
      %v412 = vld [vmem:[%s2 + $0x44] sm:$0xf]
      %v413 = vld [vmem:[%s2 + $0x48] sm:$0xf]
      %v414 = vld [vmem:[%s2 + $0x4c] sm:$0xf]
      %v415 = vld [vmem:[%s2 + $0x50] sm:$0xf]
      %v416 = vld [vmem:[%s2 + $0x54] sm:$0xf]
      %v417 = vld [vmem:[%s2 + $0x58] sm:$0xf]
      %v418 = vld [vmem:[%s2 + $0x5c] sm:$0xf]
      %v419 = vld [vmem:[%s2 + $0x60] sm:$0xf]
      %v420 = vld [vmem:[%s2 + $0x64] sm:$0xf]
      %v421 = vld [vmem:[%s2 + $0x68] sm:$0xf]
      %v422 = vld [vmem:[%s2 + $0x6c] sm:$0xf]
      %v423 = vld [vmem:[%s2 + $0x70] sm:$0xf]
      %v424 = vld [vmem:[%s2 + $0x74] sm:$0xf]
      %v425 = vld [vmem:[%s2 + $0x78] sm:$0xf]
      %v426 = vld [vmem:[%s2 + $0x7c] sm:$0xf]
      %v427 = vld [vmem:[%s2 + $0x80] sm:$0xf]
      %v428 = vld [vmem:[%s2 + $0x84] sm:$0xf]
      %v429 = vld [vmem:[%s2 + $0x88] sm:$0xf]
      %v430 = vld [vmem:[%s2 + $0x8c] sm:$0xf]
      %v431 = vld [vmem:[%s2 + $0x90] sm:$0xf]
      %v432 = vld [vmem:[%s2 + $0x94] sm:$0xf]
      %v433 = vld [vmem:[%s2 + $0x98] sm:$0xf]
      %v434 = vld [vmem:[%s2 + $0x9c] sm:$0xf]
      %v435 = vld [vmem:[%s2 + $0xa0] sm:$0xf]
      %v436 = vld [vmem:[%s2 + $0xa4] sm:$0xf]
      %v437 = vld [vmem:[%s2 + $0xa8] sm:$0xf]
      %v438 = vld [vmem:[%s2 + $0xac] sm:$0xf]
      %v439 = vld [vmem:[%s2 + $0xb0] sm:$0xf]
      %v440 = vld [vmem:[%s2 + $0xb4] sm:$0xf]
      %v441 = vld [vmem:[%s2 + $0xb8] sm:$0xf]
      %v442 = vld [vmem:[%s2 + $0xbc] sm:$0xf]
      %v443 = vld [vmem:[%s2 + $0xc0] sm:$0xf]
      %v444 = vld [vmem:[%s2 + $0xc4] sm:$0xf]
      %v445 = vld [vmem:[%s2 + $0xc8] sm:$0xf]
      %v446 = vld [vmem:[%s2 + $0xcc] sm:$0xf]
      %v447 = vld [vmem:[%s2 + $0xd0] sm:$0xf]
      %v448 = vld [vmem:[%s2 + $0xd4] sm:$0xf]
      %v449 = vld [vmem:[%s2 + $0xd8] sm:$0xf]
      %v450 = vld [vmem:[%s2 + $0xdc] sm:$0xf]
      %v451 = vld [vmem:[%s2 + $0xe0] sm:$0xf]
      %v452 = vld [vmem:[%s2 + $0xe4] sm:$0xf]
      %v453 = vld [vmem:[%s2 + $0xe8] sm:$0xf]
      %v454 = vld [vmem:[%s2 + $0xec] sm:$0xf]
      %v455 = vld [vmem:[%s2 + $0xf0] sm:$0xf]
      %v456 = vld [vmem:[%s2 + $0xf4] sm:$0xf]
      %v457 = vld [vmem:[%s2 + $0xf8] sm:$0xf]
      %v458 = vld [vmem:[%s2 + $0xfc] sm:$0xf]
      %v459 = vld [vmem:[%s2 + $0x100] sm:$0xf]
      %v460 = vld [vmem:[%s2 + $0x104] sm:$0xf]
      %v461 = vld [vmem:[%s2 + $0x108] sm:$0xf]
      %v462 = vld [vmem:[%s2 + $0x10c] sm:$0xf]
      %v463 = vld [vmem:[%s2 + $0x110] sm:$0xf]
      %v464 = vld [vmem:[%s2 + $0x114] sm:$0xf]
      %v465 = vld [vmem:[%s2 + $0x118] sm:$0xf]
      %v466 = vld [vmem:[%s2 + $0x11c] sm:$0xf]
      %v467 = vld [vmem:[%s2 + $0x120] sm:$0xf]
      %v468 = vld [vmem:[%s2 + $0x124] sm:$0xf]
      %v469 = vld [vmem:[%s2 + $0x128] sm:$0xf]
      %v470 = vld [vmem:[%s2 + $0x12c] sm:$0xf]
      %v471 = vld [vmem:[%s2 + $0x130] sm:$0xf]
      %v472 = vld [vmem:[%s2 + $0x134] sm:$0xf]
      %v473 = vld [vmem:[%s2 + $0x138] sm:$0xf]
      %v474 = vld [vmem:[%s2 + $0x13c] sm:$0xf]
      %v475 = vld [vmem:[%s2 + $0x140] sm:$0xf]
      %v476 = vld [vmem:[%s2 + $0x144] sm:$0xf]
      %v477 = vld [vmem:[%s2 + $0x148] sm:$0xf]
      %v478 = vld [vmem:[%s2 + $0x14c] sm:$0xf]
      %v479 = vld [vmem:[%s2 + $0x150] sm:$0xf]
      %v480 = vld [vmem:[%s2 + $0x154] sm:$0xf]
      %v481 = vld [vmem:[%s2 + $0x158] sm:$0xf]
      %v482 = vld [vmem:[%s2 + $0x15c] sm:$0xf]
      %v483 = vld [vmem:[%s2 + $0x160] sm:$0xf]
      %v484 = vld [vmem:[%s2 + $0x164] sm:$0xf]
      %v485 = vld [vmem:[%s2 + $0x168] sm:$0xf]
      %v486 = vld [vmem:[%s2 + $0x16c] sm:$0xf]
      %v487 = vld [vmem:[%s2 + $0x170] sm:$0xf]
      %v488 = vld [vmem:[%s2 + $0x174] sm:$0xf]
      %v489 = vld [vmem:[%s2 + $0x178] sm:$0xf]
      %v490 = vld [vmem:[%s2 + $0x17c] sm:$0xf]
      %v491 = vld [vmem:[%s2 + $0x180] sm:$0xf]
      %v492 = vld [vmem:[%s2 + $0x184] sm:$0xf]
      %v493 = vld [vmem:[%s2 + $0x188] sm:$0xf]
      %v494 = vld [vmem:[%s2 + $0x18c] sm:$0xf]
      %v495 = vld [vmem:[%s2 + $0x190] sm:$0xf]
      %v496 = vld [vmem:[%s2 + $0x194] sm:$0xf]
      %v497 = vld [vmem:[%s2 + $0x198] sm:$0xf]
      %v498 = vld [vmem:[%s2 + $0x19c] sm:$0xf]
      %v499 = vld [vmem:[%s2 + $0x1a0] sm:$0xf]
      %v500 = vld [vmem:[%s2 + $0x1a4] sm:$0xf]
      %v501 = vld [vmem:[%s2 + $0x1a8] sm:$0xf]
      %v502 = vld [vmem:[%s2 + $0x1ac] sm:$0xf]
      %v503 = vld [vmem:[%s2 + $0x1b0] sm:$0xf]
      %v504 = vld [vmem:[%s2 + $0x1b4] sm:$0xf]
      %v505 = vld [vmem:[%s2 + $0x1b8] sm:$0xf]
      %v506 = vld [vmem:[%s2 + $0x1bc] sm:$0xf]
      %v507 = vld [vmem:[%s2 + $0x1c0] sm:$0xf]
      %v508 = vld [vmem:[%s2 + $0x1c4] sm:$0xf]
      %v509 = vld [vmem:[%s2 + $0x1c8] sm:$0xf]
      %v510 = vld [vmem:[%s2 + $0x1cc] sm:$0xf]
      %v511 = vld [vmem:[%s2 + $0x1d0] sm:$0xf]
      %v512 = vld [vmem:[%s2 + $0x1d4] sm:$0xf]
      %v513 = vld [vmem:[%s2 + $0x1d8] sm:$0xf]
      %v514 = vld [vmem:[%s2 + $0x1dc] sm:$0xf]
      %v515 = vld [vmem:[%s2 + $0x1e0] sm:$0xf]
      %v516 = vld [vmem:[%s2 + $0x1e4] sm:$0xf]
      %v517 = vld [vmem:[%s2 + $0x1e8] sm:$0xf]
      %v518 = vld [vmem:[%s2 + $0x1ec] sm:$0xf]
      %v519 = vld [vmem:[%s2 + $0x1f0] sm:$0xf]
      %v520 = vld [vmem:[%s2 + $0x1f4] sm:$0xf]
      %v521 = vld [vmem:[%s2 + $0x1f8] sm:$0xf]
      %v522 = vld [vmem:[%s2 + $0x1fc] sm:$0xf]
      %v523 = vld [vmem:[%s3] sm:$0xf]
      %v524 = vld [vmem:[%s3 + $0x4] sm:$0xf]
      %v525 = vld [vmem:[%s3 + $0x8] sm:$0xf]
      %v526 = vld [vmem:[%s3 + $0xc] sm:$0xf]
      %v527 = vld [vmem:[%s3 + $0x10] sm:$0xf]
      %v528 = vld [vmem:[%s3 + $0x14] sm:$0xf]
      %v529 = vld [vmem:[%s3 + $0x18] sm:$0xf]
      %v530 = vld [vmem:[%s3 + $0x1c] sm:$0xf]
      %v531 = vld [vmem:[%s3 + $0x20] sm:$0xf]
      %v532 = vld [vmem:[%s3 + $0x24] sm:$0xf]
      %v533 = vld [vmem:[%s3 + $0x28] sm:$0xf]
      %v534 = vld [vmem:[%s3 + $0x2c] sm:$0xf]
      %v535 = vld [vmem:[%s3 + $0x30] sm:$0xf]
      %v536 = vld [vmem:[%s3 + $0x34] sm:$0xf]
      %v537 = vld [vmem:[%s3 + $0x38] sm:$0xf]
      %v538 = vld [vmem:[%s3 + $0x3c] sm:$0xf]
      %v539 = vld [vmem:[%s3 + $0x40] sm:$0xf]
      %v540 = vld [vmem:[%s3 + $0x44] sm:$0xf]
      %v541 = vld [vmem:[%s3 + $0x48] sm:$0xf]
      %v542 = vld [vmem:[%s3 + $0x4c] sm:$0xf]
      %v543 = vld [vmem:[%s3 + $0x50] sm:$0xf]
      %v544 = vld [vmem:[%s3 + $0x54] sm:$0xf]
      %v545 = vld [vmem:[%s3 + $0x58] sm:$0xf]
      %v546 = vld [vmem:[%s3 + $0x5c] sm:$0xf]
      %v547 = vld [vmem:[%s3 + $0x60] sm:$0xf]
      %v548 = vld [vmem:[%s3 + $0x64] sm:$0xf]
      %v549 = vld [vmem:[%s3 + $0x68] sm:$0xf]
      %v550 = vld [vmem:[%s3 + $0x6c] sm:$0xf]
      %v551 = vld [vmem:[%s3 + $0x70] sm:$0xf]
      %v552 = vld [vmem:[%s3 + $0x74] sm:$0xf]
      %v553 = vld [vmem:[%s3 + $0x78] sm:$0xf]
      %v554 = vld [vmem:[%s3 + $0x7c] sm:$0xf]
      %v555 = vld [vmem:[%s3 + $0x80] sm:$0xf]
      %v556 = vld [vmem:[%s3 + $0x84] sm:$0xf]
      %v557 = vld [vmem:[%s3 + $0x88] sm:$0xf]
      %v558 = vld [vmem:[%s3 + $0x8c] sm:$0xf]
      %v559 = vld [vmem:[%s3 + $0x90] sm:$0xf]
      %v560 = vld [vmem:[%s3 + $0x94] sm:$0xf]
      %v561 = vld [vmem:[%s3 + $0x98] sm:$0xf]
      %v562 = vld [vmem:[%s3 + $0x9c] sm:$0xf]
      %v563 = vld [vmem:[%s3 + $0xa0] sm:$0xf]
      %v564 = vld [vmem:[%s3 + $0xa4] sm:$0xf]
      %v565 = vld [vmem:[%s3 + $0xa8] sm:$0xf]
      %v566 = vld [vmem:[%s3 + $0xac] sm:$0xf]
      %v567 = vld [vmem:[%s3 + $0xb0] sm:$0xf]
      %v568 = vld [vmem:[%s3 + $0xb4] sm:$0xf]
      %v569 = vld [vmem:[%s3 + $0xb8] sm:$0xf]
      %v570 = vld [vmem:[%s3 + $0xbc] sm:$0xf]
      %v571 = vld [vmem:[%s3 + $0xc0] sm:$0xf]
      %v572 = vld [vmem:[%s3 + $0xc4] sm:$0xf]
      %v573 = vld [vmem:[%s3 + $0xc8] sm:$0xf]
      %v574 = vld [vmem:[%s3 + $0xcc] sm:$0xf]
      %v575 = vld [vmem:[%s3 + $0xd0] sm:$0xf]
      %v576 = vld [vmem:[%s3 + $0xd4] sm:$0xf]
      %v577 = vld [vmem:[%s3 + $0xd8] sm:$0xf]
      %v578 = vld [vmem:[%s3 + $0xdc] sm:$0xf]
      %v579 = vld [vmem:[%s3 + $0xe0] sm:$0xf]
      %v580 = vld [vmem:[%s3 + $0xe4] sm:$0xf]
      %v581 = vld [vmem:[%s3 + $0xe8] sm:$0xf]
      %v582 = vld [vmem:[%s3 + $0xec] sm:$0xf]
      %v583 = vld [vmem:[%s3 + $0xf0] sm:$0xf]
      %v584 = vld [vmem:[%s3 + $0xf4] sm:$0xf]
      %v585 = vld [vmem:[%s3 + $0xf8] sm:$0xf]
      %v586 = vld [vmem:[%s3 + $0xfc] sm:$0xf]
      %v587 = vld [vmem:[%s3 + $0x100] sm:$0xf]
      %v588 = vld [vmem:[%s3 + $0x104] sm:$0xf]
      %v589 = vld [vmem:[%s3 + $0x108] sm:$0xf]
      %v590 = vld [vmem:[%s3 + $0x10c] sm:$0xf]
      %v591 = vld [vmem:[%s3 + $0x110] sm:$0xf]
      %v592 = vld [vmem:[%s3 + $0x114] sm:$0xf]
      %v593 = vld [vmem:[%s3 + $0x118] sm:$0xf]
      %v594 = vld [vmem:[%s3 + $0x11c] sm:$0xf]
      %v595 = vld [vmem:[%s3 + $0x120] sm:$0xf]
      %v596 = vld [vmem:[%s3 + $0x124] sm:$0xf]
      %v597 = vld [vmem:[%s3 + $0x128] sm:$0xf]
      %v598 = vld [vmem:[%s3 + $0x12c] sm:$0xf]
      %v599 = vld [vmem:[%s3 + $0x130] sm:$0xf]
      %v600 = vld [vmem:[%s3 + $0x134] sm:$0xf]
      %v601 = vld [vmem:[%s3 + $0x138] sm:$0xf]
      %v602 = vld [vmem:[%s3 + $0x13c] sm:$0xf]
      %v603 = vld [vmem:[%s3 + $0x140] sm:$0xf]
      %v604 = vld [vmem:[%s3 + $0x144] sm:$0xf]
      %v605 = vld [vmem:[%s3 + $0x148] sm:$0xf]
      %v606 = vld [vmem:[%s3 + $0x14c] sm:$0xf]
      %v607 = vld [vmem:[%s3 + $0x150] sm:$0xf]
      %v608 = vld [vmem:[%s3 + $0x154] sm:$0xf]
      %v609 = vld [vmem:[%s3 + $0x158] sm:$0xf]
      %v610 = vld [vmem:[%s3 + $0x15c] sm:$0xf]
      %v611 = vld [vmem:[%s3 + $0x160] sm:$0xf]
      %v612 = vld [vmem:[%s3 + $0x164] sm:$0xf]
      %v613 = vld [vmem:[%s3 + $0x168] sm:$0xf]
      %v614 = vld [vmem:[%s3 + $0x16c] sm:$0xf]
      %v615 = vld [vmem:[%s3 + $0x170] sm:$0xf]
      %v616 = vld [vmem:[%s3 + $0x174] sm:$0xf]
      %v617 = vld [vmem:[%s3 + $0x178] sm:$0xf]
      %v618 = vld [vmem:[%s3 + $0x17c] sm:$0xf]
      %v619 = vld [vmem:[%s3 + $0x180] sm:$0xf]
      %v620 = vld [vmem:[%s3 + $0x184] sm:$0xf]
      %v621 = vld [vmem:[%s3 + $0x188] sm:$0xf]
      %v622 = vld [vmem:[%s3 + $0x18c] sm:$0xf]
      %v623 = vld [vmem:[%s3 + $0x190] sm:$0xf]
      %v624 = vld [vmem:[%s3 + $0x194] sm:$0xf]
      %v625 = vld [vmem:[%s3 + $0x198] sm:$0xf]
      %v626 = vld [vmem:[%s3 + $0x19c] sm:$0xf]
      %v627 = vld [vmem:[%s3 + $0x1a0] sm:$0xf]
      %v628 = vld [vmem:[%s3 + $0x1a4] sm:$0xf]
      %v629 = vld [vmem:[%s3 + $0x1a8] sm:$0xf]
      %v630 = vld [vmem:[%s3 + $0x1ac] sm:$0xf]
      %v631 = vld [vmem:[%s3 + $0x1b0] sm:$0xf]
      %v632 = vld [vmem:[%s3 + $0x1b4] sm:$0xf]
      %v633 = vld [vmem:[%s3 + $0x1b8] sm:$0xf]
      %v634 = vld [vmem:[%s3 + $0x1bc] sm:$0xf]
      %v635 = vld [vmem:[%s3 + $0x1c0] sm:$0xf]
      %v636 = vld [vmem:[%s3 + $0x1c4] sm:$0xf]
      %v637 = vld [vmem:[%s3 + $0x1c8] sm:$0xf]
      %v638 = vld [vmem:[%s3 + $0x1cc] sm:$0xf]
      %v639 = vld [vmem:[%s3 + $0x1d0] sm:$0xf]
      %v640 = vld [vmem:[%s3 + $0x1d4] sm:$0xf]
      %v641 = vld [vmem:[%s3 + $0x1d8] sm:$0xf]
      %v642 = vld [vmem:[%s3 + $0x1dc] sm:$0xf]
      %v643 = vld [vmem:[%s3 + $0x1e0] sm:$0xf]
      %v644 = vld [vmem:[%s3 + $0x1e4] sm:$0xf]
      %v645 = vld [vmem:[%s3 + $0x1e8] sm:$0xf]
      %v646 = vld [vmem:[%s3 + $0x1ec] sm:$0xf]
      %v647 = vld [vmem:[%s3 + $0x1f0] sm:$0xf]
      %v648 = vld [vmem:[%s3 + $0x1f4] sm:$0xf]
      %v649 = vld [vmem:[%s3 + $0x1f8] sm:$0xf]
      %v650 = vld [vmem:[%s3 + $0x1fc] sm:$0xf]
      %v652 = vshrl.u32 %v310, 16
      %v655 = vshrl.u32 %v317, 16
      %v658 = vshrl.u32 %v335, 16
      %v661 = vshrl.u32 %v342, 16
      %v664 = vshrl.u32 %v360, 16
      %v667 = vshrl.u32 %v367, 16
      %v670 = vshrl.u32 %v385, 16
      %v673 = vshrl.u32 %v392, 16
      %v811 = vunpack.c.l.b16 %v523
      %v812 = vunpack.c.l.b16 %v524
      %v813 = vunpack.c.l.b16 %v525
      %v814 = vunpack.c.l.b16 %v526
      %v815 = vunpack.c.l.b16 %v527
      %v816 = vunpack.c.l.b16 %v528
      %v817 = vunpack.c.l.b16 %v529
      %v818 = vunpack.c.l.b16 %v530
      %v819 = vunpack.c.l.b16 %v531
      %v820 = vunpack.c.l.b16 %v532
      %v821 = vunpack.c.l.b16 %v533
      %v822 = vunpack.c.l.b16 %v534
      %v823 = vunpack.c.l.b16 %v535
      %v824 = vunpack.c.l.b16 %v536
      %v825 = vunpack.c.l.b16 %v537
      %v826 = vunpack.c.l.b16 %v538
      %v827 = vunpack.c.l.b16 %v539
      %v828 = vunpack.c.l.b16 %v540
      %v829 = vunpack.c.l.b16 %v541
      %v830 = vunpack.c.l.b16 %v542
      %v831 = vunpack.c.l.b16 %v543
      %v832 = vunpack.c.l.b16 %v544
      %v833 = vunpack.c.l.b16 %v545
      %v834 = vunpack.c.l.b16 %v546
      %v835 = vunpack.c.l.b16 %v547
      %v836 = vunpack.c.l.b16 %v548
      %v837 = vunpack.c.l.b16 %v549
      %v838 = vunpack.c.l.b16 %v550
      %v839 = vunpack.c.l.b16 %v551
      %v840 = vunpack.c.l.b16 %v552
      %v841 = vunpack.c.l.b16 %v553
      %v842 = vunpack.c.l.b16 %v554
      %v843 = vunpack.c.l.b16 %v555
      %v844 = vunpack.c.l.b16 %v556
      %v845 = vunpack.c.l.b16 %v557
      %v846 = vunpack.c.l.b16 %v558
      %v847 = vunpack.c.l.b16 %v559
      %v848 = vunpack.c.l.b16 %v560
      %v849 = vunpack.c.l.b16 %v561
      %v850 = vunpack.c.l.b16 %v562
      %v851 = vunpack.c.l.b16 %v563
      %v852 = vunpack.c.l.b16 %v564
      %v853 = vunpack.c.l.b16 %v565
      %v854 = vunpack.c.l.b16 %v566
      %v855 = vunpack.c.l.b16 %v567
      %v856 = vunpack.c.l.b16 %v568
      %v857 = vunpack.c.l.b16 %v569
      %v858 = vunpack.c.l.b16 %v570
      %v859 = vunpack.c.l.b16 %v571
      %v860 = vunpack.c.l.b16 %v572
      %v861 = vunpack.c.l.b16 %v573
      %v862 = vunpack.c.l.b16 %v574
      %v863 = vunpack.c.l.b16 %v575
      %v864 = vunpack.c.l.b16 %v576
      %v865 = vunpack.c.l.b16 %v577
      %v866 = vunpack.c.l.b16 %v578
      %v867 = vunpack.c.l.b16 %v579
      %v868 = vunpack.c.l.b16 %v580
      %v869 = vunpack.c.l.b16 %v581
      %v870 = vunpack.c.l.b16 %v582
      %v871 = vunpack.c.l.b16 %v583
      %v872 = vunpack.c.l.b16 %v584
      %v873 = vunpack.c.l.b16 %v585
      %v874 = vunpack.c.l.b16 %v586
      %v875 = vunpack.c.l.b16 %v587
      %v876 = vunpack.c.l.b16 %v588
      %v877 = vunpack.c.l.b16 %v589
      %v878 = vunpack.c.l.b16 %v590
      %v879 = vunpack.c.l.b16 %v591
      %v880 = vunpack.c.l.b16 %v592
      %v881 = vunpack.c.l.b16 %v593
      %v882 = vunpack.c.l.b16 %v594
      %v883 = vunpack.c.l.b16 %v595
      %v884 = vunpack.c.l.b16 %v596
      %v885 = vunpack.c.l.b16 %v597
      %v886 = vunpack.c.l.b16 %v598
      %v887 = vunpack.c.l.b16 %v599
      %v888 = vunpack.c.l.b16 %v600
      %v889 = vunpack.c.l.b16 %v601
      %v890 = vunpack.c.l.b16 %v602
      %v891 = vunpack.c.l.b16 %v603
      %v892 = vunpack.c.l.b16 %v604
      %v893 = vunpack.c.l.b16 %v605
      %v894 = vunpack.c.l.b16 %v606
      %v895 = vunpack.c.l.b16 %v607
      %v896 = vunpack.c.l.b16 %v608
      %v897 = vunpack.c.l.b16 %v609
      %v898 = vunpack.c.l.b16 %v610
      %v899 = vunpack.c.l.b16 %v611
      %v900 = vunpack.c.l.b16 %v612
      %v901 = vunpack.c.l.b16 %v613
      %v902 = vunpack.c.l.b16 %v614
      %v903 = vunpack.c.l.b16 %v615
      %v904 = vunpack.c.l.b16 %v616
      %v905 = vunpack.c.l.b16 %v617
      %v906 = vunpack.c.l.b16 %v618
      %v907 = vunpack.c.l.b16 %v619
      %v908 = vunpack.c.l.b16 %v620
      %v909 = vunpack.c.l.b16 %v621
      %v910 = vunpack.c.l.b16 %v622
      %v911 = vunpack.c.l.b16 %v623
      %v912 = vunpack.c.l.b16 %v624
      %v913 = vunpack.c.l.b16 %v625
      %v914 = vunpack.c.l.b16 %v626
      %v915 = vunpack.c.l.b16 %v627
      %v916 = vunpack.c.l.b16 %v628
      %v917 = vunpack.c.l.b16 %v629
      %v918 = vunpack.c.l.b16 %v630
      %v919 = vunpack.c.l.b16 %v631
      %v920 = vunpack.c.l.b16 %v632
      %v921 = vunpack.c.l.b16 %v633
      %v922 = vunpack.c.l.b16 %v634
      %v923 = vunpack.c.l.b16 %v635
      %v924 = vunpack.c.l.b16 %v636
      %v925 = vunpack.c.l.b16 %v637
      %v926 = vunpack.c.l.b16 %v638
      %v927 = vunpack.c.l.b16 %v639
      %v928 = vunpack.c.l.b16 %v640
      %v929 = vunpack.c.l.b16 %v641
      %v930 = vunpack.c.l.b16 %v642
      %v931 = vunpack.c.l.b16 %v643
      %v932 = vunpack.c.l.b16 %v644
      %v933 = vunpack.c.l.b16 %v645
      %v934 = vunpack.c.l.b16 %v646
      %v935 = vunpack.c.l.b16 %v647
      %v936 = vunpack.c.l.b16 %v648
      %v937 = vunpack.c.l.b16 %v649
      %v938 = vunpack.c.l.b16 %v650
      %v939 = vpack.c.b16 %v812, %v811
      %v940 = vpack.c.b16 %v814, %v813
      %v941 = vpack.c.b16 %v816, %v815
      %v942 = vpack.c.b16 %v818, %v817
      %v943 = vpack.c.b16 %v820, %v819
      %v944 = vpack.c.b16 %v822, %v821
      %v945 = vpack.c.b16 %v824, %v823
      %v946 = vpack.c.b16 %v826, %v825
      %v947 = vpack.c.b16 %v828, %v827
      %v948 = vpack.c.b16 %v830, %v829
      %v949 = vpack.c.b16 %v832, %v831
      %v950 = vpack.c.b16 %v834, %v833
      %v951 = vpack.c.b16 %v836, %v835
      %v952 = vpack.c.b16 %v838, %v837
      %v953 = vpack.c.b16 %v840, %v839
      %v954 = vpack.c.b16 %v842, %v841
      %v955 = vpack.c.b16 %v844, %v843
      %v956 = vpack.c.b16 %v846, %v845
      %v957 = vpack.c.b16 %v848, %v847
      %v958 = vpack.c.b16 %v850, %v849
      %v959 = vpack.c.b16 %v852, %v851
      %v960 = vpack.c.b16 %v854, %v853
      %v961 = vpack.c.b16 %v856, %v855
      %v962 = vpack.c.b16 %v858, %v857
      %v963 = vpack.c.b16 %v860, %v859
      %v964 = vpack.c.b16 %v862, %v861
      %v965 = vpack.c.b16 %v864, %v863
      %v966 = vpack.c.b16 %v866, %v865
      %v967 = vpack.c.b16 %v868, %v867
      %v968 = vpack.c.b16 %v870, %v869
      %v969 = vpack.c.b16 %v872, %v871
      %v970 = vpack.c.b16 %v874, %v873
      %v971 = vpack.c.b16 %v876, %v875
      %v972 = vpack.c.b16 %v878, %v877
      %v973 = vpack.c.b16 %v880, %v879
      %v974 = vpack.c.b16 %v882, %v881
      %v975 = vpack.c.b16 %v884, %v883
      %v976 = vpack.c.b16 %v886, %v885
      %v977 = vpack.c.b16 %v888, %v887
      %v978 = vpack.c.b16 %v890, %v889
      %v979 = vpack.c.b16 %v892, %v891
      %v980 = vpack.c.b16 %v894, %v893
      %v981 = vpack.c.b16 %v896, %v895
      %v982 = vpack.c.b16 %v898, %v897
      %v983 = vpack.c.b16 %v900, %v899
      %v984 = vpack.c.b16 %v902, %v901
      %v985 = vpack.c.b16 %v904, %v903
      %v986 = vpack.c.b16 %v906, %v905
      %v987 = vpack.c.b16 %v908, %v907
      %v988 = vpack.c.b16 %v910, %v909
      %v989 = vpack.c.b16 %v912, %v911
      %v990 = vpack.c.b16 %v914, %v913
      %v991 = vpack.c.b16 %v916, %v915
      %v992 = vpack.c.b16 %v918, %v917
      %v993 = vpack.c.b16 %v920, %v919
      %v994 = vpack.c.b16 %v922, %v921
      %v995 = vpack.c.b16 %v924, %v923
      %v996 = vpack.c.b16 %v926, %v925
      %v997 = vpack.c.b16 %v928, %v927
      %v998 = vpack.c.b16 %v930, %v929
      %v999 = vpack.c.b16 %v932, %v931
      %v1000 = vpack.c.b16 %v934, %v933
      %v1001 = vpack.c.b16 %v936, %v935
      %v1002 = vpack.c.b16 %v938, %v937
      %1067 = vmatprep.subr.bf16.mxu0 0
      %1068 = vmatpush1.bf16.msra.mxu0 %v939
      %1069 = vmatprep.subr.bf16.mxu0 0
      %1070 = vmatpush1.bf16.msra.mxu0 %v940
      %1071 = vmatprep.subr.bf16.mxu0 0
      %1072 = vmatpush1.bf16.msra.mxu0 %v941
      %1073 = vmatprep.subr.bf16.mxu0 0
      %1074 = vmatpush1.bf16.msra.mxu0 %v942
      %1075 = vmatprep.subr.bf16.mxu0 0
      %1076 = vmatpush1.bf16.msra.mxu0 %v943
      %1077 = vmatprep.subr.bf16.mxu0 0
      %1078 = vmatpush1.bf16.msra.mxu0 %v944
      %1079 = vmatprep.subr.bf16.mxu0 0
      %1080 = vmatpush1.bf16.msra.mxu0 %v945
      %1081 = vmatprep.subr.bf16.mxu0 0
      %1082 = vmatpush1.bf16.msra.mxu0 %v946
      %1083 = vmatprep.subr.bf16.mxu0 0
      %1084 = vmatpush1.bf16.msra.mxu0 %v947
      %1085 = vmatprep.subr.bf16.mxu0 0
      %1086 = vmatpush1.bf16.msra.mxu0 %v948
      %1087 = vmatprep.subr.bf16.mxu0 0
      %1088 = vmatpush1.bf16.msra.mxu0 %v949
      %1089 = vmatprep.subr.bf16.mxu0 0
      %1090 = vmatpush1.bf16.msra.mxu0 %v950
      %1091 = vmatprep.subr.bf16.mxu0 0
      %1092 = vmatpush1.bf16.msra.mxu0 %v951
      %1093 = vmatprep.subr.bf16.mxu0 0
      %1094 = vmatpush1.bf16.msra.mxu0 %v952
      %1095 = vmatprep.subr.bf16.mxu0 0
      %1096 = vmatpush1.bf16.msra.mxu0 %v953
      %1097 = vmatprep.subr.bf16.mxu0 0
      %1098 = vmatpush1.bf16.msra.mxu0 %v954
      %1099 = vmatprep.mubr.bf16.mxu0 %v655
      %1100 = vmatmul.mubr.bf16.gmra.mrb[0].mxu0 %v652
      %v1101 = vpop.f32.mrb[0].mxu0
      %v1102 = vadd.f32 0.0, %v1101
      %v1103 = vpop.f32.mrb[0].mxu0
      %v1104 = vpop.f32.mrb[0].mxu0
      %v1105 = vpop.f32.mrb[0].mxu0
      %1106 = vdwg.mxu0
      %1107 = vmatprep.subr.bf16.mxu0 0
      %1108 = vmatpush1.bf16.msra.mxu0 %v955
      %1109 = vmatprep.subr.bf16.mxu0 0
      %1110 = vmatpush1.bf16.msra.mxu0 %v956
      %1111 = vmatprep.subr.bf16.mxu0 0
      %1112 = vmatpush1.bf16.msra.mxu0 %v957
      %1113 = vmatprep.subr.bf16.mxu0 0
      %1114 = vmatpush1.bf16.msra.mxu0 %v958
      %1115 = vmatprep.subr.bf16.mxu0 0
      %1116 = vmatpush1.bf16.msra.mxu0 %v959
      %1117 = vmatprep.subr.bf16.mxu0 0
      %1118 = vmatpush1.bf16.msra.mxu0 %v960
      %1119 = vmatprep.subr.bf16.mxu0 0
      %1120 = vmatpush1.bf16.msra.mxu0 %v961
      %1121 = vmatprep.subr.bf16.mxu0 0
      %1122 = vmatpush1.bf16.msra.mxu0 %v962
      %1123 = vmatprep.subr.bf16.mxu0 0
      %1124 = vmatpush1.bf16.msra.mxu0 %v963
      %1125 = vmatprep.subr.bf16.mxu0 0
      %1126 = vmatpush1.bf16.msra.mxu0 %v964
      %1127 = vmatprep.subr.bf16.mxu0 0
      %1128 = vmatpush1.bf16.msra.mxu0 %v965
      %1129 = vmatprep.subr.bf16.mxu0 0
      %1130 = vmatpush1.bf16.msra.mxu0 %v966
      %1131 = vmatprep.subr.bf16.mxu0 0
      %1132 = vmatpush1.bf16.msra.mxu0 %v967
      %1133 = vmatprep.subr.bf16.mxu0 0
      %1134 = vmatpush1.bf16.msra.mxu0 %v968
      %1135 = vmatprep.subr.bf16.mxu0 0
      %1136 = vmatpush1.bf16.msra.mxu0 %v969
      %1137 = vmatprep.subr.bf16.mxu0 0
      %1138 = vmatpush1.bf16.msra.mxu0 %v970
      %1139 = vmatprep.mubr.bf16.mxu0 %v661
      %1140 = vmatmul.mubr.bf16.gmra.mrb[0].mxu0 %v658
      %v1141 = vpop.f32.mrb[0].mxu0
      %v1142 = vadd.f32 %v1102, %v1141
      %v1143 = vpop.f32.mrb[0].mxu0
      %v1144 = vpop.f32.mrb[0].mxu0
      %v1145 = vpop.f32.mrb[0].mxu0
      %1146 = vdwg.mxu0
      %1147 = vmatprep.subr.bf16.mxu0 0
      %1148 = vmatpush1.bf16.msra.mxu0 %v971
      %1149 = vmatprep.subr.bf16.mxu0 0
      %1150 = vmatpush1.bf16.msra.mxu0 %v972
      %1151 = vmatprep.subr.bf16.mxu0 0
      %1152 = vmatpush1.bf16.msra.mxu0 %v973
      %1153 = vmatprep.subr.bf16.mxu0 0
      %1154 = vmatpush1.bf16.msra.mxu0 %v974
      %1155 = vmatprep.subr.bf16.mxu0 0
      %1156 = vmatpush1.bf16.msra.mxu0 %v975
      %1157 = vmatprep.subr.bf16.mxu0 0
      %1158 = vmatpush1.bf16.msra.mxu0 %v976
      %1159 = vmatprep.subr.bf16.mxu0 0
      %1160 = vmatpush1.bf16.msra.mxu0 %v977
      %1161 = vmatprep.subr.bf16.mxu0 0
      %1162 = vmatpush1.bf16.msra.mxu0 %v978
      %1163 = vmatprep.subr.bf16.mxu0 0
      %1164 = vmatpush1.bf16.msra.mxu0 %v979
      %1165 = vmatprep.subr.bf16.mxu0 0
      %1166 = vmatpush1.bf16.msra.mxu0 %v980
      %1167 = vmatprep.subr.bf16.mxu0 0
      %1168 = vmatpush1.bf16.msra.mxu0 %v981
      %1169 = vmatprep.subr.bf16.mxu0 0
      %1170 = vmatpush1.bf16.msra.mxu0 %v982
      %1171 = vmatprep.subr.bf16.mxu0 0
      %1172 = vmatpush1.bf16.msra.mxu0 %v983
      %1173 = vmatprep.subr.bf16.mxu0 0
      %1174 = vmatpush1.bf16.msra.mxu0 %v984
      %1175 = vmatprep.subr.bf16.mxu0 0
      %1176 = vmatpush1.bf16.msra.mxu0 %v985
      %1177 = vmatprep.subr.bf16.mxu0 0
      %1178 = vmatpush1.bf16.msra.mxu0 %v986
      %1179 = vmatprep.mubr.bf16.mxu0 %v667
      %1180 = vmatmul.mubr.bf16.gmra.mrb[0].mxu0 %v664
      %v1181 = vpop.f32.mrb[0].mxu0
      %v1182 = vadd.f32 %v1142, %v1181
      %v1183 = vpop.f32.mrb[0].mxu0
      %v1184 = vpop.f32.mrb[0].mxu0
      %v1185 = vpop.f32.mrb[0].mxu0
      %1186 = vdwg.mxu0
      %1187 = vmatprep.subr.bf16.mxu0 0
      %1188 = vmatpush1.bf16.msra.mxu0 %v987
      %1189 = vmatprep.subr.bf16.mxu0 0
      %1190 = vmatpush1.bf16.msra.mxu0 %v988
      %1191 = vmatprep.subr.bf16.mxu0 0
      %1192 = vmatpush1.bf16.msra.mxu0 %v989
      %1193 = vmatprep.subr.bf16.mxu0 0
      %1194 = vmatpush1.bf16.msra.mxu0 %v990
      %1195 = vmatprep.subr.bf16.mxu0 0
      %1196 = vmatpush1.bf16.msra.mxu0 %v991
      %1197 = vmatprep.subr.bf16.mxu0 0
      %1198 = vmatpush1.bf16.msra.mxu0 %v992
      %1199 = vmatprep.subr.bf16.mxu0 0
      %1200 = vmatpush1.bf16.msra.mxu0 %v993
      %1201 = vmatprep.subr.bf16.mxu0 0
      %1202 = vmatpush1.bf16.msra.mxu0 %v994
      %1203 = vmatprep.subr.bf16.mxu0 0
      %1204 = vmatpush1.bf16.msra.mxu0 %v995
      %1205 = vmatprep.subr.bf16.mxu0 0
      %1206 = vmatpush1.bf16.msra.mxu0 %v996
      %1207 = vmatprep.subr.bf16.mxu0 0
      %1208 = vmatpush1.bf16.msra.mxu0 %v997
      %1209 = vmatprep.subr.bf16.mxu0 0
      %1210 = vmatpush1.bf16.msra.mxu0 %v998
      %1211 = vmatprep.subr.bf16.mxu0 0
      %1212 = vmatpush1.bf16.msra.mxu0 %v999
      %1213 = vmatprep.subr.bf16.mxu0 0
      %1214 = vmatpush1.bf16.msra.mxu0 %v1000
      %1215 = vmatprep.subr.bf16.mxu0 0
      %1216 = vmatpush1.bf16.msra.mxu0 %v1001
      %1217 = vmatprep.subr.bf16.mxu0 0
      %1218 = vmatpush1.bf16.msra.mxu0 %v1002
      %1219 = vmatprep.mubr.bf16.mxu0 %v673
      %1220 = vmatmul.mubr.bf16.gmra.mrb[0].mxu0 %v670
      %v1221 = vpop.f32.mrb[0].mxu0
      %v1222 = vadd.f32 %v1182, %v1221
      %v1223 = vpop.f32.mrb[0].mxu0
      %v1224 = vpop.f32.mrb[0].mxu0
      %v1225 = vpop.f32.mrb[0].mxu0
      %1226 = vdwg.mxu0
      %v1355 = vunpack.c.l.b16 %v395
      %v1356 = vunpack.c.l.b16 %v396
      %v1357 = vunpack.c.l.b16 %v397
      %v1358 = vunpack.c.l.b16 %v398
      %v1359 = vunpack.c.l.b16 %v399
      %v1360 = vunpack.c.l.b16 %v400
      %v1361 = vunpack.c.l.b16 %v401
      %v1362 = vunpack.c.l.b16 %v402
      %v1363 = vunpack.c.l.b16 %v403
      %v1364 = vunpack.c.l.b16 %v404
      %v1365 = vunpack.c.l.b16 %v405
      %v1366 = vunpack.c.l.b16 %v406
      %v1367 = vunpack.c.l.b16 %v407
      %v1368 = vunpack.c.l.b16 %v408
      %v1369 = vunpack.c.l.b16 %v409
      %v1370 = vunpack.c.l.b16 %v410
      %v1371 = vunpack.c.l.b16 %v411
      %v1372 = vunpack.c.l.b16 %v412
      %v1373 = vunpack.c.l.b16 %v413
      %v1374 = vunpack.c.l.b16 %v414
      %v1375 = vunpack.c.l.b16 %v415
      %v1376 = vunpack.c.l.b16 %v416
      %v1377 = vunpack.c.l.b16 %v417
      %v1378 = vunpack.c.l.b16 %v418
      %v1379 = vunpack.c.l.b16 %v419
      %v1380 = vunpack.c.l.b16 %v420
      %v1381 = vunpack.c.l.b16 %v421
      %v1382 = vunpack.c.l.b16 %v422
      %v1383 = vunpack.c.l.b16 %v423
      %v1384 = vunpack.c.l.b16 %v424
      %v1385 = vunpack.c.l.b16 %v425
      %v1386 = vunpack.c.l.b16 %v426
      %v1387 = vunpack.c.l.b16 %v427
      %v1388 = vunpack.c.l.b16 %v428
      %v1389 = vunpack.c.l.b16 %v429
      %v1390 = vunpack.c.l.b16 %v430
      %v1391 = vunpack.c.l.b16 %v431
      %v1392 = vunpack.c.l.b16 %v432
      %v1393 = vunpack.c.l.b16 %v433
      %v1394 = vunpack.c.l.b16 %v434
      %v1395 = vunpack.c.l.b16 %v435
      %v1396 = vunpack.c.l.b16 %v436
      %v1397 = vunpack.c.l.b16 %v437
      %v1398 = vunpack.c.l.b16 %v438
      %v1399 = vunpack.c.l.b16 %v439
      %v1400 = vunpack.c.l.b16 %v440
      %v1401 = vunpack.c.l.b16 %v441
      %v1402 = vunpack.c.l.b16 %v442
      %v1403 = vunpack.c.l.b16 %v443
      %v1404 = vunpack.c.l.b16 %v444
      %v1405 = vunpack.c.l.b16 %v445
      %v1406 = vunpack.c.l.b16 %v446
      %v1407 = vunpack.c.l.b16 %v447
      %v1408 = vunpack.c.l.b16 %v448
      %v1409 = vunpack.c.l.b16 %v449
      %v1410 = vunpack.c.l.b16 %v450
      %v1411 = vunpack.c.l.b16 %v451
      %v1412 = vunpack.c.l.b16 %v452
      %v1413 = vunpack.c.l.b16 %v453
      %v1414 = vunpack.c.l.b16 %v454
      %v1415 = vunpack.c.l.b16 %v455
      %v1416 = vunpack.c.l.b16 %v456
      %v1417 = vunpack.c.l.b16 %v457
      %v1418 = vunpack.c.l.b16 %v458
      %v1419 = vunpack.c.l.b16 %v459
      %v1420 = vunpack.c.l.b16 %v460
      %v1421 = vunpack.c.l.b16 %v461
      %v1422 = vunpack.c.l.b16 %v462
      %v1423 = vunpack.c.l.b16 %v463
      %v1424 = vunpack.c.l.b16 %v464
      %v1425 = vunpack.c.l.b16 %v465
      %v1426 = vunpack.c.l.b16 %v466
      %v1427 = vunpack.c.l.b16 %v467
      %v1428 = vunpack.c.l.b16 %v468
      %v1429 = vunpack.c.l.b16 %v469
      %v1430 = vunpack.c.l.b16 %v470
      %v1431 = vunpack.c.l.b16 %v471
      %v1432 = vunpack.c.l.b16 %v472
      %v1433 = vunpack.c.l.b16 %v473
      %v1434 = vunpack.c.l.b16 %v474
      %v1435 = vunpack.c.l.b16 %v475
      %v1436 = vunpack.c.l.b16 %v476
      %v1437 = vunpack.c.l.b16 %v477
      %v1438 = vunpack.c.l.b16 %v478
      %v1439 = vunpack.c.l.b16 %v479
      %v1440 = vunpack.c.l.b16 %v480
      %v1441 = vunpack.c.l.b16 %v481
      %v1442 = vunpack.c.l.b16 %v482
      %v1443 = vunpack.c.l.b16 %v483
      %v1444 = vunpack.c.l.b16 %v484
      %v1445 = vunpack.c.l.b16 %v485
      %v1446 = vunpack.c.l.b16 %v486
      %v1447 = vunpack.c.l.b16 %v487
      %v1448 = vunpack.c.l.b16 %v488
      %v1449 = vunpack.c.l.b16 %v489
      %v1450 = vunpack.c.l.b16 %v490
      %v1451 = vunpack.c.l.b16 %v491
      %v1452 = vunpack.c.l.b16 %v492
      %v1453 = vunpack.c.l.b16 %v493
      %v1454 = vunpack.c.l.b16 %v494
      %v1455 = vunpack.c.l.b16 %v495
      %v1456 = vunpack.c.l.b16 %v496
      %v1457 = vunpack.c.l.b16 %v497
      %v1458 = vunpack.c.l.b16 %v498
      %v1459 = vunpack.c.l.b16 %v499
      %v1460 = vunpack.c.l.b16 %v500
      %v1461 = vunpack.c.l.b16 %v501
      %v1462 = vunpack.c.l.b16 %v502
      %v1463 = vunpack.c.l.b16 %v503
      %v1464 = vunpack.c.l.b16 %v504
      %v1465 = vunpack.c.l.b16 %v505
      %v1466 = vunpack.c.l.b16 %v506
      %v1467 = vunpack.c.l.b16 %v507
      %v1468 = vunpack.c.l.b16 %v508
      %v1469 = vunpack.c.l.b16 %v509
      %v1470 = vunpack.c.l.b16 %v510
      %v1471 = vunpack.c.l.b16 %v511
      %v1472 = vunpack.c.l.b16 %v512
      %v1473 = vunpack.c.l.b16 %v513
      %v1474 = vunpack.c.l.b16 %v514
      %v1475 = vunpack.c.l.b16 %v515
      %v1476 = vunpack.c.l.b16 %v516
      %v1477 = vunpack.c.l.b16 %v517
      %v1478 = vunpack.c.l.b16 %v518
      %v1479 = vunpack.c.l.b16 %v519
      %v1480 = vunpack.c.l.b16 %v520
      %v1481 = vunpack.c.l.b16 %v521
      %v1482 = vunpack.c.l.b16 %v522
      %v1483 = vpack.c.b16 %v1356, %v1355
      %v1484 = vpack.c.b16 %v1358, %v1357
      %v1485 = vpack.c.b16 %v1360, %v1359
      %v1486 = vpack.c.b16 %v1362, %v1361
      %v1487 = vpack.c.b16 %v1364, %v1363
      %v1488 = vpack.c.b16 %v1366, %v1365
      %v1489 = vpack.c.b16 %v1368, %v1367
      %v1490 = vpack.c.b16 %v1370, %v1369
      %v1491 = vpack.c.b16 %v1372, %v1371
      %v1492 = vpack.c.b16 %v1374, %v1373
      %v1493 = vpack.c.b16 %v1376, %v1375
      %v1494 = vpack.c.b16 %v1378, %v1377
      %v1495 = vpack.c.b16 %v1380, %v1379
      %v1496 = vpack.c.b16 %v1382, %v1381
      %v1497 = vpack.c.b16 %v1384, %v1383
      %v1498 = vpack.c.b16 %v1386, %v1385
      %v1499 = vpack.c.b16 %v1388, %v1387
      %v1500 = vpack.c.b16 %v1390, %v1389
      %v1501 = vpack.c.b16 %v1392, %v1391
      %v1502 = vpack.c.b16 %v1394, %v1393
      %v1503 = vpack.c.b16 %v1396, %v1395
      %v1504 = vpack.c.b16 %v1398, %v1397
      %v1505 = vpack.c.b16 %v1400, %v1399
      %v1506 = vpack.c.b16 %v1402, %v1401
      %v1507 = vpack.c.b16 %v1404, %v1403
      %v1508 = vpack.c.b16 %v1406, %v1405
      %v1509 = vpack.c.b16 %v1408, %v1407
      %v1510 = vpack.c.b16 %v1410, %v1409
      %v1511 = vpack.c.b16 %v1412, %v1411
      %v1512 = vpack.c.b16 %v1414, %v1413
      %v1513 = vpack.c.b16 %v1416, %v1415
      %v1514 = vpack.c.b16 %v1418, %v1417
      %v1515 = vpack.c.b16 %v1420, %v1419
      %v1516 = vpack.c.b16 %v1422, %v1421
      %v1517 = vpack.c.b16 %v1424, %v1423
      %v1518 = vpack.c.b16 %v1426, %v1425
      %v1519 = vpack.c.b16 %v1428, %v1427
      %v1520 = vpack.c.b16 %v1430, %v1429
      %v1521 = vpack.c.b16 %v1432, %v1431
      %v1522 = vpack.c.b16 %v1434, %v1433
      %v1523 = vpack.c.b16 %v1436, %v1435
      %v1524 = vpack.c.b16 %v1438, %v1437
      %v1525 = vpack.c.b16 %v1440, %v1439
      %v1526 = vpack.c.b16 %v1442, %v1441
      %v1527 = vpack.c.b16 %v1444, %v1443
      %v1528 = vpack.c.b16 %v1446, %v1445
      %v1529 = vpack.c.b16 %v1448, %v1447
      %v1530 = vpack.c.b16 %v1450, %v1449
      %v1531 = vpack.c.b16 %v1452, %v1451
      %v1532 = vpack.c.b16 %v1454, %v1453
      %v1533 = vpack.c.b16 %v1456, %v1455
      %v1534 = vpack.c.b16 %v1458, %v1457
      %v1535 = vpack.c.b16 %v1460, %v1459
      %v1536 = vpack.c.b16 %v1462, %v1461
      %v1537 = vpack.c.b16 %v1464, %v1463
      %v1538 = vpack.c.b16 %v1466, %v1465
      %v1539 = vpack.c.b16 %v1468, %v1467
      %v1540 = vpack.c.b16 %v1470, %v1469
      %v1541 = vpack.c.b16 %v1472, %v1471
      %v1542 = vpack.c.b16 %v1474, %v1473
      %v1543 = vpack.c.b16 %v1476, %v1475
      %v1544 = vpack.c.b16 %v1478, %v1477
      %v1545 = vpack.c.b16 %v1480, %v1479
      %v1546 = vpack.c.b16 %v1482, %v1481
      %1611 = vmatprep.subr.bf16.mxu0 0
      %1612 = vmatpush1.bf16.msra.mxu0 %v1483
      %1613 = vmatprep.subr.bf16.mxu0 0
      %1614 = vmatpush1.bf16.msra.mxu0 %v1484
      %1615 = vmatprep.subr.bf16.mxu0 0
      %1616 = vmatpush1.bf16.msra.mxu0 %v1485
      %1617 = vmatprep.subr.bf16.mxu0 0
      %1618 = vmatpush1.bf16.msra.mxu0 %v1486
      %1619 = vmatprep.subr.bf16.mxu0 0
      %1620 = vmatpush1.bf16.msra.mxu0 %v1487
      %1621 = vmatprep.subr.bf16.mxu0 0
      %1622 = vmatpush1.bf16.msra.mxu0 %v1488
      %1623 = vmatprep.subr.bf16.mxu0 0
      %1624 = vmatpush1.bf16.msra.mxu0 %v1489
      %1625 = vmatprep.subr.bf16.mxu0 0
      %1626 = vmatpush1.bf16.msra.mxu0 %v1490
      %1627 = vmatprep.subr.bf16.mxu0 0
      %1628 = vmatpush1.bf16.msra.mxu0 %v1491
      %1629 = vmatprep.subr.bf16.mxu0 0
      %1630 = vmatpush1.bf16.msra.mxu0 %v1492
      %1631 = vmatprep.subr.bf16.mxu0 0
      %1632 = vmatpush1.bf16.msra.mxu0 %v1493
      %1633 = vmatprep.subr.bf16.mxu0 0
      %1634 = vmatpush1.bf16.msra.mxu0 %v1494
      %1635 = vmatprep.subr.bf16.mxu0 0
      %1636 = vmatpush1.bf16.msra.mxu0 %v1495
      %1637 = vmatprep.subr.bf16.mxu0 0
      %1638 = vmatpush1.bf16.msra.mxu0 %v1496
      %1639 = vmatprep.subr.bf16.mxu0 0
      %1640 = vmatpush1.bf16.msra.mxu0 %v1497
      %1641 = vmatprep.subr.bf16.mxu0 0
      %1642 = vmatpush1.bf16.msra.mxu0 %v1498
      %1643 = vmatprep.mubr.bf16.mxu0 %v317
      %1644 = vmatmul.mubr.bf16.gmra.mrb[0].mxu0 %v310
      %v1645 = vpop.f32.mrb[0].mxu0
      %v1646 = vadd.f32 %v1222, %v1645
      %v1647 = vpop.f32.mrb[0].mxu0
      %v1648 = vpop.f32.mrb[0].mxu0
      %v1649 = vpop.f32.mrb[0].mxu0
      %1650 = vdwg.mxu0
      %1651 = vmatprep.subr.bf16.mxu0 0
      %1652 = vmatpush1.bf16.msra.mxu0 %v1499
      %1653 = vmatprep.subr.bf16.mxu0 0
      %1654 = vmatpush1.bf16.msra.mxu0 %v1500
      %1655 = vmatprep.subr.bf16.mxu0 0
      %1656 = vmatpush1.bf16.msra.mxu0 %v1501
      %1657 = vmatprep.subr.bf16.mxu0 0
      %1658 = vmatpush1.bf16.msra.mxu0 %v1502
      %1659 = vmatprep.subr.bf16.mxu0 0
      %1660 = vmatpush1.bf16.msra.mxu0 %v1503
      %1661 = vmatprep.subr.bf16.mxu0 0
      %1662 = vmatpush1.bf16.msra.mxu0 %v1504
      %1663 = vmatprep.subr.bf16.mxu0 0
      %1664 = vmatpush1.bf16.msra.mxu0 %v1505
      %1665 = vmatprep.subr.bf16.mxu0 0
      %1666 = vmatpush1.bf16.msra.mxu0 %v1506
      %1667 = vmatprep.subr.bf16.mxu0 0
      %1668 = vmatpush1.bf16.msra.mxu0 %v1507
      %1669 = vmatprep.subr.bf16.mxu0 0
      %1670 = vmatpush1.bf16.msra.mxu0 %v1508
      %1671 = vmatprep.subr.bf16.mxu0 0
      %1672 = vmatpush1.bf16.msra.mxu0 %v1509
      %1673 = vmatprep.subr.bf16.mxu0 0
      %1674 = vmatpush1.bf16.msra.mxu0 %v1510
      %1675 = vmatprep.subr.bf16.mxu0 0
      %1676 = vmatpush1.bf16.msra.mxu0 %v1511
      %1677 = vmatprep.subr.bf16.mxu0 0
      %1678 = vmatpush1.bf16.msra.mxu0 %v1512
      %1679 = vmatprep.subr.bf16.mxu0 0
      %1680 = vmatpush1.bf16.msra.mxu0 %v1513
      %1681 = vmatprep.subr.bf16.mxu0 0
      %1682 = vmatpush1.bf16.msra.mxu0 %v1514
      %1683 = vmatprep.mubr.bf16.mxu0 %v342
      %1684 = vmatmul.mubr.bf16.gmra.mrb[0].mxu0 %v335
      %v1685 = vpop.f32.mrb[0].mxu0
      %v1686 = vadd.f32 %v1646, %v1685
      %v1687 = vpop.f32.mrb[0].mxu0
      %v1688 = vpop.f32.mrb[0].mxu0
      %v1689 = vpop.f32.mrb[0].mxu0
      %1690 = vdwg.mxu0
      %1691 = vmatprep.subr.bf16.mxu0 0
      %1692 = vmatpush1.bf16.msra.mxu0 %v1515
      %1693 = vmatprep.subr.bf16.mxu0 0
      %1694 = vmatpush1.bf16.msra.mxu0 %v1516
      %1695 = vmatprep.subr.bf16.mxu0 0
      %1696 = vmatpush1.bf16.msra.mxu0 %v1517
      %1697 = vmatprep.subr.bf16.mxu0 0
      %1698 = vmatpush1.bf16.msra.mxu0 %v1518
      %1699 = vmatprep.subr.bf16.mxu0 0
      %1700 = vmatpush1.bf16.msra.mxu0 %v1519
      %1701 = vmatprep.subr.bf16.mxu0 0
      %1702 = vmatpush1.bf16.msra.mxu0 %v1520
      %1703 = vmatprep.subr.bf16.mxu0 0
      %1704 = vmatpush1.bf16.msra.mxu0 %v1521
      %1705 = vmatprep.subr.bf16.mxu0 0
      %1706 = vmatpush1.bf16.msra.mxu0 %v1522
      %1707 = vmatprep.subr.bf16.mxu0 0
      %1708 = vmatpush1.bf16.msra.mxu0 %v1523
      %1709 = vmatprep.subr.bf16.mxu0 0
      %1710 = vmatpush1.bf16.msra.mxu0 %v1524
      %1711 = vmatprep.subr.bf16.mxu0 0
      %1712 = vmatpush1.bf16.msra.mxu0 %v1525
      %1713 = vmatprep.subr.bf16.mxu0 0
      %1714 = vmatpush1.bf16.msra.mxu0 %v1526
      %1715 = vmatprep.subr.bf16.mxu0 0
      %1716 = vmatpush1.bf16.msra.mxu0 %v1527
      %1717 = vmatprep.subr.bf16.mxu0 0
      %1718 = vmatpush1.bf16.msra.mxu0 %v1528
      %1719 = vmatprep.subr.bf16.mxu0 0
      %1720 = vmatpush1.bf16.msra.mxu0 %v1529
      %1721 = vmatprep.subr.bf16.mxu0 0
      %1722 = vmatpush1.bf16.msra.mxu0 %v1530
      %1723 = vmatprep.mubr.bf16.mxu0 %v367
      %1724 = vmatmul.mubr.bf16.gmra.mrb[0].mxu0 %v360
      %v1725 = vpop.f32.mrb[0].mxu0
      %v1726 = vadd.f32 %v1686, %v1725
      %v1727 = vpop.f32.mrb[0].mxu0
      %v1728 = vpop.f32.mrb[0].mxu0
      %v1729 = vpop.f32.mrb[0].mxu0
      %1730 = vdwg.mxu0
      %1731 = vmatprep.subr.bf16.mxu0 0
      %1732 = vmatpush1.bf16.msra.mxu0 %v1531
      %1733 = vmatprep.subr.bf16.mxu0 0
      %1734 = vmatpush1.bf16.msra.mxu0 %v1532
      %1735 = vmatprep.subr.bf16.mxu0 0
      %1736 = vmatpush1.bf16.msra.mxu0 %v1533
      %1737 = vmatprep.subr.bf16.mxu0 0
      %1738 = vmatpush1.bf16.msra.mxu0 %v1534
      %1739 = vmatprep.subr.bf16.mxu0 0
      %1740 = vmatpush1.bf16.msra.mxu0 %v1535
      %1741 = vmatprep.subr.bf16.mxu0 0
      %1742 = vmatpush1.bf16.msra.mxu0 %v1536
      %1743 = vmatprep.subr.bf16.mxu0 0
      %1744 = vmatpush1.bf16.msra.mxu0 %v1537
      %1745 = vmatprep.subr.bf16.mxu0 0
      %1746 = vmatpush1.bf16.msra.mxu0 %v1538
      %1747 = vmatprep.subr.bf16.mxu0 0
      %1748 = vmatpush1.bf16.msra.mxu0 %v1539
      %1749 = vmatprep.subr.bf16.mxu0 0
      %1750 = vmatpush1.bf16.msra.mxu0 %v1540
      %1751 = vmatprep.subr.bf16.mxu0 0
      %1752 = vmatpush1.bf16.msra.mxu0 %v1541
      %1753 = vmatprep.subr.bf16.mxu0 0
      %1754 = vmatpush1.bf16.msra.mxu0 %v1542
      %1755 = vmatprep.subr.bf16.mxu0 0
      %1756 = vmatpush1.bf16.msra.mxu0 %v1543
      %1757 = vmatprep.subr.bf16.mxu0 0
      %1758 = vmatpush1.bf16.msra.mxu0 %v1544
      %1759 = vmatprep.subr.bf16.mxu0 0
      %1760 = vmatpush1.bf16.msra.mxu0 %v1545
      %1761 = vmatprep.subr.bf16.mxu0 0
      %1762 = vmatpush1.bf16.msra.mxu0 %v1546
      %1763 = vmatprep.mubr.bf16.mxu0 %v392
      %1764 = vmatmul.mubr.bf16.gmra.mrb[0].mxu0 %v385
      %v1765 = vpop.f32.mrb[0].mxu0
      %v1766 = vadd.f32 %v1726, %v1765
      %v1767 = vpop.f32.mrb[0].mxu0
      %v1768 = vpop.f32.mrb[0].mxu0
      %v1769 = vpop.f32.mrb[0].mxu0
      %1770 = vdwg.mxu0
      %v1771 = vld [vmem:[%s4] sm:$0x1]
      %v1772 = vadd.f32 %v1766, %v1771
      %1773 = vst [vmem:[%s289] sm:$0x1] %v1772
      %p1774 = scmp.lt.s32.totalorder %s20, 1
      %s1775 = scalar_select %p1774, %s20, 1
      %p1776 = scmp.lt.s32.totalorder %s21, 0
      %s1777 = scalar_select %p1776, %s21, 0
      %s1778 = sadd.s32 %s1777, %s1775
      %s1779 = scalar_lea.vmem %s5, %s1778
      // Predicated region
      $region41: #{_lambda_.9} parent=39 // pred_check
        %p1780 = pneg %p169
      $region42: #{_lambda_.9} parent=39 // pred_check_branch
        %1782 = sbr.rel (%p1780) target = $region44
      $region43: #{_lambda_.9} parent=39 // pred_region
        _
      $region44: #{_lambda_.9} parent=39 // pred_fallthru
        _
    $region40: #{_lambda_.9} parent=5 // pred_fallthru
      _
    %p1783 = scmp.le.s32.totalorder 2, %s11
    // Predicated region
    $region45: #{_lambda_.9} parent=5 // pred_check
      %p1784 = pneg %p1783
    $region46: #{_lambda_.9} parent=5 // pred_check_branch
      %1786 = sbr.rel (%p1784) target = $region48
    $region47: #{_lambda_.9} parent=5 // pred_region
      %s1787 = ssub.s32 %s11, 2
      // Predicated region
      $region49: #{_lambda_.9} parent=47 // pred_check
        %p1788 = pneg %p175
      $region50: #{_lambda_.9} parent=47 // pred_check_branch
        %1790 = sbr.rel (%p1788) target = $region52
      $region51: #{_lambda_.9} parent=47 // pred_region
        %p1791 = scmp.lt.s32.totalorder %s22, 1
        %s1792 = scalar_select %p1791, %s22, 1
        %p1793 = scmp.lt.s32.totalorder %s23, 0
        %s1794 = scalar_select %p1793, %s23, 0
        %s1795 = sadd.s32 %s1794, %s1792
        %s1796 = scalar_lea.vmem %s5, %s1795
      $region52: #{_lambda_.9} parent=47 // pred_fallthru
        _
    $region48: #{_lambda_.9} parent=5 // pred_fallthru
      _
  $region6: #{_lambda_.9} parent=0 // loop_footer
    %s15 = sadd.s32 1, %s11
  $region7: #{_lambda_.9} parent=0 // loop_footer_branch
    %10 = sbr.rel target = $region3
  $region8: #{_lambda_.9} parent=0 // loop_exit
    _

</llo_original>
